<compile_context>
chip_gen: v7x
topology: tpu7x:2x2x1
jax: 0.10.0
libtpu: 0.0.40
codegen_flags: <defaults>
</compile_context>

<pallas_src>
import functools

import jax
import jax.numpy as jnp
from jax.experimental import pallas as pl
from jax.experimental.pallas import tpu as pltpu

BN_EPS = 1e-5


# ---------------------------------------------------------------------------
# VMEM budget / tile sizing
# ---------------------------------------------------------------------------
def _vmem_limit_bytes():
    """Per-generation scoped-VMEM limit (~75% of physical, capped at 100 MiB)."""
    try:
        cap = int(pltpu.get_tpu_info().vmem_capacity_bytes)
    except Exception:
        cap = 64 * 1024 * 1024          # conservative: valid on v5e/v6e/v7x
    return int(min(cap * 3 // 4, 100 * 1024 * 1024))


def _pick_h_tile(H, W, C, budget_bytes, weight_bytes, max_tile_rows=None):
    """Largest divisor of H whose per-step VMEM footprint fits the budget.

    ~20 f32 arrays of shape (TH*W, C) are live per step (double-buffered x/y/z
    and output, padded-window + xo scratch, fuse/conv temporaries) => ~80 B/elem.
    """
    avail = max(budget_bytes - weight_bytes, budget_bytes // 4)
    max_rows = max(1, avail // (80 * W * C))
    if max_tile_rows is not None:
        max_rows = min(max_rows, max_tile_rows)
    th = 1
    for t in range(1, H + 1):
        if H % t == 0 and t <= max_rows:
            th = t
    return th


# ---------------------------------------------------------------------------
# Fused kernel: grid = (B, H//TH + 1), inner axis sequential ("arbitrary").
#   step i < NT : compute xo for row tile i (MSCA gating + recombination)
#   step i >= 1 : 3x3 conv + folded BN + ReLU for output row tile i-1, using the
#                 padded-window scratch (rows [ (i-1)*TH-1 , i*TH ] of xo, with
#                 zero halo rows/cols) carried from the previous step.
#   step i < NT : shift the padded window: carry last row + current tile's xo.
# ---------------------------------------------------------------------------
def _make_fused_kernel(TH, W, C, NT):
    HWt = TH * W

    def kernel(g_ref, x_ref, y_ref, z_ref,
               wl1_ref, tl1_ref, wl2_ref, tl2_ref,
               wc_ref, tc_ref, o_ref, win_ref, xo_ref):
        i = pl.program_id(1)

        # Fresh image (or very first step): zero the padded window so the
        # top halo row and the left/right halo columns are zero padding.
        @pl.when(i == 0)
        def _init():
            win_ref[...] = jnp.zeros(win_ref.shape, win_ref.dtype)

        # ---- phase A: MSCA fusion for row tile i (skipped on the tail step) ----
        @pl.when(i < NT)
        def _fuse():
            x = x_ref[0].reshape(HWt, C)
            y = y_ref[0].reshape(HWt, C)
            z = z_ref[0].reshape(HWt, C)
            g = g_ref[0]                              # (3, C) pre-sigmoid global gates
            wl1 = wl1_ref[...]
            tl1 = tl1_ref[...]
            wl2 = wl2_ref[...]
            tl2 = tl2_ref[...]

            def gate(s, gi):
                h = jnp.dot(s, wl1, preferred_element_type=jnp.float32) + tl1
                h = jnp.maximum(h, 0.0)               # ReLU
                xl = jnp.dot(h, wl2, preferred_element_type=jnp.float32) + tl2
                return jax.nn.sigmoid(xl + g[gi:gi + 1])

            # x*(1-wei2+wei1) + y*(1-wei1+wei3) + z*(1-wei3+wei2)
            #   == (x+y+z) + wei1*(x-y) + wei2*(z-x) + wei3*(y-z)
            xo = x + y + z
            xo = xo + gate(x + y, 0) * (x - y)        # msca(x + y)
            xo = xo + gate(z + x, 1) * (z - x)        # msca(z + x)
            xo = xo + gate(y + z, 2) * (y - z)        # msca(y + z)
            xo_ref[...] = xo.reshape(TH, W, C)

        # ---- phase B: 3x3 conv (pad=1) + folded BN + ReLU for output tile i-1 ----
        @pl.when(i >= 1)
        def _conv():
            # Bottom halo row of the window: first row of the current tile's xo,
            # or zero padding on the very last (tail) step.
            top = jnp.where(i < NT, xo_ref[0], jnp.zeros((W, C), jnp.float32))
            win_ref[TH + 1, 1:W + 1] = top

            acc = jnp.zeros((HWt, C), jnp.float32)
            for kh in range(3):
                for kw in range(3):
                    sl = win_ref[kh:kh + TH, kw:kw + W, :].reshape(HWt, C)
                    acc = acc + jnp.dot(sl, wc_ref[kh * 3 + kw],
                                        preferred_element_type=jnp.float32)
            acc = jnp.maximum(acc + tc_ref[...], 0.0)  # folded BN bias + ReLU
            o_ref[0] = acc.reshape(TH, W, C)

        # ---- phase C: shift window (carry last row + current tile's xo) ----
        @pl.when(i < NT)
        def _shift():
            prev = win_ref[TH]                         # row i*TH - 1 (zeros at i == 0)
            win_ref[0] = prev
            win_ref[1:TH + 1, 1:W + 1] = xo_ref[...]

    return kernel


# ---------------------------------------------------------------------------
# Parameter construction (deterministic, synthetic) with BN folded into weights
# ---------------------------------------------------------------------------
def _fold_bn(conv_bias, gamma, beta, mean, var):
    s = gamma / jnp.sqrt(var + BN_EPS)
    t = (conv_bias - mean) * s + beta
    return s, t


def make_params(channels, r, key):
    cr = channels // r
    keys = jax.random.split(key, 32)
    ki = iter(range(32))

    def nrm(shape, scale=0.1):
        return scale * jax.random.normal(keys[next(ki)], shape, jnp.float32)

    def bn_raw(c):
        gamma = 1.0 + 0.1 * jax.random.normal(keys[next(ki)], (c,), jnp.float32)
        beta = 0.1 * jax.random.normal(keys[next(ki)], (c,), jnp.float32)
        mean = 0.1 * jax.random.normal(keys[next(ki)], (c,), jnp.float32)
        var = 0.5 + jax.random.uniform(keys[next(ki)], (c,), jnp.float32)
        return gamma, beta, mean, var

    def conv1x1_stack():
        # nn.Conv2d(C, Cr, 1) weight stored transposed as (C, Cr); BN scale folded
        # into weight columns, only the additive bias kept.
        w1 = nrm((channels, cr))
        b1 = nrm((cr,))
        s1, t1 = _fold_bn(b1, *bn_raw(cr))
        w2 = nrm((cr, channels))
        b2 = nrm((channels,))
        s2, t2 = _fold_bn(b2, *bn_raw(channels))
        return dict(w1=w1 * s1[None, :], t1=t1.reshape(1, -1),
                    w2=w2 * s2[None, :], t2=t2.reshape(1, -1))

    local = conv1x1_stack()
    glob = conv1x1_stack()

    # BasicConv2d: nn.Conv2d(C, C, 3, pad=1, bias=False) stored as (9, C_in, C_out),
    # BN scale folded into output channels.
    wc = nrm((9, channels, channels))
    sc, tc = _fold_bn(jnp.zeros((channels,), jnp.float32), *bn_raw(channels))
    conv = dict(w=wc * sc[None, None, :], t=tc.reshape(1, -1))
    return dict(local=local, glob=glob, conv=conv)


# ---------------------------------------------------------------------------
# Host-side wrapper
# ---------------------------------------------------------------------------
def acfm_forward(x_nchw, y_nchw, z_nchw, params, max_tile_rows=None):
    B, C, H, W = x_nchw.shape
    to_nhwc = lambda a: jnp.transpose(a, (0, 2, 3, 1))
    x = to_nhwc(x_nchw)
    y = to_nhwc(y_nchw)
    z = to_nhwc(z_nchw)

    L, G, Cv = params["local"], params["glob"], params["conv"]

    # Global branch hoisted out of the tiled kernel (mean is linear:
    # mean(x+y) == mean(x)+mean(y)); tiny (B,3,C) pre-sigmoid gates.
    mx = jnp.mean(x, axis=(1, 2))
    my = jnp.mean(y, axis=(1, 2))
    mz = jnp.mean(z, axis=(1, 2))
    gsum = jnp.stack([mx + my, mz + mx, my + mz], axis=1).reshape(B * 3, C)
    gh = jnp.maximum(gsum @ G["w1"] + G["t1"], 0.0)
    xg = (gh @ G["w2"] + G["t2"]).reshape(B, 3, C)

    vmem_limit = _vmem_limit_bytes()
    weight_bytes = 8 * sum(a.size for a in
                           (L["w1"], L["t1"], L["w2"], L["t2"], Cv["w"], Cv["t"]))
    TH = _pick_h_tile(H, W, C, (vmem_limit * 3) // 5, weight_bytes, max_tile_rows)
    assert H % TH == 0, (H, TH)
    NT = H // TH

    def row_spec():
        return pl.BlockSpec((1, TH, W, C),
                            lambda b, i: (b, jnp.minimum(i, NT - 1), 0, 0))

    def const_spec(a):
        return pl.BlockSpec(a.shape, lambda b, i, _nd=a.ndim: (0,) * _nd)

    out_nhwc = pl.pallas_call(
        _make_fused_kernel(TH, W, C, NT),
        out_shape=jax.ShapeDtypeStruct((B, H, W, C), jnp.float32),
        grid=(B, NT + 1),
        in_specs=[pl.BlockSpec((1, 3, C), lambda b, i: (b, 0, 0)),   # global gates
                  row_spec(), row_spec(), row_spec(),                 # x, y, z tiles
                  const_spec(L["w1"]), const_spec(L["t1"]),
                  const_spec(L["w2"]), const_spec(L["t2"]),
                  const_spec(Cv["w"]), const_spec(Cv["t"])],
        out_specs=pl.BlockSpec((1, TH, W, C),
                               lambda b, i: (b, jnp.maximum(i - 1, 0), 0, 0)),
        scratch_shapes=[pltpu.VMEM((TH + 2, W + 2, C), jnp.float32),  # padded window
                        pltpu.VMEM((TH, W, C), jnp.float32)],         # current xo tile
        compiler_params=pltpu.CompilerParams(
            dimension_semantics=("parallel", "arbitrary"),
            vmem_limit_bytes=vmem_limit),
    )(xg, x, y, z, L["w1"], L["t1"], L["w2"], L["t2"], Cv["w"], Cv["t"])

    return jnp.transpose(out_nhwc, (0, 3, 1, 2))   # back to NCHW


# ---------------------------------------------------------------------------
# Pure-JAX reference (same math, no Pallas) for validation
# ---------------------------------------------------------------------------
def _acfm_reference(x_nchw, y_nchw, z_nchw, params):
    B, C, H, W = x_nchw.shape
    HW = H * W
    to_flat = lambda a: jnp.transpose(a, (0, 2, 3, 1)).reshape(B, HW, C)
    x, y, z = to_flat(x_nchw), to_flat(y_nchw), to_flat(z_nchw)
    L, G = params["local"], params["glob"]

    def msca(s):
        s2 = s.reshape(B * HW, C)
        h = jnp.maximum(s2 @ L["w1"] + L["t1"], 0.0)
        xl = (h @ L["w2"] + L["t2"]).reshape(B, HW, C)
        g = jnp.mean(s, axis=1)
        gh = jnp.maximum(g @ G["w1"] + G["t1"], 0.0)
        xg = gh @ G["w2"] + G["t2"]
        return jax.nn.sigmoid(xl + xg[:, None, :])

    w1_, w2_, w3_ = msca(x + y), msca(z + x), msca(y + z)
    xo = (x * (1.0 - w2_ + w1_) + y * (1.0 - w1_ + w3_) + z * (1.0 - w3_ + w2_))
    xo = xo.reshape(B, H, W, C)
    xp = jnp.pad(xo, ((0, 0), (1, 1), (1, 1), (0, 0)))
    Cv = params["conv"]
    w9 = Cv["w"]                                   # (9, C, C)
    acc = jnp.zeros((B * HW, C), jnp.float32)
    for kh in range(3):
        for kw in range(3):
            acc = acc + xp[:, kh:kh + H, kw:kw + W, :].reshape(B * HW, C) @ w9[kh * 3 + kw]
    acc = jnp.maximum(acc + Cv["t"], 0.0)
    return jnp.transpose(acc.reshape(B, H, W, C), (0, 3, 1, 2))


if __name__ == "__main__":
    B, C, H, W, r = 2, 16, 16, 16, 4

    key = jax.random.PRNGKey(0)
    kx, ky, kz, kp = jax.random.split(key, 4)
    x = jax.random.normal(kx, (B, C, H, W), jnp.float32)
    y = jax.random.normal(ky, (B, C, H, W), jnp.float32)
    z = jax.random.normal(kz, (B, C, H, W), jnp.float32)
    params = make_params(C, r, kp)

    ref = _acfm_reference(x, y, z, params)

    # Default (VMEM-budget-derived) tiling: one row tile at this toy size.
    out = jax.block_until_ready(jax.jit(acfm_forward)(x, y, z, params))
    assert out.shape == (B, C, H, W), out.shape
    assert jnp.allclose(out, ref, rtol=5e-3, atol=5e-3), \
        float(jnp.max(jnp.abs(out - ref)))

    # Force multiple row tiles (4 rows/step) to exercise the halo-carry path.
    fwd_tiled = jax.jit(functools.partial(acfm_forward, max_tile_rows=4))
    out_t = jax.block_until_ready(fwd_tiled(x, y, z, params))
    assert jnp.allclose(out_t, ref, rtol=5e-3, atol=5e-3), \
        float(jnp.max(jnp.abs(out_t - ref)))

    print("KERNEL_OK")
</pallas_src>

<mosaic_0001>
module attributes {stable_mosaic.version = 11 : i64} {
  func.func @kernel(%arg0: i32, %arg1: i32, %arg2: memref<1x3x16xf32, #tpu.memory_space<vmem>>, %arg3: memref<1x16x16x16xf32, #tpu.memory_space<vmem>>, %arg4: memref<1x16x16x16xf32, #tpu.memory_space<vmem>>, %arg5: memref<1x16x16x16xf32, #tpu.memory_space<vmem>>, %arg6: memref<16x4xf32, #tpu.memory_space<vmem>>, %arg7: memref<1x4xf32, #tpu.memory_space<vmem>>, %arg8: memref<4x16xf32, #tpu.memory_space<vmem>>, %arg9: memref<1x16xf32, #tpu.memory_space<vmem>>, %arg10: memref<9x16x16xf32, #tpu.memory_space<vmem>>, %arg11: memref<1x16xf32, #tpu.memory_space<vmem>>, %arg12: memref<1x16x16x16xf32, #tpu.memory_space<vmem>>, %arg13: memref<18x18x16xf32, #tpu.memory_space<vmem>>, %arg14: memref<16x16x16xf32, #tpu.memory_space<vmem>>) attributes {dimension_semantics = [#tpu.dimension_semantics<parallel>, #tpu.dimension_semantics<arbitrary>], iteration_bounds = array<i64: 2, 2>, scalar_prefetch = 0 : i64, scratch_operands = 2 : i64, tpu.core_type = #tpu.core_type<tc>, window_params = [{transform_indices = @transform_0, window_bounds = array<i64: 1, 3, 16>}, {transform_indices = @transform_1, window_bounds = array<i64: 1, 16, 16, 16>}, {transform_indices = @transform_2, window_bounds = array<i64: 1, 16, 16, 16>}, {transform_indices = @transform_3, window_bounds = array<i64: 1, 16, 16, 16>}, {pipeline_mode = #tpu.pipeline_mode<synchronous>, transform_indices = @transform_4, window_bounds = array<i64: 16, 4>}, {pipeline_mode = #tpu.pipeline_mode<synchronous>, transform_indices = @transform_5, window_bounds = array<i64: 1, 4>}, {pipeline_mode = #tpu.pipeline_mode<synchronous>, transform_indices = @transform_6, window_bounds = array<i64: 4, 16>}, {pipeline_mode = #tpu.pipeline_mode<synchronous>, transform_indices = @transform_7, window_bounds = array<i64: 1, 16>}, {pipeline_mode = #tpu.pipeline_mode<synchronous>, transform_indices = @transform_8, window_bounds = array<i64: 9, 16, 16>}, {pipeline_mode = #tpu.pipeline_mode<synchronous>, transform_indices = @transform_9, window_bounds = array<i64: 1, 16>}, {transform_indices = @transform_10, window_bounds = array<i64: 1, 16, 16, 16>}]} {
    %c0_i32 = arith.constant 0 : i32
    %0 = arith.cmpi eq, %arg1, %c0_i32 : i32
    %1 = arith.extui %0 : i1 to i32
    %c0_i32_0 = arith.constant 0 : i32
    %2 = arith.cmpi ne, %1, %c0_i32_0 : i32
    scf.if %2 {
      %cst = arith.constant 0.000000e+00 : f32
      %12 = vector.broadcast %cst : f32 to vector<18x18x16xf32>
      %c0 = arith.constant 0 : index
      %c0_6 = arith.constant 0 : index
      %c0_7 = arith.constant 0 : index
      %13 = vector.load %arg13[%c0, %c0_6, %c0_7] : memref<18x18x16xf32, #tpu.memory_space<vmem>>, vector<18x18x16xf32>
      tpu.vector_store %arg13[%c0, %c0_6, %c0_7], %12 {strides = array<i32>} : memref<18x18x16xf32, #tpu.memory_space<vmem>>, vector<18x18x16xf32>,
    } else {
    }
    %c1_i32 = arith.constant 1 : i32
    %3 = arith.cmpi slt, %arg1, %c1_i32 : i32
    %4 = arith.extui %3 : i1 to i32
    %c0_i32_1 = arith.constant 0 : i32
    %5 = arith.cmpi ne, %4, %c0_i32_1 : i32
    scf.if %5 {
      %c0 = arith.constant 0 : index
      %c0_6 = arith.constant 0 : index
      %c0_7 = arith.constant 0 : index
      %c0_8 = arith.constant 0 : index
      %12 = vector.load %arg3[%c0, %c0_6, %c0_7, %c0_8] : memref<1x16x16x16xf32, #tpu.memory_space<vmem>>, vector<1x16x16x16xf32>
      %13 = vector.shape_cast %12 : vector<1x16x16x16xf32> to vector<16x16x16xf32>
      %14 = vector.shape_cast %13 : vector<16x16x16xf32> to vector<256x16xf32>
      %c0_9 = arith.constant 0 : index
      %c0_10 = arith.constant 0 : index
      %c0_11 = arith.constant 0 : index
      %c0_12 = arith.constant 0 : index
      %15 = vector.load %arg4[%c0_9, %c0_10, %c0_11, %c0_12] : memref<1x16x16x16xf32, #tpu.memory_space<vmem>>, vector<1x16x16x16xf32>
      %16 = vector.shape_cast %15 : vector<1x16x16x16xf32> to vector<16x16x16xf32>
      %17 = vector.shape_cast %16 : vector<16x16x16xf32> to vector<256x16xf32>
      %c0_13 = arith.constant 0 : index
      %c0_14 = arith.constant 0 : index
      %c0_15 = arith.constant 0 : index
      %c0_16 = arith.constant 0 : index
      %18 = vector.load %arg5[%c0_13, %c0_14, %c0_15, %c0_16] : memref<1x16x16x16xf32, #tpu.memory_space<vmem>>, vector<1x16x16x16xf32>
      %19 = vector.shape_cast %18 : vector<1x16x16x16xf32> to vector<16x16x16xf32>
      %20 = vector.shape_cast %19 : vector<16x16x16xf32> to vector<256x16xf32>
      %c0_17 = arith.constant 0 : index
      %c0_18 = arith.constant 0 : index
      %c0_19 = arith.constant 0 : index
      %21 = vector.load %arg2[%c0_17, %c0_18, %c0_19] : memref<1x3x16xf32, #tpu.memory_space<vmem>>, vector<1x3x16xf32>
      %22 = vector.shape_cast %21 : vector<1x3x16xf32> to vector<3x16xf32>
      %c0_20 = arith.constant 0 : index
      %c0_21 = arith.constant 0 : index
      %23 = vector.load %arg6[%c0_20, %c0_21] : memref<16x4xf32, #tpu.memory_space<vmem>>, vector<16x4xf32>
      %c0_22 = arith.constant 0 : index
      %c0_23 = arith.constant 0 : index
      %24 = vector.load %arg7[%c0_22, %c0_23] : memref<1x4xf32, #tpu.memory_space<vmem>>, vector<1x4xf32>
      %c0_24 = arith.constant 0 : index
      %c0_25 = arith.constant 0 : index
      %25 = vector.load %arg8[%c0_24, %c0_25] : memref<4x16xf32, #tpu.memory_space<vmem>>, vector<4x16xf32>
      %c0_26 = arith.constant 0 : index
      %c0_27 = arith.constant 0 : index
      %26 = vector.load %arg9[%c0_26, %c0_27] : memref<1x16xf32, #tpu.memory_space<vmem>>, vector<1x16xf32>
      %27 = arith.addf %14, %17 : vector<256x16xf32>
      %28 = arith.addf %27, %20 : vector<256x16xf32>
      %29 = arith.addf %14, %17 : vector<256x16xf32>
      %cst = arith.constant dense<0.000000e+00> : vector<256x4xf32>
      %30 = tpu.matmul %29, %23, %cst {dimension_numbers = #tpu.dot_dimension_numbers<[1], [0], [0], [1], [0, 0, 1, 1], [], []>} : vector<256x16xf32>, vector<16x4xf32>, vector<256x4xf32> -> vector<256x4xf32>
      %31 = vector.broadcast %24 : vector<1x4xf32> to vector<256x4xf32>
      %32 = arith.addf %30, %31 : vector<256x4xf32>
      %cst_28 = arith.constant 0.000000e+00 : f32
      %33 = vector.broadcast %cst_28 : f32 to vector<256x4xf32>
      %34 = arith.maximumf %32, %33 : vector<256x4xf32>
      %cst_29 = arith.constant dense<0.000000e+00> : vector<256x16xf32>
      %35 = tpu.matmul %34, %25, %cst_29 {dimension_numbers = #tpu.dot_dimension_numbers<[1], [0], [0], [1], [0, 0, 1, 1], [], []>} : vector<256x4xf32>, vector<4x16xf32>, vector<256x16xf32> -> vector<256x16xf32>
      %36 = vector.broadcast %26 : vector<1x16xf32> to vector<256x16xf32>
      %37 = arith.addf %35, %36 : vector<256x16xf32>
      %38 = vector.extract_strided_slice %22 {offsets = [0, 0], sizes = [1, 16], strides = [1, 1]} : vector<3x16xf32> to vector<1x16xf32>
      %39 = vector.broadcast %38 : vector<1x16xf32> to vector<256x16xf32>
      %40 = arith.addf %37, %39 : vector<256x16xf32>
      %41 = arith.negf %40 : vector<256x16xf32>
      %42 = math.exp %41 : vector<256x16xf32>
      %cst_30 = arith.constant 1.000000e+00 : f32
      %43 = vector.broadcast %cst_30 : f32 to vector<256x16xf32>
      %44 = arith.addf %43, %42 : vector<256x16xf32>
      %45 = arith.divf %43, %44 : vector<256x16xf32>
      %46 = arith.subf %14, %17 : vector<256x16xf32>
      %47 = arith.mulf %45, %46 : vector<256x16xf32>
      %48 = arith.addf %28, %47 : vector<256x16xf32>
      %49 = arith.addf %20, %14 : vector<256x16xf32>
      %cst_31 = arith.constant dense<0.000000e+00> : vector<256x4xf32>
      %50 = tpu.matmul %49, %23, %cst_31 {dimension_numbers = #tpu.dot_dimension_numbers<[1], [0], [0], [1], [0, 0, 1, 1], [], []>} : vector<256x16xf32>, vector<16x4xf32>, vector<256x4xf32> -> vector<256x4xf32>
      %51 = vector.broadcast %24 : vector<1x4xf32> to vector<256x4xf32>
      %52 = arith.addf %50, %51 : vector<256x4xf32>
      %cst_32 = arith.constant 0.000000e+00 : f32
      %53 = vector.broadcast %cst_32 : f32 to vector<256x4xf32>
      %54 = arith.maximumf %52, %53 : vector<256x4xf32>
      %cst_33 = arith.constant dense<0.000000e+00> : vector<256x16xf32>
      %55 = tpu.matmul %54, %25, %cst_33 {dimension_numbers = #tpu.dot_dimension_numbers<[1], [0], [0], [1], [0, 0, 1, 1], [], []>} : vector<256x4xf32>, vector<4x16xf32>, vector<256x16xf32> -> vector<256x16xf32>
      %56 = vector.broadcast %26 : vector<1x16xf32> to vector<256x16xf32>
      %57 = arith.addf %55, %56 : vector<256x16xf32>
      %58 = vector.extract_strided_slice %22 {offsets = [1, 0], sizes = [1, 16], strides = [1, 1]} : vector<3x16xf32> to vector<1x16xf32>
      %59 = vector.broadcast %58 : vector<1x16xf32> to vector<256x16xf32>
      %60 = arith.addf %57, %59 : vector<256x16xf32>
      %61 = arith.negf %60 : vector<256x16xf32>
      %62 = math.exp %61 : vector<256x16xf32>
      %cst_34 = arith.constant 1.000000e+00 : f32
      %63 = vector.broadcast %cst_34 : f32 to vector<256x16xf32>
      %64 = arith.addf %63, %62 : vector<256x16xf32>
      %65 = arith.divf %63, %64 : vector<256x16xf32>
      %66 = arith.subf %20, %14 : vector<256x16xf32>
      %67 = arith.mulf %65, %66 : vector<256x16xf32>
      %68 = arith.addf %48, %67 : vector<256x16xf32>
      %69 = arith.addf %17, %20 : vector<256x16xf32>
      %cst_35 = arith.constant dense<0.000000e+00> : vector<256x4xf32>
      %70 = tpu.matmul %69, %23, %cst_35 {dimension_numbers = #tpu.dot_dimension_numbers<[1], [0], [0], [1], [0, 0, 1, 1], [], []>} : vector<256x16xf32>, vector<16x4xf32>, vector<256x4xf32> -> vector<256x4xf32>
      %71 = vector.broadcast %24 : vector<1x4xf32> to vector<256x4xf32>
      %72 = arith.addf %70, %71 : vector<256x4xf32>
      %cst_36 = arith.constant 0.000000e+00 : f32
      %73 = vector.broadcast %cst_36 : f32 to vector<256x4xf32>
      %74 = arith.maximumf %72, %73 : vector<256x4xf32>
      %cst_37 = arith.constant dense<0.000000e+00> : vector<256x16xf32>
      %75 = tpu.matmul %74, %25, %cst_37 {dimension_numbers = #tpu.dot_dimension_numbers<[1], [0], [0], [1], [0, 0, 1, 1], [], []>} : vector<256x4xf32>, vector<4x16xf32>, vector<256x16xf32> -> vector<256x16xf32>
      %76 = vector.broadcast %26 : vector<1x16xf32> to vector<256x16xf32>
      %77 = arith.addf %75, %76 : vector<256x16xf32>
      %78 = vector.extract_strided_slice %22 {offsets = [2, 0], sizes = [1, 16], strides = [1, 1]} : vector<3x16xf32> to vector<1x16xf32>
      %79 = vector.broadcast %78 : vector<1x16xf32> to vector<256x16xf32>
      %80 = arith.addf %77, %79 : vector<256x16xf32>
      %81 = arith.negf %80 : vector<256x16xf32>
      %82 = math.exp %81 : vector<256x16xf32>
      %cst_38 = arith.constant 1.000000e+00 : f32
      %83 = vector.broadcast %cst_38 : f32 to vector<256x16xf32>
      %84 = arith.addf %83, %82 : vector<256x16xf32>
      %85 = arith.divf %83, %84 : vector<256x16xf32>
      %86 = arith.subf %17, %20 : vector<256x16xf32>
      %87 = arith.mulf %85, %86 : vector<256x16xf32>
      %88 = arith.addf %68, %87 : vector<256x16xf32>
      %89 = vector.shape_cast %88 : vector<256x16xf32> to vector<16x16x16xf32>
      %c0_39 = arith.constant 0 : index
      %c0_40 = arith.constant 0 : index
      %c0_41 = arith.constant 0 : index
      %90 = vector.load %arg14[%c0_39, %c0_40, %c0_41] : memref<16x16x16xf32, #tpu.memory_space<vmem>>, vector<16x16x16xf32>
      tpu.vector_store %arg14[%c0_39, %c0_40, %c0_41], %89 {strides = array<i32>} : memref<16x16x16xf32, #tpu.memory_space<vmem>>, vector<16x16x16xf32>,
    } else {
    }
    %c1_i32_2 = arith.constant 1 : i32
    %6 = arith.cmpi sge, %arg1, %c1_i32_2 : i32
    %7 = arith.extui %6 : i1 to i32
    %c0_i32_3 = arith.constant 0 : i32
    %8 = arith.cmpi ne, %7, %c0_i32_3 : i32
    scf.if %8 {
      %c1_i32_6 = arith.constant 1 : i32
      %12 = arith.cmpi slt, %arg1, %c1_i32_6 : i32
      %c0 = arith.constant 0 : index
      %c0_7 = arith.constant 0 : index
      %c0_8 = arith.constant 0 : index
      %13 = vector.load %arg14[%c0, %c0_7, %c0_8] : memref<16x16x16xf32, #tpu.memory_space<vmem>>, vector<1x16x16xf32>
      %14 = vector.shape_cast %13 : vector<1x16x16xf32> to vector<16x16xf32>
      %cst = arith.constant 0.000000e+00 : f32
      %15 = vector.broadcast %cst : f32 to vector<16x16xf32>
      %16 = arith.select %12, %14, %15 : vector<16x16xf32>
      %c17 = arith.constant 17 : index
      %c1 = arith.constant 1 : index
      %c0_9 = arith.constant 0 : index
      %17 = vector.load %arg13[%c17, %c1, %c0_9] : memref<18x18x16xf32, #tpu.memory_space<vmem>>, vector<1x16x16xf32>
      %18 = vector.shape_cast %17 : vector<1x16x16xf32> to vector<16x16xf32>
      %19 = vector.shape_cast %16 : vector<16x16xf32> to vector<1x16x16xf32>
      tpu.vector_store %arg13[%c17, %c1, %c0_9], %19 {strides = array<i32>} : memref<18x18x16xf32, #tpu.memory_space<vmem>>, vector<1x16x16xf32>,
      %cst_10 = arith.constant 0.000000e+00 : f32
      %20 = vector.broadcast %cst_10 : f32 to vector<256x16xf32>
      %c0_11 = arith.constant 0 : index
      %c0_12 = arith.constant 0 : index
      %c0_13 = arith.constant 0 : index
      %21 = vector.load %arg13[%c0_11, %c0_12, %c0_13] : memref<18x18x16xf32, #tpu.memory_space<vmem>>, vector<16x16x16xf32>
      %22 = vector.shape_cast %21 : vector<16x16x16xf32> to vector<256x16xf32>
      %c0_14 = arith.constant 0 : index
      %c0_15 = arith.constant 0 : index
      %c0_16 = arith.constant 0 : index
      %23 = vector.load %arg10[%c0_14, %c0_15, %c0_16] : memref<9x16x16xf32, #tpu.memory_space<vmem>>, vector<1x16x16xf32>
      %24 = vector.shape_cast %23 : vector<1x16x16xf32> to vector<16x16xf32>
      %cst_17 = arith.constant dense<0.000000e+00> : vector<256x16xf32>
      %25 = tpu.matmul %22, %24, %cst_17 {dimension_numbers = #tpu.dot_dimension_numbers<[1], [0], [0], [1], [0, 0, 1, 1], [], []>} : vector<256x16xf32>, vector<16x16xf32>, vector<256x16xf32> -> vector<256x16xf32>
      %26 = arith.addf %20, %25 : vector<256x16xf32>
      %c0_18 = arith.constant 0 : index
      %c1_19 = arith.constant 1 : index
      %c0_20 = arith.constant 0 : index
      %27 = vector.load %arg13[%c0_18, %c1_19, %c0_20] : memref<18x18x16xf32, #tpu.memory_space<vmem>>, vector<16x16x16xf32>
      %28 = vector.shape_cast %27 : vector<16x16x16xf32> to vector<256x16xf32>
      %c1_21 = arith.constant 1 : index
      %c0_22 = arith.constant 0 : index
      %c0_23 = arith.constant 0 : index
      %29 = vector.load %arg10[%c1_21, %c0_22, %c0_23] : memref<9x16x16xf32, #tpu.memory_space<vmem>>, vector<1x16x16xf32>
      %30 = vector.shape_cast %29 : vector<1x16x16xf32> to vector<16x16xf32>
      %cst_24 = arith.constant dense<0.000000e+00> : vector<256x16xf32>
      %31 = tpu.matmul %28, %30, %cst_24 {dimension_numbers = #tpu.dot_dimension_numbers<[1], [0], [0], [1], [0, 0, 1, 1], [], []>} : vector<256x16xf32>, vector<16x16xf32>, vector<256x16xf32> -> vector<256x16xf32>
      %32 = arith.addf %26, %31 : vector<256x16xf32>
      %c0_25 = arith.constant 0 : index
      %c2 = arith.constant 2 : index
      %c0_26 = arith.constant 0 : index
      %33 = vector.load %arg13[%c0_25, %c2, %c0_26] : memref<18x18x16xf32, #tpu.memory_space<vmem>>, vector<16x16x16xf32>
      %34 = vector.shape_cast %33 : vector<16x16x16xf32> to vector<256x16xf32>
      %c2_27 = arith.constant 2 : index
      %c0_28 = arith.constant 0 : index
      %c0_29 = arith.constant 0 : index
      %35 = vector.load %arg10[%c2_27, %c0_28, %c0_29] : memref<9x16x16xf32, #tpu.memory_space<vmem>>, vector<1x16x16xf32>
      %36 = vector.shape_cast %35 : vector<1x16x16xf32> to vector<16x16xf32>
      %cst_30 = arith.constant dense<0.000000e+00> : vector<256x16xf32>
      %37 = tpu.matmul %34, %36, %cst_30 {dimension_numbers = #tpu.dot_dimension_numbers<[1], [0], [0], [1], [0, 0, 1, 1], [], []>} : vector<256x16xf32>, vector<16x16xf32>, vector<256x16xf32> -> vector<256x16xf32>
      %38 = arith.addf %32, %37 : vector<256x16xf32>
      %c1_31 = arith.constant 1 : index
      %c0_32 = arith.constant 0 : index
      %c0_33 = arith.constant 0 : index
      %39 = vector.load %arg13[%c1_31, %c0_32, %c0_33] : memref<18x18x16xf32, #tpu.memory_space<vmem>>, vector<16x16x16xf32>
      %40 = vector.shape_cast %39 : vector<16x16x16xf32> to vector<256x16xf32>
      %c3 = arith.constant 3 : index
      %c0_34 = arith.constant 0 : index
      %c0_35 = arith.constant 0 : index
      %41 = vector.load %arg10[%c3, %c0_34, %c0_35] : memref<9x16x16xf32, #tpu.memory_space<vmem>>, vector<1x16x16xf32>
      %42 = vector.shape_cast %41 : vector<1x16x16xf32> to vector<16x16xf32>
      %cst_36 = arith.constant dense<0.000000e+00> : vector<256x16xf32>
      %43 = tpu.matmul %40, %42, %cst_36 {dimension_numbers = #tpu.dot_dimension_numbers<[1], [0], [0], [1], [0, 0, 1, 1], [], []>} : vector<256x16xf32>, vector<16x16xf32>, vector<256x16xf32> -> vector<256x16xf32>
      %44 = arith.addf %38, %43 : vector<256x16xf32>
      %c1_37 = arith.constant 1 : index
      %c1_38 = arith.constant 1 : index
      %c0_39 = arith.constant 0 : index
      %45 = vector.load %arg13[%c1_37, %c1_38, %c0_39] : memref<18x18x16xf32, #tpu.memory_space<vmem>>, vector<16x16x16xf32>
      %46 = vector.shape_cast %45 : vector<16x16x16xf32> to vector<256x16xf32>
      %c4 = arith.constant 4 : index
      %c0_40 = arith.constant 0 : index
      %c0_41 = arith.constant 0 : index
      %47 = vector.load %arg10[%c4, %c0_40, %c0_41] : memref<9x16x16xf32, #tpu.memory_space<vmem>>, vector<1x16x16xf32>
      %48 = vector.shape_cast %47 : vector<1x16x16xf32> to vector<16x16xf32>
      %cst_42 = arith.constant dense<0.000000e+00> : vector<256x16xf32>
      %49 = tpu.matmul %46, %48, %cst_42 {dimension_numbers = #tpu.dot_dimension_numbers<[1], [0], [0], [1], [0, 0, 1, 1], [], []>} : vector<256x16xf32>, vector<16x16xf32>, vector<256x16xf32> -> vector<256x16xf32>
      %50 = arith.addf %44, %49 : vector<256x16xf32>
      %c1_43 = arith.constant 1 : index
      %c2_44 = arith.constant 2 : index
      %c0_45 = arith.constant 0 : index
      %51 = vector.load %arg13[%c1_43, %c2_44, %c0_45] : memref<18x18x16xf32, #tpu.memory_space<vmem>>, vector<16x16x16xf32>
      %52 = vector.shape_cast %51 : vector<16x16x16xf32> to vector<256x16xf32>
      %c5 = arith.constant 5 : index
      %c0_46 = arith.constant 0 : index
      %c0_47 = arith.constant 0 : index
      %53 = vector.load %arg10[%c5, %c0_46, %c0_47] : memref<9x16x16xf32, #tpu.memory_space<vmem>>, vector<1x16x16xf32>
      %54 = vector.shape_cast %53 : vector<1x16x16xf32> to vector<16x16xf32>
      %cst_48 = arith.constant dense<0.000000e+00> : vector<256x16xf32>
      %55 = tpu.matmul %52, %54, %cst_48 {dimension_numbers = #tpu.dot_dimension_numbers<[1], [0], [0], [1], [0, 0, 1, 1], [], []>} : vector<256x16xf32>, vector<16x16xf32>, vector<256x16xf32> -> vector<256x16xf32>
      %56 = arith.addf %50, %55 : vector<256x16xf32>
      %c2_49 = arith.constant 2 : index
      %c0_50 = arith.constant 0 : index
      %c0_51 = arith.constant 0 : index
      %57 = vector.load %arg13[%c2_49, %c0_50, %c0_51] : memref<18x18x16xf32, #tpu.memory_space<vmem>>, vector<16x16x16xf32>
      %58 = vector.shape_cast %57 : vector<16x16x16xf32> to vector<256x16xf32>
      %c6 = arith.constant 6 : index
      %c0_52 = arith.constant 0 : index
      %c0_53 = arith.constant 0 : index
      %59 = vector.load %arg10[%c6, %c0_52, %c0_53] : memref<9x16x16xf32, #tpu.memory_space<vmem>>, vector<1x16x16xf32>
      %60 = vector.shape_cast %59 : vector<1x16x16xf32> to vector<16x16xf32>
      %cst_54 = arith.constant dense<0.000000e+00> : vector<256x16xf32>
      %61 = tpu.matmul %58, %60, %cst_54 {dimension_numbers = #tpu.dot_dimension_numbers<[1], [0], [0], [1], [0, 0, 1, 1], [], []>} : vector<256x16xf32>, vector<16x16xf32>, vector<256x16xf32> -> vector<256x16xf32>
      %62 = arith.addf %56, %61 : vector<256x16xf32>
      %c2_55 = arith.constant 2 : index
      %c1_56 = arith.constant 1 : index
      %c0_57 = arith.constant 0 : index
      %63 = vector.load %arg13[%c2_55, %c1_56, %c0_57] : memref<18x18x16xf32, #tpu.memory_space<vmem>>, vector<16x16x16xf32>
      %64 = vector.shape_cast %63 : vector<16x16x16xf32> to vector<256x16xf32>
      %c7 = arith.constant 7 : index
      %c0_58 = arith.constant 0 : index
      %c0_59 = arith.constant 0 : index
      %65 = vector.load %arg10[%c7, %c0_58, %c0_59] : memref<9x16x16xf32, #tpu.memory_space<vmem>>, vector<1x16x16xf32>
      %66 = vector.shape_cast %65 : vector<1x16x16xf32> to vector<16x16xf32>
      %cst_60 = arith.constant dense<0.000000e+00> : vector<256x16xf32>
      %67 = tpu.matmul %64, %66, %cst_60 {dimension_numbers = #tpu.dot_dimension_numbers<[1], [0], [0], [1], [0, 0, 1, 1], [], []>} : vector<256x16xf32>, vector<16x16xf32>, vector<256x16xf32> -> vector<256x16xf32>
      %68 = arith.addf %62, %67 : vector<256x16xf32>
      %c2_61 = arith.constant 2 : index
      %c2_62 = arith.constant 2 : index
      %c0_63 = arith.constant 0 : index
      %69 = vector.load %arg13[%c2_61, %c2_62, %c0_63] : memref<18x18x16xf32, #tpu.memory_space<vmem>>, vector<16x16x16xf32>
      %70 = vector.shape_cast %69 : vector<16x16x16xf32> to vector<256x16xf32>
      %c8 = arith.constant 8 : index
      %c0_64 = arith.constant 0 : index
      %c0_65 = arith.constant 0 : index
      %71 = vector.load %arg10[%c8, %c0_64, %c0_65] : memref<9x16x16xf32, #tpu.memory_space<vmem>>, vector<1x16x16xf32>
      %72 = vector.shape_cast %71 : vector<1x16x16xf32> to vector<16x16xf32>
      %cst_66 = arith.constant dense<0.000000e+00> : vector<256x16xf32>
      %73 = tpu.matmul %70, %72, %cst_66 {dimension_numbers = #tpu.dot_dimension_numbers<[1], [0], [0], [1], [0, 0, 1, 1], [], []>} : vector<256x16xf32>, vector<16x16xf32>, vector<256x16xf32> -> vector<256x16xf32>
      %74 = arith.addf %68, %73 : vector<256x16xf32>
      %c0_67 = arith.constant 0 : index
      %c0_68 = arith.constant 0 : index
      %75 = vector.load %arg11[%c0_67, %c0_68] : memref<1x16xf32, #tpu.memory_space<vmem>>, vector<1x16xf32>
      %76 = vector.broadcast %75 : vector<1x16xf32> to vector<256x16xf32>
      %77 = arith.addf %74, %76 : vector<256x16xf32>
      %cst_69 = arith.constant 0.000000e+00 : f32
      %78 = vector.broadcast %cst_69 : f32 to vector<256x16xf32>
      %79 = arith.maximumf %77, %78 : vector<256x16xf32>
      %80 = vector.shape_cast %79 : vector<256x16xf32> to vector<16x16x16xf32>
      %c0_70 = arith.constant 0 : index
      %c0_71 = arith.constant 0 : index
      %c0_72 = arith.constant 0 : index
      %c0_73 = arith.constant 0 : index
      %81 = vector.load %arg12[%c0_70, %c0_71, %c0_72, %c0_73] : memref<1x16x16x16xf32, #tpu.memory_space<vmem>>, vector<1x16x16x16xf32>
      %82 = vector.shape_cast %81 : vector<1x16x16x16xf32> to vector<16x16x16xf32>
      %83 = vector.shape_cast %80 : vector<16x16x16xf32> to vector<1x16x16x16xf32>
      tpu.vector_store %arg12[%c0_70, %c0_71, %c0_72, %c0_73], %83 {strides = array<i32>} : memref<1x16x16x16xf32, #tpu.memory_space<vmem>>, vector<1x16x16x16xf32>,
    } else {
    }
    %c1_i32_4 = arith.constant 1 : i32
    %9 = arith.cmpi slt, %arg1, %c1_i32_4 : i32
    %10 = arith.extui %9 : i1 to i32
    %c0_i32_5 = arith.constant 0 : i32
    %11 = arith.cmpi ne, %10, %c0_i32_5 : i32
    scf.if %11 {
      %c16 = arith.constant 16 : index
      %c0 = arith.constant 0 : index
      %c0_6 = arith.constant 0 : index
      %12 = vector.load %arg13[%c16, %c0, %c0_6] : memref<18x18x16xf32, #tpu.memory_space<vmem>>, vector<1x18x16xf32>
      %13 = vector.shape_cast %12 : vector<1x18x16xf32> to vector<18x16xf32>
      %c0_7 = arith.constant 0 : index
      %c0_8 = arith.constant 0 : index
      %c0_9 = arith.constant 0 : index
      %14 = vector.load %arg13[%c0_7, %c0_8, %c0_9] : memref<18x18x16xf32, #tpu.memory_space<vmem>>, vector<1x18x16xf32>
      %15 = vector.shape_cast %14 : vector<1x18x16xf32> to vector<18x16xf32>
      %16 = vector.shape_cast %13 : vector<18x16xf32> to vector<1x18x16xf32>
      tpu.vector_store %arg13[%c0_7, %c0_8, %c0_9], %16 {strides = array<i32>} : memref<18x18x16xf32, #tpu.memory_space<vmem>>, vector<1x18x16xf32>,
      %c0_10 = arith.constant 0 : index
      %c0_11 = arith.constant 0 : index
      %c0_12 = arith.constant 0 : index
      %17 = vector.load %arg14[%c0_10, %c0_11, %c0_12] : memref<16x16x16xf32, #tpu.memory_space<vmem>>, vector<16x16x16xf32>
      %c1 = arith.constant 1 : index
      %c1_13 = arith.constant 1 : index
      %c0_14 = arith.constant 0 : index
      %18 = vector.load %arg13[%c1, %c1_13, %c0_14] : memref<18x18x16xf32, #tpu.memory_space<vmem>>, vector<16x16x16xf32>
      tpu.vector_store %arg13[%c1, %c1_13, %c0_14], %17 {strides = array<i32>} : memref<18x18x16xf32, #tpu.memory_space<vmem>>, vector<16x16x16xf32>,
    } else {
    }
    return
  }
  func.func @transform_0(%arg0: i32, %arg1: i32) -> (i32, i32, i32) {
    %c0_i32 = arith.constant 0 : i32
    %c0_i32_0 = arith.constant 0 : i32
    %c0_i32_1 = arith.constant 0 : i32
    return %arg0, %c0_i32, %c0_i32_0 : i32, i32, i32
  }
  func.func @transform_1(%arg0: i32, %arg1: i32) -> (i32, i32, i32, i32) {
    %c0_i32 = arith.constant 0 : i32
    %0 = arith.minsi %arg1, %c0_i32 : i32
    %c0_i32_0 = arith.constant 0 : i32
    %c0_i32_1 = arith.constant 0 : i32
    %c0_i32_2 = arith.constant 0 : i32
    return %arg0, %0, %c0_i32_0, %c0_i32_1 : i32, i32, i32, i32
  }
  func.func @transform_2(%arg0: i32, %arg1: i32) -> (i32, i32, i32, i32) {
    %c0_i32 = arith.constant 0 : i32
    %0 = arith.minsi %arg1, %c0_i32 : i32
    %c0_i32_0 = arith.constant 0 : i32
    %c0_i32_1 = arith.constant 0 : i32
    %c0_i32_2 = arith.constant 0 : i32
    return %arg0, %0, %c0_i32_0, %c0_i32_1 : i32, i32, i32, i32
  }
  func.func @transform_3(%arg0: i32, %arg1: i32) -> (i32, i32, i32, i32) {
    %c0_i32 = arith.constant 0 : i32
    %0 = arith.minsi %arg1, %c0_i32 : i32
    %c0_i32_0 = arith.constant 0 : i32
    %c0_i32_1 = arith.constant 0 : i32
    %c0_i32_2 = arith.constant 0 : i32
    return %arg0, %0, %c0_i32_0, %c0_i32_1 : i32, i32, i32, i32
  }
  func.func @transform_4(%arg0: i32, %arg1: i32) -> (i32, i32) {
    %c0_i32 = arith.constant 0 : i32
    %c0_i32_0 = arith.constant 0 : i32
    %c0_i32_1 = arith.constant 0 : i32
    return %c0_i32, %c0_i32_0 : i32, i32
  }
  func.func @transform_5(%arg0: i32, %arg1: i32) -> (i32, i32) {
    %c0_i32 = arith.constant 0 : i32
    %c0_i32_0 = arith.constant 0 : i32
    %c0_i32_1 = arith.constant 0 : i32
    return %c0_i32, %c0_i32_0 : i32, i32
  }
  func.func @transform_6(%arg0: i32, %arg1: i32) -> (i32, i32) {
    %c0_i32 = arith.constant 0 : i32
    %c0_i32_0 = arith.constant 0 : i32
    %c0_i32_1 = arith.constant 0 : i32
    return %c0_i32, %c0_i32_0 : i32, i32
  }
  func.func @transform_7(%arg0: i32, %arg1: i32) -> (i32, i32) {
    %c0_i32 = arith.constant 0 : i32
    %c0_i32_0 = arith.constant 0 : i32
    %c0_i32_1 = arith.constant 0 : i32
    return %c0_i32, %c0_i32_0 : i32, i32
  }
  func.func @transform_8(%arg0: i32, %arg1: i32) -> (i32, i32, i32) {
    %c0_i32 = arith.constant 0 : i32
    %c0_i32_0 = arith.constant 0 : i32
    %c0_i32_1 = arith.constant 0 : i32
    %c0_i32_2 = arith.constant 0 : i32
    return %c0_i32, %c0_i32_0, %c0_i32_1 : i32, i32, i32
  }
  func.func @transform_9(%arg0: i32, %arg1: i32) -> (i32, i32) {
    %c0_i32 = arith.constant 0 : i32
    %c0_i32_0 = arith.constant 0 : i32
    %c0_i32_1 = arith.constant 0 : i32
    return %c0_i32, %c0_i32_0 : i32, i32
  }
  func.func @transform_10(%arg0: i32, %arg1: i32) -> (i32, i32, i32, i32) {
    %c1_i32 = arith.constant 1 : i32
    %0 = arith.subi %arg1, %c1_i32 : i32
    %c0_i32 = arith.constant 0 : i32
    %1 = arith.maxsi %0, %c0_i32 : i32
    %c0_i32_0 = arith.constant 0 : i32
    %c0_i32_1 = arith.constant 0 : i32
    %c0_i32_2 = arith.constant 0 : i32
    return %arg0, %1, %c0_i32_0, %c0_i32_1 : i32, i32, i32, i32
  }
}

</mosaic_0001>

<llo_original>
// kernel: acfm_forward.1
$region0: #{acfm_forward.1}
  #allocation0 [shape = 'u32[]', space=smem, size = 0x4, offset = 0x4, fixed_abs, tag = 'smem constant byte address 0x4 - core index']
  #allocation1 [shape = 'u32[144,128]{1,0:T(1,128)}', space=vmem, size = 0x12000, scoped, tag = 'internal scratch']
  #allocation2 [shape = 'f32[18,18,16]{2,1,0:T(8,128)}', space=vmem, size = 0x36000, scoped, tag = 'scratch operand']
  #allocation3 [shape = 'f32[16,16,16]{2,1,0:T(8,128)}', space=vmem, size = 0x20000, scoped, tag = 'scratch operand']
  %s0 = inlined_call_operand.vmem [shape: f32[2,3,16], index: 0, kind: input, shape index: {}]
  %s1 = inlined_call_operand.vmem [shape: f32[2,16,16,16], index: 1, kind: input, shape index: {}]
  %s2 = inlined_call_operand.vmem [shape: f32[2,16,16,16], index: 2, kind: input, shape index: {}]
  %s3 = inlined_call_operand.vmem [shape: f32[2,16,16,16], index: 3, kind: input, shape index: {}]
  %s4 = inlined_call_operand.vmem [shape: f32[16,4], index: 4, kind: input, shape index: {}]
  %s5 = inlined_call_operand.vmem [shape: f32[1,4], index: 5, kind: input, shape index: {}]
  %s6 = inlined_call_operand.vmem [shape: f32[4,16], index: 6, kind: input, shape index: {}]
  %s7 = inlined_call_operand.vmem [shape: f32[1,16], index: 7, kind: input, shape index: {}]
  %s8 = inlined_call_operand.vmem [shape: f32[9,16,16], index: 8, kind: input, shape index: {}]
  %s9 = inlined_call_operand.vmem [shape: f32[1,16], index: 9, kind: input, shape index: {}]
  %s10 = inlined_call_operand.vmem [shape: f32[2,16,16,16], index: 10, kind: output, shape index: {}]
  %s11 = sld [smem:[#allocation0]]
  $region89: #{acfm_forward.1} parent=0
    _
  %s13 = ssub.s32 1, %s11
  %s14 = scalar_select 0, %s13, %s11
  loop: start=0, step=1, limit=6
  $region2: #{acfm_forward.1} parent=0 // loop_pre_header
    _
  $region3: #{acfm_forward.1} parent=0 // loop_header
    %s16 = sphi 0, %s20
    %p17 = scmp.ge.s32.totalorder %s16, 6
    %s23 = sphi 0, %s35
    %s24 = sphi 0, %s31
    %s25 = sphi 0, %s23
    %s26 = sphi 0, %s24
    %s27 = sphi 0, %s25
    %s28 = sphi 0, %s26
    %s38 = sphi 0, %s40
    %s41 = sphi 0, %s38
    %s42 = sphi 0, %s41
    %s58 = sphi 0, %s42
    %s70 = sphi 0, %s72
    %s73 = sphi 0, %s70
    %s74 = sphi 0, %s73
    %s90 = sphi 0, %s74
    %s102 = sphi 0, %s104
    %s105 = sphi 0, %s102
    %s106 = sphi 0, %s105
    %s122 = sphi 0, %s106
    %s134 = sphi 0, %s136
    %s137 = sphi 0, %s134
    %s138 = sphi 0, %s137
    %s154 = sphi 0, %s138
    %s158 = sphi 0, %s158
    %s160 = sphi 0, %s158
    %s161 = sphi 0, %s160
    %s175 = sphi 0, %s161
    %s179 = sphi 0, %s179
    %s181 = sphi 0, %s179
    %s182 = sphi 0, %s181
    %s196 = sphi 0, %s182
    %s200 = sphi 0, %s200
    %s202 = sphi 0, %s200
    %s203 = sphi 0, %s202
    %s217 = sphi 0, %s203
    %s221 = sphi 0, %s221
    %s223 = sphi 0, %s221
    %s224 = sphi 0, %s223
    %s238 = sphi 0, %s224
    %s242 = sphi 0, %s242
    %s244 = sphi 0, %s242
    %s245 = sphi 0, %s244
    %s259 = sphi 0, %s245
    %s263 = sphi 0, %s263
    %s265 = sphi 0, %s263
    %s266 = sphi 0, %s265
    %s280 = sphi 0, %s266
    %s294 = sphi 0, %s296
    %s297 = sphi 0, %s294
    %s298 = sphi 0, %s297
    %s314 = sphi 0, %s298
  $region4: #{acfm_forward.1} parent=0 // loop_header_branch
    %19 = sbr.rel (%p17) target = $region8
  $region5: #{acfm_forward.1} parent=0 // loop_body
    %s21 = ssub.s32 %s16, 1
    %s22 = ssub.s32 %s16, 2
    %s29 = sadd.s32 1, %s24
    %p30 = scmp.ge.s32.totalorder %s29, 2
    %s31 = scalar_select %p30, 0, %s29
    %s32 = sadd.s32 1, %s23
    %s33 = scalar_select %p30, %s32, %s23
    %p34 = scmp.ge.s32.totalorder %s33, 2
    %s35 = scalar_select %p34, 0, %s33
    %s36 = ssub.s32 %s23, %s35
    %p37 = scmp.eq.s32.totalorder %s36, 0
    %s39 = sadd.s32 %s38, 1
    %s40 = scalar_select %p37, %s38, %s39
    %p43 = pneg %p37
    %p44 = scmp.eq.s32.totalorder %s16, 3
    %p45 = por %p43, %p44
    %p46 = scmp.ne.s32.totalorder %s38, %s41
    %p47 = scmp.eq.s32.totalorder %s16, 0
    %p48 = por %p46, %p47
    %p49 = scmp.ne.s32.totalorder %s38, %s41
    %p50 = scmp.eq.s32.totalorder %s21, 3
    %p51 = por %p49, %p50
    %p52 = scmp.ne.s32.totalorder %s41, %s42
    %p53 = scmp.eq.s32.totalorder %s21, 0
    %p54 = por %p52, %p53
    %p55 = scmp.ne.s32.totalorder %s41, %s42
    %p56 = scmp.eq.s32.totalorder %s22, 3
    %p57 = por %p55, %p56
    %p59 = scmp.ne.s32.totalorder %s42, %s58
    %p60 = scmp.eq.s32.totalorder %s22, 0
    %p61 = por %p59, %p60
    %p62 = scmp.lt.s32.totalorder %s24, 0
    %s63 = scalar_select %p62, %s24, 0
    %p64 = scmp.lt.s32.totalorder %s31, 0
    %s65 = scalar_select %p64, %s31, 0
    %s66 = ssub.s32 %s23, %s35
    %s67 = ssub.s32 %s63, %s65
    %s68 = sor.u32 %s66, %s67
    %p69 = scmp.eq.s32.totalorder %s68, 0
    %s71 = sadd.s32 %s70, 1
    %s72 = scalar_select %p69, %s70, %s71
    %p75 = pneg %p69
    %p76 = scmp.eq.s32.totalorder %s16, 3
    %p77 = por %p75, %p76
    %p78 = scmp.ne.s32.totalorder %s70, %s73
    %p79 = scmp.eq.s32.totalorder %s16, 0
    %p80 = por %p78, %p79
    %p81 = scmp.ne.s32.totalorder %s70, %s73
    %p82 = scmp.eq.s32.totalorder %s21, 3
    %p83 = por %p81, %p82
    %p84 = scmp.ne.s32.totalorder %s73, %s74
    %p85 = scmp.eq.s32.totalorder %s21, 0
    %p86 = por %p84, %p85
    %p87 = scmp.ne.s32.totalorder %s73, %s74
    %p88 = scmp.eq.s32.totalorder %s22, 3
    %p89 = por %p87, %p88
    %p91 = scmp.ne.s32.totalorder %s74, %s90
    %p92 = scmp.eq.s32.totalorder %s22, 0
    %p93 = por %p91, %p92
    %p94 = scmp.lt.s32.totalorder %s24, 0
    %s95 = scalar_select %p94, %s24, 0
    %p96 = scmp.lt.s32.totalorder %s31, 0
    %s97 = scalar_select %p96, %s31, 0
    %s98 = ssub.s32 %s23, %s35
    %s99 = ssub.s32 %s95, %s97
    %s100 = sor.u32 %s98, %s99
    %p101 = scmp.eq.s32.totalorder %s100, 0
    %s103 = sadd.s32 %s102, 1
    %s104 = scalar_select %p101, %s102, %s103
    %p107 = pneg %p101
    %p108 = scmp.eq.s32.totalorder %s16, 3
    %p109 = por %p107, %p108
    %p110 = scmp.ne.s32.totalorder %s102, %s105
    %p111 = scmp.eq.s32.totalorder %s16, 0
    %p112 = por %p110, %p111
    %p113 = scmp.ne.s32.totalorder %s102, %s105
    %p114 = scmp.eq.s32.totalorder %s21, 3
    %p115 = por %p113, %p114
    %p116 = scmp.ne.s32.totalorder %s105, %s106
    %p117 = scmp.eq.s32.totalorder %s21, 0
    %p118 = por %p116, %p117
    %p119 = scmp.ne.s32.totalorder %s105, %s106
    %p120 = scmp.eq.s32.totalorder %s22, 3
    %p121 = por %p119, %p120
    %p123 = scmp.ne.s32.totalorder %s106, %s122
    %p124 = scmp.eq.s32.totalorder %s22, 0
    %p125 = por %p123, %p124
    %p126 = scmp.lt.s32.totalorder %s24, 0
    %s127 = scalar_select %p126, %s24, 0
    %p128 = scmp.lt.s32.totalorder %s31, 0
    %s129 = scalar_select %p128, %s31, 0
    %s130 = ssub.s32 %s23, %s35
    %s131 = ssub.s32 %s127, %s129
    %s132 = sor.u32 %s130, %s131
    %p133 = scmp.eq.s32.totalorder %s132, 0
    %s135 = sadd.s32 %s134, 1
    %s136 = scalar_select %p133, %s134, %s135
    %p139 = pneg %p133
    %p140 = scmp.eq.s32.totalorder %s16, 3
    %p141 = por %p139, %p140
    %p142 = scmp.ne.s32.totalorder %s134, %s137
    %p143 = scmp.eq.s32.totalorder %s16, 0
    %p144 = por %p142, %p143
    %p145 = scmp.ne.s32.totalorder %s134, %s137
    %p146 = scmp.eq.s32.totalorder %s21, 3
    %p147 = por %p145, %p146
    %p148 = scmp.ne.s32.totalorder %s137, %s138
    %p149 = scmp.eq.s32.totalorder %s21, 0
    %p150 = por %p148, %p149
    %p151 = scmp.ne.s32.totalorder %s137, %s138
    %p152 = scmp.eq.s32.totalorder %s22, 3
    %p153 = por %p151, %p152
    %p155 = scmp.ne.s32.totalorder %s138, %s154
    %p156 = scmp.eq.s32.totalorder %s22, 0
    %p157 = por %p155, %p156
    %s159 = sadd.s32 %s158, 1
    %p162 = scmp.eq.s32.totalorder %s16, 3
    %p163 = scmp.ne.s32.totalorder %s158, %s160
    %p164 = scmp.eq.s32.totalorder %s16, 0
    %p165 = por %p163, %p164
    %p166 = scmp.ne.s32.totalorder %s158, %s160
    %p167 = scmp.eq.s32.totalorder %s21, 3
    %p168 = por %p166, %p167
    %p169 = scmp.ne.s32.totalorder %s160, %s161
    %p170 = scmp.eq.s32.totalorder %s21, 0
    %p171 = por %p169, %p170
    %p172 = scmp.ne.s32.totalorder %s160, %s161
    %p173 = scmp.eq.s32.totalorder %s22, 3
    %p174 = por %p172, %p173
    %p176 = scmp.ne.s32.totalorder %s161, %s175
    %p177 = scmp.eq.s32.totalorder %s22, 0
    %p178 = por %p176, %p177
    %s180 = sadd.s32 %s179, 1
    %p183 = scmp.eq.s32.totalorder %s16, 3
    %p184 = scmp.ne.s32.totalorder %s179, %s181
    %p185 = scmp.eq.s32.totalorder %s16, 0
    %p186 = por %p184, %p185
    %p187 = scmp.ne.s32.totalorder %s179, %s181
    %p188 = scmp.eq.s32.totalorder %s21, 3
    %p189 = por %p187, %p188
    %p190 = scmp.ne.s32.totalorder %s181, %s182
    %p191 = scmp.eq.s32.totalorder %s21, 0
    %p192 = por %p190, %p191
    %p193 = scmp.ne.s32.totalorder %s181, %s182
    %p194 = scmp.eq.s32.totalorder %s22, 3
    %p195 = por %p193, %p194
    %p197 = scmp.ne.s32.totalorder %s182, %s196
    %p198 = scmp.eq.s32.totalorder %s22, 0
    %p199 = por %p197, %p198
    %s201 = sadd.s32 %s200, 1
    %p204 = scmp.eq.s32.totalorder %s16, 3
    %p205 = scmp.ne.s32.totalorder %s200, %s202
    %p206 = scmp.eq.s32.totalorder %s16, 0
    %p207 = por %p205, %p206
    %p208 = scmp.ne.s32.totalorder %s200, %s202
    %p209 = scmp.eq.s32.totalorder %s21, 3
    %p210 = por %p208, %p209
    %p211 = scmp.ne.s32.totalorder %s202, %s203
    %p212 = scmp.eq.s32.totalorder %s21, 0
    %p213 = por %p211, %p212
    %p214 = scmp.ne.s32.totalorder %s202, %s203
    %p215 = scmp.eq.s32.totalorder %s22, 3
    %p216 = por %p214, %p215
    %p218 = scmp.ne.s32.totalorder %s203, %s217
    %p219 = scmp.eq.s32.totalorder %s22, 0
    %p220 = por %p218, %p219
    %s222 = sadd.s32 %s221, 1
    %p225 = scmp.eq.s32.totalorder %s16, 3
    %p226 = scmp.ne.s32.totalorder %s221, %s223
    %p227 = scmp.eq.s32.totalorder %s16, 0
    %p228 = por %p226, %p227
    %p229 = scmp.ne.s32.totalorder %s221, %s223
    %p230 = scmp.eq.s32.totalorder %s21, 3
    %p231 = por %p229, %p230
    %p232 = scmp.ne.s32.totalorder %s223, %s224
    %p233 = scmp.eq.s32.totalorder %s21, 0
    %p234 = por %p232, %p233
    %p235 = scmp.ne.s32.totalorder %s223, %s224
    %p236 = scmp.eq.s32.totalorder %s22, 3
    %p237 = por %p235, %p236
    %p239 = scmp.ne.s32.totalorder %s224, %s238
    %p240 = scmp.eq.s32.totalorder %s22, 0
    %p241 = por %p239, %p240
    %s243 = sadd.s32 %s242, 1
    %p246 = scmp.eq.s32.totalorder %s16, 3
    %p247 = scmp.ne.s32.totalorder %s242, %s244
    %p248 = scmp.eq.s32.totalorder %s16, 0
    %p249 = por %p247, %p248
    %p250 = scmp.ne.s32.totalorder %s242, %s244
    %p251 = scmp.eq.s32.totalorder %s21, 3
    %p252 = por %p250, %p251
    %p253 = scmp.ne.s32.totalorder %s244, %s245
    %p254 = scmp.eq.s32.totalorder %s21, 0
    %p255 = por %p253, %p254
    %p256 = scmp.ne.s32.totalorder %s244, %s245
    %p257 = scmp.eq.s32.totalorder %s22, 3
    %p258 = por %p256, %p257
    %p260 = scmp.ne.s32.totalorder %s245, %s259
    %p261 = scmp.eq.s32.totalorder %s22, 0
    %p262 = por %p260, %p261
    %s264 = sadd.s32 %s263, 1
    %p267 = scmp.eq.s32.totalorder %s16, 3
    %p268 = scmp.ne.s32.totalorder %s263, %s265
    %p269 = scmp.eq.s32.totalorder %s16, 0
    %p270 = por %p268, %p269
    %p271 = scmp.ne.s32.totalorder %s263, %s265
    %p272 = scmp.eq.s32.totalorder %s21, 3
    %p273 = por %p271, %p272
    %p274 = scmp.ne.s32.totalorder %s265, %s266
    %p275 = scmp.eq.s32.totalorder %s21, 0
    %p276 = por %p274, %p275
    %p277 = scmp.ne.s32.totalorder %s265, %s266
    %p278 = scmp.eq.s32.totalorder %s22, 3
    %p279 = por %p277, %p278
    %p281 = scmp.ne.s32.totalorder %s266, %s280
    %p282 = scmp.eq.s32.totalorder %s22, 0
    %p283 = por %p281, %p282
    %s284 = ssub.s32 %s24, 1
    %p285 = scmp.gt.s32.totalorder %s284, 0
    %s286 = scalar_select %p285, %s284, 0
    %s287 = ssub.s32 %s31, 1
    %p288 = scmp.gt.s32.totalorder %s287, 0
    %s289 = scalar_select %p288, %s287, 0
    %s290 = ssub.s32 %s23, %s35
    %s291 = ssub.s32 %s286, %s289
    %s292 = sor.u32 %s290, %s291
    %p293 = scmp.eq.s32.totalorder %s292, 0
    %s295 = sadd.s32 %s294, 1
    %s296 = scalar_select %p293, %s294, %s295
    %p299 = pneg %p293
    %p300 = scmp.eq.s32.totalorder %s16, 3
    %p301 = por %p299, %p300
    %p302 = scmp.ne.s32.totalorder %s294, %s297
    %p303 = scmp.eq.s32.totalorder %s16, 0
    %p304 = por %p302, %p303
    %p305 = scmp.ne.s32.totalorder %s294, %s297
    %p306 = scmp.eq.s32.totalorder %s21, 3
    %p307 = por %p305, %p306
    %p308 = scmp.ne.s32.totalorder %s297, %s298
    %p309 = scmp.eq.s32.totalorder %s21, 0
    %p310 = por %p308, %p309
    %p311 = scmp.ne.s32.totalorder %s297, %s298
    %p312 = scmp.eq.s32.totalorder %s22, 3
    %p313 = por %p311, %p312
    %p315 = scmp.ne.s32.totalorder %s298, %s314
    %p316 = scmp.eq.s32.totalorder %s22, 0
    %p317 = por %p315, %p316
    %p318 = scmp.le.s32.totalorder 1, %s16
    %p319 = scmp.lt.s32.totalorder %s16, 5
    %p320 = pnand %p318, %p319
    %p321 = pneg %p320
    // Predicated region
    $region9: #{acfm_forward.1} parent=5 // pred_check
      _
    $region10: #{acfm_forward.1} parent=5 // pred_check_branch
      %323 = sbr.rel (%p320) target = $region12
    $region11: #{acfm_forward.1} parent=5 // pred_region
      %s324 = ssub.s32 %s16, 1
      // Predicated region
      $region13: #{acfm_forward.1} parent=11 // pred_check
        %p325 = pneg %p171
      $region14: #{acfm_forward.1} parent=11 // pred_check_branch
        %327 = sbr.rel (%p325) target = $region16
      $region15: #{acfm_forward.1} parent=11 // pred_region
        _
      $region16: #{acfm_forward.1} parent=11 // pred_fallthru
        _
      // Predicated region
      $region17: #{acfm_forward.1} parent=11 // pred_check
        %p328 = pneg %p192
      $region18: #{acfm_forward.1} parent=11 // pred_check_branch
        %330 = sbr.rel (%p328) target = $region20
      $region19: #{acfm_forward.1} parent=11 // pred_region
        _
      $region20: #{acfm_forward.1} parent=11 // pred_fallthru
        _
      // Predicated region
      $region21: #{acfm_forward.1} parent=11 // pred_check
        %p331 = pneg %p213
      $region22: #{acfm_forward.1} parent=11 // pred_check_branch
        %333 = sbr.rel (%p331) target = $region24
      $region23: #{acfm_forward.1} parent=11 // pred_region
        _
      $region24: #{acfm_forward.1} parent=11 // pred_fallthru
        _
      // Predicated region
      $region25: #{acfm_forward.1} parent=11 // pred_check
        %p334 = pneg %p234
      $region26: #{acfm_forward.1} parent=11 // pred_check_branch
        %336 = sbr.rel (%p334) target = $region28
      $region27: #{acfm_forward.1} parent=11 // pred_region
        _
      $region28: #{acfm_forward.1} parent=11 // pred_fallthru
        _
      // Predicated region
      $region29: #{acfm_forward.1} parent=11 // pred_check
        %p337 = pneg %p255
      $region30: #{acfm_forward.1} parent=11 // pred_check_branch
        %339 = sbr.rel (%p337) target = $region32
      $region31: #{acfm_forward.1} parent=11 // pred_region
        _
      $region32: #{acfm_forward.1} parent=11 // pred_fallthru
        _
      // Predicated region
      $region33: #{acfm_forward.1} parent=11 // pred_check
        %p340 = pneg %p276
      $region34: #{acfm_forward.1} parent=11 // pred_check_branch
        %342 = sbr.rel (%p340) target = $region36
      $region35: #{acfm_forward.1} parent=11 // pred_region
        _
      $region36: #{acfm_forward.1} parent=11 // pred_fallthru
        _
    $region12: #{acfm_forward.1} parent=5 // pred_fallthru
      _
    %p343 = scmp.lt.s32.totalorder %s16, 4
    // Predicated region
    $region37: #{acfm_forward.1} parent=5 // pred_check
      %p344 = pneg %p343
    $region38: #{acfm_forward.1} parent=5 // pred_check_branch
      %346 = sbr.rel (%p344) target = $region40
    $region39: #{acfm_forward.1} parent=5 // pred_region
      // Predicated region
      $region41: #{acfm_forward.1} parent=39 // pred_check
        %p347 = pneg %p48
      $region42: #{acfm_forward.1} parent=39 // pred_check_branch
        %349 = sbr.rel (%p347) target = $region44
      $region43: #{acfm_forward.1} parent=39 // pred_region
        %p350 = scmp.lt.s32.totalorder %s23, 1
        %s351 = scalar_select %p350, %s23, 1
        %s352 = smul.addr %s351, 4
        %s353 = scalar_lea.vmem %s0, %s352
      $region44: #{acfm_forward.1} parent=39 // pred_fallthru
        _
      // Predicated region
      $region45: #{acfm_forward.1} parent=39 // pred_check
        %p354 = pneg %p80
      $region46: #{acfm_forward.1} parent=39 // pred_check_branch
        %356 = sbr.rel (%p354) target = $region48
      $region47: #{acfm_forward.1} parent=39 // pred_region
        %p357 = scmp.lt.s32.totalorder %s24, 0
        %s358 = scalar_select %p357, %s24, 0
        %s359 = smul.u32 16, %s358
        %p360 = scmp.lt.s32.totalorder %s23, 1
        %s361 = scalar_select %p360, %s23, 1
        %p362 = scmp.lt.s32.totalorder %s359, 15
        %s363 = scalar_select %p362, %s359, 15
        %s364 = smul.addr %s363, 2
        %s365 = smul.addr %s361, 32
        %s366 = sadd.s32 %s364, %s365
        %s367 = smul.addr %s366, 8
        %s368 = scalar_lea.vmem %s1, %s367
        %p369 = scmp.lt.s32.totalorder %s24, 0
        %s370 = scalar_select %p369, %s24, 0
        %s371 = smul.u32 16, %s370
      $region48: #{acfm_forward.1} parent=39 // pred_fallthru
        _
      // Predicated region
      $region49: #{acfm_forward.1} parent=39 // pred_check
        %p372 = pneg %p112
      $region50: #{acfm_forward.1} parent=39 // pred_check_branch
        %374 = sbr.rel (%p372) target = $region52
      $region51: #{acfm_forward.1} parent=39 // pred_region
        %p375 = scmp.lt.s32.totalorder %s24, 0
        %s376 = scalar_select %p375, %s24, 0
        %s377 = smul.u32 16, %s376
        %p378 = scmp.lt.s32.totalorder %s23, 1
        %s379 = scalar_select %p378, %s23, 1
        %p380 = scmp.lt.s32.totalorder %s377, 15
        %s381 = scalar_select %p380, %s377, 15
        %s382 = smul.addr %s381, 2
        %s383 = smul.addr %s379, 32
        %s384 = sadd.s32 %s382, %s383
        %s385 = smul.addr %s384, 8
        %s386 = scalar_lea.vmem %s2, %s385
        %p387 = scmp.lt.s32.totalorder %s24, 0
        %s388 = scalar_select %p387, %s24, 0
        %s389 = smul.u32 16, %s388
      $region52: #{acfm_forward.1} parent=39 // pred_fallthru
        _
      // Predicated region
      $region53: #{acfm_forward.1} parent=39 // pred_check
        %p390 = pneg %p144
      $region54: #{acfm_forward.1} parent=39 // pred_check_branch
        %392 = sbr.rel (%p390) target = $region56
      $region55: #{acfm_forward.1} parent=39 // pred_region
        %p393 = scmp.lt.s32.totalorder %s24, 0
        %s394 = scalar_select %p393, %s24, 0
        %s395 = smul.u32 16, %s394
        %p396 = scmp.lt.s32.totalorder %s23, 1
        %s397 = scalar_select %p396, %s23, 1
        %p398 = scmp.lt.s32.totalorder %s395, 15
        %s399 = scalar_select %p398, %s395, 15
        %s400 = smul.addr %s399, 2
        %s401 = smul.addr %s397, 32
        %s402 = sadd.s32 %s400, %s401
        %s403 = smul.addr %s402, 8
        %s404 = scalar_lea.vmem %s3, %s403
        %p405 = scmp.lt.s32.totalorder %s24, 0
        %s406 = scalar_select %p405, %s24, 0
        %s407 = smul.u32 16, %s406
      $region56: #{acfm_forward.1} parent=39 // pred_fallthru
        _
    $region40: #{acfm_forward.1} parent=5 // pred_fallthru
      _
    %p408 = scmp.le.s32.totalorder 1, %s16
    %p409 = scmp.lt.s32.totalorder %s16, 5
    %p410 = pnand %p408, %p409
    %p411 = pneg %p410
    // Predicated region
    $region57: #{acfm_forward.1} parent=5 // pred_check
      _
    $region58: #{acfm_forward.1} parent=5 // pred_check_branch
      %413 = sbr.rel (%p410) target = $region60
    $region59: #{acfm_forward.1} parent=5 // pred_region
      %s414 = ssub.s32 %s16, 1
      %p415 = scmp.lt.s32.totalorder %s25, 1
      %s416 = scalar_select %p415, %s25, 1
      %s417 = smul.addr %s416, 4
      %s418 = scalar_lea.vmem %s0, %s417
      %p419 = pneg %p54
      %p420 = pneg %p51
      %p421 = scmp.lt.s32.totalorder %s26, 0
      %s422 = scalar_select %p421, %s26, 0
      %s423 = smul.u32 16, %s422
      %p424 = scmp.lt.s32.totalorder %s25, 1
      %s425 = scalar_select %p424, %s25, 1
      %p426 = scmp.lt.s32.totalorder %s423, 15
      %s427 = scalar_select %p426, %s423, 15
      %s428 = smul.addr %s427, 2
      %s429 = smul.addr %s425, 32
      %s430 = sadd.s32 %s428, %s429
      %s431 = smul.addr %s430, 8
      %s432 = scalar_lea.vmem %s1, %s431
      %p433 = pneg %p86
      %p434 = pneg %p83
      %p435 = scmp.lt.s32.totalorder %s26, 0
      %s436 = scalar_select %p435, %s26, 0
      %s437 = smul.u32 16, %s436
      %p438 = scmp.lt.s32.totalorder %s25, 1
      %s439 = scalar_select %p438, %s25, 1
      %p440 = scmp.lt.s32.totalorder %s437, 15
      %s441 = scalar_select %p440, %s437, 15
      %s442 = smul.addr %s441, 2
      %s443 = smul.addr %s439, 32
      %s444 = sadd.s32 %s442, %s443
      %s445 = smul.addr %s444, 8
      %s446 = scalar_lea.vmem %s2, %s445
      %p447 = pneg %p118
      %p448 = pneg %p115
      %p449 = scmp.lt.s32.totalorder %s26, 0
      %s450 = scalar_select %p449, %s26, 0
      %s451 = smul.u32 16, %s450
      %p452 = scmp.lt.s32.totalorder %s25, 1
      %s453 = scalar_select %p452, %s25, 1
      %p454 = scmp.lt.s32.totalorder %s451, 15
      %s455 = scalar_select %p454, %s451, 15
      %s456 = smul.addr %s455, 2
      %s457 = smul.addr %s453, 32
      %s458 = sadd.s32 %s456, %s457
      %s459 = smul.addr %s458, 8
      %s460 = scalar_lea.vmem %s3, %s459
      %p461 = pneg %p150
      %p462 = pneg %p147
      %p463 = pneg %p171
      %p464 = pneg %p168
      %p465 = pneg %p192
      %p466 = pneg %p189
      %p467 = pneg %p213
      %p468 = pneg %p210
      %p469 = pneg %p234
      %p470 = pneg %p231
      %p471 = pneg %p255
      %p472 = pneg %p252
      %p473 = pneg %p276
      %p474 = pneg %p273
      %p475 = pneg %p310
      %p476 = pneg %p307
      %s477 = ssub.s32 %s26, 1
      %p478 = scmp.gt.s32.totalorder %s477, 0
      %s479 = scalar_select %p478, %s477, 0
      %s480 = smul.u32 16, %s479
      %p481 = scmp.lt.s32.totalorder %s25, 1
      %s482 = scalar_select %p481, %s25, 1
      %p483 = scmp.lt.s32.totalorder %s480, 15
      %s484 = scalar_select %p483, %s480, 15
      %s485 = smul.addr %s484, 2
      %s486 = smul.addr %s482, 32
      %s487 = sadd.s32 %s485, %s486
      %s488 = smul.addr %s487, 8
      %s489 = scalar_lea.vmem %s10, %s488
      %p490 = scmp.lt.s32.totalorder %s25, 1
      %s491 = scalar_select %p490, %s25, 1
      %s492 = smul.addr %s491, 4
      %s493 = scalar_lea.vmem %s0, %s492
      %p494 = scmp.lt.s32.totalorder %s26, 0
      %s495 = scalar_select %p494, %s26, 0
      %s496 = smul.u32 16, %s495
      %p497 = scmp.lt.s32.totalorder %s25, 1
      %s498 = scalar_select %p497, %s25, 1
      %p499 = scmp.lt.s32.totalorder %s496, 15
      %s500 = scalar_select %p499, %s496, 15
      %s501 = smul.addr %s500, 2
      %s502 = smul.addr %s498, 32
      %s503 = sadd.s32 %s501, %s502
      %s504 = smul.addr %s503, 8
      %s505 = scalar_lea.vmem %s1, %s504
      %p506 = scmp.lt.s32.totalorder %s26, 0
      %s507 = scalar_select %p506, %s26, 0
      %s508 = smul.u32 16, %s507
      %p509 = scmp.lt.s32.totalorder %s26, 0
      %s510 = scalar_select %p509, %s26, 0
      %s511 = smul.u32 16, %s510
      %p512 = scmp.lt.s32.totalorder %s25, 1
      %s513 = scalar_select %p512, %s25, 1
      %p514 = scmp.lt.s32.totalorder %s511, 15
      %s515 = scalar_select %p514, %s511, 15
      %s516 = smul.addr %s515, 2
      %s517 = smul.addr %s513, 32
      %s518 = sadd.s32 %s516, %s517
      %s519 = smul.addr %s518, 8
      %s520 = scalar_lea.vmem %s2, %s519
      %p521 = scmp.lt.s32.totalorder %s26, 0
      %s522 = scalar_select %p521, %s26, 0
      %s523 = smul.u32 16, %s522
      %p524 = scmp.lt.s32.totalorder %s26, 0
      %s525 = scalar_select %p524, %s26, 0
      %s526 = smul.u32 16, %s525
      %p527 = scmp.lt.s32.totalorder %s25, 1
      %s528 = scalar_select %p527, %s25, 1
      %p529 = scmp.lt.s32.totalorder %s526, 15
      %s530 = scalar_select %p529, %s526, 15
      %s531 = smul.addr %s530, 2
      %s532 = smul.addr %s528, 32
      %s533 = sadd.s32 %s531, %s532
      %s534 = smul.addr %s533, 8
      %s535 = scalar_lea.vmem %s3, %s534
      %p536 = scmp.lt.s32.totalorder %s26, 0
      %s537 = scalar_select %p536, %s26, 0
      %s538 = smul.u32 16, %s537
      %s539 = ssub.s32 %s26, 1
      %p540 = scmp.gt.s32.totalorder %s539, 0
      %s541 = scalar_select %p540, %s539, 0
      %s542 = smul.u32 16, %s541
      %p543 = scmp.lt.s32.totalorder %s25, 1
      %s544 = scalar_select %p543, %s25, 1
      %p545 = scmp.lt.s32.totalorder %s542, 15
      %s546 = scalar_select %p545, %s542, 15
      %s547 = smul.addr %s546, 2
      %s548 = smul.addr %s544, 32
      %s549 = sadd.s32 %s547, %s548
      %s550 = smul.addr %s549, 8
      %s551 = scalar_lea.vmem %s10, %s550
      %s552 = ssub.s32 %s26, 1
      %p553 = scmp.gt.s32.totalorder %s552, 0
      %s554 = scalar_select %p553, %s552, 0
      %s555 = smul.u32 16, %s554
      %p556 = scmp.eq.s32.totalorder %s26, 0
      // Predicated region
      $region61: #{acfm_forward.1} parent=59 // pred_check
        %p557 = pneg %p556
      $region62: #{acfm_forward.1} parent=59 // pred_check_branch
        %559 = sbr.rel (%p557) target = $region64
      $region63: #{acfm_forward.1} parent=59 // pred_region
        %vm560 = vcmask 130048
        %561 = vst.msk [vmem:[#allocation2] sm:$0xff] %vm560, 0.0
        %562 = vst.msk [vmem:[#allocation2 + $0x8] sm:$0xff] %vm560, 0.0
        %vm563 = vcmask 123904
        %564 = vst.msk [vmem:[#allocation2 + $0x10] sm:$0x3] %vm563, 0.0
        %565 = vst.msk [vmem:[#allocation2 + $0x18] sm:$0xff] %vm560, 0.0
        %566 = vst.msk [vmem:[#allocation2 + $0x20] sm:$0xff] %vm560, 0.0
        %567 = vst.msk [vmem:[#allocation2 + $0x28] sm:$0x3] %vm563, 0.0
        %568 = vst.msk [vmem:[#allocation2 + $0x30] sm:$0xff] %vm560, 0.0
        %569 = vst.msk [vmem:[#allocation2 + $0x38] sm:$0xff] %vm560, 0.0
        %570 = vst.msk [vmem:[#allocation2 + $0x40] sm:$0x3] %vm563, 0.0
        %571 = vst.msk [vmem:[#allocation2 + $0x48] sm:$0xff] %vm560, 0.0
        %572 = vst.msk [vmem:[#allocation2 + $0x50] sm:$0xff] %vm560, 0.0
        %573 = vst.msk [vmem:[#allocation2 + $0x58] sm:$0x3] %vm563, 0.0
        %574 = vst.msk [vmem:[#allocation2 + $0x60] sm:$0xff] %vm560, 0.0
        %575 = vst.msk [vmem:[#allocation2 + $0x68] sm:$0xff] %vm560, 0.0
        %576 = vst.msk [vmem:[#allocation2 + $0x70] sm:$0x3] %vm563, 0.0
        %577 = vst.msk [vmem:[#allocation2 + $0x78] sm:$0xff] %vm560, 0.0
        %578 = vst.msk [vmem:[#allocation2 + $0x80] sm:$0xff] %vm560, 0.0
        %579 = vst.msk [vmem:[#allocation2 + $0x88] sm:$0x3] %vm563, 0.0
        %580 = vst.msk [vmem:[#allocation2 + $0x90] sm:$0xff] %vm560, 0.0
        %581 = vst.msk [vmem:[#allocation2 + $0x98] sm:$0xff] %vm560, 0.0
        %582 = vst.msk [vmem:[#allocation2 + $0xa0] sm:$0x3] %vm563, 0.0
        %583 = vst.msk [vmem:[#allocation2 + $0xa8] sm:$0xff] %vm560, 0.0
        %584 = vst.msk [vmem:[#allocation2 + $0xb0] sm:$0xff] %vm560, 0.0
        %585 = vst.msk [vmem:[#allocation2 + $0xb8] sm:$0x3] %vm563, 0.0
        %586 = vst.msk [vmem:[#allocation2 + $0xc0] sm:$0xff] %vm560, 0.0
        %587 = vst.msk [vmem:[#allocation2 + $0xc8] sm:$0xff] %vm560, 0.0
        %588 = vst.msk [vmem:[#allocation2 + $0xd0] sm:$0x3] %vm563, 0.0
        %589 = vst.msk [vmem:[#allocation2 + $0xd8] sm:$0xff] %vm560, 0.0
        %590 = vst.msk [vmem:[#allocation2 + $0xe0] sm:$0xff] %vm560, 0.0
        %591 = vst.msk [vmem:[#allocation2 + $0xe8] sm:$0x3] %vm563, 0.0
        %592 = vst.msk [vmem:[#allocation2 + $0xf0] sm:$0xff] %vm560, 0.0
        %593 = vst.msk [vmem:[#allocation2 + $0xf8] sm:$0xff] %vm560, 0.0
        %594 = vst.msk [vmem:[#allocation2 + $0x100] sm:$0x3] %vm563, 0.0
        %595 = vst.msk [vmem:[#allocation2 + $0x108] sm:$0xff] %vm560, 0.0
        %596 = vst.msk [vmem:[#allocation2 + $0x110] sm:$0xff] %vm560, 0.0
        %597 = vst.msk [vmem:[#allocation2 + $0x118] sm:$0x3] %vm563, 0.0
        %598 = vst.msk [vmem:[#allocation2 + $0x120] sm:$0xff] %vm560, 0.0
        %599 = vst.msk [vmem:[#allocation2 + $0x128] sm:$0xff] %vm560, 0.0
        %600 = vst.msk [vmem:[#allocation2 + $0x130] sm:$0x3] %vm563, 0.0
        %601 = vst.msk [vmem:[#allocation2 + $0x138] sm:$0xff] %vm560, 0.0
        %602 = vst.msk [vmem:[#allocation2 + $0x140] sm:$0xff] %vm560, 0.0
        %603 = vst.msk [vmem:[#allocation2 + $0x148] sm:$0x3] %vm563, 0.0
        %604 = vst.msk [vmem:[#allocation2 + $0x150] sm:$0xff] %vm560, 0.0
        %605 = vst.msk [vmem:[#allocation2 + $0x158] sm:$0xff] %vm560, 0.0
        %606 = vst.msk [vmem:[#allocation2 + $0x160] sm:$0x3] %vm563, 0.0
        %607 = vst.msk [vmem:[#allocation2 + $0x168] sm:$0xff] %vm560, 0.0
        %608 = vst.msk [vmem:[#allocation2 + $0x170] sm:$0xff] %vm560, 0.0
        %609 = vst.msk [vmem:[#allocation2 + $0x178] sm:$0x3] %vm563, 0.0
        %610 = vst.msk [vmem:[#allocation2 + $0x180] sm:$0xff] %vm560, 0.0
        %611 = vst.msk [vmem:[#allocation2 + $0x188] sm:$0xff] %vm560, 0.0
        %612 = vst.msk [vmem:[#allocation2 + $0x190] sm:$0x3] %vm563, 0.0
        %613 = vst.msk [vmem:[#allocation2 + $0x198] sm:$0xff] %vm560, 0.0
        %614 = vst.msk [vmem:[#allocation2 + $0x1a0] sm:$0xff] %vm560, 0.0
        %615 = vst.msk [vmem:[#allocation2 + $0x1a8] sm:$0x3] %vm563, 0.0
      $region64: #{acfm_forward.1} parent=59 // pred_fallthru
        _
      %p616 = scmp.lt.s32.totalorder %s26, 1
      // Predicated region
      $region65: #{acfm_forward.1} parent=59 // pred_check
        %p617 = pneg %p616
      $region66: #{acfm_forward.1} parent=59 // pred_check_branch
        %619 = sbr.rel (%p617) target = $region68
      $region67: #{acfm_forward.1} parent=59 // pred_region
        %v620 = vld [vmem:[%s505] sm:$0xff]
        %v621 = vld [vmem:[%s505 + $0x8] sm:$0xff]
        %v622 = vld [vmem:[%s505 + $0x10] sm:$0xff]
        %v623 = vld [vmem:[%s505 + $0x18] sm:$0xff]
        %v624 = vld [vmem:[%s505 + $0x20] sm:$0xff]
        %v625 = vld [vmem:[%s505 + $0x28] sm:$0xff]
        %v626 = vld [vmem:[%s505 + $0x30] sm:$0xff]
        %v627 = vld [vmem:[%s505 + $0x38] sm:$0xff]
        %v628 = vld [vmem:[%s505 + $0x40] sm:$0xff]
        %v629 = vld [vmem:[%s505 + $0x48] sm:$0xff]
        %v630 = vld [vmem:[%s505 + $0x50] sm:$0xff]
        %v631 = vld [vmem:[%s505 + $0x58] sm:$0xff]
        %v632 = vld [vmem:[%s505 + $0x60] sm:$0xff]
        %v633 = vld [vmem:[%s505 + $0x68] sm:$0xff]
        %v634 = vld [vmem:[%s505 + $0x70] sm:$0xff]
        %v635 = vld [vmem:[%s505 + $0x78] sm:$0xff]
        %v636 = vld [vmem:[%s505 + $0x80] sm:$0xff]
        %v637 = vld [vmem:[%s505 + $0x88] sm:$0xff]
        %v638 = vld [vmem:[%s505 + $0x90] sm:$0xff]
        %v639 = vld [vmem:[%s505 + $0x98] sm:$0xff]
        %v640 = vld [vmem:[%s505 + $0xa0] sm:$0xff]
        %v641 = vld [vmem:[%s505 + $0xa8] sm:$0xff]
        %v642 = vld [vmem:[%s505 + $0xb0] sm:$0xff]
        %v643 = vld [vmem:[%s505 + $0xb8] sm:$0xff]
        %v644 = vld [vmem:[%s505 + $0xc0] sm:$0xff]
        %v645 = vld [vmem:[%s505 + $0xc8] sm:$0xff]
        %v646 = vld [vmem:[%s505 + $0xd0] sm:$0xff]
        %v647 = vld [vmem:[%s505 + $0xd8] sm:$0xff]
        %v648 = vld [vmem:[%s505 + $0xe0] sm:$0xff]
        %v649 = vld [vmem:[%s505 + $0xe8] sm:$0xff]
        %v650 = vld [vmem:[%s505 + $0xf0] sm:$0xff]
        %v651 = vld [vmem:[%s505 + $0xf8] sm:$0xff]
        %v652 = vld [vmem:[%s520] sm:$0xff]
        %v653 = vld [vmem:[%s520 + $0x8] sm:$0xff]
        %v654 = vld [vmem:[%s520 + $0x10] sm:$0xff]
        %v655 = vld [vmem:[%s520 + $0x18] sm:$0xff]
        %v656 = vld [vmem:[%s520 + $0x20] sm:$0xff]
        %v657 = vld [vmem:[%s520 + $0x28] sm:$0xff]
        %v658 = vld [vmem:[%s520 + $0x30] sm:$0xff]
        %v659 = vld [vmem:[%s520 + $0x38] sm:$0xff]
        %v660 = vld [vmem:[%s520 + $0x40] sm:$0xff]
        %v661 = vld [vmem:[%s520 + $0x48] sm:$0xff]
        %v662 = vld [vmem:[%s520 + $0x50] sm:$0xff]
        %v663 = vld [vmem:[%s520 + $0x58] sm:$0xff]
        %v664 = vld [vmem:[%s520 + $0x60] sm:$0xff]
        %v665 = vld [vmem:[%s520 + $0x68] sm:$0xff]
        %v666 = vld [vmem:[%s520 + $0x70] sm:$0xff]
        %v667 = vld [vmem:[%s520 + $0x78] sm:$0xff]
        %v668 = vld [vmem:[%s520 + $0x80] sm:$0xff]
        %v669 = vld [vmem:[%s520 + $0x88] sm:$0xff]
        %v670 = vld [vmem:[%s520 + $0x90] sm:$0xff]
        %v671 = vld [vmem:[%s520 + $0x98] sm:$0xff]
        %v672 = vld [vmem:[%s520 + $0xa0] sm:$0xff]
        %v673 = vld [vmem:[%s520 + $0xa8] sm:$0xff]
        %v674 = vld [vmem:[%s520 + $0xb0] sm:$0xff]
        %v675 = vld [vmem:[%s520 + $0xb8] sm:$0xff]
        %v676 = vld [vmem:[%s520 + $0xc0] sm:$0xff]
        %v677 = vld [vmem:[%s520 + $0xc8] sm:$0xff]
        %v678 = vld [vmem:[%s520 + $0xd0] sm:$0xff]
        %v679 = vld [vmem:[%s520 + $0xd8] sm:$0xff]
        %v680 = vld [vmem:[%s520 + $0xe0] sm:$0xff]
        %v681 = vld [vmem:[%s520 + $0xe8] sm:$0xff]
        %v682 = vld [vmem:[%s520 + $0xf0] sm:$0xff]
        %v683 = vld [vmem:[%s520 + $0xf8] sm:$0xff]
        %v684 = vld [vmem:[%s535] sm:$0xff]
        %v685 = vld [vmem:[%s535 + $0x8] sm:$0xff]
        %v686 = vld [vmem:[%s535 + $0x10] sm:$0xff]
        %v687 = vld [vmem:[%s535 + $0x18] sm:$0xff]
        %v688 = vld [vmem:[%s535 + $0x20] sm:$0xff]
        %v689 = vld [vmem:[%s535 + $0x28] sm:$0xff]
        %v690 = vld [vmem:[%s535 + $0x30] sm:$0xff]
        %v691 = vld [vmem:[%s535 + $0x38] sm:$0xff]
        %v692 = vld [vmem:[%s535 + $0x40] sm:$0xff]
        %v693 = vld [vmem:[%s535 + $0x48] sm:$0xff]
        %v694 = vld [vmem:[%s535 + $0x50] sm:$0xff]
        %v695 = vld [vmem:[%s535 + $0x58] sm:$0xff]
        %v696 = vld [vmem:[%s535 + $0x60] sm:$0xff]
        %v697 = vld [vmem:[%s535 + $0x68] sm:$0xff]
        %v698 = vld [vmem:[%s535 + $0x70] sm:$0xff]
        %v699 = vld [vmem:[%s535 + $0x78] sm:$0xff]
        %v700 = vld [vmem:[%s535 + $0x80] sm:$0xff]
        %v701 = vld [vmem:[%s535 + $0x88] sm:$0xff]
        %v702 = vld [vmem:[%s535 + $0x90] sm:$0xff]
        %v703 = vld [vmem:[%s535 + $0x98] sm:$0xff]
        %v704 = vld [vmem:[%s535 + $0xa0] sm:$0xff]
        %v705 = vld [vmem:[%s535 + $0xa8] sm:$0xff]
        %v706 = vld [vmem:[%s535 + $0xb0] sm:$0xff]
        %v707 = vld [vmem:[%s535 + $0xb8] sm:$0xff]
        %v708 = vld [vmem:[%s535 + $0xc0] sm:$0xff]
        %v709 = vld [vmem:[%s535 + $0xc8] sm:$0xff]
        %v710 = vld [vmem:[%s535 + $0xd0] sm:$0xff]
        %v711 = vld [vmem:[%s535 + $0xd8] sm:$0xff]
        %v712 = vld [vmem:[%s535 + $0xe0] sm:$0xff]
        %v713 = vld [vmem:[%s535 + $0xe8] sm:$0xff]
        %v714 = vld [vmem:[%s535 + $0xf0] sm:$0xff]
        %v715 = vld [vmem:[%s535 + $0xf8] sm:$0xff]
        %v716 = vld [vmem:[%s493] sm:$0x7]
        %v717 = vld [vmem:[%s4] sm:$0xff]
        %v718 = vld [vmem:[%s4 + $0x8] sm:$0xff]
        %v719 = vld [vmem:[%s5] sm:$0x1]
        %v720 = vld [vmem:[%s6] sm:$0xf]
        %v721 = vld [vmem:[%s7] sm:$0x1]
        %v722 = vadd.f32 %v620, %v652
        %v723 = vadd.f32 %v621, %v653
        %v724 = vadd.f32 %v622, %v654
        %v725 = vadd.f32 %v623, %v655
        %v726 = vadd.f32 %v624, %v656
        %v727 = vadd.f32 %v625, %v657
        %v728 = vadd.f32 %v626, %v658
        %v729 = vadd.f32 %v627, %v659
        %v730 = vadd.f32 %v628, %v660
        %v731 = vadd.f32 %v629, %v661
        %v732 = vadd.f32 %v630, %v662
        %v733 = vadd.f32 %v631, %v663
        %v734 = vadd.f32 %v632, %v664
        %v735 = vadd.f32 %v633, %v665
        %v736 = vadd.f32 %v634, %v666
        %v737 = vadd.f32 %v635, %v667
        %v738 = vadd.f32 %v636, %v668
        %v739 = vadd.f32 %v637, %v669
        %v740 = vadd.f32 %v638, %v670
        %v741 = vadd.f32 %v639, %v671
        %v742 = vadd.f32 %v640, %v672
        %v743 = vadd.f32 %v641, %v673
        %v744 = vadd.f32 %v642, %v674
        %v745 = vadd.f32 %v643, %v675
        %v746 = vadd.f32 %v644, %v676
        %v747 = vadd.f32 %v645, %v677
        %v748 = vadd.f32 %v646, %v678
        %v749 = vadd.f32 %v647, %v679
        %v750 = vadd.f32 %v648, %v680
        %v751 = vadd.f32 %v649, %v681
        %v752 = vadd.f32 %v650, %v682
        %v753 = vadd.f32 %v651, %v683
        %v754 = vadd.f32 %v722, %v684
        %v755 = vadd.f32 %v723, %v685
        %v756 = vadd.f32 %v724, %v686
        %v757 = vadd.f32 %v725, %v687
        %v758 = vadd.f32 %v726, %v688
        %v759 = vadd.f32 %v727, %v689
        %v760 = vadd.f32 %v728, %v690
        %v761 = vadd.f32 %v729, %v691
        %v762 = vadd.f32 %v730, %v692
        %v763 = vadd.f32 %v731, %v693
        %v764 = vadd.f32 %v732, %v694
        %v765 = vadd.f32 %v733, %v695
        %v766 = vadd.f32 %v734, %v696
        %v767 = vadd.f32 %v735, %v697
        %v768 = vadd.f32 %v736, %v698
        %v769 = vadd.f32 %v737, %v699
        %v770 = vadd.f32 %v738, %v700
        %v771 = vadd.f32 %v739, %v701
        %v772 = vadd.f32 %v740, %v702
        %v773 = vadd.f32 %v741, %v703
        %v774 = vadd.f32 %v742, %v704
        %v775 = vadd.f32 %v743, %v705
        %v776 = vadd.f32 %v744, %v706
        %v777 = vadd.f32 %v745, %v707
        %v778 = vadd.f32 %v746, %v708
        %v779 = vadd.f32 %v747, %v709
        %v780 = vadd.f32 %v748, %v710
        %v781 = vadd.f32 %v749, %v711
        %v782 = vadd.f32 %v750, %v712
        %v783 = vadd.f32 %v751, %v713
        %v784 = vadd.f32 %v752, %v714
        %v785 = vadd.f32 %v753, %v715
        %v787 = vlaneseq
        %v788 = vshrl.u32 %v787, 7
        %v789 = vsub.s32 0, %v788
        %v790 = vrot.slane %v719, %v789
        %vm792 = vcmask 130048
        %v794 = vsel %vm792, %v722, 0
        %v797 = vsel %vm792, %v723, 0
        %v800 = vsel %vm792, %v724, 0
        %v803 = vsel %vm792, %v725, 0
        %v806 = vsel %vm792, %v726, 0
        %v809 = vsel %vm792, %v727, 0
        %v812 = vsel %vm792, %v728, 0
        %v815 = vsel %vm792, %v729, 0
        %v818 = vsel %vm792, %v730, 0
        %v821 = vsel %vm792, %v731, 0
        %v824 = vsel %vm792, %v732, 0
        %v827 = vsel %vm792, %v733, 0
        %v830 = vsel %vm792, %v734, 0
        %v833 = vsel %vm792, %v735, 0
        %v836 = vsel %vm792, %v736, 0
        %v839 = vsel %vm792, %v737, 0
        %v842 = vsel %vm792, %v738, 0
        %v845 = vsel %vm792, %v739, 0
        %v848 = vsel %vm792, %v740, 0
        %v851 = vsel %vm792, %v741, 0
        %v854 = vsel %vm792, %v742, 0
        %v857 = vsel %vm792, %v743, 0
        %v860 = vsel %vm792, %v744, 0
        %v863 = vsel %vm792, %v745, 0
        %v866 = vsel %vm792, %v746, 0
        %v869 = vsel %vm792, %v747, 0
        %v872 = vsel %vm792, %v748, 0
        %v875 = vsel %vm792, %v749, 0
        %v878 = vsel %vm792, %v750, 0
        %v881 = vsel %vm792, %v751, 0
        %v884 = vsel %vm792, %v752, 0
        %v887 = vsel %vm792, %v753, 0
        %889 = vmatprep.subr.mxu0 0.0
        %890 = vmatpush1.msra.mxu0 %v717
        %891 = vmatprep.subr.mxu0 0.0
        %892 = vmatpush1.msra.mxu0 %v718
        %893 = vmatprep.subr.mxu0 0.0
        %894 = vmatpush1.msra.mxu0 0.0
        %895 = vmatprep.subr.mxu0 0.0
        %896 = vmatpush1.msra.mxu0 0.0
        %897 = vmatprep.subr.mxu0 0.0
        %898 = vmatpush1.msra.mxu0 0.0
        %899 = vmatprep.subr.mxu0 0.0
        %900 = vmatpush1.msra.mxu0 0.0
        %901 = vmatprep.subr.mxu0 0.0
        %902 = vmatpush1.msra.mxu0 0.0
        %903 = vmatprep.subr.mxu0 0.0
        %904 = vmatpush1.msra.mxu0 0.0
        %905 = vmatprep.subr.mxu0 0.0
        %906 = vmatpush1.msra.mxu0 0.0
        %907 = vmatprep.subr.mxu0 0.0
        %908 = vmatpush1.msra.mxu0 0.0
        %909 = vmatprep.subr.mxu0 0.0
        %910 = vmatpush1.msra.mxu0 0.0
        %911 = vmatprep.subr.mxu0 0.0
        %912 = vmatpush1.msra.mxu0 0.0
        %913 = vmatprep.subr.mxu0 0.0
        %914 = vmatpush1.msra.mxu0 0.0
        %915 = vmatprep.subr.mxu0 0.0
        %916 = vmatpush1.msra.mxu0 0.0
        %917 = vmatprep.subr.mxu0 0.0
        %918 = vmatpush1.msra.mxu0 0.0
        %919 = vmatprep.subr.mxu0 0.0
        %920 = vmatpush1.msra.mxu0 0.0
        %921 = vmatprep.subr.mxu0 0.0
        %922 = vmatpush1.msra.mxu0 0.0
        %923 = vmatprep.subr.mxu0 0.0
        %924 = vmatpush1.msra.mxu0 0.0
        %925 = vmatprep.subr.mxu0 0.0
        %926 = vmatpush1.msra.mxu0 0.0
        %927 = vmatprep.subr.mxu0 0.0
        %928 = vmatpush1.msra.mxu0 0.0
        %929 = vmatprep.subr.mxu0 0.0
        %930 = vmatpush1.msra.mxu0 0.0
        %931 = vmatprep.subr.mxu0 0.0
        %932 = vmatpush1.msra.mxu0 0.0
        %933 = vmatprep.subr.mxu0 0.0
        %934 = vmatpush1.msra.mxu0 0.0
        %935 = vmatprep.subr.mxu0 0.0
        %936 = vmatpush1.msra.mxu0 0.0
        %937 = vmatprep.subr.mxu0 0.0
        %938 = vmatpush1.msra.mxu0 0.0
        %939 = vmatprep.subr.mxu0 0.0
        %940 = vmatpush1.msra.mxu0 0.0
        %941 = vmatprep.subr.mxu0 0.0
        %942 = vmatpush1.msra.mxu0 0.0
        %943 = vmatprep.subr.mxu0 0.0
        %944 = vmatpush1.msra.mxu0 0.0
        %945 = vmatprep.subr.mxu0 0.0
        %946 = vmatpush1.msra.mxu0 0.0
        %947 = vmatprep.subr.mxu0 0.0
        %948 = vmatpush1.msra.mxu0 0.0
        %949 = vmatprep.subr.mxu0 0.0
        %950 = vmatpush1.msra.mxu0 0.0
        %951 = vmatprep.subr.mxu0 0.0
        %952 = vmatpush1.msra.mxu0 0.0
        %953 = vmatprep.mubr.f32.mxu0 0.0
        %954 = vmatmul.mubr.f32.gmra.mrb[0].mxu0 %v794
        %v955 = vpop.f32.mrb[0].mxu0
        %v956 = vadd.f32 %v790, %v955
        %v957 = vpop.f32.mrb[0].mxu0
        %958 = vmatprep.mubr.f32.mxu0 0.0
        %959 = vmatmul.mubr.f32.gmra.mrb[0].mxu0 %v797
        %v960 = vpop.f32.mrb[0].mxu0
        %v961 = vadd.f32 %v790, %v960
        %v962 = vpop.f32.mrb[0].mxu0
        %963 = vmatprep.mubr.f32.mxu0 0.0
        %964 = vmatmul.mubr.f32.gmra.mrb[0].mxu0 %v800
        %v965 = vpop.f32.mrb[0].mxu0
        %v966 = vadd.f32 %v790, %v965
        %v967 = vpop.f32.mrb[0].mxu0
        %968 = vmatprep.mubr.f32.mxu0 0.0
        %969 = vmatmul.mubr.f32.gmra.mrb[0].mxu0 %v803
        %v970 = vpop.f32.mrb[0].mxu0
        %v971 = vadd.f32 %v790, %v970
        %v972 = vpop.f32.mrb[0].mxu0
        %973 = vmatprep.mubr.f32.mxu0 0.0
        %974 = vmatmul.mubr.f32.gmra.mrb[0].mxu0 %v806
        %v975 = vpop.f32.mrb[0].mxu0
        %v976 = vadd.f32 %v790, %v975
        %v977 = vpop.f32.mrb[0].mxu0
        %978 = vmatprep.mubr.f32.mxu0 0.0
        %979 = vmatmul.mubr.f32.gmra.mrb[0].mxu0 %v809
        %v980 = vpop.f32.mrb[0].mxu0
        %v981 = vadd.f32 %v790, %v980
        %v982 = vpop.f32.mrb[0].mxu0
        %983 = vmatprep.mubr.f32.mxu0 0.0
        %984 = vmatmul.mubr.f32.gmra.mrb[0].mxu0 %v812
        %v985 = vpop.f32.mrb[0].mxu0
        %v986 = vadd.f32 %v790, %v985
        %v987 = vpop.f32.mrb[0].mxu0
        %988 = vmatprep.mubr.f32.mxu0 0.0
        %989 = vmatmul.mubr.f32.gmra.mrb[0].mxu0 %v815
        %v990 = vpop.f32.mrb[0].mxu0
        %v991 = vadd.f32 %v790, %v990
        %v992 = vpop.f32.mrb[0].mxu0
        %993 = vmatprep.mubr.f32.mxu0 0.0
        %994 = vmatmul.mubr.f32.gmra.mrb[0].mxu0 %v818
        %v995 = vpop.f32.mrb[0].mxu0
        %v996 = vadd.f32 %v790, %v995
        %v997 = vpop.f32.mrb[0].mxu0
        %998 = vmatprep.mubr.f32.mxu0 0.0
        %999 = vmatmul.mubr.f32.gmra.mrb[0].mxu0 %v821
        %v1000 = vpop.f32.mrb[0].mxu0
        %v1001 = vadd.f32 %v790, %v1000
        %v1002 = vpop.f32.mrb[0].mxu0
        %1003 = vmatprep.mubr.f32.mxu0 0.0
        %1004 = vmatmul.mubr.f32.gmra.mrb[0].mxu0 %v824
        %v1005 = vpop.f32.mrb[0].mxu0
        %v1006 = vadd.f32 %v790, %v1005
        %v1007 = vpop.f32.mrb[0].mxu0
        %1008 = vmatprep.mubr.f32.mxu0 0.0
        %1009 = vmatmul.mubr.f32.gmra.mrb[0].mxu0 %v827
        %v1010 = vpop.f32.mrb[0].mxu0
        %v1011 = vadd.f32 %v790, %v1010
        %v1012 = vpop.f32.mrb[0].mxu0
        %1013 = vmatprep.mubr.f32.mxu0 0.0
        %1014 = vmatmul.mubr.f32.gmra.mrb[0].mxu0 %v830
        %v1015 = vpop.f32.mrb[0].mxu0
        %v1016 = vadd.f32 %v790, %v1015
        %v1017 = vpop.f32.mrb[0].mxu0
        %1018 = vmatprep.mubr.f32.mxu0 0.0
        %1019 = vmatmul.mubr.f32.gmra.mrb[0].mxu0 %v833
        %v1020 = vpop.f32.mrb[0].mxu0
        %v1021 = vadd.f32 %v790, %v1020
        %v1022 = vpop.f32.mrb[0].mxu0
        %1023 = vmatprep.mubr.f32.mxu0 0.0
        %1024 = vmatmul.mubr.f32.gmra.mrb[0].mxu0 %v836
        %v1025 = vpop.f32.mrb[0].mxu0
        %v1026 = vadd.f32 %v790, %v1025
        %v1027 = vpop.f32.mrb[0].mxu0
        %1028 = vmatprep.mubr.f32.mxu0 0.0
        %1029 = vmatmul.mubr.f32.gmra.mrb[0].mxu0 %v839
        %v1030 = vpop.f32.mrb[0].mxu0
        %v1031 = vadd.f32 %v790, %v1030
        %v1032 = vpop.f32.mrb[0].mxu0
        %1033 = vmatprep.mubr.f32.mxu0 0.0
        %1034 = vmatmul.mubr.f32.gmra.mrb[0].mxu0 %v842
        %v1035 = vpop.f32.mrb[0].mxu0
        %v1036 = vadd.f32 %v790, %v1035
        %v1037 = vpop.f32.mrb[0].mxu0
        %1038 = vmatprep.mubr.f32.mxu0 0.0
        %1039 = vmatmul.mubr.f32.gmra.mrb[0].mxu0 %v845
        %v1040 = vpop.f32.mrb[0].mxu0
        %v1041 = vadd.f32 %v790, %v1040
        %v1042 = vpop.f32.mrb[0].mxu0
        %1043 = vmatprep.mubr.f32.mxu0 0.0
        %1044 = vmatmul.mubr.f32.gmra.mrb[0].mxu0 %v848
        %v1045 = vpop.f32.mrb[0].mxu0
        %v1046 = vadd.f32 %v790, %v1045
        %v1047 = vpop.f32.mrb[0].mxu0
        %1048 = vmatprep.mubr.f32.mxu0 0.0
        %1049 = vmatmul.mubr.f32.gmra.mrb[0].mxu0 %v851
        %v1050 = vpop.f32.mrb[0].mxu0
        %v1051 = vadd.f32 %v790, %v1050
        %v1052 = vpop.f32.mrb[0].mxu0
        %1053 = vmatprep.mubr.f32.mxu0 0.0
        %1054 = vmatmul.mubr.f32.gmra.mrb[0].mxu0 %v854
        %v1055 = vpop.f32.mrb[0].mxu0
        %v1056 = vadd.f32 %v790, %v1055
        %v1057 = vpop.f32.mrb[0].mxu0
        %1058 = vmatprep.mubr.f32.mxu0 0.0
        %1059 = vmatmul.mubr.f32.gmra.mrb[0].mxu0 %v857
        %v1060 = vpop.f32.mrb[0].mxu0
        %v1061 = vadd.f32 %v790, %v1060
        %v1062 = vpop.f32.mrb[0].mxu0
        %1063 = vmatprep.mubr.f32.mxu0 0.0
        %1064 = vmatmul.mubr.f32.gmra.mrb[0].mxu0 %v860
        %v1065 = vpop.f32.mrb[0].mxu0
        %v1066 = vadd.f32 %v790, %v1065
        %v1067 = vpop.f32.mrb[0].mxu0
        %1068 = vmatprep.mubr.f32.mxu0 0.0
        %1069 = vmatmul.mubr.f32.gmra.mrb[0].mxu0 %v863
        %v1070 = vpop.f32.mrb[0].mxu0
        %v1071 = vadd.f32 %v790, %v1070
        %v1072 = vpop.f32.mrb[0].mxu0
        %1073 = vmatprep.mubr.f32.mxu0 0.0
        %1074 = vmatmul.mubr.f32.gmra.mrb[0].mxu0 %v866
        %v1075 = vpop.f32.mrb[0].mxu0
        %v1076 = vadd.f32 %v790, %v1075
        %v1077 = vpop.f32.mrb[0].mxu0
        %1078 = vmatprep.mubr.f32.mxu0 0.0
        %1079 = vmatmul.mubr.f32.gmra.mrb[0].mxu0 %v869
        %v1080 = vpop.f32.mrb[0].mxu0
        %v1081 = vadd.f32 %v790, %v1080
        %v1082 = vpop.f32.mrb[0].mxu0
        %1083 = vmatprep.mubr.f32.mxu0 0.0
        %1084 = vmatmul.mubr.f32.gmra.mrb[0].mxu0 %v872
        %v1085 = vpop.f32.mrb[0].mxu0
        %v1086 = vadd.f32 %v790, %v1085
        %v1087 = vpop.f32.mrb[0].mxu0
        %1088 = vmatprep.mubr.f32.mxu0 0.0
        %1089 = vmatmul.mubr.f32.gmra.mrb[0].mxu0 %v875
        %v1090 = vpop.f32.mrb[0].mxu0
        %v1091 = vadd.f32 %v790, %v1090
        %v1092 = vpop.f32.mrb[0].mxu0
        %1093 = vmatprep.mubr.f32.mxu0 0.0
        %1094 = vmatmul.mubr.f32.gmra.mrb[0].mxu0 %v878
        %v1095 = vpop.f32.mrb[0].mxu0
        %v1096 = vadd.f32 %v790, %v1095
        %v1097 = vpop.f32.mrb[0].mxu0
        %1098 = vmatprep.mubr.f32.mxu0 0.0
        %1099 = vmatmul.mubr.f32.gmra.mrb[0].mxu0 %v881
        %v1100 = vpop.f32.mrb[0].mxu0
        %v1101 = vadd.f32 %v790, %v1100
        %v1102 = vpop.f32.mrb[0].mxu0
        %1103 = vmatprep.mubr.f32.mxu0 0.0
        %1104 = vmatmul.mubr.f32.gmra.mrb[0].mxu0 %v884
        %v1105 = vpop.f32.mrb[0].mxu0
        %v1106 = vadd.f32 %v790, %v1105
        %v1107 = vpop.f32.mrb[0].mxu0
        %1108 = vmatprep.mubr.f32.mxu0 0.0
        %1109 = vmatmul.mubr.f32.gmra.mrb[0].mxu0 %v887
        %v1110 = vpop.f32.mrb[0].mxu0
        %v1111 = vadd.f32 %v790, %v1110
        %v1112 = vpop.f32.mrb[0].mxu0
        %1113 = vdwg.mxu0
        %v1114 = vmax.f32 %v956, 0.0
        %v1115 = vmax.f32 %v961, 0.0
        %v1116 = vmax.f32 %v966, 0.0
        %v1117 = vmax.f32 %v971, 0.0
        %v1118 = vmax.f32 %v976, 0.0
        %v1119 = vmax.f32 %v981, 0.0
        %v1120 = vmax.f32 %v986, 0.0
        %v1121 = vmax.f32 %v991, 0.0
        %v1122 = vmax.f32 %v996, 0.0
        %v1123 = vmax.f32 %v1001, 0.0
        %v1124 = vmax.f32 %v1006, 0.0
        %v1125 = vmax.f32 %v1011, 0.0
        %v1126 = vmax.f32 %v1016, 0.0
        %v1127 = vmax.f32 %v1021, 0.0
        %v1128 = vmax.f32 %v1026, 0.0
        %v1129 = vmax.f32 %v1031, 0.0
        %v1130 = vmax.f32 %v1036, 0.0
        %v1131 = vmax.f32 %v1041, 0.0
        %v1132 = vmax.f32 %v1046, 0.0
        %v1133 = vmax.f32 %v1051, 0.0
        %v1134 = vmax.f32 %v1056, 0.0
        %v1135 = vmax.f32 %v1061, 0.0
        %v1136 = vmax.f32 %v1066, 0.0
        %v1137 = vmax.f32 %v1071, 0.0
        %v1138 = vmax.f32 %v1076, 0.0
        %v1139 = vmax.f32 %v1081, 0.0
        %v1140 = vmax.f32 %v1086, 0.0
        %v1141 = vmax.f32 %v1091, 0.0
        %v1142 = vmax.f32 %v1096, 0.0
        %v1143 = vmax.f32 %v1101, 0.0
        %v1144 = vmax.f32 %v1106, 0.0
        %v1145 = vmax.f32 %v1111, 0.0
        %v1147 = vlaneseq
        %v1148 = vshrl.u32 %v1147, 7
        %v1149 = vsub.s32 0, %v1148
        %v1150 = vrot.slane %v721, %v1149
        %vm1152 = vcmask 31744
        %v1154 = vsel %vm1152, %v1114, 0
        %v1157 = vsel %vm1152, %v1115, 0
        %v1160 = vsel %vm1152, %v1116, 0
        %v1163 = vsel %vm1152, %v1117, 0
        %v1166 = vsel %vm1152, %v1118, 0
        %v1169 = vsel %vm1152, %v1119, 0
        %v1172 = vsel %vm1152, %v1120, 0
        %v1175 = vsel %vm1152, %v1121, 0
        %v1178 = vsel %vm1152, %v1122, 0
        %v1181 = vsel %vm1152, %v1123, 0
        %v1184 = vsel %vm1152, %v1124, 0
        %v1187 = vsel %vm1152, %v1125, 0
        %v1190 = vsel %vm1152, %v1126, 0
        %v1193 = vsel %vm1152, %v1127, 0
        %v1196 = vsel %vm1152, %v1128, 0
        %v1199 = vsel %vm1152, %v1129, 0
        %v1202 = vsel %vm1152, %v1130, 0
        %v1205 = vsel %vm1152, %v1131, 0
        %v1208 = vsel %vm1152, %v1132, 0
        %v1211 = vsel %vm1152, %v1133, 0
        %v1214 = vsel %vm1152, %v1134, 0
        %v1217 = vsel %vm1152, %v1135, 0
        %v1220 = vsel %vm1152, %v1136, 0
        %v1223 = vsel %vm1152, %v1137, 0
        %v1226 = vsel %vm1152, %v1138, 0
        %v1229 = vsel %vm1152, %v1139, 0
        %v1232 = vsel %vm1152, %v1140, 0
        %v1235 = vsel %vm1152, %v1141, 0
        %v1238 = vsel %vm1152, %v1142, 0
        %v1241 = vsel %vm1152, %v1143, 0
        %v1244 = vsel %vm1152, %v1144, 0
        %v1247 = vsel %vm1152, %v1145, 0
        %vm1249 = vcmask 1043456
        %v1251 = vsel %vm1249, %v720, 0
        %1253 = vmatprep.subr.mxu0 0.0
        %1254 = vmatpush1.msra.mxu0 %v1251
        %1255 = vmatprep.subr.mxu0 0.0
        %1256 = vmatpush1.msra.mxu0 0.0
        %1257 = vmatprep.subr.mxu0 0.0
        %1258 = vmatpush1.msra.mxu0 0.0
        %1259 = vmatprep.subr.mxu0 0.0
        %1260 = vmatpush1.msra.mxu0 0.0
        %1261 = vmatprep.subr.mxu0 0.0
        %1262 = vmatpush1.msra.mxu0 0.0
        %1263 = vmatprep.subr.mxu0 0.0
        %1264 = vmatpush1.msra.mxu0 0.0
        %1265 = vmatprep.subr.mxu0 0.0
        %1266 = vmatpush1.msra.mxu0 0.0
        %1267 = vmatprep.subr.mxu0 0.0
        %1268 = vmatpush1.msra.mxu0 0.0
        %1269 = vmatprep.subr.mxu0 0.0
        %1270 = vmatpush1.msra.mxu0 0.0
        %1271 = vmatprep.subr.mxu0 0.0
        %1272 = vmatpush1.msra.mxu0 0.0
        %1273 = vmatprep.subr.mxu0 0.0
        %1274 = vmatpush1.msra.mxu0 0.0
        %1275 = vmatprep.subr.mxu0 0.0
        %1276 = vmatpush1.msra.mxu0 0.0
        %1277 = vmatprep.subr.mxu0 0.0
        %1278 = vmatpush1.msra.mxu0 0.0
        %1279 = vmatprep.subr.mxu0 0.0
        %1280 = vmatpush1.msra.mxu0 0.0
        %1281 = vmatprep.subr.mxu0 0.0
        %1282 = vmatpush1.msra.mxu0 0.0
        %1283 = vmatprep.subr.mxu0 0.0
        %1284 = vmatpush1.msra.mxu0 0.0
        %1285 = vmatprep.subr.mxu0 0.0
        %1286 = vmatpush1.msra.mxu0 0.0
        %1287 = vmatprep.subr.mxu0 0.0
        %1288 = vmatpush1.msra.mxu0 0.0
        %1289 = vmatprep.subr.mxu0 0.0
        %1290 = vmatpush1.msra.mxu0 0.0
        %1291 = vmatprep.subr.mxu0 0.0
        %1292 = vmatpush1.msra.mxu0 0.0
        %1293 = vmatprep.subr.mxu0 0.0
        %1294 = vmatpush1.msra.mxu0 0.0
        %1295 = vmatprep.subr.mxu0 0.0
        %1296 = vmatpush1.msra.mxu0 0.0
        %1297 = vmatprep.subr.mxu0 0.0
        %1298 = vmatpush1.msra.mxu0 0.0
        %1299 = vmatprep.subr.mxu0 0.0
        %1300 = vmatpush1.msra.mxu0 0.0
        %1301 = vmatprep.subr.mxu0 0.0
        %1302 = vmatpush1.msra.mxu0 0.0
        %1303 = vmatprep.subr.mxu0 0.0
        %1304 = vmatpush1.msra.mxu0 0.0
        %1305 = vmatprep.subr.mxu0 0.0
        %1306 = vmatpush1.msra.mxu0 0.0
        %1307 = vmatprep.subr.mxu0 0.0
        %1308 = vmatpush1.msra.mxu0 0.0
        %1309 = vmatprep.subr.mxu0 0.0
        %1310 = vmatpush1.msra.mxu0 0.0
        %1311 = vmatprep.subr.mxu0 0.0
        %1312 = vmatpush1.msra.mxu0 0.0
        %1313 = vmatprep.subr.mxu0 0.0
        %1314 = vmatpush1.msra.mxu0 0.0
        %1315 = vmatprep.subr.mxu0 0.0
        %1316 = vmatpush1.msra.mxu0 0.0
        %1317 = vmatprep.mubr.f32.mxu0 0.0
        %1318 = vmatmul.mubr.f32.gmra.mrb[0].mxu0 %v1154
        %v1319 = vpop.f32.mrb[0].mxu0
        %v1320 = vadd.f32 %v1150, %v1319
        %v1321 = vpop.f32.mrb[0].mxu0
        %1322 = vmatprep.mubr.f32.mxu0 0.0
        %1323 = vmatmul.mubr.f32.gmra.mrb[0].mxu0 %v1157
        %v1324 = vpop.f32.mrb[0].mxu0
        %v1325 = vadd.f32 %v1150, %v1324
        %v1326 = vpop.f32.mrb[0].mxu0
        %1327 = vmatprep.mubr.f32.mxu0 0.0
        %1328 = vmatmul.mubr.f32.gmra.mrb[0].mxu0 %v1160
        %v1329 = vpop.f32.mrb[0].mxu0
        %v1330 = vadd.f32 %v1150, %v1329
        %v1331 = vpop.f32.mrb[0].mxu0
        %1332 = vmatprep.mubr.f32.mxu0 0.0
        %1333 = vmatmul.mubr.f32.gmra.mrb[0].mxu0 %v1163
        %v1334 = vpop.f32.mrb[0].mxu0
        %v1335 = vadd.f32 %v1150, %v1334
        %v1336 = vpop.f32.mrb[0].mxu0
        %1337 = vmatprep.mubr.f32.mxu0 0.0
        %1338 = vmatmul.mubr.f32.gmra.mrb[0].mxu0 %v1166
        %v1339 = vpop.f32.mrb[0].mxu0
        %v1340 = vadd.f32 %v1150, %v1339
        %v1341 = vpop.f32.mrb[0].mxu0
        %1342 = vmatprep.mubr.f32.mxu0 0.0
        %1343 = vmatmul.mubr.f32.gmra.mrb[0].mxu0 %v1169
        %v1344 = vpop.f32.mrb[0].mxu0
        %v1345 = vadd.f32 %v1150, %v1344
        %v1346 = vpop.f32.mrb[0].mxu0
        %1347 = vmatprep.mubr.f32.mxu0 0.0
        %1348 = vmatmul.mubr.f32.gmra.mrb[0].mxu0 %v1172
        %v1349 = vpop.f32.mrb[0].mxu0
        %v1350 = vadd.f32 %v1150, %v1349
        %v1351 = vpop.f32.mrb[0].mxu0
        %1352 = vmatprep.mubr.f32.mxu0 0.0
        %1353 = vmatmul.mubr.f32.gmra.mrb[0].mxu0 %v1175
        %v1354 = vpop.f32.mrb[0].mxu0
        %v1355 = vadd.f32 %v1150, %v1354
        %v1356 = vpop.f32.mrb[0].mxu0
        %1357 = vmatprep.mubr.f32.mxu0 0.0
        %1358 = vmatmul.mubr.f32.gmra.mrb[0].mxu0 %v1178
        %v1359 = vpop.f32.mrb[0].mxu0
        %v1360 = vadd.f32 %v1150, %v1359
        %v1361 = vpop.f32.mrb[0].mxu0
        %1362 = vmatprep.mubr.f32.mxu0 0.0
        %1363 = vmatmul.mubr.f32.gmra.mrb[0].mxu0 %v1181
        %v1364 = vpop.f32.mrb[0].mxu0
        %v1365 = vadd.f32 %v1150, %v1364
        %v1366 = vpop.f32.mrb[0].mxu0
        %1367 = vmatprep.mubr.f32.mxu0 0.0
        %1368 = vmatmul.mubr.f32.gmra.mrb[0].mxu0 %v1184
        %v1369 = vpop.f32.mrb[0].mxu0
        %v1370 = vadd.f32 %v1150, %v1369
        %v1371 = vpop.f32.mrb[0].mxu0
        %1372 = vmatprep.mubr.f32.mxu0 0.0
        %1373 = vmatmul.mubr.f32.gmra.mrb[0].mxu0 %v1187
        %v1374 = vpop.f32.mrb[0].mxu0
        %v1375 = vadd.f32 %v1150, %v1374
        %v1376 = vpop.f32.mrb[0].mxu0
        %1377 = vmatprep.mubr.f32.mxu0 0.0
        %1378 = vmatmul.mubr.f32.gmra.mrb[0].mxu0 %v1190
        %v1379 = vpop.f32.mrb[0].mxu0
        %v1380 = vadd.f32 %v1150, %v1379
        %v1381 = vpop.f32.mrb[0].mxu0
        %1382 = vmatprep.mubr.f32.mxu0 0.0
        %1383 = vmatmul.mubr.f32.gmra.mrb[0].mxu0 %v1193
        %v1384 = vpop.f32.mrb[0].mxu0
        %v1385 = vadd.f32 %v1150, %v1384
        %v1386 = vpop.f32.mrb[0].mxu0
        %1387 = vmatprep.mubr.f32.mxu0 0.0
        %1388 = vmatmul.mubr.f32.gmra.mrb[0].mxu0 %v1196
        %v1389 = vpop.f32.mrb[0].mxu0
        %v1390 = vadd.f32 %v1150, %v1389
        %v1391 = vpop.f32.mrb[0].mxu0
        %1392 = vmatprep.mubr.f32.mxu0 0.0
        %1393 = vmatmul.mubr.f32.gmra.mrb[0].mxu0 %v1199
        %v1394 = vpop.f32.mrb[0].mxu0
        %v1395 = vadd.f32 %v1150, %v1394
        %v1396 = vpop.f32.mrb[0].mxu0
        %1397 = vmatprep.mubr.f32.mxu0 0.0
        %1398 = vmatmul.mubr.f32.gmra.mrb[0].mxu0 %v1202
        %v1399 = vpop.f32.mrb[0].mxu0
        %v1400 = vadd.f32 %v1150, %v1399
        %v1401 = vpop.f32.mrb[0].mxu0
        %1402 = vmatprep.mubr.f32.mxu0 0.0
        %1403 = vmatmul.mubr.f32.gmra.mrb[0].mxu0 %v1205
        %v1404 = vpop.f32.mrb[0].mxu0
        %v1405 = vadd.f32 %v1150, %v1404
        %v1406 = vpop.f32.mrb[0].mxu0
        %1407 = vmatprep.mubr.f32.mxu0 0.0
        %1408 = vmatmul.mubr.f32.gmra.mrb[0].mxu0 %v1208
        %v1409 = vpop.f32.mrb[0].mxu0
        %v1410 = vadd.f32 %v1150, %v1409
        %v1411 = vpop.f32.mrb[0].mxu0
        %1412 = vmatprep.mubr.f32.mxu0 0.0
        %1413 = vmatmul.mubr.f32.gmra.mrb[0].mxu0 %v1211
        %v1414 = vpop.f32.mrb[0].mxu0
        %v1415 = vadd.f32 %v1150, %v1414
        %v1416 = vpop.f32.mrb[0].mxu0
        %1417 = vmatprep.mubr.f32.mxu0 0.0
        %1418 = vmatmul.mubr.f32.gmra.mrb[0].mxu0 %v1214
        %v1419 = vpop.f32.mrb[0].mxu0
        %v1420 = vadd.f32 %v1150, %v1419
        %v1421 = vpop.f32.mrb[0].mxu0
        %1422 = vmatprep.mubr.f32.mxu0 0.0
        %1423 = vmatmul.mubr.f32.gmra.mrb[0].mxu0 %v1217
        %v1424 = vpop.f32.mrb[0].mxu0
        %v1425 = vadd.f32 %v1150, %v1424
        %v1426 = vpop.f32.mrb[0].mxu0
        %1427 = vmatprep.mubr.f32.mxu0 0.0
        %1428 = vmatmul.mubr.f32.gmra.mrb[0].mxu0 %v1220
        %v1429 = vpop.f32.mrb[0].mxu0
        %v1430 = vadd.f32 %v1150, %v1429
        %v1431 = vpop.f32.mrb[0].mxu0
        %1432 = vmatprep.mubr.f32.mxu0 0.0
        %1433 = vmatmul.mubr.f32.gmra.mrb[0].mxu0 %v1223
        %v1434 = vpop.f32.mrb[0].mxu0
        %v1435 = vadd.f32 %v1150, %v1434
        %v1436 = vpop.f32.mrb[0].mxu0
        %1437 = vmatprep.mubr.f32.mxu0 0.0
        %1438 = vmatmul.mubr.f32.gmra.mrb[0].mxu0 %v1226
        %v1439 = vpop.f32.mrb[0].mxu0
        %v1440 = vadd.f32 %v1150, %v1439
        %v1441 = vpop.f32.mrb[0].mxu0
        %1442 = vmatprep.mubr.f32.mxu0 0.0
        %1443 = vmatmul.mubr.f32.gmra.mrb[0].mxu0 %v1229
        %v1444 = vpop.f32.mrb[0].mxu0
        %v1445 = vadd.f32 %v1150, %v1444
        %v1446 = vpop.f32.mrb[0].mxu0
        %1447 = vmatprep.mubr.f32.mxu0 0.0
        %1448 = vmatmul.mubr.f32.gmra.mrb[0].mxu0 %v1232
        %v1449 = vpop.f32.mrb[0].mxu0
        %v1450 = vadd.f32 %v1150, %v1449
        %v1451 = vpop.f32.mrb[0].mxu0
        %1452 = vmatprep.mubr.f32.mxu0 0.0
        %1453 = vmatmul.mubr.f32.gmra.mrb[0].mxu0 %v1235
        %v1454 = vpop.f32.mrb[0].mxu0
        %v1455 = vadd.f32 %v1150, %v1454
        %v1456 = vpop.f32.mrb[0].mxu0
        %1457 = vmatprep.mubr.f32.mxu0 0.0
        %1458 = vmatmul.mubr.f32.gmra.mrb[0].mxu0 %v1238
        %v1459 = vpop.f32.mrb[0].mxu0
        %v1460 = vadd.f32 %v1150, %v1459
        %v1461 = vpop.f32.mrb[0].mxu0
        %1462 = vmatprep.mubr.f32.mxu0 0.0
        %1463 = vmatmul.mubr.f32.gmra.mrb[0].mxu0 %v1241
        %v1464 = vpop.f32.mrb[0].mxu0
        %v1465 = vadd.f32 %v1150, %v1464
        %v1466 = vpop.f32.mrb[0].mxu0
        %1467 = vmatprep.mubr.f32.mxu0 0.0
        %1468 = vmatmul.mubr.f32.gmra.mrb[0].mxu0 %v1244
        %v1469 = vpop.f32.mrb[0].mxu0
        %v1470 = vadd.f32 %v1150, %v1469
        %v1471 = vpop.f32.mrb[0].mxu0
        %1472 = vmatprep.mubr.f32.mxu0 0.0
        %1473 = vmatmul.mubr.f32.gmra.mrb[0].mxu0 %v1247
        %v1474 = vpop.f32.mrb[0].mxu0
        %v1475 = vadd.f32 %v1150, %v1474
        %v1476 = vpop.f32.mrb[0].mxu0
        %1477 = vdwg.mxu0
        %v1478 = vlaneseq
        %v1479 = vshrl.u32 %v1478, 7
        %v1480 = vsub.s32 0, %v1479
        %v1481 = vrot.slane %v716, %v1480
        %v1482 = vadd.f32 %v1320, %v1481
        %v1483 = vadd.f32 %v1325, %v1481
        %v1484 = vadd.f32 %v1330, %v1481
        %v1485 = vadd.f32 %v1335, %v1481
        %v1486 = vadd.f32 %v1340, %v1481
        %v1487 = vadd.f32 %v1345, %v1481
        %v1488 = vadd.f32 %v1350, %v1481
        %v1489 = vadd.f32 %v1355, %v1481
        %v1490 = vadd.f32 %v1360, %v1481
        %v1491 = vadd.f32 %v1365, %v1481
        %v1492 = vadd.f32 %v1370, %v1481
        %v1493 = vadd.f32 %v1375, %v1481
        %v1494 = vadd.f32 %v1380, %v1481
        %v1495 = vadd.f32 %v1385, %v1481
        %v1496 = vadd.f32 %v1390, %v1481
        %v1497 = vadd.f32 %v1395, %v1481
        %v1498 = vadd.f32 %v1400, %v1481
        %v1499 = vadd.f32 %v1405, %v1481
        %v1500 = vadd.f32 %v1410, %v1481
        %v1501 = vadd.f32 %v1415, %v1481
        %v1502 = vadd.f32 %v1420, %v1481
        %v1503 = vadd.f32 %v1425, %v1481
        %v1504 = vadd.f32 %v1430, %v1481
        %v1505 = vadd.f32 %v1435, %v1481
        %v1506 = vadd.f32 %v1440, %v1481
        %v1507 = vadd.f32 %v1445, %v1481
        %v1508 = vadd.f32 %v1450, %v1481
        %v1509 = vadd.f32 %v1455, %v1481
        %v1510 = vadd.f32 %v1460, %v1481
        %v1511 = vadd.f32 %v1465, %v1481
        %v1512 = vadd.f32 %v1470, %v1481
        %v1513 = vadd.f32 %v1475, %v1481
        %v1514 = vxor.u32 %v1482, 2147483648
        %v1515 = vxor.u32 %v1483, 2147483648
        %v1516 = vxor.u32 %v1484, 2147483648
        %v1517 = vxor.u32 %v1485, 2147483648
        %v1518 = vxor.u32 %v1486, 2147483648
        %v1519 = vxor.u32 %v1487, 2147483648
        %v1520 = vxor.u32 %v1488, 2147483648
        %v1521 = vxor.u32 %v1489, 2147483648
        %v1522 = vxor.u32 %v1490, 2147483648
        %v1523 = vxor.u32 %v1491, 2147483648
        %v1524 = vxor.u32 %v1492, 2147483648
        %v1525 = vxor.u32 %v1493, 2147483648
        %v1526 = vxor.u32 %v1494, 2147483648
        %v1527 = vxor.u32 %v1495, 2147483648
        %v1528 = vxor.u32 %v1496, 2147483648
        %v1529 = vxor.u32 %v1497, 2147483648
        %v1530 = vxor.u32 %v1498, 2147483648
        %v1531 = vxor.u32 %v1499, 2147483648
        %v1532 = vxor.u32 %v1500, 2147483648
        %v1533 = vxor.u32 %v1501, 2147483648
        %v1534 = vxor.u32 %v1502, 2147483648
        %v1535 = vxor.u32 %v1503, 2147483648
        %v1536 = vxor.u32 %v1504, 2147483648
        %v1537 = vxor.u32 %v1505, 2147483648
        %v1538 = vxor.u32 %v1506, 2147483648
        %v1539 = vxor.u32 %v1507, 2147483648
        %v1540 = vxor.u32 %v1508, 2147483648
        %v1541 = vxor.u32 %v1509, 2147483648
        %v1542 = vxor.u32 %v1510, 2147483648
        %v1543 = vxor.u32 %v1511, 2147483648
        %v1544 = vxor.u32 %v1512, 2147483648
        %v1545 = vxor.u32 %v1513, 2147483648
        %v1546 = vmul.f32 %v1514, 1.442695
        %v1547 = vpow.pop %v1546
        %v1548 = vmul.f32 %v1515, 1.442695
        %v1549 = vpow.pop %v1548
        %v1550 = vmul.f32 %v1516, 1.442695
        %v1551 = vpow.pop %v1550
        %v1552 = vmul.f32 %v1517, 1.442695
        %v1553 = vpow.pop %v1552
        %v1554 = vmul.f32 %v1518, 1.442695
        %v1555 = vpow.pop %v1554
        %v1556 = vmul.f32 %v1519, 1.442695
        %v1557 = vpow.pop %v1556
        %v1558 = vmul.f32 %v1520, 1.442695
        %v1559 = vpow.pop %v1558
        %v1560 = vmul.f32 %v1521, 1.442695
        %v1561 = vpow.pop %v1560
        %v1562 = vmul.f32 %v1522, 1.442695
        %v1563 = vpow.pop %v1562
        %v1564 = vmul.f32 %v1523, 1.442695
        %v1565 = vpow.pop %v1564
        %v1566 = vmul.f32 %v1524, 1.442695
        %v1567 = vpow.pop %v1566
        %v1568 = vmul.f32 %v1525, 1.442695
        %v1569 = vpow.pop %v1568
        %v1570 = vmul.f32 %v1526, 1.442695
        %v1571 = vpow.pop %v1570
        %v1572 = vmul.f32 %v1527, 1.442695
        %v1573 = vpow.pop %v1572
        %v1574 = vmul.f32 %v1528, 1.442695
        %v1575 = vpow.pop %v1574
        %v1576 = vmul.f32 %v1529, 1.442695
        %v1577 = vpow.pop %v1576
        %v1578 = vmul.f32 %v1530, 1.442695
        %v1579 = vpow.pop %v1578
        %v1580 = vmul.f32 %v1531, 1.442695
        %v1581 = vpow.pop %v1580
        %v1582 = vmul.f32 %v1532, 1.442695
        %v1583 = vpow.pop %v1582
        %v1584 = vmul.f32 %v1533, 1.442695
        %v1585 = vpow.pop %v1584
        %v1586 = vmul.f32 %v1534, 1.442695
        %v1587 = vpow.pop %v1586
        %v1588 = vmul.f32 %v1535, 1.442695
        %v1589 = vpow.pop %v1588
        %v1590 = vmul.f32 %v1536, 1.442695
        %v1591 = vpow.pop %v1590
        %v1592 = vmul.f32 %v1537, 1.442695
        %v1593 = vpow.pop %v1592
        %v1594 = vmul.f32 %v1538, 1.442695
        %v1595 = vpow.pop %v1594
        %v1596 = vmul.f32 %v1539, 1.442695
        %v1597 = vpow.pop %v1596
        %v1598 = vmul.f32 %v1540, 1.442695
        %v1599 = vpow.pop %v1598
        %v1600 = vmul.f32 %v1541, 1.442695
        %v1601 = vpow.pop %v1600
        %v1602 = vmul.f32 %v1542, 1.442695
        %v1603 = vpow.pop %v1602
        %v1604 = vmul.f32 %v1543, 1.442695
        %v1605 = vpow.pop %v1604
        %v1606 = vmul.f32 %v1544, 1.442695
        %v1607 = vpow.pop %v1606
        %v1608 = vmul.f32 %v1545, 1.442695
        %v1609 = vpow.pop %v1608
        %v1610 = vadd.f32 %v1547, 1.0
        %v1611 = vadd.f32 %v1549, 1.0
        %v1612 = vadd.f32 %v1551, 1.0
        %v1613 = vadd.f32 %v1553, 1.0
        %v1614 = vadd.f32 %v1555, 1.0
        %v1615 = vadd.f32 %v1557, 1.0
        %v1616 = vadd.f32 %v1559, 1.0
        %v1617 = vadd.f32 %v1561, 1.0
        %v1618 = vadd.f32 %v1563, 1.0
        %v1619 = vadd.f32 %v1565, 1.0
        %v1620 = vadd.f32 %v1567, 1.0
        %v1621 = vadd.f32 %v1569, 1.0
        %v1622 = vadd.f32 %v1571, 1.0
        %v1623 = vadd.f32 %v1573, 1.0
        %v1624 = vadd.f32 %v1575, 1.0
        %v1625 = vadd.f32 %v1577, 1.0
        %v1626 = vadd.f32 %v1579, 1.0
        %v1627 = vadd.f32 %v1581, 1.0
        %v1628 = vadd.f32 %v1583, 1.0
        %v1629 = vadd.f32 %v1585, 1.0
        %v1630 = vadd.f32 %v1587, 1.0
        %v1631 = vadd.f32 %v1589, 1.0
        %v1632 = vadd.f32 %v1591, 1.0
        %v1633 = vadd.f32 %v1593, 1.0
        %v1634 = vadd.f32 %v1595, 1.0
        %v1635 = vadd.f32 %v1597, 1.0
        %v1636 = vadd.f32 %v1599, 1.0
        %v1637 = vadd.f32 %v1601, 1.0
        %v1638 = vadd.f32 %v1603, 1.0
        %v1639 = vadd.f32 %v1605, 1.0
        %v1640 = vadd.f32 %v1607, 1.0
        %v1641 = vadd.f32 %v1609, 1.0
        %v1642 = vrcp.pop %v1610
        %v1643 = vmul.f32 1.0, %v1642
        %v1644 = vrcp.pop %v1611
        %v1645 = vmul.f32 1.0, %v1644
        %v1646 = vrcp.pop %v1612
        %v1647 = vmul.f32 1.0, %v1646
        %v1648 = vrcp.pop %v1613
        %v1649 = vmul.f32 1.0, %v1648
        %v1650 = vrcp.pop %v1614
        %v1651 = vmul.f32 1.0, %v1650
        %v1652 = vrcp.pop %v1615
        %v1653 = vmul.f32 1.0, %v1652
        %v1654 = vrcp.pop %v1616
        %v1655 = vmul.f32 1.0, %v1654
        %v1656 = vrcp.pop %v1617
        %v1657 = vmul.f32 1.0, %v1656
        %v1658 = vrcp.pop %v1618
        %v1659 = vmul.f32 1.0, %v1658
        %v1660 = vrcp.pop %v1619
        %v1661 = vmul.f32 1.0, %v1660
        %v1662 = vrcp.pop %v1620
        %v1663 = vmul.f32 1.0, %v1662
        %v1664 = vrcp.pop %v1621
        %v1665 = vmul.f32 1.0, %v1664
        %v1666 = vrcp.pop %v1622
        %v1667 = vmul.f32 1.0, %v1666
        %v1668 = vrcp.pop %v1623
        %v1669 = vmul.f32 1.0, %v1668
        %v1670 = vrcp.pop %v1624
        %v1671 = vmul.f32 1.0, %v1670
        %v1672 = vrcp.pop %v1625
        %v1673 = vmul.f32 1.0, %v1672
        %v1674 = vrcp.pop %v1626
        %v1675 = vmul.f32 1.0, %v1674
        %v1676 = vrcp.pop %v1627
        %v1677 = vmul.f32 1.0, %v1676
        %v1678 = vrcp.pop %v1628
        %v1679 = vmul.f32 1.0, %v1678
        %v1680 = vrcp.pop %v1629
        %v1681 = vmul.f32 1.0, %v1680
        %v1682 = vrcp.pop %v1630
        %v1683 = vmul.f32 1.0, %v1682
        %v1684 = vrcp.pop %v1631
        %v1685 = vmul.f32 1.0, %v1684
        %v1686 = vrcp.pop %v1632
        %v1687 = vmul.f32 1.0, %v1686
        %v1688 = vrcp.pop %v1633
        %v1689 = vmul.f32 1.0, %v1688
        %v1690 = vrcp.pop %v1634
        %v1691 = vmul.f32 1.0, %v1690
        %v1692 = vrcp.pop %v1635
        %v1693 = vmul.f32 1.0, %v1692
        %v1694 = vrcp.pop %v1636
        %v1695 = vmul.f32 1.0, %v1694
        %v1696 = vrcp.pop %v1637
        %v1697 = vmul.f32 1.0, %v1696
        %v1698 = vrcp.pop %v1638
        %v1699 = vmul.f32 1.0, %v1698
        %v1700 = vrcp.pop %v1639
        %v1701 = vmul.f32 1.0, %v1700
        %v1702 = vrcp.pop %v1640
        %v1703 = vmul.f32 1.0, %v1702
        %v1704 = vrcp.pop %v1641
        %v1705 = vmul.f32 1.0, %v1704
        %v1706 = vsub.f32 %v620, %v652
        %v1707 = vsub.f32 %v621, %v653
        %v1708 = vsub.f32 %v622, %v654
        %v1709 = vsub.f32 %v623, %v655
        %v1710 = vsub.f32 %v624, %v656
        %v1711 = vsub.f32 %v625, %v657
        %v1712 = vsub.f32 %v626, %v658
        %v1713 = vsub.f32 %v627, %v659
        %v1714 = vsub.f32 %v628, %v660
        %v1715 = vsub.f32 %v629, %v661
        %v1716 = vsub.f32 %v630, %v662
        %v1717 = vsub.f32 %v631, %v663
        %v1718 = vsub.f32 %v632, %v664
        %v1719 = vsub.f32 %v633, %v665
        %v1720 = vsub.f32 %v634, %v666
        %v1721 = vsub.f32 %v635, %v667
        %v1722 = vsub.f32 %v636, %v668
        %v1723 = vsub.f32 %v637, %v669
        %v1724 = vsub.f32 %v638, %v670
        %v1725 = vsub.f32 %v639, %v671
        %v1726 = vsub.f32 %v640, %v672
        %v1727 = vsub.f32 %v641, %v673
        %v1728 = vsub.f32 %v642, %v674
        %v1729 = vsub.f32 %v643, %v675
        %v1730 = vsub.f32 %v644, %v676
        %v1731 = vsub.f32 %v645, %v677
        %v1732 = vsub.f32 %v646, %v678
        %v1733 = vsub.f32 %v647, %v679
        %v1734 = vsub.f32 %v648, %v680
        %v1735 = vsub.f32 %v649, %v681
        %v1736 = vsub.f32 %v650, %v682
        %v1737 = vsub.f32 %v651, %v683
        %v1738 = vmul.f32 %v1643, %v1706
        %v1739 = vmul.f32 %v1645, %v1707
        %v1740 = vmul.f32 %v1647, %v1708
        %v1741 = vmul.f32 %v1649, %v1709
        %v1742 = vmul.f32 %v1651, %v1710
        %v1743 = vmul.f32 %v1653, %v1711
        %v1744 = vmul.f32 %v1655, %v1712
        %v1745 = vmul.f32 %v1657, %v1713
        %v1746 = vmul.f32 %v1659, %v1714
        %v1747 = vmul.f32 %v1661, %v1715
        %v1748 = vmul.f32 %v1663, %v1716
        %v1749 = vmul.f32 %v1665, %v1717
        %v1750 = vmul.f32 %v1667, %v1718
        %v1751 = vmul.f32 %v1669, %v1719
        %v1752 = vmul.f32 %v1671, %v1720
        %v1753 = vmul.f32 %v1673, %v1721
        %v1754 = vmul.f32 %v1675, %v1722
        %v1755 = vmul.f32 %v1677, %v1723
        %v1756 = vmul.f32 %v1679, %v1724
        %v1757 = vmul.f32 %v1681, %v1725
        %v1758 = vmul.f32 %v1683, %v1726
        %v1759 = vmul.f32 %v1685, %v1727
        %v1760 = vmul.f32 %v1687, %v1728
        %v1761 = vmul.f32 %v1689, %v1729
        %v1762 = vmul.f32 %v1691, %v1730
        %v1763 = vmul.f32 %v1693, %v1731
        %v1764 = vmul.f32 %v1695, %v1732
        %v1765 = vmul.f32 %v1697, %v1733
        %v1766 = vmul.f32 %v1699, %v1734
        %v1767 = vmul.f32 %v1701, %v1735
        %v1768 = vmul.f32 %v1703, %v1736
        %v1769 = vmul.f32 %v1705, %v1737
        %v1770 = vadd.f32 %v754, %v1738
        %v1771 = vadd.f32 %v755, %v1739
        %v1772 = vadd.f32 %v756, %v1740
        %v1773 = vadd.f32 %v757, %v1741
        %v1774 = vadd.f32 %v758, %v1742
        %v1775 = vadd.f32 %v759, %v1743
        %v1776 = vadd.f32 %v760, %v1744
        %v1777 = vadd.f32 %v761, %v1745
        %v1778 = vadd.f32 %v762, %v1746
        %v1779 = vadd.f32 %v763, %v1747
        %v1780 = vadd.f32 %v764, %v1748
        %v1781 = vadd.f32 %v765, %v1749
        %v1782 = vadd.f32 %v766, %v1750
        %v1783 = vadd.f32 %v767, %v1751
        %v1784 = vadd.f32 %v768, %v1752
        %v1785 = vadd.f32 %v769, %v1753
        %v1786 = vadd.f32 %v770, %v1754
        %v1787 = vadd.f32 %v771, %v1755
        %v1788 = vadd.f32 %v772, %v1756
        %v1789 = vadd.f32 %v773, %v1757
        %v1790 = vadd.f32 %v774, %v1758
        %v1791 = vadd.f32 %v775, %v1759
        %v1792 = vadd.f32 %v776, %v1760
        %v1793 = vadd.f32 %v777, %v1761
        %v1794 = vadd.f32 %v778, %v1762
        %v1795 = vadd.f32 %v779, %v1763
        %v1796 = vadd.f32 %v780, %v1764
        %v1797 = vadd.f32 %v781, %v1765
        %v1798 = vadd.f32 %v782, %v1766
        %v1799 = vadd.f32 %v783, %v1767
        %v1800 = vadd.f32 %v784, %v1768
        %v1801 = vadd.f32 %v785, %v1769
        %v1802 = vadd.f32 %v684, %v620
        %v1803 = vadd.f32 %v685, %v621
        %v1804 = vadd.f32 %v686, %v622
        %v1805 = vadd.f32 %v687, %v623
        %v1806 = vadd.f32 %v688, %v624
        %v1807 = vadd.f32 %v689, %v625
        %v1808 = vadd.f32 %v690, %v626
        %v1809 = vadd.f32 %v691, %v627
        %v1810 = vadd.f32 %v692, %v628
        %v1811 = vadd.f32 %v693, %v629
        %v1812 = vadd.f32 %v694, %v630
        %v1813 = vadd.f32 %v695, %v631
        %v1814 = vadd.f32 %v696, %v632
        %v1815 = vadd.f32 %v697, %v633
        %v1816 = vadd.f32 %v698, %v634
        %v1817 = vadd.f32 %v699, %v635
        %v1818 = vadd.f32 %v700, %v636
        %v1819 = vadd.f32 %v701, %v637
        %v1820 = vadd.f32 %v702, %v638
        %v1821 = vadd.f32 %v703, %v639
        %v1822 = vadd.f32 %v704, %v640
        %v1823 = vadd.f32 %v705, %v641
        %v1824 = vadd.f32 %v706, %v642
        %v1825 = vadd.f32 %v707, %v643
        %v1826 = vadd.f32 %v708, %v644
        %v1827 = vadd.f32 %v709, %v645
        %v1828 = vadd.f32 %v710, %v646
        %v1829 = vadd.f32 %v711, %v647
        %v1830 = vadd.f32 %v712, %v648
        %v1831 = vadd.f32 %v713, %v649
        %v1832 = vadd.f32 %v714, %v650
        %v1833 = vadd.f32 %v715, %v651
        %v1835 = vsel %vm792, %v1802, 0
        %v1838 = vsel %vm792, %v1803, 0
        %v1841 = vsel %vm792, %v1804, 0
        %v1844 = vsel %vm792, %v1805, 0
        %v1847 = vsel %vm792, %v1806, 0
        %v1850 = vsel %vm792, %v1807, 0
        %v1853 = vsel %vm792, %v1808, 0
        %v1856 = vsel %vm792, %v1809, 0
        %v1859 = vsel %vm792, %v1810, 0
        %v1862 = vsel %vm792, %v1811, 0
        %v1865 = vsel %vm792, %v1812, 0
        %v1868 = vsel %vm792, %v1813, 0
        %v1871 = vsel %vm792, %v1814, 0
        %v1874 = vsel %vm792, %v1815, 0
        %v1877 = vsel %vm792, %v1816, 0
        %v1880 = vsel %vm792, %v1817, 0
        %v1883 = vsel %vm792, %v1818, 0
        %v1886 = vsel %vm792, %v1819, 0
        %v1889 = vsel %vm792, %v1820, 0
        %v1892 = vsel %vm792, %v1821, 0
        %v1895 = vsel %vm792, %v1822, 0
        %v1898 = vsel %vm792, %v1823, 0
        %v1901 = vsel %vm792, %v1824, 0
        %v1904 = vsel %vm792, %v1825, 0
        %v1907 = vsel %vm792, %v1826, 0
        %v1910 = vsel %vm792, %v1827, 0
        %v1913 = vsel %vm792, %v1828, 0
        %v1916 = vsel %vm792, %v1829, 0
        %v1919 = vsel %vm792, %v1830, 0
        %v1922 = vsel %vm792, %v1831, 0
        %v1925 = vsel %vm792, %v1832, 0
        %v1928 = vsel %vm792, %v1833, 0
        %1930 = vmatprep.subr.mxu0 0.0
        %1931 = vmatpush1.msra.mxu0 %v717
        %1932 = vmatprep.subr.mxu0 0.0
        %1933 = vmatpush1.msra.mxu0 %v718
        %1934 = vmatprep.subr.mxu0 0.0
        %1935 = vmatpush1.msra.mxu0 0.0
        %1936 = vmatprep.subr.mxu0 0.0
        %1937 = vmatpush1.msra.mxu0 0.0
        %1938 = vmatprep.subr.mxu0 0.0
        %1939 = vmatpush1.msra.mxu0 0.0
        %1940 = vmatprep.subr.mxu0 0.0
        %1941 = vmatpush1.msra.mxu0 0.0
        %1942 = vmatprep.subr.mxu0 0.0
        %1943 = vmatpush1.msra.mxu0 0.0
        %1944 = vmatprep.subr.mxu0 0.0
        %1945 = vmatpush1.msra.mxu0 0.0
        %1946 = vmatprep.subr.mxu0 0.0
        %1947 = vmatpush1.msra.mxu0 0.0
        %1948 = vmatprep.subr.mxu0 0.0
        %1949 = vmatpush1.msra.mxu0 0.0
        %1950 = vmatprep.subr.mxu0 0.0
        %1951 = vmatpush1.msra.mxu0 0.0
        %1952 = vmatprep.subr.mxu0 0.0
        %1953 = vmatpush1.msra.mxu0 0.0
        %1954 = vmatprep.subr.mxu0 0.0
        %1955 = vmatpush1.msra.mxu0 0.0
        %1956 = vmatprep.subr.mxu0 0.0
        %1957 = vmatpush1.msra.mxu0 0.0
        %1958 = vmatprep.subr.mxu0 0.0
        %1959 = vmatpush1.msra.mxu0 0.0
        %1960 = vmatprep.subr.mxu0 0.0
        %1961 = vmatpush1.msra.mxu0 0.0
        %1962 = vmatprep.subr.mxu0 0.0
        %1963 = vmatpush1.msra.mxu0 0.0
        %1964 = vmatprep.subr.mxu0 0.0
        %1965 = vmatpush1.msra.mxu0 0.0
        %1966 = vmatprep.subr.mxu0 0.0
        %1967 = vmatpush1.msra.mxu0 0.0
        %1968 = vmatprep.subr.mxu0 0.0
        %1969 = vmatpush1.msra.mxu0 0.0
        %1970 = vmatprep.subr.mxu0 0.0
        %1971 = vmatpush1.msra.mxu0 0.0
        %1972 = vmatprep.subr.mxu0 0.0
        %1973 = vmatpush1.msra.mxu0 0.0
        %1974 = vmatprep.subr.mxu0 0.0
        %1975 = vmatpush1.msra.mxu0 0.0
        %1976 = vmatprep.subr.mxu0 0.0
        %1977 = vmatpush1.msra.mxu0 0.0
        %1978 = vmatprep.subr.mxu0 0.0
        %1979 = vmatpush1.msra.mxu0 0.0
        %1980 = vmatprep.subr.mxu0 0.0
        %1981 = vmatpush1.msra.mxu0 0.0
        %1982 = vmatprep.subr.mxu0 0.0
        %1983 = vmatpush1.msra.mxu0 0.0
        %1984 = vmatprep.subr.mxu0 0.0
        %1985 = vmatpush1.msra.mxu0 0.0
        %1986 = vmatprep.subr.mxu0 0.0
        %1987 = vmatpush1.msra.mxu0 0.0
        %1988 = vmatprep.subr.mxu0 0.0
        %1989 = vmatpush1.msra.mxu0 0.0
        %1990 = vmatprep.subr.mxu0 0.0
        %1991 = vmatpush1.msra.mxu0 0.0
        %1992 = vmatprep.subr.mxu0 0.0
        %1993 = vmatpush1.msra.mxu0 0.0
        %1994 = vmatprep.mubr.f32.mxu0 0.0
        %1995 = vmatmul.mubr.f32.gmra.mrb[0].mxu0 %v1835
        %v1996 = vpop.f32.mrb[0].mxu0
        %v1997 = vadd.f32 %v790, %v1996
        %v1998 = vpop.f32.mrb[0].mxu0
        %1999 = vmatprep.mubr.f32.mxu0 0.0
        %2000 = vmatmul.mubr.f32.gmra.mrb[0].mxu0 %v1838
        %v2001 = vpop.f32.mrb[0].mxu0
        %v2002 = vadd.f32 %v790, %v2001
        %v2003 = vpop.f32.mrb[0].mxu0
        %2004 = vmatprep.mubr.f32.mxu0 0.0
        %2005 = vmatmul.mubr.f32.gmra.mrb[0].mxu0 %v1841
        %v2006 = vpop.f32.mrb[0].mxu0
        %v2007 = vadd.f32 %v790, %v2006
        %v2008 = vpop.f32.mrb[0].mxu0
        %2009 = vmatprep.mubr.f32.mxu0 0.0
        %2010 = vmatmul.mubr.f32.gmra.mrb[0].mxu0 %v1844
        %v2011 = vpop.f32.mrb[0].mxu0
        %v2012 = vadd.f32 %v790, %v2011
        %v2013 = vpop.f32.mrb[0].mxu0
        %2014 = vmatprep.mubr.f32.mxu0 0.0
        %2015 = vmatmul.mubr.f32.gmra.mrb[0].mxu0 %v1847
        %v2016 = vpop.f32.mrb[0].mxu0
        %v2017 = vadd.f32 %v790, %v2016
        %v2018 = vpop.f32.mrb[0].mxu0
        %2019 = vmatprep.mubr.f32.mxu0 0.0
        %2020 = vmatmul.mubr.f32.gmra.mrb[0].mxu0 %v1850
        %v2021 = vpop.f32.mrb[0].mxu0
        %v2022 = vadd.f32 %v790, %v2021
        %v2023 = vpop.f32.mrb[0].mxu0
        %2024 = vmatprep.mubr.f32.mxu0 0.0
        %2025 = vmatmul.mubr.f32.gmra.mrb[0].mxu0 %v1853
        %v2026 = vpop.f32.mrb[0].mxu0
        %v2027 = vadd.f32 %v790, %v2026
        %v2028 = vpop.f32.mrb[0].mxu0
        %2029 = vmatprep.mubr.f32.mxu0 0.0
        %2030 = vmatmul.mubr.f32.gmra.mrb[0].mxu0 %v1856
        %v2031 = vpop.f32.mrb[0].mxu0
        %v2032 = vadd.f32 %v790, %v2031
        %v2033 = vpop.f32.mrb[0].mxu0
        %2034 = vmatprep.mubr.f32.mxu0 0.0
        %2035 = vmatmul.mubr.f32.gmra.mrb[0].mxu0 %v1859
        %v2036 = vpop.f32.mrb[0].mxu0
        %v2037 = vadd.f32 %v790, %v2036
        %v2038 = vpop.f32.mrb[0].mxu0
        %2039 = vmatprep.mubr.f32.mxu0 0.0
        %2040 = vmatmul.mubr.f32.gmra.mrb[0].mxu0 %v1862
        %v2041 = vpop.f32.mrb[0].mxu0
        %v2042 = vadd.f32 %v790, %v2041
        %v2043 = vpop.f32.mrb[0].mxu0
        %2044 = vmatprep.mubr.f32.mxu0 0.0
        %2045 = vmatmul.mubr.f32.gmra.mrb[0].mxu0 %v1865
        %v2046 = vpop.f32.mrb[0].mxu0
        %v2047 = vadd.f32 %v790, %v2046
        %v2048 = vpop.f32.mrb[0].mxu0
        %2049 = vmatprep.mubr.f32.mxu0 0.0
        %2050 = vmatmul.mubr.f32.gmra.mrb[0].mxu0 %v1868
        %v2051 = vpop.f32.mrb[0].mxu0
        %v2052 = vadd.f32 %v790, %v2051
        %v2053 = vpop.f32.mrb[0].mxu0
        %2054 = vmatprep.mubr.f32.mxu0 0.0
        %2055 = vmatmul.mubr.f32.gmra.mrb[0].mxu0 %v1871
        %v2056 = vpop.f32.mrb[0].mxu0
        %v2057 = vadd.f32 %v790, %v2056
        %v2058 = vpop.f32.mrb[0].mxu0
        %2059 = vmatprep.mubr.f32.mxu0 0.0
        %2060 = vmatmul.mubr.f32.gmra.mrb[0].mxu0 %v1874
        %v2061 = vpop.f32.mrb[0].mxu0
        %v2062 = vadd.f32 %v790, %v2061
        %v2063 = vpop.f32.mrb[0].mxu0
        %2064 = vmatprep.mubr.f32.mxu0 0.0
        %2065 = vmatmul.mubr.f32.gmra.mrb[0].mxu0 %v1877
        %v2066 = vpop.f32.mrb[0].mxu0
        %v2067 = vadd.f32 %v790, %v2066
        %v2068 = vpop.f32.mrb[0].mxu0
        %2069 = vmatprep.mubr.f32.mxu0 0.0
        %2070 = vmatmul.mubr.f32.gmra.mrb[0].mxu0 %v1880
        %v2071 = vpop.f32.mrb[0].mxu0
        %v2072 = vadd.f32 %v790, %v2071
        %v2073 = vpop.f32.mrb[0].mxu0
        %2074 = vmatprep.mubr.f32.mxu0 0.0
        %2075 = vmatmul.mubr.f32.gmra.mrb[0].mxu0 %v1883
        %v2076 = vpop.f32.mrb[0].mxu0
        %v2077 = vadd.f32 %v790, %v2076
        %v2078 = vpop.f32.mrb[0].mxu0
        %2079 = vmatprep.mubr.f32.mxu0 0.0
        %2080 = vmatmul.mubr.f32.gmra.mrb[0].mxu0 %v1886
        %v2081 = vpop.f32.mrb[0].mxu0
        %v2082 = vadd.f32 %v790, %v2081
        %v2083 = vpop.f32.mrb[0].mxu0
        %2084 = vmatprep.mubr.f32.mxu0 0.0
        %2085 = vmatmul.mubr.f32.gmra.mrb[0].mxu0 %v1889
        %v2086 = vpop.f32.mrb[0].mxu0
        %v2087 = vadd.f32 %v790, %v2086
        %v2088 = vpop.f32.mrb[0].mxu0
        %2089 = vmatprep.mubr.f32.mxu0 0.0
        %2090 = vmatmul.mubr.f32.gmra.mrb[0].mxu0 %v1892
        %v2091 = vpop.f32.mrb[0].mxu0
        %v2092 = vadd.f32 %v790, %v2091
        %v2093 = vpop.f32.mrb[0].mxu0
        %2094 = vmatprep.mubr.f32.mxu0 0.0
        %2095 = vmatmul.mubr.f32.gmra.mrb[0].mxu0 %v1895
        %v2096 = vpop.f32.mrb[0].mxu0
        %v2097 = vadd.f32 %v790, %v2096
        %v2098 = vpop.f32.mrb[0].mxu0
        %2099 = vmatprep.mubr.f32.mxu0 0.0
        %2100 = vmatmul.mubr.f32.gmra.mrb[0].mxu0 %v1898
        %v2101 = vpop.f32.mrb[0].mxu0
        %v2102 = vadd.f32 %v790, %v2101
        %v2103 = vpop.f32.mrb[0].mxu0
        %2104 = vmatprep.mubr.f32.mxu0 0.0
        %2105 = vmatmul.mubr.f32.gmra.mrb[0].mxu0 %v1901
        %v2106 = vpop.f32.mrb[0].mxu0
        %v2107 = vadd.f32 %v790, %v2106
        %v2108 = vpop.f32.mrb[0].mxu0
        %2109 = vmatprep.mubr.f32.mxu0 0.0
        %2110 = vmatmul.mubr.f32.gmra.mrb[0].mxu0 %v1904
        %v2111 = vpop.f32.mrb[0].mxu0
        %v2112 = vadd.f32 %v790, %v2111
        %v2113 = vpop.f32.mrb[0].mxu0
        %2114 = vmatprep.mubr.f32.mxu0 0.0
        %2115 = vmatmul.mubr.f32.gmra.mrb[0].mxu0 %v1907
        %v2116 = vpop.f32.mrb[0].mxu0
        %v2117 = vadd.f32 %v790, %v2116
        %v2118 = vpop.f32.mrb[0].mxu0
        %2119 = vmatprep.mubr.f32.mxu0 0.0
        %2120 = vmatmul.mubr.f32.gmra.mrb[0].mxu0 %v1910
        %v2121 = vpop.f32.mrb[0].mxu0
        %v2122 = vadd.f32 %v790, %v2121
        %v2123 = vpop.f32.mrb[0].mxu0
        %2124 = vmatprep.mubr.f32.mxu0 0.0
        %2125 = vmatmul.mubr.f32.gmra.mrb[0].mxu0 %v1913
        %v2126 = vpop.f32.mrb[0].mxu0
        %v2127 = vadd.f32 %v790, %v2126
        %v2128 = vpop.f32.mrb[0].mxu0
        %2129 = vmatprep.mubr.f32.mxu0 0.0
        %2130 = vmatmul.mubr.f32.gmra.mrb[0].mxu0 %v1916
        %v2131 = vpop.f32.mrb[0].mxu0
        %v2132 = vadd.f32 %v790, %v2131
        %v2133 = vpop.f32.mrb[0].mxu0
        %2134 = vmatprep.mubr.f32.mxu0 0.0
        %2135 = vmatmul.mubr.f32.gmra.mrb[0].mxu0 %v1919
        %v2136 = vpop.f32.mrb[0].mxu0
        %v2137 = vadd.f32 %v790, %v2136
        %v2138 = vpop.f32.mrb[0].mxu0
        %2139 = vmatprep.mubr.f32.mxu0 0.0
        %2140 = vmatmul.mubr.f32.gmra.mrb[0].mxu0 %v1922
        %v2141 = vpop.f32.mrb[0].mxu0
        %v2142 = vadd.f32 %v790, %v2141
        %v2143 = vpop.f32.mrb[0].mxu0
        %2144 = vmatprep.mubr.f32.mxu0 0.0
        %2145 = vmatmul.mubr.f32.gmra.mrb[0].mxu0 %v1925
        %v2146 = vpop.f32.mrb[0].mxu0
        %v2147 = vadd.f32 %v790, %v2146
        %v2148 = vpop.f32.mrb[0].mxu0
        %2149 = vmatprep.mubr.f32.mxu0 0.0
        %2150 = vmatmul.mubr.f32.gmra.mrb[0].mxu0 %v1928
        %v2151 = vpop.f32.mrb[0].mxu0
        %v2152 = vadd.f32 %v790, %v2151
        %v2153 = vpop.f32.mrb[0].mxu0
        %2154 = vdwg.mxu0
        %v2155 = vmax.f32 %v1997, 0.0
        %v2156 = vmax.f32 %v2002, 0.0
        %v2157 = vmax.f32 %v2007, 0.0
        %v2158 = vmax.f32 %v2012, 0.0
        %v2159 = vmax.f32 %v2017, 0.0
        %v2160 = vmax.f32 %v2022, 0.0
        %v2161 = vmax.f32 %v2027, 0.0
        %v2162 = vmax.f32 %v2032, 0.0
        %v2163 = vmax.f32 %v2037, 0.0
        %v2164 = vmax.f32 %v2042, 0.0
        %v2165 = vmax.f32 %v2047, 0.0
        %v2166 = vmax.f32 %v2052, 0.0
        %v2167 = vmax.f32 %v2057, 0.0
        %v2168 = vmax.f32 %v2062, 0.0
        %v2169 = vmax.f32 %v2067, 0.0
        %v2170 = vmax.f32 %v2072, 0.0
        %v2171 = vmax.f32 %v2077, 0.0
        %v2172 = vmax.f32 %v2082, 0.0
        %v2173 = vmax.f32 %v2087, 0.0
        %v2174 = vmax.f32 %v2092, 0.0
        %v2175 = vmax.f32 %v2097, 0.0
        %v2176 = vmax.f32 %v2102, 0.0
        %v2177 = vmax.f32 %v2107, 0.0
        %v2178 = vmax.f32 %v2112, 0.0
        %v2179 = vmax.f32 %v2117, 0.0
        %v2180 = vmax.f32 %v2122, 0.0
        %v2181 = vmax.f32 %v2127, 0.0
        %v2182 = vmax.f32 %v2132, 0.0
        %v2183 = vmax.f32 %v2137, 0.0
        %v2184 = vmax.f32 %v2142, 0.0
        %v2185 = vmax.f32 %v2147, 0.0
        %v2186 = vmax.f32 %v2152, 0.0
        %v2188 = vsel %vm1152, %v2155, 0
        %v2191 = vsel %vm1152, %v2156, 0
        %v2194 = vsel %vm1152, %v2157, 0
        %v2197 = vsel %vm1152, %v2158, 0
        %v2200 = vsel %vm1152, %v2159, 0
        %v2203 = vsel %vm1152, %v2160, 0
        %v2206 = vsel %vm1152, %v2161, 0
        %v2209 = vsel %vm1152, %v2162, 0
        %v2212 = vsel %vm1152, %v2163, 0
        %v2215 = vsel %vm1152, %v2164, 0
        %v2218 = vsel %vm1152, %v2165, 0
        %v2221 = vsel %vm1152, %v2166, 0
        %v2224 = vsel %vm1152, %v2167, 0
        %v2227 = vsel %vm1152, %v2168, 0
        %v2230 = vsel %vm1152, %v2169, 0
        %v2233 = vsel %vm1152, %v2170, 0
        %v2236 = vsel %vm1152, %v2171, 0
        %v2239 = vsel %vm1152, %v2172, 0
        %v2242 = vsel %vm1152, %v2173, 0
        %v2245 = vsel %vm1152, %v2174, 0
        %v2248 = vsel %vm1152, %v2175, 0
        %v2251 = vsel %vm1152, %v2176, 0
        %v2254 = vsel %vm1152, %v2177, 0
        %v2257 = vsel %vm1152, %v2178, 0
        %v2260 = vsel %vm1152, %v2179, 0
        %v2263 = vsel %vm1152, %v2180, 0
        %v2266 = vsel %vm1152, %v2181, 0
        %v2269 = vsel %vm1152, %v2182, 0
        %v2272 = vsel %vm1152, %v2183, 0
        %v2275 = vsel %vm1152, %v2184, 0
        %v2278 = vsel %vm1152, %v2185, 0
        %v2281 = vsel %vm1152, %v2186, 0
        %2283 = vmatprep.subr.mxu0 0.0
        %2284 = vmatpush1.msra.mxu0 %v1251
        %2285 = vmatprep.subr.mxu0 0.0
        %2286 = vmatpush1.msra.mxu0 0.0
        %2287 = vmatprep.subr.mxu0 0.0
        %2288 = vmatpush1.msra.mxu0 0.0
        %2289 = vmatprep.subr.mxu0 0.0
        %2290 = vmatpush1.msra.mxu0 0.0
        %2291 = vmatprep.subr.mxu0 0.0
        %2292 = vmatpush1.msra.mxu0 0.0
        %2293 = vmatprep.subr.mxu0 0.0
        %2294 = vmatpush1.msra.mxu0 0.0
        %2295 = vmatprep.subr.mxu0 0.0
        %2296 = vmatpush1.msra.mxu0 0.0
        %2297 = vmatprep.subr.mxu0 0.0
        %2298 = vmatpush1.msra.mxu0 0.0
        %2299 = vmatprep.subr.mxu0 0.0
        %2300 = vmatpush1.msra.mxu0 0.0
        %2301 = vmatprep.subr.mxu0 0.0
        %2302 = vmatpush1.msra.mxu0 0.0
        %2303 = vmatprep.subr.mxu0 0.0
        %2304 = vmatpush1.msra.mxu0 0.0
        %2305 = vmatprep.subr.mxu0 0.0
        %2306 = vmatpush1.msra.mxu0 0.0
        %2307 = vmatprep.subr.mxu0 0.0
        %2308 = vmatpush1.msra.mxu0 0.0
        %2309 = vmatprep.subr.mxu0 0.0
        %2310 = vmatpush1.msra.mxu0 0.0
        %2311 = vmatprep.subr.mxu0 0.0
        %2312 = vmatpush1.msra.mxu0 0.0
        %2313 = vmatprep.subr.mxu0 0.0
        %2314 = vmatpush1.msra.mxu0 0.0
        %2315 = vmatprep.subr.mxu0 0.0
        %2316 = vmatpush1.msra.mxu0 0.0
        %2317 = vmatprep.subr.mxu0 0.0
        %2318 = vmatpush1.msra.mxu0 0.0
        %2319 = vmatprep.subr.mxu0 0.0
        %2320 = vmatpush1.msra.mxu0 0.0
        %2321 = vmatprep.subr.mxu0 0.0
        %2322 = vmatpush1.msra.mxu0 0.0
        %2323 = vmatprep.subr.mxu0 0.0
        %2324 = vmatpush1.msra.mxu0 0.0
        %2325 = vmatprep.subr.mxu0 0.0
        %2326 = vmatpush1.msra.mxu0 0.0
        %2327 = vmatprep.subr.mxu0 0.0
        %2328 = vmatpush1.msra.mxu0 0.0
        %2329 = vmatprep.subr.mxu0 0.0
        %2330 = vmatpush1.msra.mxu0 0.0
        %2331 = vmatprep.subr.mxu0 0.0
        %2332 = vmatpush1.msra.mxu0 0.0
        %2333 = vmatprep.subr.mxu0 0.0
        %2334 = vmatpush1.msra.mxu0 0.0
        %2335 = vmatprep.subr.mxu0 0.0
        %2336 = vmatpush1.msra.mxu0 0.0
        %2337 = vmatprep.subr.mxu0 0.0
        %2338 = vmatpush1.msra.mxu0 0.0
        %2339 = vmatprep.subr.mxu0 0.0
        %2340 = vmatpush1.msra.mxu0 0.0
        %2341 = vmatprep.subr.mxu0 0.0
        %2342 = vmatpush1.msra.mxu0 0.0
        %2343 = vmatprep.subr.mxu0 0.0
        %2344 = vmatpush1.msra.mxu0 0.0
        %2345 = vmatprep.subr.mxu0 0.0
        %2346 = vmatpush1.msra.mxu0 0.0
        %2347 = vmatprep.mubr.f32.mxu0 0.0
        %2348 = vmatmul.mubr.f32.gmra.mrb[0].mxu0 %v2188
        %v2349 = vpop.f32.mrb[0].mxu0
        %v2350 = vadd.f32 %v1150, %v2349
        %v2351 = vpop.f32.mrb[0].mxu0
        %2352 = vmatprep.mubr.f32.mxu0 0.0
        %2353 = vmatmul.mubr.f32.gmra.mrb[0].mxu0 %v2191
        %v2354 = vpop.f32.mrb[0].mxu0
        %v2355 = vadd.f32 %v1150, %v2354
        %v2356 = vpop.f32.mrb[0].mxu0
        %2357 = vmatprep.mubr.f32.mxu0 0.0
        %2358 = vmatmul.mubr.f32.gmra.mrb[0].mxu0 %v2194
        %v2359 = vpop.f32.mrb[0].mxu0
        %v2360 = vadd.f32 %v1150, %v2359
        %v2361 = vpop.f32.mrb[0].mxu0
        %2362 = vmatprep.mubr.f32.mxu0 0.0
        %2363 = vmatmul.mubr.f32.gmra.mrb[0].mxu0 %v2197
        %v2364 = vpop.f32.mrb[0].mxu0
        %v2365 = vadd.f32 %v1150, %v2364
        %v2366 = vpop.f32.mrb[0].mxu0
        %2367 = vmatprep.mubr.f32.mxu0 0.0
        %2368 = vmatmul.mubr.f32.gmra.mrb[0].mxu0 %v2200
        %v2369 = vpop.f32.mrb[0].mxu0
        %v2370 = vadd.f32 %v1150, %v2369
        %v2371 = vpop.f32.mrb[0].mxu0
        %2372 = vmatprep.mubr.f32.mxu0 0.0
        %2373 = vmatmul.mubr.f32.gmra.mrb[0].mxu0 %v2203
        %v2374 = vpop.f32.mrb[0].mxu0
        %v2375 = vadd.f32 %v1150, %v2374
        %v2376 = vpop.f32.mrb[0].mxu0
        %2377 = vmatprep.mubr.f32.mxu0 0.0
        %2378 = vmatmul.mubr.f32.gmra.mrb[0].mxu0 %v2206
        %v2379 = vpop.f32.mrb[0].mxu0
        %v2380 = vadd.f32 %v1150, %v2379
        %v2381 = vpop.f32.mrb[0].mxu0
        %2382 = vmatprep.mubr.f32.mxu0 0.0
        %2383 = vmatmul.mubr.f32.gmra.mrb[0].mxu0 %v2209
        %v2384 = vpop.f32.mrb[0].mxu0
        %v2385 = vadd.f32 %v1150, %v2384
        %v2386 = vpop.f32.mrb[0].mxu0
        %2387 = vmatprep.mubr.f32.mxu0 0.0
        %2388 = vmatmul.mubr.f32.gmra.mrb[0].mxu0 %v2212
        %v2389 = vpop.f32.mrb[0].mxu0
        %v2390 = vadd.f32 %v1150, %v2389
        %v2391 = vpop.f32.mrb[0].mxu0
        %2392 = vmatprep.mubr.f32.mxu0 0.0
        %2393 = vmatmul.mubr.f32.gmra.mrb[0].mxu0 %v2215
        %v2394 = vpop.f32.mrb[0].mxu0
        %v2395 = vadd.f32 %v1150, %v2394
        %v2396 = vpop.f32.mrb[0].mxu0
        %2397 = vmatprep.mubr.f32.mxu0 0.0
        %2398 = vmatmul.mubr.f32.gmra.mrb[0].mxu0 %v2218
        %v2399 = vpop.f32.mrb[0].mxu0
        %v2400 = vadd.f32 %v1150, %v2399
        %v2401 = vpop.f32.mrb[0].mxu0
        %2402 = vmatprep.mubr.f32.mxu0 0.0
        %2403 = vmatmul.mubr.f32.gmra.mrb[0].mxu0 %v2221
        %v2404 = vpop.f32.mrb[0].mxu0
        %v2405 = vadd.f32 %v1150, %v2404
        %v2406 = vpop.f32.mrb[0].mxu0
        %2407 = vmatprep.mubr.f32.mxu0 0.0
        %2408 = vmatmul.mubr.f32.gmra.mrb[0].mxu0 %v2224
        %v2409 = vpop.f32.mrb[0].mxu0
        %v2410 = vadd.f32 %v1150, %v2409
        %v2411 = vpop.f32.mrb[0].mxu0
        %2412 = vmatprep.mubr.f32.mxu0 0.0
        %2413 = vmatmul.mubr.f32.gmra.mrb[0].mxu0 %v2227
        %v2414 = vpop.f32.mrb[0].mxu0
        %v2415 = vadd.f32 %v1150, %v2414
        %v2416 = vpop.f32.mrb[0].mxu0
        %2417 = vmatprep.mubr.f32.mxu0 0.0
        %2418 = vmatmul.mubr.f32.gmra.mrb[0].mxu0 %v2230
        %v2419 = vpop.f32.mrb[0].mxu0
        %v2420 = vadd.f32 %v1150, %v2419
        %v2421 = vpop.f32.mrb[0].mxu0
        %2422 = vmatprep.mubr.f32.mxu0 0.0
        %2423 = vmatmul.mubr.f32.gmra.mrb[0].mxu0 %v2233
        %v2424 = vpop.f32.mrb[0].mxu0
        %v2425 = vadd.f32 %v1150, %v2424
        %v2426 = vpop.f32.mrb[0].mxu0
        %2427 = vmatprep.mubr.f32.mxu0 0.0
        %2428 = vmatmul.mubr.f32.gmra.mrb[0].mxu0 %v2236
        %v2429 = vpop.f32.mrb[0].mxu0
        %v2430 = vadd.f32 %v1150, %v2429
        %v2431 = vpop.f32.mrb[0].mxu0
        %2432 = vmatprep.mubr.f32.mxu0 0.0
        %2433 = vmatmul.mubr.f32.gmra.mrb[0].mxu0 %v2239
        %v2434 = vpop.f32.mrb[0].mxu0
        %v2435 = vadd.f32 %v1150, %v2434
        %v2436 = vpop.f32.mrb[0].mxu0
        %2437 = vmatprep.mubr.f32.mxu0 0.0
        %2438 = vmatmul.mubr.f32.gmra.mrb[0].mxu0 %v2242
        %v2439 = vpop.f32.mrb[0].mxu0
        %v2440 = vadd.f32 %v1150, %v2439
        %v2441 = vpop.f32.mrb[0].mxu0
        %2442 = vmatprep.mubr.f32.mxu0 0.0
        %2443 = vmatmul.mubr.f32.gmra.mrb[0].mxu0 %v2245
        %v2444 = vpop.f32.mrb[0].mxu0
        %v2445 = vadd.f32 %v1150, %v2444
        %v2446 = vpop.f32.mrb[0].mxu0
        %2447 = vmatprep.mubr.f32.mxu0 0.0
        %2448 = vmatmul.mubr.f32.gmra.mrb[0].mxu0 %v2248
        %v2449 = vpop.f32.mrb[0].mxu0
        %v2450 = vadd.f32 %v1150, %v2449
        %v2451 = vpop.f32.mrb[0].mxu0
        %2452 = vmatprep.mubr.f32.mxu0 0.0
        %2453 = vmatmul.mubr.f32.gmra.mrb[0].mxu0 %v2251
        %v2454 = vpop.f32.mrb[0].mxu0
        %v2455 = vadd.f32 %v1150, %v2454
        %v2456 = vpop.f32.mrb[0].mxu0
        %2457 = vmatprep.mubr.f32.mxu0 0.0
        %2458 = vmatmul.mubr.f32.gmra.mrb[0].mxu0 %v2254
        %v2459 = vpop.f32.mrb[0].mxu0
        %v2460 = vadd.f32 %v1150, %v2459
        %v2461 = vpop.f32.mrb[0].mxu0
        %2462 = vmatprep.mubr.f32.mxu0 0.0
        %2463 = vmatmul.mubr.f32.gmra.mrb[0].mxu0 %v2257
        %v2464 = vpop.f32.mrb[0].mxu0
        %v2465 = vadd.f32 %v1150, %v2464
        %v2466 = vpop.f32.mrb[0].mxu0
        %2467 = vmatprep.mubr.f32.mxu0 0.0
        %2468 = vmatmul.mubr.f32.gmra.mrb[0].mxu0 %v2260
        %v2469 = vpop.f32.mrb[0].mxu0
        %v2470 = vadd.f32 %v1150, %v2469
        %v2471 = vpop.f32.mrb[0].mxu0
        %2472 = vmatprep.mubr.f32.mxu0 0.0
        %2473 = vmatmul.mubr.f32.gmra.mrb[0].mxu0 %v2263
        %v2474 = vpop.f32.mrb[0].mxu0
        %v2475 = vadd.f32 %v1150, %v2474
        %v2476 = vpop.f32.mrb[0].mxu0
        %2477 = vmatprep.mubr.f32.mxu0 0.0
        %2478 = vmatmul.mubr.f32.gmra.mrb[0].mxu0 %v2266
        %v2479 = vpop.f32.mrb[0].mxu0
        %v2480 = vadd.f32 %v1150, %v2479
        %v2481 = vpop.f32.mrb[0].mxu0
        %2482 = vmatprep.mubr.f32.mxu0 0.0
        %2483 = vmatmul.mubr.f32.gmra.mrb[0].mxu0 %v2269
        %v2484 = vpop.f32.mrb[0].mxu0
        %v2485 = vadd.f32 %v1150, %v2484
        %v2486 = vpop.f32.mrb[0].mxu0
        %2487 = vmatprep.mubr.f32.mxu0 0.0
        %2488 = vmatmul.mubr.f32.gmra.mrb[0].mxu0 %v2272
        %v2489 = vpop.f32.mrb[0].mxu0
        %v2490 = vadd.f32 %v1150, %v2489
        %v2491 = vpop.f32.mrb[0].mxu0
        %2492 = vmatprep.mubr.f32.mxu0 0.0
        %2493 = vmatmul.mubr.f32.gmra.mrb[0].mxu0 %v2275
        %v2494 = vpop.f32.mrb[0].mxu0
        %v2495 = vadd.f32 %v1150, %v2494
        %v2496 = vpop.f32.mrb[0].mxu0
        %2497 = vmatprep.mubr.f32.mxu0 0.0
        %2498 = vmatmul.mubr.f32.gmra.mrb[0].mxu0 %v2278
        %v2499 = vpop.f32.mrb[0].mxu0
        %v2500 = vadd.f32 %v1150, %v2499
        %v2501 = vpop.f32.mrb[0].mxu0
        %2502 = vmatprep.mubr.f32.mxu0 0.0
        %2503 = vmatmul.mubr.f32.gmra.mrb[0].mxu0 %v2281
        %v2504 = vpop.f32.mrb[0].mxu0
        %v2505 = vadd.f32 %v1150, %v2504
        %v2506 = vpop.f32.mrb[0].mxu0
        %2507 = vdwg.mxu0
        %v2508 = vlaneseq
        %v2509 = vshrl.u32 %v2508, 7
        %v2510 = vsub.s32 1, %v2509
        %v2511 = vrot.slane %v716, %v2510
        %v2512 = vadd.f32 %v2350, %v2511
        %v2513 = vadd.f32 %v2355, %v2511
        %v2514 = vadd.f32 %v2360, %v2511
        %v2515 = vadd.f32 %v2365, %v2511
        %v2516 = vadd.f32 %v2370, %v2511
        %v2517 = vadd.f32 %v2375, %v2511
        %v2518 = vadd.f32 %v2380, %v2511
        %v2519 = vadd.f32 %v2385, %v2511
        %v2520 = vadd.f32 %v2390, %v2511
        %v2521 = vadd.f32 %v2395, %v2511
        %v2522 = vadd.f32 %v2400, %v2511
        %v2523 = vadd.f32 %v2405, %v2511
        %v2524 = vadd.f32 %v2410, %v2511
        %v2525 = vadd.f32 %v2415, %v2511
        %v2526 = vadd.f32 %v2420, %v2511
        %v2527 = vadd.f32 %v2425, %v2511
        %v2528 = vadd.f32 %v2430, %v2511
        %v2529 = vadd.f32 %v2435, %v2511
        %v2530 = vadd.f32 %v2440, %v2511
        %v2531 = vadd.f32 %v2445, %v2511
        %v2532 = vadd.f32 %v2450, %v2511
        %v2533 = vadd.f32 %v2455, %v2511
        %v2534 = vadd.f32 %v2460, %v2511
        %v2535 = vadd.f32 %v2465, %v2511
        %v2536 = vadd.f32 %v2470, %v2511
        %v2537 = vadd.f32 %v2475, %v2511
        %v2538 = vadd.f32 %v2480, %v2511
        %v2539 = vadd.f32 %v2485, %v2511
        %v2540 = vadd.f32 %v2490, %v2511
        %v2541 = vadd.f32 %v2495, %v2511
        %v2542 = vadd.f32 %v2500, %v2511
        %v2543 = vadd.f32 %v2505, %v2511
        %v2544 = vxor.u32 %v2512, 2147483648
        %v2545 = vxor.u32 %v2513, 2147483648
        %v2546 = vxor.u32 %v2514, 2147483648
        %v2547 = vxor.u32 %v2515, 2147483648
        %v2548 = vxor.u32 %v2516, 2147483648
        %v2549 = vxor.u32 %v2517, 2147483648
        %v2550 = vxor.u32 %v2518, 2147483648
        %v2551 = vxor.u32 %v2519, 2147483648
        %v2552 = vxor.u32 %v2520, 2147483648
        %v2553 = vxor.u32 %v2521, 2147483648
        %v2554 = vxor.u32 %v2522, 2147483648
        %v2555 = vxor.u32 %v2523, 2147483648
        %v2556 = vxor.u32 %v2524, 2147483648
        %v2557 = vxor.u32 %v2525, 2147483648
        %v2558 = vxor.u32 %v2526, 2147483648
        %v2559 = vxor.u32 %v2527, 2147483648
        %v2560 = vxor.u32 %v2528, 2147483648
        %v2561 = vxor.u32 %v2529, 2147483648
        %v2562 = vxor.u32 %v2530, 2147483648
        %v2563 = vxor.u32 %v2531, 2147483648
        %v2564 = vxor.u32 %v2532, 2147483648
        %v2565 = vxor.u32 %v2533, 2147483648
        %v2566 = vxor.u32 %v2534, 2147483648
        %v2567 = vxor.u32 %v2535, 2147483648
        %v2568 = vxor.u32 %v2536, 2147483648
        %v2569 = vxor.u32 %v2537, 2147483648
        %v2570 = vxor.u32 %v2538, 2147483648
        %v2571 = vxor.u32 %v2539, 2147483648
        %v2572 = vxor.u32 %v2540, 2147483648
        %v2573 = vxor.u32 %v2541, 2147483648
        %v2574 = vxor.u32 %v2542, 2147483648
        %v2575 = vxor.u32 %v2543, 2147483648
        %v2576 = vmul.f32 %v2544, 1.442695
        %v2577 = vpow.pop %v2576
        %v2578 = vmul.f32 %v2545, 1.442695
        %v2579 = vpow.pop %v2578
        %v2580 = vmul.f32 %v2546, 1.442695
        %v2581 = vpow.pop %v2580
        %v2582 = vmul.f32 %v2547, 1.442695
        %v2583 = vpow.pop %v2582
        %v2584 = vmul.f32 %v2548, 1.442695
        %v2585 = vpow.pop %v2584
        %v2586 = vmul.f32 %v2549, 1.442695
        %v2587 = vpow.pop %v2586
        %v2588 = vmul.f32 %v2550, 1.442695
        %v2589 = vpow.pop %v2588
        %v2590 = vmul.f32 %v2551, 1.442695
        %v2591 = vpow.pop %v2590
        %v2592 = vmul.f32 %v2552, 1.442695
        %v2593 = vpow.pop %v2592
        %v2594 = vmul.f32 %v2553, 1.442695
        %v2595 = vpow.pop %v2594
        %v2596 = vmul.f32 %v2554, 1.442695
        %v2597 = vpow.pop %v2596
        %v2598 = vmul.f32 %v2555, 1.442695
        %v2599 = vpow.pop %v2598
        %v2600 = vmul.f32 %v2556, 1.442695
        %v2601 = vpow.pop %v2600
        %v2602 = vmul.f32 %v2557, 1.442695
        %v2603 = vpow.pop %v2602
        %v2604 = vmul.f32 %v2558, 1.442695
        %v2605 = vpow.pop %v2604
        %v2606 = vmul.f32 %v2559, 1.442695
        %v2607 = vpow.pop %v2606
        %v2608 = vmul.f32 %v2560, 1.442695
        %v2609 = vpow.pop %v2608
        %v2610 = vmul.f32 %v2561, 1.442695
        %v2611 = vpow.pop %v2610
        %v2612 = vmul.f32 %v2562, 1.442695
        %v2613 = vpow.pop %v2612
        %v2614 = vmul.f32 %v2563, 1.442695
        %v2615 = vpow.pop %v2614
        %v2616 = vmul.f32 %v2564, 1.442695
        %v2617 = vpow.pop %v2616
        %v2618 = vmul.f32 %v2565, 1.442695
        %v2619 = vpow.pop %v2618
        %v2620 = vmul.f32 %v2566, 1.442695
        %v2621 = vpow.pop %v2620
        %v2622 = vmul.f32 %v2567, 1.442695
        %v2623 = vpow.pop %v2622
        %v2624 = vmul.f32 %v2568, 1.442695
        %v2625 = vpow.pop %v2624
        %v2626 = vmul.f32 %v2569, 1.442695
        %v2627 = vpow.pop %v2626
        %v2628 = vmul.f32 %v2570, 1.442695
        %v2629 = vpow.pop %v2628
        %v2630 = vmul.f32 %v2571, 1.442695
        %v2631 = vpow.pop %v2630
        %v2632 = vmul.f32 %v2572, 1.442695
        %v2633 = vpow.pop %v2632
        %v2634 = vmul.f32 %v2573, 1.442695
        %v2635 = vpow.pop %v2634
        %v2636 = vmul.f32 %v2574, 1.442695
        %v2637 = vpow.pop %v2636
        %v2638 = vmul.f32 %v2575, 1.442695
        %v2639 = vpow.pop %v2638
        %v2640 = vadd.f32 %v2577, 1.0
        %v2641 = vadd.f32 %v2579, 1.0
        %v2642 = vadd.f32 %v2581, 1.0
        %v2643 = vadd.f32 %v2583, 1.0
        %v2644 = vadd.f32 %v2585, 1.0
        %v2645 = vadd.f32 %v2587, 1.0
        %v2646 = vadd.f32 %v2589, 1.0
        %v2647 = vadd.f32 %v2591, 1.0
        %v2648 = vadd.f32 %v2593, 1.0
        %v2649 = vadd.f32 %v2595, 1.0
        %v2650 = vadd.f32 %v2597, 1.0
        %v2651 = vadd.f32 %v2599, 1.0
        %v2652 = vadd.f32 %v2601, 1.0
        %v2653 = vadd.f32 %v2603, 1.0
        %v2654 = vadd.f32 %v2605, 1.0
        %v2655 = vadd.f32 %v2607, 1.0
        %v2656 = vadd.f32 %v2609, 1.0
        %v2657 = vadd.f32 %v2611, 1.0
        %v2658 = vadd.f32 %v2613, 1.0
        %v2659 = vadd.f32 %v2615, 1.0
        %v2660 = vadd.f32 %v2617, 1.0
        %v2661 = vadd.f32 %v2619, 1.0
        %v2662 = vadd.f32 %v2621, 1.0
        %v2663 = vadd.f32 %v2623, 1.0
        %v2664 = vadd.f32 %v2625, 1.0
        %v2665 = vadd.f32 %v2627, 1.0
        %v2666 = vadd.f32 %v2629, 1.0
        %v2667 = vadd.f32 %v2631, 1.0
        %v2668 = vadd.f32 %v2633, 1.0
        %v2669 = vadd.f32 %v2635, 1.0
        %v2670 = vadd.f32 %v2637, 1.0
        %v2671 = vadd.f32 %v2639, 1.0
        %v2672 = vrcp.pop %v2640
        %v2673 = vmul.f32 1.0, %v2672
        %v2674 = vrcp.pop %v2641
        %v2675 = vmul.f32 1.0, %v2674
        %v2676 = vrcp.pop %v2642
        %v2677 = vmul.f32 1.0, %v2676
        %v2678 = vrcp.pop %v2643
        %v2679 = vmul.f32 1.0, %v2678
        %v2680 = vrcp.pop %v2644
        %v2681 = vmul.f32 1.0, %v2680
        %v2682 = vrcp.pop %v2645
        %v2683 = vmul.f32 1.0, %v2682
        %v2684 = vrcp.pop %v2646
        %v2685 = vmul.f32 1.0, %v2684
        %v2686 = vrcp.pop %v2647
        %v2687 = vmul.f32 1.0, %v2686
        %v2688 = vrcp.pop %v2648
        %v2689 = vmul.f32 1.0, %v2688
        %v2690 = vrcp.pop %v2649
        %v2691 = vmul.f32 1.0, %v2690
        %v2692 = vrcp.pop %v2650
        %v2693 = vmul.f32 1.0, %v2692
        %v2694 = vrcp.pop %v2651
        %v2695 = vmul.f32 1.0, %v2694
        %v2696 = vrcp.pop %v2652
        %v2697 = vmul.f32 1.0, %v2696
        %v2698 = vrcp.pop %v2653
        %v2699 = vmul.f32 1.0, %v2698
        %v2700 = vrcp.pop %v2654
        %v2701 = vmul.f32 1.0, %v2700
        %v2702 = vrcp.pop %v2655
        %v2703 = vmul.f32 1.0, %v2702
        %v2704 = vrcp.pop %v2656
        %v2705 = vmul.f32 1.0, %v2704
        %v2706 = vrcp.pop %v2657
        %v2707 = vmul.f32 1.0, %v2706
        %v2708 = vrcp.pop %v2658
        %v2709 = vmul.f32 1.0, %v2708
        %v2710 = vrcp.pop %v2659
        %v2711 = vmul.f32 1.0, %v2710
        %v2712 = vrcp.pop %v2660
        %v2713 = vmul.f32 1.0, %v2712
        %v2714 = vrcp.pop %v2661
        %v2715 = vmul.f32 1.0, %v2714
        %v2716 = vrcp.pop %v2662
        %v2717 = vmul.f32 1.0, %v2716
        %v2718 = vrcp.pop %v2663
        %v2719 = vmul.f32 1.0, %v2718
        %v2720 = vrcp.pop %v2664
        %v2721 = vmul.f32 1.0, %v2720
        %v2722 = vrcp.pop %v2665
        %v2723 = vmul.f32 1.0, %v2722
        %v2724 = vrcp.pop %v2666
        %v2725 = vmul.f32 1.0, %v2724
        %v2726 = vrcp.pop %v2667
        %v2727 = vmul.f32 1.0, %v2726
        %v2728 = vrcp.pop %v2668
        %v2729 = vmul.f32 1.0, %v2728
        %v2730 = vrcp.pop %v2669
        %v2731 = vmul.f32 1.0, %v2730
        %v2732 = vrcp.pop %v2670
        %v2733 = vmul.f32 1.0, %v2732
        %v2734 = vrcp.pop %v2671
        %v2735 = vmul.f32 1.0, %v2734
        %v2736 = vsub.f32 %v684, %v620
        %v2737 = vsub.f32 %v685, %v621
        %v2738 = vsub.f32 %v686, %v622
        %v2739 = vsub.f32 %v687, %v623
        %v2740 = vsub.f32 %v688, %v624
        %v2741 = vsub.f32 %v689, %v625
        %v2742 = vsub.f32 %v690, %v626
        %v2743 = vsub.f32 %v691, %v627
        %v2744 = vsub.f32 %v692, %v628
        %v2745 = vsub.f32 %v693, %v629
        %v2746 = vsub.f32 %v694, %v630
        %v2747 = vsub.f32 %v695, %v631
        %v2748 = vsub.f32 %v696, %v632
        %v2749 = vsub.f32 %v697, %v633
        %v2750 = vsub.f32 %v698, %v634
        %v2751 = vsub.f32 %v699, %v635
        %v2752 = vsub.f32 %v700, %v636
        %v2753 = vsub.f32 %v701, %v637
        %v2754 = vsub.f32 %v702, %v638
        %v2755 = vsub.f32 %v703, %v639
        %v2756 = vsub.f32 %v704, %v640
        %v2757 = vsub.f32 %v705, %v641
        %v2758 = vsub.f32 %v706, %v642
        %v2759 = vsub.f32 %v707, %v643
        %v2760 = vsub.f32 %v708, %v644
        %v2761 = vsub.f32 %v709, %v645
        %v2762 = vsub.f32 %v710, %v646
        %v2763 = vsub.f32 %v711, %v647
        %v2764 = vsub.f32 %v712, %v648
        %v2765 = vsub.f32 %v713, %v649
        %v2766 = vsub.f32 %v714, %v650
        %v2767 = vsub.f32 %v715, %v651
        %v2768 = vmul.f32 %v2673, %v2736
        %v2769 = vmul.f32 %v2675, %v2737
        %v2770 = vmul.f32 %v2677, %v2738
        %v2771 = vmul.f32 %v2679, %v2739
        %v2772 = vmul.f32 %v2681, %v2740
        %v2773 = vmul.f32 %v2683, %v2741
        %v2774 = vmul.f32 %v2685, %v2742
        %v2775 = vmul.f32 %v2687, %v2743
        %v2776 = vmul.f32 %v2689, %v2744
        %v2777 = vmul.f32 %v2691, %v2745
        %v2778 = vmul.f32 %v2693, %v2746
        %v2779 = vmul.f32 %v2695, %v2747
        %v2780 = vmul.f32 %v2697, %v2748
        %v2781 = vmul.f32 %v2699, %v2749
        %v2782 = vmul.f32 %v2701, %v2750
        %v2783 = vmul.f32 %v2703, %v2751
        %v2784 = vmul.f32 %v2705, %v2752
        %v2785 = vmul.f32 %v2707, %v2753
        %v2786 = vmul.f32 %v2709, %v2754
        %v2787 = vmul.f32 %v2711, %v2755
        %v2788 = vmul.f32 %v2713, %v2756
        %v2789 = vmul.f32 %v2715, %v2757
        %v2790 = vmul.f32 %v2717, %v2758
        %v2791 = vmul.f32 %v2719, %v2759
        %v2792 = vmul.f32 %v2721, %v2760
        %v2793 = vmul.f32 %v2723, %v2761
        %v2794 = vmul.f32 %v2725, %v2762
        %v2795 = vmul.f32 %v2727, %v2763
        %v2796 = vmul.f32 %v2729, %v2764
        %v2797 = vmul.f32 %v2731, %v2765
        %v2798 = vmul.f32 %v2733, %v2766
        %v2799 = vmul.f32 %v2735, %v2767
        %v2800 = vadd.f32 %v1770, %v2768
        %v2801 = vadd.f32 %v1771, %v2769
        %v2802 = vadd.f32 %v1772, %v2770
        %v2803 = vadd.f32 %v1773, %v2771
        %v2804 = vadd.f32 %v1774, %v2772
        %v2805 = vadd.f32 %v1775, %v2773
        %v2806 = vadd.f32 %v1776, %v2774
        %v2807 = vadd.f32 %v1777, %v2775
        %v2808 = vadd.f32 %v1778, %v2776
        %v2809 = vadd.f32 %v1779, %v2777
        %v2810 = vadd.f32 %v1780, %v2778
        %v2811 = vadd.f32 %v1781, %v2779
        %v2812 = vadd.f32 %v1782, %v2780
        %v2813 = vadd.f32 %v1783, %v2781
        %v2814 = vadd.f32 %v1784, %v2782
        %v2815 = vadd.f32 %v1785, %v2783
        %v2816 = vadd.f32 %v1786, %v2784
        %v2817 = vadd.f32 %v1787, %v2785
        %v2818 = vadd.f32 %v1788, %v2786
        %v2819 = vadd.f32 %v1789, %v2787
        %v2820 = vadd.f32 %v1790, %v2788
        %v2821 = vadd.f32 %v1791, %v2789
        %v2822 = vadd.f32 %v1792, %v2790
        %v2823 = vadd.f32 %v1793, %v2791
        %v2824 = vadd.f32 %v1794, %v2792
        %v2825 = vadd.f32 %v1795, %v2793
        %v2826 = vadd.f32 %v1796, %v2794
        %v2827 = vadd.f32 %v1797, %v2795
        %v2828 = vadd.f32 %v1798, %v2796
        %v2829 = vadd.f32 %v1799, %v2797
        %v2830 = vadd.f32 %v1800, %v2798
        %v2831 = vadd.f32 %v1801, %v2799
        %v2832 = vadd.f32 %v652, %v684
        %v2833 = vadd.f32 %v653, %v685
        %v2834 = vadd.f32 %v654, %v686
        %v2835 = vadd.f32 %v655, %v687
        %v2836 = vadd.f32 %v656, %v688
        %v2837 = vadd.f32 %v657, %v689
        %v2838 = vadd.f32 %v658, %v690
        %v2839 = vadd.f32 %v659, %v691
        %v2840 = vadd.f32 %v660, %v692
        %v2841 = vadd.f32 %v661, %v693
        %v2842 = vadd.f32 %v662, %v694
        %v2843 = vadd.f32 %v663, %v695
        %v2844 = vadd.f32 %v664, %v696
        %v2845 = vadd.f32 %v665, %v697
        %v2846 = vadd.f32 %v666, %v698
        %v2847 = vadd.f32 %v667, %v699
        %v2848 = vadd.f32 %v668, %v700
        %v2849 = vadd.f32 %v669, %v701
        %v2850 = vadd.f32 %v670, %v702
        %v2851 = vadd.f32 %v671, %v703
        %v2852 = vadd.f32 %v672, %v704
        %v2853 = vadd.f32 %v673, %v705
        %v2854 = vadd.f32 %v674, %v706
        %v2855 = vadd.f32 %v675, %v707
        %v2856 = vadd.f32 %v676, %v708
        %v2857 = vadd.f32 %v677, %v709
        %v2858 = vadd.f32 %v678, %v710
        %v2859 = vadd.f32 %v679, %v711
        %v2860 = vadd.f32 %v680, %v712
        %v2861 = vadd.f32 %v681, %v713
        %v2862 = vadd.f32 %v682, %v714
        %v2863 = vadd.f32 %v683, %v715
        %v2865 = vsel %vm792, %v2832, 0
        %v2868 = vsel %vm792, %v2833, 0
        %v2871 = vsel %vm792, %v2834, 0
        %v2874 = vsel %vm792, %v2835, 0
        %v2877 = vsel %vm792, %v2836, 0
        %v2880 = vsel %vm792, %v2837, 0
        %v2883 = vsel %vm792, %v2838, 0
        %v2886 = vsel %vm792, %v2839, 0
        %v2889 = vsel %vm792, %v2840, 0
        %v2892 = vsel %vm792, %v2841, 0
        %v2895 = vsel %vm792, %v2842, 0
        %v2898 = vsel %vm792, %v2843, 0
        %v2901 = vsel %vm792, %v2844, 0
        %v2904 = vsel %vm792, %v2845, 0
        %v2907 = vsel %vm792, %v2846, 0
        %v2910 = vsel %vm792, %v2847, 0
        %v2913 = vsel %vm792, %v2848, 0
        %v2916 = vsel %vm792, %v2849, 0
        %v2919 = vsel %vm792, %v2850, 0
        %v2922 = vsel %vm792, %v2851, 0
        %v2925 = vsel %vm792, %v2852, 0
        %v2928 = vsel %vm792, %v2853, 0
        %v2931 = vsel %vm792, %v2854, 0
        %v2934 = vsel %vm792, %v2855, 0
        %v2937 = vsel %vm792, %v2856, 0
        %v2940 = vsel %vm792, %v2857, 0
        %v2943 = vsel %vm792, %v2858, 0
        %v2946 = vsel %vm792, %v2859, 0
        %v2949 = vsel %vm792, %v2860, 0
        %v2952 = vsel %vm792, %v2861, 0
        %v2955 = vsel %vm792, %v2862, 0
        %v2958 = vsel %vm792, %v2863, 0
        %2960 = vmatprep.subr.mxu0 0.0
        %2961 = vmatpush1.msra.mxu0 %v717
        %2962 = vmatprep.subr.mxu0 0.0
        %2963 = vmatpush1.msra.mxu0 %v718
        %2964 = vmatprep.subr.mxu0 0.0
        %2965 = vmatpush1.msra.mxu0 0.0
        %2966 = vmatprep.subr.mxu0 0.0
        %2967 = vmatpush1.msra.mxu0 0.0
        %2968 = vmatprep.subr.mxu0 0.0
        %2969 = vmatpush1.msra.mxu0 0.0
        %2970 = vmatprep.subr.mxu0 0.0
        %2971 = vmatpush1.msra.mxu0 0.0
        %2972 = vmatprep.subr.mxu0 0.0
        %2973 = vmatpush1.msra.mxu0 0.0
        %2974 = vmatprep.subr.mxu0 0.0
        %2975 = vmatpush1.msra.mxu0 0.0
        %2976 = vmatprep.subr.mxu0 0.0
        %2977 = vmatpush1.msra.mxu0 0.0
        %2978 = vmatprep.subr.mxu0 0.0
        %2979 = vmatpush1.msra.mxu0 0.0
        %2980 = vmatprep.subr.mxu0 0.0
        %2981 = vmatpush1.msra.mxu0 0.0
        %2982 = vmatprep.subr.mxu0 0.0
        %2983 = vmatpush1.msra.mxu0 0.0
        %2984 = vmatprep.subr.mxu0 0.0
        %2985 = vmatpush1.msra.mxu0 0.0
        %2986 = vmatprep.subr.mxu0 0.0
        %2987 = vmatpush1.msra.mxu0 0.0
        %2988 = vmatprep.subr.mxu0 0.0
        %2989 = vmatpush1.msra.mxu0 0.0
        %2990 = vmatprep.subr.mxu0 0.0
        %2991 = vmatpush1.msra.mxu0 0.0
        %2992 = vmatprep.subr.mxu0 0.0
        %2993 = vmatpush1.msra.mxu0 0.0
        %2994 = vmatprep.subr.mxu0 0.0
        %2995 = vmatpush1.msra.mxu0 0.0
        %2996 = vmatprep.subr.mxu0 0.0
        %2997 = vmatpush1.msra.mxu0 0.0
        %2998 = vmatprep.subr.mxu0 0.0
        %2999 = vmatpush1.msra.mxu0 0.0
        %3000 = vmatprep.subr.mxu0 0.0
        %3001 = vmatpush1.msra.mxu0 0.0
        %3002 = vmatprep.subr.mxu0 0.0
        %3003 = vmatpush1.msra.mxu0 0.0
        %3004 = vmatprep.subr.mxu0 0.0
        %3005 = vmatpush1.msra.mxu0 0.0
        %3006 = vmatprep.subr.mxu0 0.0
        %3007 = vmatpush1.msra.mxu0 0.0
        %3008 = vmatprep.subr.mxu0 0.0
        %3009 = vmatpush1.msra.mxu0 0.0
        %3010 = vmatprep.subr.mxu0 0.0
        %3011 = vmatpush1.msra.mxu0 0.0
        %3012 = vmatprep.subr.mxu0 0.0
        %3013 = vmatpush1.msra.mxu0 0.0
        %3014 = vmatprep.subr.mxu0 0.0
        %3015 = vmatpush1.msra.mxu0 0.0
        %3016 = vmatprep.subr.mxu0 0.0
        %3017 = vmatpush1.msra.mxu0 0.0
        %3018 = vmatprep.subr.mxu0 0.0
        %3019 = vmatpush1.msra.mxu0 0.0
        %3020 = vmatprep.subr.mxu0 0.0
        %3021 = vmatpush1.msra.mxu0 0.0
        %3022 = vmatprep.subr.mxu0 0.0
        %3023 = vmatpush1.msra.mxu0 0.0
        %3024 = vmatprep.mubr.f32.mxu0 0.0
        %3025 = vmatmul.mubr.f32.gmra.mrb[0].mxu0 %v2865
        %v3026 = vpop.f32.mrb[0].mxu0
        %v3027 = vadd.f32 %v790, %v3026
        %v3028 = vpop.f32.mrb[0].mxu0
        %3029 = vmatprep.mubr.f32.mxu0 0.0
        %3030 = vmatmul.mubr.f32.gmra.mrb[0].mxu0 %v2868
        %v3031 = vpop.f32.mrb[0].mxu0
        %v3032 = vadd.f32 %v790, %v3031
        %v3033 = vpop.f32.mrb[0].mxu0
        %3034 = vmatprep.mubr.f32.mxu0 0.0
        %3035 = vmatmul.mubr.f32.gmra.mrb[0].mxu0 %v2871
        %v3036 = vpop.f32.mrb[0].mxu0
        %v3037 = vadd.f32 %v790, %v3036
        %v3038 = vpop.f32.mrb[0].mxu0
        %3039 = vmatprep.mubr.f32.mxu0 0.0
        %3040 = vmatmul.mubr.f32.gmra.mrb[0].mxu0 %v2874
        %v3041 = vpop.f32.mrb[0].mxu0
        %v3042 = vadd.f32 %v790, %v3041
        %v3043 = vpop.f32.mrb[0].mxu0
        %3044 = vmatprep.mubr.f32.mxu0 0.0
        %3045 = vmatmul.mubr.f32.gmra.mrb[0].mxu0 %v2877
        %v3046 = vpop.f32.mrb[0].mxu0
        %v3047 = vadd.f32 %v790, %v3046
        %v3048 = vpop.f32.mrb[0].mxu0
        %3049 = vmatprep.mubr.f32.mxu0 0.0
        %3050 = vmatmul.mubr.f32.gmra.mrb[0].mxu0 %v2880
        %v3051 = vpop.f32.mrb[0].mxu0
        %v3052 = vadd.f32 %v790, %v3051
        %v3053 = vpop.f32.mrb[0].mxu0
        %3054 = vmatprep.mubr.f32.mxu0 0.0
        %3055 = vmatmul.mubr.f32.gmra.mrb[0].mxu0 %v2883
        %v3056 = vpop.f32.mrb[0].mxu0
        %v3057 = vadd.f32 %v790, %v3056
        %v3058 = vpop.f32.mrb[0].mxu0
        %3059 = vmatprep.mubr.f32.mxu0 0.0
        %3060 = vmatmul.mubr.f32.gmra.mrb[0].mxu0 %v2886
        %v3061 = vpop.f32.mrb[0].mxu0
        %v3062 = vadd.f32 %v790, %v3061
        %v3063 = vpop.f32.mrb[0].mxu0
        %3064 = vmatprep.mubr.f32.mxu0 0.0
        %3065 = vmatmul.mubr.f32.gmra.mrb[0].mxu0 %v2889
        %v3066 = vpop.f32.mrb[0].mxu0
        %v3067 = vadd.f32 %v790, %v3066
        %v3068 = vpop.f32.mrb[0].mxu0
        %3069 = vmatprep.mubr.f32.mxu0 0.0
        %3070 = vmatmul.mubr.f32.gmra.mrb[0].mxu0 %v2892
        %v3071 = vpop.f32.mrb[0].mxu0
        %v3072 = vadd.f32 %v790, %v3071
        %v3073 = vpop.f32.mrb[0].mxu0
        %3074 = vmatprep.mubr.f32.mxu0 0.0
        %3075 = vmatmul.mubr.f32.gmra.mrb[0].mxu0 %v2895
        %v3076 = vpop.f32.mrb[0].mxu0
        %v3077 = vadd.f32 %v790, %v3076
        %v3078 = vpop.f32.mrb[0].mxu0
        %3079 = vmatprep.mubr.f32.mxu0 0.0
        %3080 = vmatmul.mubr.f32.gmra.mrb[0].mxu0 %v2898
        %v3081 = vpop.f32.mrb[0].mxu0
        %v3082 = vadd.f32 %v790, %v3081
        %v3083 = vpop.f32.mrb[0].mxu0
        %3084 = vmatprep.mubr.f32.mxu0 0.0
        %3085 = vmatmul.mubr.f32.gmra.mrb[0].mxu0 %v2901
        %v3086 = vpop.f32.mrb[0].mxu0
        %v3087 = vadd.f32 %v790, %v3086
        %v3088 = vpop.f32.mrb[0].mxu0
        %3089 = vmatprep.mubr.f32.mxu0 0.0
        %3090 = vmatmul.mubr.f32.gmra.mrb[0].mxu0 %v2904
        %v3091 = vpop.f32.mrb[0].mxu0
        %v3092 = vadd.f32 %v790, %v3091
        %v3093 = vpop.f32.mrb[0].mxu0
        %3094 = vmatprep.mubr.f32.mxu0 0.0
        %3095 = vmatmul.mubr.f32.gmra.mrb[0].mxu0 %v2907
        %v3096 = vpop.f32.mrb[0].mxu0
        %v3097 = vadd.f32 %v790, %v3096
        %v3098 = vpop.f32.mrb[0].mxu0
        %3099 = vmatprep.mubr.f32.mxu0 0.0
        %3100 = vmatmul.mubr.f32.gmra.mrb[0].mxu0 %v2910
        %v3101 = vpop.f32.mrb[0].mxu0
        %v3102 = vadd.f32 %v790, %v3101
        %v3103 = vpop.f32.mrb[0].mxu0
        %3104 = vmatprep.mubr.f32.mxu0 0.0
        %3105 = vmatmul.mubr.f32.gmra.mrb[0].mxu0 %v2913
        %v3106 = vpop.f32.mrb[0].mxu0
        %v3107 = vadd.f32 %v790, %v3106
        %v3108 = vpop.f32.mrb[0].mxu0
        %3109 = vmatprep.mubr.f32.mxu0 0.0
        %3110 = vmatmul.mubr.f32.gmra.mrb[0].mxu0 %v2916
        %v3111 = vpop.f32.mrb[0].mxu0
        %v3112 = vadd.f32 %v790, %v3111
        %v3113 = vpop.f32.mrb[0].mxu0
        %3114 = vmatprep.mubr.f32.mxu0 0.0
        %3115 = vmatmul.mubr.f32.gmra.mrb[0].mxu0 %v2919
        %v3116 = vpop.f32.mrb[0].mxu0
        %v3117 = vadd.f32 %v790, %v3116
        %v3118 = vpop.f32.mrb[0].mxu0
        %3119 = vmatprep.mubr.f32.mxu0 0.0
        %3120 = vmatmul.mubr.f32.gmra.mrb[0].mxu0 %v2922
        %v3121 = vpop.f32.mrb[0].mxu0
        %v3122 = vadd.f32 %v790, %v3121
        %v3123 = vpop.f32.mrb[0].mxu0
        %3124 = vmatprep.mubr.f32.mxu0 0.0
        %3125 = vmatmul.mubr.f32.gmra.mrb[0].mxu0 %v2925
        %v3126 = vpop.f32.mrb[0].mxu0
        %v3127 = vadd.f32 %v790, %v3126
        %v3128 = vpop.f32.mrb[0].mxu0
        %3129 = vmatprep.mubr.f32.mxu0 0.0
        %3130 = vmatmul.mubr.f32.gmra.mrb[0].mxu0 %v2928
        %v3131 = vpop.f32.mrb[0].mxu0
        %v3132 = vadd.f32 %v790, %v3131
        %v3133 = vpop.f32.mrb[0].mxu0
        %3134 = vmatprep.mubr.f32.mxu0 0.0
        %3135 = vmatmul.mubr.f32.gmra.mrb[0].mxu0 %v2931
        %v3136 = vpop.f32.mrb[0].mxu0
        %v3137 = vadd.f32 %v790, %v3136
        %v3138 = vpop.f32.mrb[0].mxu0
        %3139 = vmatprep.mubr.f32.mxu0 0.0
        %3140 = vmatmul.mubr.f32.gmra.mrb[0].mxu0 %v2934
        %v3141 = vpop.f32.mrb[0].mxu0
        %v3142 = vadd.f32 %v790, %v3141
        %v3143 = vpop.f32.mrb[0].mxu0
        %3144 = vmatprep.mubr.f32.mxu0 0.0
        %3145 = vmatmul.mubr.f32.gmra.mrb[0].mxu0 %v2937
        %v3146 = vpop.f32.mrb[0].mxu0
        %v3147 = vadd.f32 %v790, %v3146
        %v3148 = vpop.f32.mrb[0].mxu0
        %3149 = vmatprep.mubr.f32.mxu0 0.0
        %3150 = vmatmul.mubr.f32.gmra.mrb[0].mxu0 %v2940
        %v3151 = vpop.f32.mrb[0].mxu0
        %v3152 = vadd.f32 %v790, %v3151
        %v3153 = vpop.f32.mrb[0].mxu0
        %3154 = vmatprep.mubr.f32.mxu0 0.0
        %3155 = vmatmul.mubr.f32.gmra.mrb[0].mxu0 %v2943
        %v3156 = vpop.f32.mrb[0].mxu0
        %v3157 = vadd.f32 %v790, %v3156
        %v3158 = vpop.f32.mrb[0].mxu0
        %3159 = vmatprep.mubr.f32.mxu0 0.0
        %3160 = vmatmul.mubr.f32.gmra.mrb[0].mxu0 %v2946
        %v3161 = vpop.f32.mrb[0].mxu0
        %v3162 = vadd.f32 %v790, %v3161
        %v3163 = vpop.f32.mrb[0].mxu0
        %3164 = vmatprep.mubr.f32.mxu0 0.0
        %3165 = vmatmul.mubr.f32.gmra.mrb[0].mxu0 %v2949
        %v3166 = vpop.f32.mrb[0].mxu0
        %v3167 = vadd.f32 %v790, %v3166
        %v3168 = vpop.f32.mrb[0].mxu0
        %3169 = vmatprep.mubr.f32.mxu0 0.0
        %3170 = vmatmul.mubr.f32.gmra.mrb[0].mxu0 %v2952
        %v3171 = vpop.f32.mrb[0].mxu0
        %v3172 = vadd.f32 %v790, %v3171
        %v3173 = vpop.f32.mrb[0].mxu0
        %3174 = vmatprep.mubr.f32.mxu0 0.0
        %3175 = vmatmul.mubr.f32.gmra.mrb[0].mxu0 %v2955
        %v3176 = vpop.f32.mrb[0].mxu0
        %v3177 = vadd.f32 %v790, %v3176
        %v3178 = vpop.f32.mrb[0].mxu0
        %3179 = vmatprep.mubr.f32.mxu0 0.0
        %3180 = vmatmul.mubr.f32.gmra.mrb[0].mxu0 %v2958
        %v3181 = vpop.f32.mrb[0].mxu0
        %v3182 = vadd.f32 %v790, %v3181
        %v3183 = vpop.f32.mrb[0].mxu0
        %3184 = vdwg.mxu0
        %v3185 = vmax.f32 %v3027, 0.0
        %v3186 = vmax.f32 %v3032, 0.0
        %v3187 = vmax.f32 %v3037, 0.0
        %v3188 = vmax.f32 %v3042, 0.0
        %v3189 = vmax.f32 %v3047, 0.0
        %v3190 = vmax.f32 %v3052, 0.0
        %v3191 = vmax.f32 %v3057, 0.0
        %v3192 = vmax.f32 %v3062, 0.0
        %v3193 = vmax.f32 %v3067, 0.0
        %v3194 = vmax.f32 %v3072, 0.0
        %v3195 = vmax.f32 %v3077, 0.0
        %v3196 = vmax.f32 %v3082, 0.0
        %v3197 = vmax.f32 %v3087, 0.0
        %v3198 = vmax.f32 %v3092, 0.0
        %v3199 = vmax.f32 %v3097, 0.0
        %v3200 = vmax.f32 %v3102, 0.0
        %v3201 = vmax.f32 %v3107, 0.0
        %v3202 = vmax.f32 %v3112, 0.0
        %v3203 = vmax.f32 %v3117, 0.0
        %v3204 = vmax.f32 %v3122, 0.0
        %v3205 = vmax.f32 %v3127, 0.0
        %v3206 = vmax.f32 %v3132, 0.0
        %v3207 = vmax.f32 %v3137, 0.0
        %v3208 = vmax.f32 %v3142, 0.0
        %v3209 = vmax.f32 %v3147, 0.0
        %v3210 = vmax.f32 %v3152, 0.0
        %v3211 = vmax.f32 %v3157, 0.0
        %v3212 = vmax.f32 %v3162, 0.0
        %v3213 = vmax.f32 %v3167, 0.0
        %v3214 = vmax.f32 %v3172, 0.0
        %v3215 = vmax.f32 %v3177, 0.0
        %v3216 = vmax.f32 %v3182, 0.0
        %v3218 = vsel %vm1152, %v3185, 0
        %v3221 = vsel %vm1152, %v3186, 0
        %v3224 = vsel %vm1152, %v3187, 0
        %v3227 = vsel %vm1152, %v3188, 0
        %v3230 = vsel %vm1152, %v3189, 0
        %v3233 = vsel %vm1152, %v3190, 0
        %v3236 = vsel %vm1152, %v3191, 0
        %v3239 = vsel %vm1152, %v3192, 0
        %v3242 = vsel %vm1152, %v3193, 0
        %v3245 = vsel %vm1152, %v3194, 0
        %v3248 = vsel %vm1152, %v3195, 0
        %v3251 = vsel %vm1152, %v3196, 0
        %v3254 = vsel %vm1152, %v3197, 0
        %v3257 = vsel %vm1152, %v3198, 0
        %v3260 = vsel %vm1152, %v3199, 0
        %v3263 = vsel %vm1152, %v3200, 0
        %v3266 = vsel %vm1152, %v3201, 0
        %v3269 = vsel %vm1152, %v3202, 0
        %v3272 = vsel %vm1152, %v3203, 0
        %v3275 = vsel %vm1152, %v3204, 0
        %v3278 = vsel %vm1152, %v3205, 0
        %v3281 = vsel %vm1152, %v3206, 0
        %v3284 = vsel %vm1152, %v3207, 0
        %v3287 = vsel %vm1152, %v3208, 0
        %v3290 = vsel %vm1152, %v3209, 0
        %v3293 = vsel %vm1152, %v3210, 0
        %v3296 = vsel %vm1152, %v3211, 0
        %v3299 = vsel %vm1152, %v3212, 0
        %v3302 = vsel %vm1152, %v3213, 0
        %v3305 = vsel %vm1152, %v3214, 0
        %v3308 = vsel %vm1152, %v3215, 0
        %v3311 = vsel %vm1152, %v3216, 0
        %3313 = vmatprep.subr.mxu0 0.0
        %3314 = vmatpush1.msra.mxu0 %v1251
        %3315 = vmatprep.subr.mxu0 0.0
        %3316 = vmatpush1.msra.mxu0 0.0
        %3317 = vmatprep.subr.mxu0 0.0
        %3318 = vmatpush1.msra.mxu0 0.0
        %3319 = vmatprep.subr.mxu0 0.0
        %3320 = vmatpush1.msra.mxu0 0.0
        %3321 = vmatprep.subr.mxu0 0.0
        %3322 = vmatpush1.msra.mxu0 0.0
        %3323 = vmatprep.subr.mxu0 0.0
        %3324 = vmatpush1.msra.mxu0 0.0
        %3325 = vmatprep.subr.mxu0 0.0
        %3326 = vmatpush1.msra.mxu0 0.0
        %3327 = vmatprep.subr.mxu0 0.0
        %3328 = vmatpush1.msra.mxu0 0.0
        %3329 = vmatprep.subr.mxu0 0.0
        %3330 = vmatpush1.msra.mxu0 0.0
        %3331 = vmatprep.subr.mxu0 0.0
        %3332 = vmatpush1.msra.mxu0 0.0
        %3333 = vmatprep.subr.mxu0 0.0
        %3334 = vmatpush1.msra.mxu0 0.0
        %3335 = vmatprep.subr.mxu0 0.0
        %3336 = vmatpush1.msra.mxu0 0.0
        %3337 = vmatprep.subr.mxu0 0.0
        %3338 = vmatpush1.msra.mxu0 0.0
        %3339 = vmatprep.subr.mxu0 0.0
        %3340 = vmatpush1.msra.mxu0 0.0
        %3341 = vmatprep.subr.mxu0 0.0
        %3342 = vmatpush1.msra.mxu0 0.0
        %3343 = vmatprep.subr.mxu0 0.0
        %3344 = vmatpush1.msra.mxu0 0.0
        %3345 = vmatprep.subr.mxu0 0.0
        %3346 = vmatpush1.msra.mxu0 0.0
        %3347 = vmatprep.subr.mxu0 0.0
        %3348 = vmatpush1.msra.mxu0 0.0
        %3349 = vmatprep.subr.mxu0 0.0
        %3350 = vmatpush1.msra.mxu0 0.0
        %3351 = vmatprep.subr.mxu0 0.0
        %3352 = vmatpush1.msra.mxu0 0.0
        %3353 = vmatprep.subr.mxu0 0.0
        %3354 = vmatpush1.msra.mxu0 0.0
        %3355 = vmatprep.subr.mxu0 0.0
        %3356 = vmatpush1.msra.mxu0 0.0
        %3357 = vmatprep.subr.mxu0 0.0
        %3358 = vmatpush1.msra.mxu0 0.0
        %3359 = vmatprep.subr.mxu0 0.0
        %3360 = vmatpush1.msra.mxu0 0.0
        %3361 = vmatprep.subr.mxu0 0.0
        %3362 = vmatpush1.msra.mxu0 0.0
        %3363 = vmatprep.subr.mxu0 0.0
        %3364 = vmatpush1.msra.mxu0 0.0
        %3365 = vmatprep.subr.mxu0 0.0
        %3366 = vmatpush1.msra.mxu0 0.0
        %3367 = vmatprep.subr.mxu0 0.0
        %3368 = vmatpush1.msra.mxu0 0.0
        %3369 = vmatprep.subr.mxu0 0.0
        %3370 = vmatpush1.msra.mxu0 0.0
        %3371 = vmatprep.subr.mxu0 0.0
        %3372 = vmatpush1.msra.mxu0 0.0
        %3373 = vmatprep.subr.mxu0 0.0
        %3374 = vmatpush1.msra.mxu0 0.0
        %3375 = vmatprep.subr.mxu0 0.0
        %3376 = vmatpush1.msra.mxu0 0.0
        %3377 = vmatprep.mubr.f32.mxu0 0.0
        %3378 = vmatmul.mubr.f32.gmra.mrb[0].mxu0 %v3218
        %v3379 = vpop.f32.mrb[0].mxu0
        %v3380 = vadd.f32 %v1150, %v3379
        %v3381 = vpop.f32.mrb[0].mxu0
        %3382 = vmatprep.mubr.f32.mxu0 0.0
        %3383 = vmatmul.mubr.f32.gmra.mrb[0].mxu0 %v3221
        %v3384 = vpop.f32.mrb[0].mxu0
        %v3385 = vadd.f32 %v1150, %v3384
        %v3386 = vpop.f32.mrb[0].mxu0
        %3387 = vmatprep.mubr.f32.mxu0 0.0
        %3388 = vmatmul.mubr.f32.gmra.mrb[0].mxu0 %v3224
        %v3389 = vpop.f32.mrb[0].mxu0
        %v3390 = vadd.f32 %v1150, %v3389
        %v3391 = vpop.f32.mrb[0].mxu0
        %3392 = vmatprep.mubr.f32.mxu0 0.0
        %3393 = vmatmul.mubr.f32.gmra.mrb[0].mxu0 %v3227
        %v3394 = vpop.f32.mrb[0].mxu0
        %v3395 = vadd.f32 %v1150, %v3394
        %v3396 = vpop.f32.mrb[0].mxu0
        %3397 = vmatprep.mubr.f32.mxu0 0.0
        %3398 = vmatmul.mubr.f32.gmra.mrb[0].mxu0 %v3230
        %v3399 = vpop.f32.mrb[0].mxu0
        %v3400 = vadd.f32 %v1150, %v3399
        %v3401 = vpop.f32.mrb[0].mxu0
        %3402 = vmatprep.mubr.f32.mxu0 0.0
        %3403 = vmatmul.mubr.f32.gmra.mrb[0].mxu0 %v3233
        %v3404 = vpop.f32.mrb[0].mxu0
        %v3405 = vadd.f32 %v1150, %v3404
        %v3406 = vpop.f32.mrb[0].mxu0
        %3407 = vmatprep.mubr.f32.mxu0 0.0
        %3408 = vmatmul.mubr.f32.gmra.mrb[0].mxu0 %v3236
        %v3409 = vpop.f32.mrb[0].mxu0
        %v3410 = vadd.f32 %v1150, %v3409
        %v3411 = vpop.f32.mrb[0].mxu0
        %3412 = vmatprep.mubr.f32.mxu0 0.0
        %3413 = vmatmul.mubr.f32.gmra.mrb[0].mxu0 %v3239
        %v3414 = vpop.f32.mrb[0].mxu0
        %v3415 = vadd.f32 %v1150, %v3414
        %v3416 = vpop.f32.mrb[0].mxu0
        %3417 = vmatprep.mubr.f32.mxu0 0.0
        %3418 = vmatmul.mubr.f32.gmra.mrb[0].mxu0 %v3242
        %v3419 = vpop.f32.mrb[0].mxu0
        %v3420 = vadd.f32 %v1150, %v3419
        %v3421 = vpop.f32.mrb[0].mxu0
        %3422 = vmatprep.mubr.f32.mxu0 0.0
        %3423 = vmatmul.mubr.f32.gmra.mrb[0].mxu0 %v3245
        %v3424 = vpop.f32.mrb[0].mxu0
        %v3425 = vadd.f32 %v1150, %v3424
        %v3426 = vpop.f32.mrb[0].mxu0
        %3427 = vmatprep.mubr.f32.mxu0 0.0
        %3428 = vmatmul.mubr.f32.gmra.mrb[0].mxu0 %v3248
        %v3429 = vpop.f32.mrb[0].mxu0
        %v3430 = vadd.f32 %v1150, %v3429
        %v3431 = vpop.f32.mrb[0].mxu0
        %3432 = vmatprep.mubr.f32.mxu0 0.0
        %3433 = vmatmul.mubr.f32.gmra.mrb[0].mxu0 %v3251
        %v3434 = vpop.f32.mrb[0].mxu0
        %v3435 = vadd.f32 %v1150, %v3434
        %v3436 = vpop.f32.mrb[0].mxu0
        %3437 = vmatprep.mubr.f32.mxu0 0.0
        %3438 = vmatmul.mubr.f32.gmra.mrb[0].mxu0 %v3254
        %v3439 = vpop.f32.mrb[0].mxu0
        %v3440 = vadd.f32 %v1150, %v3439
        %v3441 = vpop.f32.mrb[0].mxu0
        %3442 = vmatprep.mubr.f32.mxu0 0.0
        %3443 = vmatmul.mubr.f32.gmra.mrb[0].mxu0 %v3257
        %v3444 = vpop.f32.mrb[0].mxu0
        %v3445 = vadd.f32 %v1150, %v3444
        %v3446 = vpop.f32.mrb[0].mxu0
        %3447 = vmatprep.mubr.f32.mxu0 0.0
        %3448 = vmatmul.mubr.f32.gmra.mrb[0].mxu0 %v3260
        %v3449 = vpop.f32.mrb[0].mxu0
        %v3450 = vadd.f32 %v1150, %v3449
        %v3451 = vpop.f32.mrb[0].mxu0
        %3452 = vmatprep.mubr.f32.mxu0 0.0
        %3453 = vmatmul.mubr.f32.gmra.mrb[0].mxu0 %v3263
        %v3454 = vpop.f32.mrb[0].mxu0
        %v3455 = vadd.f32 %v1150, %v3454
        %v3456 = vpop.f32.mrb[0].mxu0
        %3457 = vmatprep.mubr.f32.mxu0 0.0
        %3458 = vmatmul.mubr.f32.gmra.mrb[0].mxu0 %v3266
        %v3459 = vpop.f32.mrb[0].mxu0
        %v3460 = vadd.f32 %v1150, %v3459
        %v3461 = vpop.f32.mrb[0].mxu0
        %3462 = vmatprep.mubr.f32.mxu0 0.0
        %3463 = vmatmul.mubr.f32.gmra.mrb[0].mxu0 %v3269
        %v3464 = vpop.f32.mrb[0].mxu0
        %v3465 = vadd.f32 %v1150, %v3464
        %v3466 = vpop.f32.mrb[0].mxu0
        %3467 = vmatprep.mubr.f32.mxu0 0.0
        %3468 = vmatmul.mubr.f32.gmra.mrb[0].mxu0 %v3272
        %v3469 = vpop.f32.mrb[0].mxu0
        %v3470 = vadd.f32 %v1150, %v3469
        %v3471 = vpop.f32.mrb[0].mxu0
        %3472 = vmatprep.mubr.f32.mxu0 0.0
        %3473 = vmatmul.mubr.f32.gmra.mrb[0].mxu0 %v3275
        %v3474 = vpop.f32.mrb[0].mxu0
        %v3475 = vadd.f32 %v1150, %v3474
        %v3476 = vpop.f32.mrb[0].mxu0
        %3477 = vmatprep.mubr.f32.mxu0 0.0
        %3478 = vmatmul.mubr.f32.gmra.mrb[0].mxu0 %v3278
        %v3479 = vpop.f32.mrb[0].mxu0
        %v3480 = vadd.f32 %v1150, %v3479
        %v3481 = vpop.f32.mrb[0].mxu0
        %3482 = vmatprep.mubr.f32.mxu0 0.0
        %3483 = vmatmul.mubr.f32.gmra.mrb[0].mxu0 %v3281
        %v3484 = vpop.f32.mrb[0].mxu0
        %v3485 = vadd.f32 %v1150, %v3484
        %v3486 = vpop.f32.mrb[0].mxu0
        %3487 = vmatprep.mubr.f32.mxu0 0.0
        %3488 = vmatmul.mubr.f32.gmra.mrb[0].mxu0 %v3284
        %v3489 = vpop.f32.mrb[0].mxu0
        %v3490 = vadd.f32 %v1150, %v3489
        %v3491 = vpop.f32.mrb[0].mxu0
        %3492 = vmatprep.mubr.f32.mxu0 0.0
        %3493 = vmatmul.mubr.f32.gmra.mrb[0].mxu0 %v3287
        %v3494 = vpop.f32.mrb[0].mxu0
        %v3495 = vadd.f32 %v1150, %v3494
        %v3496 = vpop.f32.mrb[0].mxu0
        %3497 = vmatprep.mubr.f32.mxu0 0.0
        %3498 = vmatmul.mubr.f32.gmra.mrb[0].mxu0 %v3290
        %v3499 = vpop.f32.mrb[0].mxu0
        %v3500 = vadd.f32 %v1150, %v3499
        %v3501 = vpop.f32.mrb[0].mxu0
        %3502 = vmatprep.mubr.f32.mxu0 0.0
        %3503 = vmatmul.mubr.f32.gmra.mrb[0].mxu0 %v3293
        %v3504 = vpop.f32.mrb[0].mxu0
        %v3505 = vadd.f32 %v1150, %v3504
        %v3506 = vpop.f32.mrb[0].mxu0
        %3507 = vmatprep.mubr.f32.mxu0 0.0
        %3508 = vmatmul.mubr.f32.gmra.mrb[0].mxu0 %v3296
        %v3509 = vpop.f32.mrb[0].mxu0
        %v3510 = vadd.f32 %v1150, %v3509
        %v3511 = vpop.f32.mrb[0].mxu0
        %3512 = vmatprep.mubr.f32.mxu0 0.0
        %3513 = vmatmul.mubr.f32.gmra.mrb[0].mxu0 %v3299
        %v3514 = vpop.f32.mrb[0].mxu0
        %v3515 = vadd.f32 %v1150, %v3514
        %v3516 = vpop.f32.mrb[0].mxu0
        %3517 = vmatprep.mubr.f32.mxu0 0.0
        %3518 = vmatmul.mubr.f32.gmra.mrb[0].mxu0 %v3302
        %v3519 = vpop.f32.mrb[0].mxu0
        %v3520 = vadd.f32 %v1150, %v3519
        %v3521 = vpop.f32.mrb[0].mxu0
        %3522 = vmatprep.mubr.f32.mxu0 0.0
        %3523 = vmatmul.mubr.f32.gmra.mrb[0].mxu0 %v3305
        %v3524 = vpop.f32.mrb[0].mxu0
        %v3525 = vadd.f32 %v1150, %v3524
        %v3526 = vpop.f32.mrb[0].mxu0
        %3527 = vmatprep.mubr.f32.mxu0 0.0
        %3528 = vmatmul.mubr.f32.gmra.mrb[0].mxu0 %v3308
        %v3529 = vpop.f32.mrb[0].mxu0
        %v3530 = vadd.f32 %v1150, %v3529
        %v3531 = vpop.f32.mrb[0].mxu0
        %3532 = vmatprep.mubr.f32.mxu0 0.0
        %3533 = vmatmul.mubr.f32.gmra.mrb[0].mxu0 %v3311
        %v3534 = vpop.f32.mrb[0].mxu0
        %v3535 = vadd.f32 %v1150, %v3534
        %v3536 = vpop.f32.mrb[0].mxu0
        %3537 = vdwg.mxu0
        %v3538 = vlaneseq
        %v3539 = vshrl.u32 %v3538, 7
        %v3540 = vsub.s32 2, %v3539
        %v3541 = vrot.slane %v716, %v3540
        %v3542 = vadd.f32 %v3380, %v3541
        %v3543 = vadd.f32 %v3385, %v3541
        %v3544 = vadd.f32 %v3390, %v3541
        %v3545 = vadd.f32 %v3395, %v3541
        %v3546 = vadd.f32 %v3400, %v3541
        %v3547 = vadd.f32 %v3405, %v3541
        %v3548 = vadd.f32 %v3410, %v3541
        %v3549 = vadd.f32 %v3415, %v3541
        %v3550 = vadd.f32 %v3420, %v3541
        %v3551 = vadd.f32 %v3425, %v3541
        %v3552 = vadd.f32 %v3430, %v3541
        %v3553 = vadd.f32 %v3435, %v3541
        %v3554 = vadd.f32 %v3440, %v3541
        %v3555 = vadd.f32 %v3445, %v3541
        %v3556 = vadd.f32 %v3450, %v3541
        %v3557 = vadd.f32 %v3455, %v3541
        %v3558 = vadd.f32 %v3460, %v3541
        %v3559 = vadd.f32 %v3465, %v3541
        %v3560 = vadd.f32 %v3470, %v3541
        %v3561 = vadd.f32 %v3475, %v3541
        %v3562 = vadd.f32 %v3480, %v3541
        %v3563 = vadd.f32 %v3485, %v3541
        %v3564 = vadd.f32 %v3490, %v3541
        %v3565 = vadd.f32 %v3495, %v3541
        %v3566 = vadd.f32 %v3500, %v3541
        %v3567 = vadd.f32 %v3505, %v3541
        %v3568 = vadd.f32 %v3510, %v3541
        %v3569 = vadd.f32 %v3515, %v3541
        %v3570 = vadd.f32 %v3520, %v3541
        %v3571 = vadd.f32 %v3525, %v3541
        %v3572 = vadd.f32 %v3530, %v3541
        %v3573 = vadd.f32 %v3535, %v3541
        %v3574 = vxor.u32 %v3542, 2147483648
        %v3575 = vxor.u32 %v3543, 2147483648
        %v3576 = vxor.u32 %v3544, 2147483648
        %v3577 = vxor.u32 %v3545, 2147483648
        %v3578 = vxor.u32 %v3546, 2147483648
        %v3579 = vxor.u32 %v3547, 2147483648
        %v3580 = vxor.u32 %v3548, 2147483648
        %v3581 = vxor.u32 %v3549, 2147483648
        %v3582 = vxor.u32 %v3550, 2147483648
        %v3583 = vxor.u32 %v3551, 2147483648
        %v3584 = vxor.u32 %v3552, 2147483648
        %v3585 = vxor.u32 %v3553, 2147483648
        %v3586 = vxor.u32 %v3554, 2147483648
        %v3587 = vxor.u32 %v3555, 2147483648
        %v3588 = vxor.u32 %v3556, 2147483648
        %v3589 = vxor.u32 %v3557, 2147483648
        %v3590 = vxor.u32 %v3558, 2147483648
        %v3591 = vxor.u32 %v3559, 2147483648
        %v3592 = vxor.u32 %v3560, 2147483648
        %v3593 = vxor.u32 %v3561, 2147483648
        %v3594 = vxor.u32 %v3562, 2147483648
        %v3595 = vxor.u32 %v3563, 2147483648
        %v3596 = vxor.u32 %v3564, 2147483648
        %v3597 = vxor.u32 %v3565, 2147483648
        %v3598 = vxor.u32 %v3566, 2147483648
        %v3599 = vxor.u32 %v3567, 2147483648
        %v3600 = vxor.u32 %v3568, 2147483648
        %v3601 = vxor.u32 %v3569, 2147483648
        %v3602 = vxor.u32 %v3570, 2147483648
        %v3603 = vxor.u32 %v3571, 2147483648
        %v3604 = vxor.u32 %v3572, 2147483648
        %v3605 = vxor.u32 %v3573, 2147483648
        %v3606 = vmul.f32 %v3574, 1.442695
        %v3607 = vpow.pop %v3606
        %v3608 = vmul.f32 %v3575, 1.442695
        %v3609 = vpow.pop %v3608
        %v3610 = vmul.f32 %v3576, 1.442695
        %v3611 = vpow.pop %v3610
        %v3612 = vmul.f32 %v3577, 1.442695
        %v3613 = vpow.pop %v3612
        %v3614 = vmul.f32 %v3578, 1.442695
        %v3615 = vpow.pop %v3614
        %v3616 = vmul.f32 %v3579, 1.442695
        %v3617 = vpow.pop %v3616
        %v3618 = vmul.f32 %v3580, 1.442695
        %v3619 = vpow.pop %v3618
        %v3620 = vmul.f32 %v3581, 1.442695
        %v3621 = vpow.pop %v3620
        %v3622 = vmul.f32 %v3582, 1.442695
        %v3623 = vpow.pop %v3622
        %v3624 = vmul.f32 %v3583, 1.442695
        %v3625 = vpow.pop %v3624
        %v3626 = vmul.f32 %v3584, 1.442695
        %v3627 = vpow.pop %v3626
        %v3628 = vmul.f32 %v3585, 1.442695
        %v3629 = vpow.pop %v3628
        %v3630 = vmul.f32 %v3586, 1.442695
        %v3631 = vpow.pop %v3630
        %v3632 = vmul.f32 %v3587, 1.442695
        %v3633 = vpow.pop %v3632
        %v3634 = vmul.f32 %v3588, 1.442695
        %v3635 = vpow.pop %v3634
        %v3636 = vmul.f32 %v3589, 1.442695
        %v3637 = vpow.pop %v3636
        %v3638 = vmul.f32 %v3590, 1.442695
        %v3639 = vpow.pop %v3638
        %v3640 = vmul.f32 %v3591, 1.442695
        %v3641 = vpow.pop %v3640
        %v3642 = vmul.f32 %v3592, 1.442695
        %v3643 = vpow.pop %v3642
        %v3644 = vmul.f32 %v3593, 1.442695
        %v3645 = vpow.pop %v3644
        %v3646 = vmul.f32 %v3594, 1.442695
        %v3647 = vpow.pop %v3646
        %v3648 = vmul.f32 %v3595, 1.442695
        %v3649 = vpow.pop %v3648
        %v3650 = vmul.f32 %v3596, 1.442695
        %v3651 = vpow.pop %v3650
        %v3652 = vmul.f32 %v3597, 1.442695
        %v3653 = vpow.pop %v3652
        %v3654 = vmul.f32 %v3598, 1.442695
        %v3655 = vpow.pop %v3654
        %v3656 = vmul.f32 %v3599, 1.442695
        %v3657 = vpow.pop %v3656
        %v3658 = vmul.f32 %v3600, 1.442695
        %v3659 = vpow.pop %v3658
        %v3660 = vmul.f32 %v3601, 1.442695
        %v3661 = vpow.pop %v3660
        %v3662 = vmul.f32 %v3602, 1.442695
        %v3663 = vpow.pop %v3662
        %v3664 = vmul.f32 %v3603, 1.442695
        %v3665 = vpow.pop %v3664
        %v3666 = vmul.f32 %v3604, 1.442695
        %v3667 = vpow.pop %v3666
        %v3668 = vmul.f32 %v3605, 1.442695
        %v3669 = vpow.pop %v3668
        %v3670 = vadd.f32 %v3607, 1.0
        %v3671 = vadd.f32 %v3609, 1.0
        %v3672 = vadd.f32 %v3611, 1.0
        %v3673 = vadd.f32 %v3613, 1.0
        %v3674 = vadd.f32 %v3615, 1.0
        %v3675 = vadd.f32 %v3617, 1.0
        %v3676 = vadd.f32 %v3619, 1.0
        %v3677 = vadd.f32 %v3621, 1.0
        %v3678 = vadd.f32 %v3623, 1.0
        %v3679 = vadd.f32 %v3625, 1.0
        %v3680 = vadd.f32 %v3627, 1.0
        %v3681 = vadd.f32 %v3629, 1.0
        %v3682 = vadd.f32 %v3631, 1.0
        %v3683 = vadd.f32 %v3633, 1.0
        %v3684 = vadd.f32 %v3635, 1.0
        %v3685 = vadd.f32 %v3637, 1.0
        %v3686 = vadd.f32 %v3639, 1.0
        %v3687 = vadd.f32 %v3641, 1.0
        %v3688 = vadd.f32 %v3643, 1.0
        %v3689 = vadd.f32 %v3645, 1.0
        %v3690 = vadd.f32 %v3647, 1.0
        %v3691 = vadd.f32 %v3649, 1.0
        %v3692 = vadd.f32 %v3651, 1.0
        %v3693 = vadd.f32 %v3653, 1.0
        %v3694 = vadd.f32 %v3655, 1.0
        %v3695 = vadd.f32 %v3657, 1.0
        %v3696 = vadd.f32 %v3659, 1.0
        %v3697 = vadd.f32 %v3661, 1.0
        %v3698 = vadd.f32 %v3663, 1.0
        %v3699 = vadd.f32 %v3665, 1.0
        %v3700 = vadd.f32 %v3667, 1.0
        %v3701 = vadd.f32 %v3669, 1.0
        %v3702 = vrcp.pop %v3670
        %v3703 = vmul.f32 1.0, %v3702
        %v3704 = vrcp.pop %v3671
        %v3705 = vmul.f32 1.0, %v3704
        %v3706 = vrcp.pop %v3672
        %v3707 = vmul.f32 1.0, %v3706
        %v3708 = vrcp.pop %v3673
        %v3709 = vmul.f32 1.0, %v3708
        %v3710 = vrcp.pop %v3674
        %v3711 = vmul.f32 1.0, %v3710
        %v3712 = vrcp.pop %v3675
        %v3713 = vmul.f32 1.0, %v3712
        %v3714 = vrcp.pop %v3676
        %v3715 = vmul.f32 1.0, %v3714
        %v3716 = vrcp.pop %v3677
        %v3717 = vmul.f32 1.0, %v3716
        %v3718 = vrcp.pop %v3678
        %v3719 = vmul.f32 1.0, %v3718
        %v3720 = vrcp.pop %v3679
        %v3721 = vmul.f32 1.0, %v3720
        %v3722 = vrcp.pop %v3680
        %v3723 = vmul.f32 1.0, %v3722
        %v3724 = vrcp.pop %v3681
        %v3725 = vmul.f32 1.0, %v3724
        %v3726 = vrcp.pop %v3682
        %v3727 = vmul.f32 1.0, %v3726
        %v3728 = vrcp.pop %v3683
        %v3729 = vmul.f32 1.0, %v3728
        %v3730 = vrcp.pop %v3684
        %v3731 = vmul.f32 1.0, %v3730
        %v3732 = vrcp.pop %v3685
        %v3733 = vmul.f32 1.0, %v3732
        %v3734 = vrcp.pop %v3686
        %v3735 = vmul.f32 1.0, %v3734
        %v3736 = vrcp.pop %v3687
        %v3737 = vmul.f32 1.0, %v3736
        %v3738 = vrcp.pop %v3688
        %v3739 = vmul.f32 1.0, %v3738
        %v3740 = vrcp.pop %v3689
        %v3741 = vmul.f32 1.0, %v3740
        %v3742 = vrcp.pop %v3690
        %v3743 = vmul.f32 1.0, %v3742
        %v3744 = vrcp.pop %v3691
        %v3745 = vmul.f32 1.0, %v3744
        %v3746 = vrcp.pop %v3692
        %v3747 = vmul.f32 1.0, %v3746
        %v3748 = vrcp.pop %v3693
        %v3749 = vmul.f32 1.0, %v3748
        %v3750 = vrcp.pop %v3694
        %v3751 = vmul.f32 1.0, %v3750
        %v3752 = vrcp.pop %v3695
        %v3753 = vmul.f32 1.0, %v3752
        %v3754 = vrcp.pop %v3696
        %v3755 = vmul.f32 1.0, %v3754
        %v3756 = vrcp.pop %v3697
        %v3757 = vmul.f32 1.0, %v3756
        %v3758 = vrcp.pop %v3698
        %v3759 = vmul.f32 1.0, %v3758
        %v3760 = vrcp.pop %v3699
        %v3761 = vmul.f32 1.0, %v3760
        %v3762 = vrcp.pop %v3700
        %v3763 = vmul.f32 1.0, %v3762
        %v3764 = vrcp.pop %v3701
        %v3765 = vmul.f32 1.0, %v3764
        %v3766 = vsub.f32 %v652, %v684
        %v3767 = vsub.f32 %v653, %v685
        %v3768 = vsub.f32 %v654, %v686
        %v3769 = vsub.f32 %v655, %v687
        %v3770 = vsub.f32 %v656, %v688
        %v3771 = vsub.f32 %v657, %v689
        %v3772 = vsub.f32 %v658, %v690
        %v3773 = vsub.f32 %v659, %v691
        %v3774 = vsub.f32 %v660, %v692
        %v3775 = vsub.f32 %v661, %v693
        %v3776 = vsub.f32 %v662, %v694
        %v3777 = vsub.f32 %v663, %v695
        %v3778 = vsub.f32 %v664, %v696
        %v3779 = vsub.f32 %v665, %v697
        %v3780 = vsub.f32 %v666, %v698
        %v3781 = vsub.f32 %v667, %v699
        %v3782 = vsub.f32 %v668, %v700
        %v3783 = vsub.f32 %v669, %v701
        %v3784 = vsub.f32 %v670, %v702
        %v3785 = vsub.f32 %v671, %v703
        %v3786 = vsub.f32 %v672, %v704
        %v3787 = vsub.f32 %v673, %v705
        %v3788 = vsub.f32 %v674, %v706
        %v3789 = vsub.f32 %v675, %v707
        %v3790 = vsub.f32 %v676, %v708
        %v3791 = vsub.f32 %v677, %v709
        %v3792 = vsub.f32 %v678, %v710
        %v3793 = vsub.f32 %v679, %v711
        %v3794 = vsub.f32 %v680, %v712
        %v3795 = vsub.f32 %v681, %v713
        %v3796 = vsub.f32 %v682, %v714
        %v3797 = vsub.f32 %v683, %v715
        %v3798 = vmul.f32 %v3703, %v3766
        %v3799 = vmul.f32 %v3705, %v3767
        %v3800 = vmul.f32 %v3707, %v3768
        %v3801 = vmul.f32 %v3709, %v3769
        %v3802 = vmul.f32 %v3711, %v3770
        %v3803 = vmul.f32 %v3713, %v3771
        %v3804 = vmul.f32 %v3715, %v3772
        %v3805 = vmul.f32 %v3717, %v3773
        %v3806 = vmul.f32 %v3719, %v3774
        %v3807 = vmul.f32 %v3721, %v3775
        %v3808 = vmul.f32 %v3723, %v3776
        %v3809 = vmul.f32 %v3725, %v3777
        %v3810 = vmul.f32 %v3727, %v3778
        %v3811 = vmul.f32 %v3729, %v3779
        %v3812 = vmul.f32 %v3731, %v3780
        %v3813 = vmul.f32 %v3733, %v3781
        %v3814 = vmul.f32 %v3735, %v3782
        %v3815 = vmul.f32 %v3737, %v3783
        %v3816 = vmul.f32 %v3739, %v3784
        %v3817 = vmul.f32 %v3741, %v3785
        %v3818 = vmul.f32 %v3743, %v3786
        %v3819 = vmul.f32 %v3745, %v3787
        %v3820 = vmul.f32 %v3747, %v3788
        %v3821 = vmul.f32 %v3749, %v3789
        %v3822 = vmul.f32 %v3751, %v3790
        %v3823 = vmul.f32 %v3753, %v3791
        %v3824 = vmul.f32 %v3755, %v3792
        %v3825 = vmul.f32 %v3757, %v3793
        %v3826 = vmul.f32 %v3759, %v3794
        %v3827 = vmul.f32 %v3761, %v3795
        %v3828 = vmul.f32 %v3763, %v3796
        %v3829 = vmul.f32 %v3765, %v3797
        %v3830 = vadd.f32 %v2800, %v3798
        %v3831 = vadd.f32 %v2801, %v3799
        %v3832 = vadd.f32 %v2802, %v3800
        %v3833 = vadd.f32 %v2803, %v3801
        %v3834 = vadd.f32 %v2804, %v3802
        %v3835 = vadd.f32 %v2805, %v3803
        %v3836 = vadd.f32 %v2806, %v3804
        %v3837 = vadd.f32 %v2807, %v3805
        %v3838 = vadd.f32 %v2808, %v3806
        %v3839 = vadd.f32 %v2809, %v3807
        %v3840 = vadd.f32 %v2810, %v3808
        %v3841 = vadd.f32 %v2811, %v3809
        %v3842 = vadd.f32 %v2812, %v3810
        %v3843 = vadd.f32 %v2813, %v3811
        %v3844 = vadd.f32 %v2814, %v3812
        %v3845 = vadd.f32 %v2815, %v3813
        %v3846 = vadd.f32 %v2816, %v3814
        %v3847 = vadd.f32 %v2817, %v3815
        %v3848 = vadd.f32 %v2818, %v3816
        %v3849 = vadd.f32 %v2819, %v3817
        %v3850 = vadd.f32 %v2820, %v3818
        %v3851 = vadd.f32 %v2821, %v3819
        %v3852 = vadd.f32 %v2822, %v3820
        %v3853 = vadd.f32 %v2823, %v3821
        %v3854 = vadd.f32 %v2824, %v3822
        %v3855 = vadd.f32 %v2825, %v3823
        %v3856 = vadd.f32 %v2826, %v3824
        %v3857 = vadd.f32 %v2827, %v3825
        %v3858 = vadd.f32 %v2828, %v3826
        %v3859 = vadd.f32 %v2829, %v3827
        %v3860 = vadd.f32 %v2830, %v3828
        %v3861 = vadd.f32 %v2831, %v3829
        %3862 = vst.msk [vmem:[#allocation3] sm:$0xff] %vm792, %v3830
        %3863 = vst.msk [vmem:[#allocation3 + $0x8] sm:$0xff] %vm792, %v3831
        %3864 = vst.msk [vmem:[#allocation3 + $0x10] sm:$0xff] %vm792, %v3832
        %3865 = vst.msk [vmem:[#allocation3 + $0x18] sm:$0xff] %vm792, %v3833
        %3866 = vst.msk [vmem:[#allocation3 + $0x20] sm:$0xff] %vm792, %v3834
        %3867 = vst.msk [vmem:[#allocation3 + $0x28] sm:$0xff] %vm792, %v3835
        %3868 = vst.msk [vmem:[#allocation3 + $0x30] sm:$0xff] %vm792, %v3836
        %3869 = vst.msk [vmem:[#allocation3 + $0x38] sm:$0xff] %vm792, %v3837
        %3870 = vst.msk [vmem:[#allocation3 + $0x40] sm:$0xff] %vm792, %v3838
        %3871 = vst.msk [vmem:[#allocation3 + $0x48] sm:$0xff] %vm792, %v3839
        %3872 = vst.msk [vmem:[#allocation3 + $0x50] sm:$0xff] %vm792, %v3840
        %3873 = vst.msk [vmem:[#allocation3 + $0x58] sm:$0xff] %vm792, %v3841
        %3874 = vst.msk [vmem:[#allocation3 + $0x60] sm:$0xff] %vm792, %v3842
        %3875 = vst.msk [vmem:[#allocation3 + $0x68] sm:$0xff] %vm792, %v3843
        %3876 = vst.msk [vmem:[#allocation3 + $0x70] sm:$0xff] %vm792, %v3844
        %3877 = vst.msk [vmem:[#allocation3 + $0x78] sm:$0xff] %vm792, %v3845
        %3878 = vst.msk [vmem:[#allocation3 + $0x80] sm:$0xff] %vm792, %v3846
        %3879 = vst.msk [vmem:[#allocation3 + $0x88] sm:$0xff] %vm792, %v3847
        %3880 = vst.msk [vmem:[#allocation3 + $0x90] sm:$0xff] %vm792, %v3848
        %3881 = vst.msk [vmem:[#allocation3 + $0x98] sm:$0xff] %vm792, %v3849
        %3882 = vst.msk [vmem:[#allocation3 + $0xa0] sm:$0xff] %vm792, %v3850
        %3883 = vst.msk [vmem:[#allocation3 + $0xa8] sm:$0xff] %vm792, %v3851
        %3884 = vst.msk [vmem:[#allocation3 + $0xb0] sm:$0xff] %vm792, %v3852
        %3885 = vst.msk [vmem:[#allocation3 + $0xb8] sm:$0xff] %vm792, %v3853
        %3886 = vst.msk [vmem:[#allocation3 + $0xc0] sm:$0xff] %vm792, %v3854
        %3887 = vst.msk [vmem:[#allocation3 + $0xc8] sm:$0xff] %vm792, %v3855
        %3888 = vst.msk [vmem:[#allocation3 + $0xd0] sm:$0xff] %vm792, %v3856
        %3889 = vst.msk [vmem:[#allocation3 + $0xd8] sm:$0xff] %vm792, %v3857
        %3890 = vst.msk [vmem:[#allocation3 + $0xe0] sm:$0xff] %vm792, %v3858
        %3891 = vst.msk [vmem:[#allocation3 + $0xe8] sm:$0xff] %vm792, %v3859
        %3892 = vst.msk [vmem:[#allocation3 + $0xf0] sm:$0xff] %vm792, %v3860
        %3893 = vst.msk [vmem:[#allocation3 + $0xf8] sm:$0xff] %vm792, %v3861
      $region68: #{acfm_forward.1} parent=59 // pred_fallthru
        _
      %p3894 = scmp.ge.s32.totalorder %s26, 1
      // Predicated region
      $region69: #{acfm_forward.1} parent=59 // pred_check
        %p3895 = pneg %p3894
      $region70: #{acfm_forward.1} parent=59 // pred_check_branch
        %3897 = sbr.rel (%p3895) target = $region72
      $region71: #{acfm_forward.1} parent=59 // pred_region
        %v3898 = vld [vmem:[#allocation3] sm:$0xff]
        %v3899 = vld [vmem:[#allocation3 + $0x8] sm:$0xff]
        %s3900 = scalar_select %p616, 1, 0
        %v3901 = vstv %s3900
        %vm3902 = vcmp.eq.s32.totalorder %v3901, 1
        %v3903 = vsel %vm3902, %v3898, 0.0
        %v3904 = vsel %vm3902, %v3899, 0.0
        %s3905 = scalar_lea.vmem [#allocation2], 408
        %vm3906 = vcmask 130048
        %3907 = vst.msk [vmem:[%s3905 + $0x1] sm:$0xff] %vm3906, %v3903
        %3908 = vst.msk [vmem:[%s3905 + $0x9] sm:$0xff] %vm3906, %v3904
        %v3909 = vld [vmem:[#allocation2] sm:$0xff]
        %v3910 = vld [vmem:[#allocation2 + $0x8] sm:$0xff]
        %v3911 = vld [vmem:[#allocation2 + $0x18] sm:$0xff]
        %v3912 = vld [vmem:[#allocation2 + $0x20] sm:$0xff]
        %v3913 = vld [vmem:[#allocation2 + $0x30] sm:$0xff]
        %v3914 = vld [vmem:[#allocation2 + $0x38] sm:$0xff]
        %v3915 = vld [vmem:[#allocation2 + $0x48] sm:$0xff]
        %v3916 = vld [vmem:[#allocation2 + $0x50] sm:$0xff]
        %v3917 = vld [vmem:[#allocation2 + $0x60] sm:$0xff]
        %v3918 = vld [vmem:[#allocation2 + $0x68] sm:$0xff]
        %v3919 = vld [vmem:[#allocation2 + $0x78] sm:$0xff]
        %v3920 = vld [vmem:[#allocation2 + $0x80] sm:$0xff]
        %v3921 = vld [vmem:[#allocation2 + $0x90] sm:$0xff]
        %v3922 = vld [vmem:[#allocation2 + $0x98] sm:$0xff]
        %v3923 = vld [vmem:[#allocation2 + $0xa8] sm:$0xff]
        %v3924 = vld [vmem:[#allocation2 + $0xb0] sm:$0xff]
        %v3925 = vld [vmem:[#allocation2 + $0xc0] sm:$0xff]
        %v3926 = vld [vmem:[#allocation2 + $0xc8] sm:$0xff]
        %v3927 = vld [vmem:[#allocation2 + $0xd8] sm:$0xff]
        %v3928 = vld [vmem:[#allocation2 + $0xe0] sm:$0xff]
        %v3929 = vld [vmem:[#allocation2 + $0xf0] sm:$0xff]
        %v3930 = vld [vmem:[#allocation2 + $0xf8] sm:$0xff]
        %v3931 = vld [vmem:[#allocation2 + $0x108] sm:$0xff]
        %v3932 = vld [vmem:[#allocation2 + $0x110] sm:$0xff]
        %v3933 = vld [vmem:[#allocation2 + $0x120] sm:$0xff]
        %v3934 = vld [vmem:[#allocation2 + $0x128] sm:$0xff]
        %v3935 = vld [vmem:[#allocation2 + $0x138] sm:$0xff]
        %v3936 = vld [vmem:[#allocation2 + $0x140] sm:$0xff]
        %v3937 = vld [vmem:[#allocation2 + $0x150] sm:$0xff]
        %v3938 = vld [vmem:[#allocation2 + $0x158] sm:$0xff]
        %v3939 = vld [vmem:[#allocation2 + $0x168] sm:$0xff]
        %v3940 = vld [vmem:[#allocation2 + $0x170] sm:$0xff]
        %v3941 = vld [vmem:[%s8] sm:$0xff]
        %v3942 = vld [vmem:[%s8 + $0x8] sm:$0xff]
        %v3943 = vld [vmem:[#allocation2 + $0x1] sm:$0xff]
        %v3944 = vld [vmem:[#allocation2 + $0x9] sm:$0xff]
        %v3945 = vld [vmem:[#allocation2 + $0x19] sm:$0xff]
        %v3946 = vld [vmem:[#allocation2 + $0x21] sm:$0xff]
        %v3947 = vld [vmem:[#allocation2 + $0x31] sm:$0xff]
        %v3948 = vld [vmem:[#allocation2 + $0x39] sm:$0xff]
        %v3949 = vld [vmem:[#allocation2 + $0x49] sm:$0xff]
        %v3950 = vld [vmem:[#allocation2 + $0x51] sm:$0xff]
        %v3951 = vld [vmem:[#allocation2 + $0x61] sm:$0xff]
        %v3952 = vld [vmem:[#allocation2 + $0x69] sm:$0xff]
        %v3953 = vld [vmem:[#allocation2 + $0x79] sm:$0xff]
        %v3954 = vld [vmem:[#allocation2 + $0x81] sm:$0xff]
        %v3955 = vld [vmem:[#allocation2 + $0x91] sm:$0xff]
        %v3956 = vld [vmem:[#allocation2 + $0x99] sm:$0xff]
        %v3957 = vld [vmem:[#allocation2 + $0xa9] sm:$0xff]
        %v3958 = vld [vmem:[#allocation2 + $0xb1] sm:$0xff]
        %v3959 = vld [vmem:[#allocation2 + $0xc1] sm:$0xff]
        %v3960 = vld [vmem:[#allocation2 + $0xc9] sm:$0xff]
        %v3961 = vld [vmem:[#allocation2 + $0xd9] sm:$0xff]
        %v3962 = vld [vmem:[#allocation2 + $0xe1] sm:$0xff]
        %v3963 = vld [vmem:[#allocation2 + $0xf1] sm:$0xff]
        %v3964 = vld [vmem:[#allocation2 + $0xf9] sm:$0xff]
        %v3965 = vld [vmem:[#allocation2 + $0x109] sm:$0xff]
        %v3966 = vld [vmem:[#allocation2 + $0x111] sm:$0xff]
        %v3967 = vld [vmem:[#allocation2 + $0x121] sm:$0xff]
        %v3968 = vld [vmem:[#allocation2 + $0x129] sm:$0xff]
        %v3969 = vld [vmem:[#allocation2 + $0x139] sm:$0xff]
        %v3970 = vld [vmem:[#allocation2 + $0x141] sm:$0xff]
        %v3971 = vld [vmem:[#allocation2 + $0x151] sm:$0xff]
        %v3972 = vld [vmem:[#allocation2 + $0x159] sm:$0xff]
        %v3973 = vld [vmem:[#allocation2 + $0x169] sm:$0xff]
        %v3974 = vld [vmem:[#allocation2 + $0x171] sm:$0xff]
        %s3975 = scalar_lea.vmem %s8, 16
        %v3976 = vld [vmem:[%s3975] sm:$0xff]
        %v3977 = vld [vmem:[%s3975 + $0x8] sm:$0xff]
        %v3979 = vsel %vm3906, %v3943, 0
        %v3982 = vsel %vm3906, %v3944, 0
        %v3985 = vsel %vm3906, %v3945, 0
        %v3988 = vsel %vm3906, %v3946, 0
        %v3991 = vsel %vm3906, %v3947, 0
        %v3994 = vsel %vm3906, %v3948, 0
        %v3997 = vsel %vm3906, %v3949, 0
        %v4000 = vsel %vm3906, %v3950, 0
        %v4003 = vsel %vm3906, %v3951, 0
        %v4006 = vsel %vm3906, %v3952, 0
        %v4009 = vsel %vm3906, %v3953, 0
        %v4012 = vsel %vm3906, %v3954, 0
        %v4015 = vsel %vm3906, %v3955, 0
        %v4018 = vsel %vm3906, %v3956, 0
        %v4021 = vsel %vm3906, %v3957, 0
        %v4024 = vsel %vm3906, %v3958, 0
        %v4027 = vsel %vm3906, %v3959, 0
        %v4030 = vsel %vm3906, %v3960, 0
        %v4033 = vsel %vm3906, %v3961, 0
        %v4036 = vsel %vm3906, %v3962, 0
        %v4039 = vsel %vm3906, %v3963, 0
        %v4042 = vsel %vm3906, %v3964, 0
        %v4045 = vsel %vm3906, %v3965, 0
        %v4048 = vsel %vm3906, %v3966, 0
        %v4051 = vsel %vm3906, %v3967, 0
        %v4054 = vsel %vm3906, %v3968, 0
        %v4057 = vsel %vm3906, %v3969, 0
        %v4060 = vsel %vm3906, %v3970, 0
        %v4063 = vsel %vm3906, %v3971, 0
        %v4066 = vsel %vm3906, %v3972, 0
        %v4069 = vsel %vm3906, %v3973, 0
        %v4072 = vsel %vm3906, %v3974, 0
        %4074 = vmatprep.subr.mxu0 0.0
        %4075 = vmatpush1.msra.mxu0 %v3976
        %4076 = vmatprep.subr.mxu0 0.0
        %4077 = vmatpush1.msra.mxu0 %v3977
        %4078 = vmatprep.subr.mxu0 0.0
        %4079 = vmatpush1.msra.mxu0 0.0
        %4080 = vmatprep.subr.mxu0 0.0
        %4081 = vmatpush1.msra.mxu0 0.0
        %4082 = vmatprep.subr.mxu0 0.0
        %4083 = vmatpush1.msra.mxu0 0.0
        %4084 = vmatprep.subr.mxu0 0.0
        %4085 = vmatpush1.msra.mxu0 0.0
        %4086 = vmatprep.subr.mxu0 0.0
        %4087 = vmatpush1.msra.mxu0 0.0
        %4088 = vmatprep.subr.mxu0 0.0
        %4089 = vmatpush1.msra.mxu0 0.0
        %4090 = vmatprep.subr.mxu0 0.0
        %4091 = vmatpush1.msra.mxu0 0.0
        %4092 = vmatprep.subr.mxu0 0.0
        %4093 = vmatpush1.msra.mxu0 0.0
        %4094 = vmatprep.subr.mxu0 0.0
        %4095 = vmatpush1.msra.mxu0 0.0
        %4096 = vmatprep.subr.mxu0 0.0
        %4097 = vmatpush1.msra.mxu0 0.0
        %4098 = vmatprep.subr.mxu0 0.0
        %4099 = vmatpush1.msra.mxu0 0.0
        %4100 = vmatprep.subr.mxu0 0.0
        %4101 = vmatpush1.msra.mxu0 0.0
        %4102 = vmatprep.subr.mxu0 0.0
        %4103 = vmatpush1.msra.mxu0 0.0
        %4104 = vmatprep.subr.mxu0 0.0
        %4105 = vmatpush1.msra.mxu0 0.0
        %4106 = vmatprep.subr.mxu0 0.0
        %4107 = vmatpush1.msra.mxu0 0.0
        %4108 = vmatprep.subr.mxu0 0.0
        %4109 = vmatpush1.msra.mxu0 0.0
        %4110 = vmatprep.subr.mxu0 0.0
        %4111 = vmatpush1.msra.mxu0 0.0
        %4112 = vmatprep.subr.mxu0 0.0
        %4113 = vmatpush1.msra.mxu0 0.0
        %4114 = vmatprep.subr.mxu0 0.0
        %4115 = vmatpush1.msra.mxu0 0.0
        %4116 = vmatprep.subr.mxu0 0.0
        %4117 = vmatpush1.msra.mxu0 0.0
        %4118 = vmatprep.subr.mxu0 0.0
        %4119 = vmatpush1.msra.mxu0 0.0
        %4120 = vmatprep.subr.mxu0 0.0
        %4121 = vmatpush1.msra.mxu0 0.0
        %4122 = vmatprep.subr.mxu0 0.0
        %4123 = vmatpush1.msra.mxu0 0.0
        %4124 = vmatprep.subr.mxu0 0.0
        %4125 = vmatpush1.msra.mxu0 0.0
        %4126 = vmatprep.subr.mxu0 0.0
        %4127 = vmatpush1.msra.mxu0 0.0
        %4128 = vmatprep.subr.mxu0 0.0
        %4129 = vmatpush1.msra.mxu0 0.0
        %4130 = vmatprep.subr.mxu0 0.0
        %4131 = vmatpush1.msra.mxu0 0.0
        %4132 = vmatprep.subr.mxu0 0.0
        %4133 = vmatpush1.msra.mxu0 0.0
        %4134 = vmatprep.subr.mxu0 0.0
        %4135 = vmatpush1.msra.mxu0 0.0
        %4136 = vmatprep.subr.mxu0 0.0
        %4137 = vmatpush1.msra.mxu0 0.0
        %4138 = vmatprep.mubr.f32.mxu0 0.0
        %4139 = vmatmul.mubr.f32.gmra.mrb[0].mxu0 %v3979
        %v4140 = vpop.f32.mrb[0].mxu0
        %v4141 = vadd.f32 0.0, %v4140
        %v4142 = vpop.f32.mrb[0].mxu0
        %4143 = vmatprep.mubr.f32.mxu0 0.0
        %4144 = vmatmul.mubr.f32.gmra.mrb[0].mxu0 %v3982
        %v4145 = vpop.f32.mrb[0].mxu0
        %v4146 = vadd.f32 0.0, %v4145
        %v4147 = vpop.f32.mrb[0].mxu0
        %4148 = vmatprep.mubr.f32.mxu0 0.0
        %4149 = vmatmul.mubr.f32.gmra.mrb[0].mxu0 %v3985
        %v4150 = vpop.f32.mrb[0].mxu0
        %v4151 = vadd.f32 0.0, %v4150
        %v4152 = vpop.f32.mrb[0].mxu0
        %4153 = vmatprep.mubr.f32.mxu0 0.0
        %4154 = vmatmul.mubr.f32.gmra.mrb[0].mxu0 %v3988
        %v4155 = vpop.f32.mrb[0].mxu0
        %v4156 = vadd.f32 0.0, %v4155
        %v4157 = vpop.f32.mrb[0].mxu0
        %4158 = vmatprep.mubr.f32.mxu0 0.0
        %4159 = vmatmul.mubr.f32.gmra.mrb[0].mxu0 %v3991
        %v4160 = vpop.f32.mrb[0].mxu0
        %v4161 = vadd.f32 0.0, %v4160
        %v4162 = vpop.f32.mrb[0].mxu0
        %4163 = vmatprep.mubr.f32.mxu0 0.0
        %4164 = vmatmul.mubr.f32.gmra.mrb[0].mxu0 %v3994
        %v4165 = vpop.f32.mrb[0].mxu0
        %v4166 = vadd.f32 0.0, %v4165
        %v4167 = vpop.f32.mrb[0].mxu0
        %4168 = vmatprep.mubr.f32.mxu0 0.0
        %4169 = vmatmul.mubr.f32.gmra.mrb[0].mxu0 %v3997
        %v4170 = vpop.f32.mrb[0].mxu0
        %v4171 = vadd.f32 0.0, %v4170
        %v4172 = vpop.f32.mrb[0].mxu0
        %4173 = vmatprep.mubr.f32.mxu0 0.0
        %4174 = vmatmul.mubr.f32.gmra.mrb[0].mxu0 %v4000
        %v4175 = vpop.f32.mrb[0].mxu0
        %v4176 = vadd.f32 0.0, %v4175
        %v4177 = vpop.f32.mrb[0].mxu0
        %4178 = vmatprep.mubr.f32.mxu0 0.0
        %4179 = vmatmul.mubr.f32.gmra.mrb[0].mxu0 %v4003
        %v4180 = vpop.f32.mrb[0].mxu0
        %v4181 = vadd.f32 0.0, %v4180
        %v4182 = vpop.f32.mrb[0].mxu0
        %4183 = vmatprep.mubr.f32.mxu0 0.0
        %4184 = vmatmul.mubr.f32.gmra.mrb[0].mxu0 %v4006
        %v4185 = vpop.f32.mrb[0].mxu0
        %v4186 = vadd.f32 0.0, %v4185
        %v4187 = vpop.f32.mrb[0].mxu0
        %4188 = vmatprep.mubr.f32.mxu0 0.0
        %4189 = vmatmul.mubr.f32.gmra.mrb[0].mxu0 %v4009
        %v4190 = vpop.f32.mrb[0].mxu0
        %v4191 = vadd.f32 0.0, %v4190
        %v4192 = vpop.f32.mrb[0].mxu0
        %4193 = vmatprep.mubr.f32.mxu0 0.0
        %4194 = vmatmul.mubr.f32.gmra.mrb[0].mxu0 %v4012
        %v4195 = vpop.f32.mrb[0].mxu0
        %v4196 = vadd.f32 0.0, %v4195
        %v4197 = vpop.f32.mrb[0].mxu0
        %4198 = vmatprep.mubr.f32.mxu0 0.0
        %4199 = vmatmul.mubr.f32.gmra.mrb[0].mxu0 %v4015
        %v4200 = vpop.f32.mrb[0].mxu0
        %v4201 = vadd.f32 0.0, %v4200
        %v4202 = vpop.f32.mrb[0].mxu0
        %4203 = vmatprep.mubr.f32.mxu0 0.0
        %4204 = vmatmul.mubr.f32.gmra.mrb[0].mxu0 %v4018
        %v4205 = vpop.f32.mrb[0].mxu0
        %v4206 = vadd.f32 0.0, %v4205
        %v4207 = vpop.f32.mrb[0].mxu0
        %4208 = vmatprep.mubr.f32.mxu0 0.0
        %4209 = vmatmul.mubr.f32.gmra.mrb[0].mxu0 %v4021
        %v4210 = vpop.f32.mrb[0].mxu0
        %v4211 = vadd.f32 0.0, %v4210
        %v4212 = vpop.f32.mrb[0].mxu0
        %4213 = vmatprep.mubr.f32.mxu0 0.0
        %4214 = vmatmul.mubr.f32.gmra.mrb[0].mxu0 %v4024
        %v4215 = vpop.f32.mrb[0].mxu0
        %v4216 = vadd.f32 0.0, %v4215
        %v4217 = vpop.f32.mrb[0].mxu0
        %4218 = vmatprep.mubr.f32.mxu0 0.0
        %4219 = vmatmul.mubr.f32.gmra.mrb[0].mxu0 %v4027
        %v4220 = vpop.f32.mrb[0].mxu0
        %v4221 = vadd.f32 0.0, %v4220
        %v4222 = vpop.f32.mrb[0].mxu0
        %4223 = vmatprep.mubr.f32.mxu0 0.0
        %4224 = vmatmul.mubr.f32.gmra.mrb[0].mxu0 %v4030
        %v4225 = vpop.f32.mrb[0].mxu0
        %v4226 = vadd.f32 0.0, %v4225
        %v4227 = vpop.f32.mrb[0].mxu0
        %4228 = vmatprep.mubr.f32.mxu0 0.0
        %4229 = vmatmul.mubr.f32.gmra.mrb[0].mxu0 %v4033
        %v4230 = vpop.f32.mrb[0].mxu0
        %v4231 = vadd.f32 0.0, %v4230
        %v4232 = vpop.f32.mrb[0].mxu0
        %4233 = vmatprep.mubr.f32.mxu0 0.0
        %4234 = vmatmul.mubr.f32.gmra.mrb[0].mxu0 %v4036
        %v4235 = vpop.f32.mrb[0].mxu0
        %v4236 = vadd.f32 0.0, %v4235
        %v4237 = vpop.f32.mrb[0].mxu0
        %4238 = vmatprep.mubr.f32.mxu0 0.0
        %4239 = vmatmul.mubr.f32.gmra.mrb[0].mxu0 %v4039
        %v4240 = vpop.f32.mrb[0].mxu0
        %v4241 = vadd.f32 0.0, %v4240
        %v4242 = vpop.f32.mrb[0].mxu0
        %4243 = vmatprep.mubr.f32.mxu0 0.0
        %4244 = vmatmul.mubr.f32.gmra.mrb[0].mxu0 %v4042
        %v4245 = vpop.f32.mrb[0].mxu0
        %v4246 = vadd.f32 0.0, %v4245
        %v4247 = vpop.f32.mrb[0].mxu0
        %4248 = vmatprep.mubr.f32.mxu0 0.0
        %4249 = vmatmul.mubr.f32.gmra.mrb[0].mxu0 %v4045
        %v4250 = vpop.f32.mrb[0].mxu0
        %v4251 = vadd.f32 0.0, %v4250
        %v4252 = vpop.f32.mrb[0].mxu0
        %4253 = vmatprep.mubr.f32.mxu0 0.0
        %4254 = vmatmul.mubr.f32.gmra.mrb[0].mxu0 %v4048
        %v4255 = vpop.f32.mrb[0].mxu0
        %v4256 = vadd.f32 0.0, %v4255
        %v4257 = vpop.f32.mrb[0].mxu0
        %4258 = vmatprep.mubr.f32.mxu0 0.0
        %4259 = vmatmul.mubr.f32.gmra.mrb[0].mxu0 %v4051
        %v4260 = vpop.f32.mrb[0].mxu0
        %v4261 = vadd.f32 0.0, %v4260
        %v4262 = vpop.f32.mrb[0].mxu0
        %4263 = vmatprep.mubr.f32.mxu0 0.0
        %4264 = vmatmul.mubr.f32.gmra.mrb[0].mxu0 %v4054
        %v4265 = vpop.f32.mrb[0].mxu0
        %v4266 = vadd.f32 0.0, %v4265
        %v4267 = vpop.f32.mrb[0].mxu0
        %4268 = vmatprep.mubr.f32.mxu0 0.0
        %4269 = vmatmul.mubr.f32.gmra.mrb[0].mxu0 %v4057
        %v4270 = vpop.f32.mrb[0].mxu0
        %v4271 = vadd.f32 0.0, %v4270
        %v4272 = vpop.f32.mrb[0].mxu0
        %4273 = vmatprep.mubr.f32.mxu0 0.0
        %4274 = vmatmul.mubr.f32.gmra.mrb[0].mxu0 %v4060
        %v4275 = vpop.f32.mrb[0].mxu0
        %v4276 = vadd.f32 0.0, %v4275
        %v4277 = vpop.f32.mrb[0].mxu0
        %4278 = vmatprep.mubr.f32.mxu0 0.0
        %4279 = vmatmul.mubr.f32.gmra.mrb[0].mxu0 %v4063
        %v4280 = vpop.f32.mrb[0].mxu0
        %v4281 = vadd.f32 0.0, %v4280
        %v4282 = vpop.f32.mrb[0].mxu0
        %4283 = vmatprep.mubr.f32.mxu0 0.0
        %4284 = vmatmul.mubr.f32.gmra.mrb[0].mxu0 %v4066
        %v4285 = vpop.f32.mrb[0].mxu0
        %v4286 = vadd.f32 0.0, %v4285
        %v4287 = vpop.f32.mrb[0].mxu0
        %4288 = vmatprep.mubr.f32.mxu0 0.0
        %4289 = vmatmul.mubr.f32.gmra.mrb[0].mxu0 %v4069
        %v4290 = vpop.f32.mrb[0].mxu0
        %v4291 = vadd.f32 0.0, %v4290
        %v4292 = vpop.f32.mrb[0].mxu0
        %4293 = vmatprep.mubr.f32.mxu0 0.0
        %4294 = vmatmul.mubr.f32.gmra.mrb[0].mxu0 %v4072
        %v4295 = vpop.f32.mrb[0].mxu0
        %v4296 = vadd.f32 0.0, %v4295
        %v4297 = vpop.f32.mrb[0].mxu0
        %4298 = vdwg.mxu0
        %v4300 = vsel %vm3906, %v3909, 0
        %v4303 = vsel %vm3906, %v3910, 0
        %v4306 = vsel %vm3906, %v3911, 0
        %v4309 = vsel %vm3906, %v3912, 0
        %v4312 = vsel %vm3906, %v3913, 0
        %v4315 = vsel %vm3906, %v3914, 0
        %v4318 = vsel %vm3906, %v3915, 0
        %v4321 = vsel %vm3906, %v3916, 0
        %v4324 = vsel %vm3906, %v3917, 0
        %v4327 = vsel %vm3906, %v3918, 0
        %v4330 = vsel %vm3906, %v3919, 0
        %v4333 = vsel %vm3906, %v3920, 0
        %v4336 = vsel %vm3906, %v3921, 0
        %v4339 = vsel %vm3906, %v3922, 0
        %v4342 = vsel %vm3906, %v3923, 0
        %v4345 = vsel %vm3906, %v3924, 0
        %v4348 = vsel %vm3906, %v3925, 0
        %v4351 = vsel %vm3906, %v3926, 0
        %v4354 = vsel %vm3906, %v3927, 0
        %v4357 = vsel %vm3906, %v3928, 0
        %v4360 = vsel %vm3906, %v3929, 0
        %v4363 = vsel %vm3906, %v3930, 0
        %v4366 = vsel %vm3906, %v3931, 0
        %v4369 = vsel %vm3906, %v3932, 0
        %v4372 = vsel %vm3906, %v3933, 0
        %v4375 = vsel %vm3906, %v3934, 0
        %v4378 = vsel %vm3906, %v3935, 0
        %v4381 = vsel %vm3906, %v3936, 0
        %v4384 = vsel %vm3906, %v3937, 0
        %v4387 = vsel %vm3906, %v3938, 0
        %v4390 = vsel %vm3906, %v3939, 0
        %v4393 = vsel %vm3906, %v3940, 0
        %4395 = vmatprep.subr.mxu0 0.0
        %4396 = vmatpush1.msra.mxu0 %v3941
        %4397 = vmatprep.subr.mxu0 0.0
        %4398 = vmatpush1.msra.mxu0 %v3942
        %4399 = vmatprep.subr.mxu0 0.0
        %4400 = vmatpush1.msra.mxu0 0.0
        %4401 = vmatprep.subr.mxu0 0.0
        %4402 = vmatpush1.msra.mxu0 0.0
        %4403 = vmatprep.subr.mxu0 0.0
        %4404 = vmatpush1.msra.mxu0 0.0
        %4405 = vmatprep.subr.mxu0 0.0
        %4406 = vmatpush1.msra.mxu0 0.0
        %4407 = vmatprep.subr.mxu0 0.0
        %4408 = vmatpush1.msra.mxu0 0.0
        %4409 = vmatprep.subr.mxu0 0.0
        %4410 = vmatpush1.msra.mxu0 0.0
        %4411 = vmatprep.subr.mxu0 0.0
        %4412 = vmatpush1.msra.mxu0 0.0
        %4413 = vmatprep.subr.mxu0 0.0
        %4414 = vmatpush1.msra.mxu0 0.0
        %4415 = vmatprep.subr.mxu0 0.0
        %4416 = vmatpush1.msra.mxu0 0.0
        %4417 = vmatprep.subr.mxu0 0.0
        %4418 = vmatpush1.msra.mxu0 0.0
        %4419 = vmatprep.subr.mxu0 0.0
        %4420 = vmatpush1.msra.mxu0 0.0
        %4421 = vmatprep.subr.mxu0 0.0
        %4422 = vmatpush1.msra.mxu0 0.0
        %4423 = vmatprep.subr.mxu0 0.0
        %4424 = vmatpush1.msra.mxu0 0.0
        %4425 = vmatprep.subr.mxu0 0.0
        %4426 = vmatpush1.msra.mxu0 0.0
        %4427 = vmatprep.subr.mxu0 0.0
        %4428 = vmatpush1.msra.mxu0 0.0
        %4429 = vmatprep.subr.mxu0 0.0
        %4430 = vmatpush1.msra.mxu0 0.0
        %4431 = vmatprep.subr.mxu0 0.0
        %4432 = vmatpush1.msra.mxu0 0.0
        %4433 = vmatprep.subr.mxu0 0.0
        %4434 = vmatpush1.msra.mxu0 0.0
        %4435 = vmatprep.subr.mxu0 0.0
        %4436 = vmatpush1.msra.mxu0 0.0
        %4437 = vmatprep.subr.mxu0 0.0
        %4438 = vmatpush1.msra.mxu0 0.0
        %4439 = vmatprep.subr.mxu0 0.0
        %4440 = vmatpush1.msra.mxu0 0.0
        %4441 = vmatprep.subr.mxu0 0.0
        %4442 = vmatpush1.msra.mxu0 0.0
        %4443 = vmatprep.subr.mxu0 0.0
        %4444 = vmatpush1.msra.mxu0 0.0
        %4445 = vmatprep.subr.mxu0 0.0
        %4446 = vmatpush1.msra.mxu0 0.0
        %4447 = vmatprep.subr.mxu0 0.0
        %4448 = vmatpush1.msra.mxu0 0.0
        %4449 = vmatprep.subr.mxu0 0.0
        %4450 = vmatpush1.msra.mxu0 0.0
        %4451 = vmatprep.subr.mxu0 0.0
        %4452 = vmatpush1.msra.mxu0 0.0
        %4453 = vmatprep.subr.mxu0 0.0
        %4454 = vmatpush1.msra.mxu0 0.0
        %4455 = vmatprep.subr.mxu0 0.0
        %4456 = vmatpush1.msra.mxu0 0.0
        %4457 = vmatprep.subr.mxu0 0.0
        %4458 = vmatpush1.msra.mxu0 0.0
        %4459 = vmatprep.mubr.f32.mxu0 0.0
        %4460 = vmatmul.mubr.f32.gmra.mrb[0].mxu0 %v4300
        %v4461 = vpop.f32.mrb[0].mxu0
        %v4462 = vadd.f32 %v4141, %v4461
        %v4463 = vpop.f32.mrb[0].mxu0
        %4464 = vmatprep.mubr.f32.mxu0 0.0
        %4465 = vmatmul.mubr.f32.gmra.mrb[0].mxu0 %v4303
        %v4466 = vpop.f32.mrb[0].mxu0
        %v4467 = vadd.f32 %v4146, %v4466
        %v4468 = vpop.f32.mrb[0].mxu0
        %4469 = vmatprep.mubr.f32.mxu0 0.0
        %4470 = vmatmul.mubr.f32.gmra.mrb[0].mxu0 %v4306
        %v4471 = vpop.f32.mrb[0].mxu0
        %v4472 = vadd.f32 %v4151, %v4471
        %v4473 = vpop.f32.mrb[0].mxu0
        %4474 = vmatprep.mubr.f32.mxu0 0.0
        %4475 = vmatmul.mubr.f32.gmra.mrb[0].mxu0 %v4309
        %v4476 = vpop.f32.mrb[0].mxu0
        %v4477 = vadd.f32 %v4156, %v4476
        %v4478 = vpop.f32.mrb[0].mxu0
        %4479 = vmatprep.mubr.f32.mxu0 0.0
        %4480 = vmatmul.mubr.f32.gmra.mrb[0].mxu0 %v4312
        %v4481 = vpop.f32.mrb[0].mxu0
        %v4482 = vadd.f32 %v4161, %v4481
        %v4483 = vpop.f32.mrb[0].mxu0
        %4484 = vmatprep.mubr.f32.mxu0 0.0
        %4485 = vmatmul.mubr.f32.gmra.mrb[0].mxu0 %v4315
        %v4486 = vpop.f32.mrb[0].mxu0
        %v4487 = vadd.f32 %v4166, %v4486
        %v4488 = vpop.f32.mrb[0].mxu0
        %4489 = vmatprep.mubr.f32.mxu0 0.0
        %4490 = vmatmul.mubr.f32.gmra.mrb[0].mxu0 %v4318
        %v4491 = vpop.f32.mrb[0].mxu0
        %v4492 = vadd.f32 %v4171, %v4491
        %v4493 = vpop.f32.mrb[0].mxu0
        %4494 = vmatprep.mubr.f32.mxu0 0.0
        %4495 = vmatmul.mubr.f32.gmra.mrb[0].mxu0 %v4321
        %v4496 = vpop.f32.mrb[0].mxu0
        %v4497 = vadd.f32 %v4176, %v4496
        %v4498 = vpop.f32.mrb[0].mxu0
        %4499 = vmatprep.mubr.f32.mxu0 0.0
        %4500 = vmatmul.mubr.f32.gmra.mrb[0].mxu0 %v4324
        %v4501 = vpop.f32.mrb[0].mxu0
        %v4502 = vadd.f32 %v4181, %v4501
        %v4503 = vpop.f32.mrb[0].mxu0
        %4504 = vmatprep.mubr.f32.mxu0 0.0
        %4505 = vmatmul.mubr.f32.gmra.mrb[0].mxu0 %v4327
        %v4506 = vpop.f32.mrb[0].mxu0
        %v4507 = vadd.f32 %v4186, %v4506
        %v4508 = vpop.f32.mrb[0].mxu0
        %4509 = vmatprep.mubr.f32.mxu0 0.0
        %4510 = vmatmul.mubr.f32.gmra.mrb[0].mxu0 %v4330
        %v4511 = vpop.f32.mrb[0].mxu0
        %v4512 = vadd.f32 %v4191, %v4511
        %v4513 = vpop.f32.mrb[0].mxu0
        %4514 = vmatprep.mubr.f32.mxu0 0.0
        %4515 = vmatmul.mubr.f32.gmra.mrb[0].mxu0 %v4333
        %v4516 = vpop.f32.mrb[0].mxu0
        %v4517 = vadd.f32 %v4196, %v4516
        %v4518 = vpop.f32.mrb[0].mxu0
        %4519 = vmatprep.mubr.f32.mxu0 0.0
        %4520 = vmatmul.mubr.f32.gmra.mrb[0].mxu0 %v4336
        %v4521 = vpop.f32.mrb[0].mxu0
        %v4522 = vadd.f32 %v4201, %v4521
        %v4523 = vpop.f32.mrb[0].mxu0
        %4524 = vmatprep.mubr.f32.mxu0 0.0
        %4525 = vmatmul.mubr.f32.gmra.mrb[0].mxu0 %v4339
        %v4526 = vpop.f32.mrb[0].mxu0
        %v4527 = vadd.f32 %v4206, %v4526
        %v4528 = vpop.f32.mrb[0].mxu0
        %4529 = vmatprep.mubr.f32.mxu0 0.0
        %4530 = vmatmul.mubr.f32.gmra.mrb[0].mxu0 %v4342
        %v4531 = vpop.f32.mrb[0].mxu0
        %v4532 = vadd.f32 %v4211, %v4531
        %v4533 = vpop.f32.mrb[0].mxu0
        %4534 = vmatprep.mubr.f32.mxu0 0.0
        %4535 = vmatmul.mubr.f32.gmra.mrb[0].mxu0 %v4345
        %v4536 = vpop.f32.mrb[0].mxu0
        %v4537 = vadd.f32 %v4216, %v4536
        %v4538 = vpop.f32.mrb[0].mxu0
        %4539 = vmatprep.mubr.f32.mxu0 0.0
        %4540 = vmatmul.mubr.f32.gmra.mrb[0].mxu0 %v4348
        %v4541 = vpop.f32.mrb[0].mxu0
        %v4542 = vadd.f32 %v4221, %v4541
        %v4543 = vpop.f32.mrb[0].mxu0
        %4544 = vmatprep.mubr.f32.mxu0 0.0
        %4545 = vmatmul.mubr.f32.gmra.mrb[0].mxu0 %v4351
        %v4546 = vpop.f32.mrb[0].mxu0
        %v4547 = vadd.f32 %v4226, %v4546
        %v4548 = vpop.f32.mrb[0].mxu0
        %4549 = vmatprep.mubr.f32.mxu0 0.0
        %4550 = vmatmul.mubr.f32.gmra.mrb[0].mxu0 %v4354
        %v4551 = vpop.f32.mrb[0].mxu0
        %v4552 = vadd.f32 %v4231, %v4551
        %v4553 = vpop.f32.mrb[0].mxu0
        %4554 = vmatprep.mubr.f32.mxu0 0.0
        %4555 = vmatmul.mubr.f32.gmra.mrb[0].mxu0 %v4357
        %v4556 = vpop.f32.mrb[0].mxu0
        %v4557 = vadd.f32 %v4236, %v4556
        %v4558 = vpop.f32.mrb[0].mxu0
        %4559 = vmatprep.mubr.f32.mxu0 0.0
        %4560 = vmatmul.mubr.f32.gmra.mrb[0].mxu0 %v4360
        %v4561 = vpop.f32.mrb[0].mxu0
        %v4562 = vadd.f32 %v4241, %v4561
        %v4563 = vpop.f32.mrb[0].mxu0
        %4564 = vmatprep.mubr.f32.mxu0 0.0
        %4565 = vmatmul.mubr.f32.gmra.mrb[0].mxu0 %v4363
        %v4566 = vpop.f32.mrb[0].mxu0
        %v4567 = vadd.f32 %v4246, %v4566
        %v4568 = vpop.f32.mrb[0].mxu0
        %4569 = vmatprep.mubr.f32.mxu0 0.0
        %4570 = vmatmul.mubr.f32.gmra.mrb[0].mxu0 %v4366
        %v4571 = vpop.f32.mrb[0].mxu0
        %v4572 = vadd.f32 %v4251, %v4571
        %v4573 = vpop.f32.mrb[0].mxu0
        %4574 = vmatprep.mubr.f32.mxu0 0.0
        %4575 = vmatmul.mubr.f32.gmra.mrb[0].mxu0 %v4369
        %v4576 = vpop.f32.mrb[0].mxu0
        %v4577 = vadd.f32 %v4256, %v4576
        %v4578 = vpop.f32.mrb[0].mxu0
        %4579 = vmatprep.mubr.f32.mxu0 0.0
        %4580 = vmatmul.mubr.f32.gmra.mrb[0].mxu0 %v4372
        %v4581 = vpop.f32.mrb[0].mxu0
        %v4582 = vadd.f32 %v4261, %v4581
        %v4583 = vpop.f32.mrb[0].mxu0
        %4584 = vmatprep.mubr.f32.mxu0 0.0
        %4585 = vmatmul.mubr.f32.gmra.mrb[0].mxu0 %v4375
        %v4586 = vpop.f32.mrb[0].mxu0
        %v4587 = vadd.f32 %v4266, %v4586
        %v4588 = vpop.f32.mrb[0].mxu0
        %4589 = vmatprep.mubr.f32.mxu0 0.0
        %4590 = vmatmul.mubr.f32.gmra.mrb[0].mxu0 %v4378
        %v4591 = vpop.f32.mrb[0].mxu0
        %v4592 = vadd.f32 %v4271, %v4591
        %v4593 = vpop.f32.mrb[0].mxu0
        %4594 = vmatprep.mubr.f32.mxu0 0.0
        %4595 = vmatmul.mubr.f32.gmra.mrb[0].mxu0 %v4381
        %v4596 = vpop.f32.mrb[0].mxu0
        %v4597 = vadd.f32 %v4276, %v4596
        %v4598 = vpop.f32.mrb[0].mxu0
        %4599 = vmatprep.mubr.f32.mxu0 0.0
        %4600 = vmatmul.mubr.f32.gmra.mrb[0].mxu0 %v4384
        %v4601 = vpop.f32.mrb[0].mxu0
        %v4602 = vadd.f32 %v4281, %v4601
        %v4603 = vpop.f32.mrb[0].mxu0
        %4604 = vmatprep.mubr.f32.mxu0 0.0
        %4605 = vmatmul.mubr.f32.gmra.mrb[0].mxu0 %v4387
        %v4606 = vpop.f32.mrb[0].mxu0
        %v4607 = vadd.f32 %v4286, %v4606
        %v4608 = vpop.f32.mrb[0].mxu0
        %4609 = vmatprep.mubr.f32.mxu0 0.0
        %4610 = vmatmul.mubr.f32.gmra.mrb[0].mxu0 %v4390
        %v4611 = vpop.f32.mrb[0].mxu0
        %v4612 = vadd.f32 %v4291, %v4611
        %v4613 = vpop.f32.mrb[0].mxu0
        %4614 = vmatprep.mubr.f32.mxu0 0.0
        %4615 = vmatmul.mubr.f32.gmra.mrb[0].mxu0 %v4393
        %v4616 = vpop.f32.mrb[0].mxu0
        %v4617 = vadd.f32 %v4296, %v4616
        %v4618 = vpop.f32.mrb[0].mxu0
        %4619 = vdwg.mxu0
        %v4620 = vld [vmem:[#allocation2 + $0x2] sm:$0xff]
        %v4621 = vld [vmem:[#allocation2 + $0xa] sm:$0xff]
        %v4622 = vld [vmem:[#allocation2 + $0x1a] sm:$0xff]
        %v4623 = vld [vmem:[#allocation2 + $0x22] sm:$0xff]
        %v4624 = vld [vmem:[#allocation2 + $0x32] sm:$0xff]
        %v4625 = vld [vmem:[#allocation2 + $0x3a] sm:$0xff]
        %v4626 = vld [vmem:[#allocation2 + $0x4a] sm:$0xff]
        %v4627 = vld [vmem:[#allocation2 + $0x52] sm:$0xff]
        %v4628 = vld [vmem:[#allocation2 + $0x62] sm:$0xff]
        %v4629 = vld [vmem:[#allocation2 + $0x6a] sm:$0xff]
        %v4630 = vld [vmem:[#allocation2 + $0x7a] sm:$0xff]
        %v4631 = vld [vmem:[#allocation2 + $0x82] sm:$0xff]
        %v4632 = vld [vmem:[#allocation2 + $0x92] sm:$0xff]
        %v4633 = vld [vmem:[#allocation2 + $0x9a] sm:$0xff]
        %v4634 = vld [vmem:[#allocation2 + $0xaa] sm:$0xff]
        %v4635 = vld [vmem:[#allocation2 + $0xb2] sm:$0xff]
        %v4636 = vld [vmem:[#allocation2 + $0xc2] sm:$0xff]
        %v4637 = vld [vmem:[#allocation2 + $0xca] sm:$0xff]
        %v4638 = vld [vmem:[#allocation2 + $0xda] sm:$0xff]
        %v4639 = vld [vmem:[#allocation2 + $0xe2] sm:$0xff]
        %v4640 = vld [vmem:[#allocation2 + $0xf2] sm:$0xff]
        %v4641 = vld [vmem:[#allocation2 + $0xfa] sm:$0xff]
        %v4642 = vld [vmem:[#allocation2 + $0x10a] sm:$0xff]
        %v4643 = vld [vmem:[#allocation2 + $0x112] sm:$0xff]
        %v4644 = vld [vmem:[#allocation2 + $0x122] sm:$0xff]
        %v4645 = vld [vmem:[#allocation2 + $0x12a] sm:$0xff]
        %v4646 = vld [vmem:[#allocation2 + $0x13a] sm:$0xff]
        %v4647 = vld [vmem:[#allocation2 + $0x142] sm:$0xff]
        %v4648 = vld [vmem:[#allocation2 + $0x152] sm:$0xff]
        %v4649 = vld [vmem:[#allocation2 + $0x15a] sm:$0xff]
        %v4650 = vld [vmem:[#allocation2 + $0x16a] sm:$0xff]
        %v4651 = vld [vmem:[#allocation2 + $0x172] sm:$0xff]
        %s4652 = scalar_lea.vmem %s8, 32
        %v4653 = vld [vmem:[%s4652] sm:$0xff]
        %v4654 = vld [vmem:[%s4652 + $0x8] sm:$0xff]
        %v4656 = vsel %vm3906, %v4620, 0
        %v4659 = vsel %vm3906, %v4621, 0
        %v4662 = vsel %vm3906, %v4622, 0
        %v4665 = vsel %vm3906, %v4623, 0
        %v4668 = vsel %vm3906, %v4624, 0
        %v4671 = vsel %vm3906, %v4625, 0
        %v4674 = vsel %vm3906, %v4626, 0
        %v4677 = vsel %vm3906, %v4627, 0
        %v4680 = vsel %vm3906, %v4628, 0
        %v4683 = vsel %vm3906, %v4629, 0
        %v4686 = vsel %vm3906, %v4630, 0
        %v4689 = vsel %vm3906, %v4631, 0
        %v4692 = vsel %vm3906, %v4632, 0
        %v4695 = vsel %vm3906, %v4633, 0
        %v4698 = vsel %vm3906, %v4634, 0
        %v4701 = vsel %vm3906, %v4635, 0
        %v4704 = vsel %vm3906, %v4636, 0
        %v4707 = vsel %vm3906, %v4637, 0
        %v4710 = vsel %vm3906, %v4638, 0
        %v4713 = vsel %vm3906, %v4639, 0
        %v4716 = vsel %vm3906, %v4640, 0
        %v4719 = vsel %vm3906, %v4641, 0
        %v4722 = vsel %vm3906, %v4642, 0
        %v4725 = vsel %vm3906, %v4643, 0
        %v4728 = vsel %vm3906, %v4644, 0
        %v4731 = vsel %vm3906, %v4645, 0
        %v4734 = vsel %vm3906, %v4646, 0
        %v4737 = vsel %vm3906, %v4647, 0
        %v4740 = vsel %vm3906, %v4648, 0
        %v4743 = vsel %vm3906, %v4649, 0
        %v4746 = vsel %vm3906, %v4650, 0
        %v4749 = vsel %vm3906, %v4651, 0
        %4751 = vmatprep.subr.mxu0 0.0
        %4752 = vmatpush1.msra.mxu0 %v4653
        %4753 = vmatprep.subr.mxu0 0.0
        %4754 = vmatpush1.msra.mxu0 %v4654
        %4755 = vmatprep.subr.mxu0 0.0
        %4756 = vmatpush1.msra.mxu0 0.0
        %4757 = vmatprep.subr.mxu0 0.0
        %4758 = vmatpush1.msra.mxu0 0.0
        %4759 = vmatprep.subr.mxu0 0.0
        %4760 = vmatpush1.msra.mxu0 0.0
        %4761 = vmatprep.subr.mxu0 0.0
        %4762 = vmatpush1.msra.mxu0 0.0
        %4763 = vmatprep.subr.mxu0 0.0
        %4764 = vmatpush1.msra.mxu0 0.0
        %4765 = vmatprep.subr.mxu0 0.0
        %4766 = vmatpush1.msra.mxu0 0.0
        %4767 = vmatprep.subr.mxu0 0.0
        %4768 = vmatpush1.msra.mxu0 0.0
        %4769 = vmatprep.subr.mxu0 0.0
        %4770 = vmatpush1.msra.mxu0 0.0
        %4771 = vmatprep.subr.mxu0 0.0
        %4772 = vmatpush1.msra.mxu0 0.0
        %4773 = vmatprep.subr.mxu0 0.0
        %4774 = vmatpush1.msra.mxu0 0.0
        %4775 = vmatprep.subr.mxu0 0.0
        %4776 = vmatpush1.msra.mxu0 0.0
        %4777 = vmatprep.subr.mxu0 0.0
        %4778 = vmatpush1.msra.mxu0 0.0
        %4779 = vmatprep.subr.mxu0 0.0
        %4780 = vmatpush1.msra.mxu0 0.0
        %4781 = vmatprep.subr.mxu0 0.0
        %4782 = vmatpush1.msra.mxu0 0.0
        %4783 = vmatprep.subr.mxu0 0.0
        %4784 = vmatpush1.msra.mxu0 0.0
        %4785 = vmatprep.subr.mxu0 0.0
        %4786 = vmatpush1.msra.mxu0 0.0
        %4787 = vmatprep.subr.mxu0 0.0
        %4788 = vmatpush1.msra.mxu0 0.0
        %4789 = vmatprep.subr.mxu0 0.0
        %4790 = vmatpush1.msra.mxu0 0.0
        %4791 = vmatprep.subr.mxu0 0.0
        %4792 = vmatpush1.msra.mxu0 0.0
        %4793 = vmatprep.subr.mxu0 0.0
        %4794 = vmatpush1.msra.mxu0 0.0
        %4795 = vmatprep.subr.mxu0 0.0
        %4796 = vmatpush1.msra.mxu0 0.0
        %4797 = vmatprep.subr.mxu0 0.0
        %4798 = vmatpush1.msra.mxu0 0.0
        %4799 = vmatprep.subr.mxu0 0.0
        %4800 = vmatpush1.msra.mxu0 0.0
        %4801 = vmatprep.subr.mxu0 0.0
        %4802 = vmatpush1.msra.mxu0 0.0
        %4803 = vmatprep.subr.mxu0 0.0
        %4804 = vmatpush1.msra.mxu0 0.0
        %4805 = vmatprep.subr.mxu0 0.0
        %4806 = vmatpush1.msra.mxu0 0.0
        %4807 = vmatprep.subr.mxu0 0.0
        %4808 = vmatpush1.msra.mxu0 0.0
        %4809 = vmatprep.subr.mxu0 0.0
        %4810 = vmatpush1.msra.mxu0 0.0
        %4811 = vmatprep.subr.mxu0 0.0
        %4812 = vmatpush1.msra.mxu0 0.0
        %4813 = vmatprep.subr.mxu0 0.0
        %4814 = vmatpush1.msra.mxu0 0.0
        %4815 = vmatprep.mubr.f32.mxu0 0.0
        %4816 = vmatmul.mubr.f32.gmra.mrb[0].mxu0 %v4656
        %v4817 = vpop.f32.mrb[0].mxu0
        %v4818 = vadd.f32 0.0, %v4817
        %v4819 = vpop.f32.mrb[0].mxu0
        %4820 = vmatprep.mubr.f32.mxu0 0.0
        %4821 = vmatmul.mubr.f32.gmra.mrb[0].mxu0 %v4659
        %v4822 = vpop.f32.mrb[0].mxu0
        %v4823 = vadd.f32 0.0, %v4822
        %v4824 = vpop.f32.mrb[0].mxu0
        %4825 = vmatprep.mubr.f32.mxu0 0.0
        %4826 = vmatmul.mubr.f32.gmra.mrb[0].mxu0 %v4662
        %v4827 = vpop.f32.mrb[0].mxu0
        %v4828 = vadd.f32 0.0, %v4827
        %v4829 = vpop.f32.mrb[0].mxu0
        %4830 = vmatprep.mubr.f32.mxu0 0.0
        %4831 = vmatmul.mubr.f32.gmra.mrb[0].mxu0 %v4665
        %v4832 = vpop.f32.mrb[0].mxu0
        %v4833 = vadd.f32 0.0, %v4832
        %v4834 = vpop.f32.mrb[0].mxu0
        %4835 = vmatprep.mubr.f32.mxu0 0.0
        %4836 = vmatmul.mubr.f32.gmra.mrb[0].mxu0 %v4668
        %v4837 = vpop.f32.mrb[0].mxu0
        %v4838 = vadd.f32 0.0, %v4837
        %v4839 = vpop.f32.mrb[0].mxu0
        %4840 = vmatprep.mubr.f32.mxu0 0.0
        %4841 = vmatmul.mubr.f32.gmra.mrb[0].mxu0 %v4671
        %v4842 = vpop.f32.mrb[0].mxu0
        %v4843 = vadd.f32 0.0, %v4842
        %v4844 = vpop.f32.mrb[0].mxu0
        %4845 = vmatprep.mubr.f32.mxu0 0.0
        %4846 = vmatmul.mubr.f32.gmra.mrb[0].mxu0 %v4674
        %v4847 = vpop.f32.mrb[0].mxu0
        %v4848 = vadd.f32 0.0, %v4847
        %v4849 = vpop.f32.mrb[0].mxu0
        %4850 = vmatprep.mubr.f32.mxu0 0.0
        %4851 = vmatmul.mubr.f32.gmra.mrb[0].mxu0 %v4677
        %v4852 = vpop.f32.mrb[0].mxu0
        %v4853 = vadd.f32 0.0, %v4852
        %v4854 = vpop.f32.mrb[0].mxu0
        %4855 = vmatprep.mubr.f32.mxu0 0.0
        %4856 = vmatmul.mubr.f32.gmra.mrb[0].mxu0 %v4680
        %v4857 = vpop.f32.mrb[0].mxu0
        %v4858 = vadd.f32 0.0, %v4857
        %v4859 = vpop.f32.mrb[0].mxu0
        %4860 = vmatprep.mubr.f32.mxu0 0.0
        %4861 = vmatmul.mubr.f32.gmra.mrb[0].mxu0 %v4683
        %v4862 = vpop.f32.mrb[0].mxu0
        %v4863 = vadd.f32 0.0, %v4862
        %v4864 = vpop.f32.mrb[0].mxu0
        %4865 = vmatprep.mubr.f32.mxu0 0.0
        %4866 = vmatmul.mubr.f32.gmra.mrb[0].mxu0 %v4686
        %v4867 = vpop.f32.mrb[0].mxu0
        %v4868 = vadd.f32 0.0, %v4867
        %v4869 = vpop.f32.mrb[0].mxu0
        %4870 = vmatprep.mubr.f32.mxu0 0.0
        %4871 = vmatmul.mubr.f32.gmra.mrb[0].mxu0 %v4689
        %v4872 = vpop.f32.mrb[0].mxu0
        %v4873 = vadd.f32 0.0, %v4872
        %v4874 = vpop.f32.mrb[0].mxu0
        %4875 = vmatprep.mubr.f32.mxu0 0.0
        %4876 = vmatmul.mubr.f32.gmra.mrb[0].mxu0 %v4692
        %v4877 = vpop.f32.mrb[0].mxu0
        %v4878 = vadd.f32 0.0, %v4877
        %v4879 = vpop.f32.mrb[0].mxu0
        %4880 = vmatprep.mubr.f32.mxu0 0.0
        %4881 = vmatmul.mubr.f32.gmra.mrb[0].mxu0 %v4695
        %v4882 = vpop.f32.mrb[0].mxu0
        %v4883 = vadd.f32 0.0, %v4882
        %v4884 = vpop.f32.mrb[0].mxu0
        %4885 = vmatprep.mubr.f32.mxu0 0.0
        %4886 = vmatmul.mubr.f32.gmra.mrb[0].mxu0 %v4698
        %v4887 = vpop.f32.mrb[0].mxu0
        %v4888 = vadd.f32 0.0, %v4887
        %v4889 = vpop.f32.mrb[0].mxu0
        %4890 = vmatprep.mubr.f32.mxu0 0.0
        %4891 = vmatmul.mubr.f32.gmra.mrb[0].mxu0 %v4701
        %v4892 = vpop.f32.mrb[0].mxu0
        %v4893 = vadd.f32 0.0, %v4892
        %v4894 = vpop.f32.mrb[0].mxu0
        %4895 = vmatprep.mubr.f32.mxu0 0.0
        %4896 = vmatmul.mubr.f32.gmra.mrb[0].mxu0 %v4704
        %v4897 = vpop.f32.mrb[0].mxu0
        %v4898 = vadd.f32 0.0, %v4897
        %v4899 = vpop.f32.mrb[0].mxu0
        %4900 = vmatprep.mubr.f32.mxu0 0.0
        %4901 = vmatmul.mubr.f32.gmra.mrb[0].mxu0 %v4707
        %v4902 = vpop.f32.mrb[0].mxu0
        %v4903 = vadd.f32 0.0, %v4902
        %v4904 = vpop.f32.mrb[0].mxu0
        %4905 = vmatprep.mubr.f32.mxu0 0.0
        %4906 = vmatmul.mubr.f32.gmra.mrb[0].mxu0 %v4710
        %v4907 = vpop.f32.mrb[0].mxu0
        %v4908 = vadd.f32 0.0, %v4907
        %v4909 = vpop.f32.mrb[0].mxu0
        %4910 = vmatprep.mubr.f32.mxu0 0.0
        %4911 = vmatmul.mubr.f32.gmra.mrb[0].mxu0 %v4713
        %v4912 = vpop.f32.mrb[0].mxu0
        %v4913 = vadd.f32 0.0, %v4912
        %v4914 = vpop.f32.mrb[0].mxu0
        %4915 = vmatprep.mubr.f32.mxu0 0.0
        %4916 = vmatmul.mubr.f32.gmra.mrb[0].mxu0 %v4716
        %v4917 = vpop.f32.mrb[0].mxu0
        %v4918 = vadd.f32 0.0, %v4917
        %v4919 = vpop.f32.mrb[0].mxu0
        %4920 = vmatprep.mubr.f32.mxu0 0.0
        %4921 = vmatmul.mubr.f32.gmra.mrb[0].mxu0 %v4719
        %v4922 = vpop.f32.mrb[0].mxu0
        %v4923 = vadd.f32 0.0, %v4922
        %v4924 = vpop.f32.mrb[0].mxu0
        %4925 = vmatprep.mubr.f32.mxu0 0.0
        %4926 = vmatmul.mubr.f32.gmra.mrb[0].mxu0 %v4722
        %v4927 = vpop.f32.mrb[0].mxu0
        %v4928 = vadd.f32 0.0, %v4927
        %v4929 = vpop.f32.mrb[0].mxu0
        %4930 = vmatprep.mubr.f32.mxu0 0.0
        %4931 = vmatmul.mubr.f32.gmra.mrb[0].mxu0 %v4725
        %v4932 = vpop.f32.mrb[0].mxu0
        %v4933 = vadd.f32 0.0, %v4932
        %v4934 = vpop.f32.mrb[0].mxu0
        %4935 = vmatprep.mubr.f32.mxu0 0.0
        %4936 = vmatmul.mubr.f32.gmra.mrb[0].mxu0 %v4728
        %v4937 = vpop.f32.mrb[0].mxu0
        %v4938 = vadd.f32 0.0, %v4937
        %v4939 = vpop.f32.mrb[0].mxu0
        %4940 = vmatprep.mubr.f32.mxu0 0.0
        %4941 = vmatmul.mubr.f32.gmra.mrb[0].mxu0 %v4731
        %v4942 = vpop.f32.mrb[0].mxu0
        %v4943 = vadd.f32 0.0, %v4942
        %v4944 = vpop.f32.mrb[0].mxu0
        %4945 = vmatprep.mubr.f32.mxu0 0.0
        %4946 = vmatmul.mubr.f32.gmra.mrb[0].mxu0 %v4734
        %v4947 = vpop.f32.mrb[0].mxu0
        %v4948 = vadd.f32 0.0, %v4947
        %v4949 = vpop.f32.mrb[0].mxu0
        %4950 = vmatprep.mubr.f32.mxu0 0.0
        %4951 = vmatmul.mubr.f32.gmra.mrb[0].mxu0 %v4737
        %v4952 = vpop.f32.mrb[0].mxu0
        %v4953 = vadd.f32 0.0, %v4952
        %v4954 = vpop.f32.mrb[0].mxu0
        %4955 = vmatprep.mubr.f32.mxu0 0.0
        %4956 = vmatmul.mubr.f32.gmra.mrb[0].mxu0 %v4740
        %v4957 = vpop.f32.mrb[0].mxu0
        %v4958 = vadd.f32 0.0, %v4957
        %v4959 = vpop.f32.mrb[0].mxu0
        %4960 = vmatprep.mubr.f32.mxu0 0.0
        %4961 = vmatmul.mubr.f32.gmra.mrb[0].mxu0 %v4743
        %v4962 = vpop.f32.mrb[0].mxu0
        %v4963 = vadd.f32 0.0, %v4962
        %v4964 = vpop.f32.mrb[0].mxu0
        %4965 = vmatprep.mubr.f32.mxu0 0.0
        %4966 = vmatmul.mubr.f32.gmra.mrb[0].mxu0 %v4746
        %v4967 = vpop.f32.mrb[0].mxu0
        %v4968 = vadd.f32 0.0, %v4967
        %v4969 = vpop.f32.mrb[0].mxu0
        %4970 = vmatprep.mubr.f32.mxu0 0.0
        %4971 = vmatmul.mubr.f32.gmra.mrb[0].mxu0 %v4749
        %v4972 = vpop.f32.mrb[0].mxu0
        %v4973 = vadd.f32 0.0, %v4972
        %v4974 = vpop.f32.mrb[0].mxu0
        %4975 = vdwg.mxu0
        %v4976 = vadd.f32 %v4462, %v4818
        %v4977 = vadd.f32 %v4467, %v4823
        %v4978 = vadd.f32 %v4472, %v4828
        %v4979 = vadd.f32 %v4477, %v4833
        %v4980 = vadd.f32 %v4482, %v4838
        %v4981 = vadd.f32 %v4487, %v4843
        %v4982 = vadd.f32 %v4492, %v4848
        %v4983 = vadd.f32 %v4497, %v4853
        %v4984 = vadd.f32 %v4502, %v4858
        %v4985 = vadd.f32 %v4507, %v4863
        %v4986 = vadd.f32 %v4512, %v4868
        %v4987 = vadd.f32 %v4517, %v4873
        %v4988 = vadd.f32 %v4522, %v4878
        %v4989 = vadd.f32 %v4527, %v4883
        %v4990 = vadd.f32 %v4532, %v4888
        %v4991 = vadd.f32 %v4537, %v4893
        %v4992 = vadd.f32 %v4542, %v4898
        %v4993 = vadd.f32 %v4547, %v4903
        %v4994 = vadd.f32 %v4552, %v4908
        %v4995 = vadd.f32 %v4557, %v4913
        %v4996 = vadd.f32 %v4562, %v4918
        %v4997 = vadd.f32 %v4567, %v4923
        %v4998 = vadd.f32 %v4572, %v4928
        %v4999 = vadd.f32 %v4577, %v4933
        %v5000 = vadd.f32 %v4582, %v4938
        %v5001 = vadd.f32 %v4587, %v4943
        %v5002 = vadd.f32 %v4592, %v4948
        %v5003 = vadd.f32 %v4597, %v4953
        %v5004 = vadd.f32 %v4602, %v4958
        %v5005 = vadd.f32 %v4607, %v4963
        %v5006 = vadd.f32 %v4612, %v4968
        %v5007 = vadd.f32 %v4617, %v4973
        %s5008 = scalar_lea.vmem [#allocation2], 24
        %v5009 = vld [vmem:[%s5008] sm:$0xff]
        %v5010 = vld [vmem:[%s5008 + $0x8] sm:$0xff]
        %v5011 = vld [vmem:[%s5008 + $0x18] sm:$0xff]
        %v5012 = vld [vmem:[%s5008 + $0x20] sm:$0xff]
        %v5013 = vld [vmem:[%s5008 + $0x30] sm:$0xff]
        %v5014 = vld [vmem:[%s5008 + $0x38] sm:$0xff]
        %v5015 = vld [vmem:[%s5008 + $0x48] sm:$0xff]
        %v5016 = vld [vmem:[%s5008 + $0x50] sm:$0xff]
        %v5017 = vld [vmem:[%s5008 + $0x60] sm:$0xff]
        %v5018 = vld [vmem:[%s5008 + $0x68] sm:$0xff]
        %v5019 = vld [vmem:[%s5008 + $0x78] sm:$0xff]
        %v5020 = vld [vmem:[%s5008 + $0x80] sm:$0xff]
        %v5021 = vld [vmem:[%s5008 + $0x90] sm:$0xff]
        %v5022 = vld [vmem:[%s5008 + $0x98] sm:$0xff]
        %v5023 = vld [vmem:[%s5008 + $0xa8] sm:$0xff]
        %v5024 = vld [vmem:[%s5008 + $0xb0] sm:$0xff]
        %v5025 = vld [vmem:[%s5008 + $0xc0] sm:$0xff]
        %v5026 = vld [vmem:[%s5008 + $0xc8] sm:$0xff]
        %v5027 = vld [vmem:[%s5008 + $0xd8] sm:$0xff]
        %v5028 = vld [vmem:[%s5008 + $0xe0] sm:$0xff]
        %v5029 = vld [vmem:[%s5008 + $0xf0] sm:$0xff]
        %v5030 = vld [vmem:[%s5008 + $0xf8] sm:$0xff]
        %v5031 = vld [vmem:[%s5008 + $0x108] sm:$0xff]
        %v5032 = vld [vmem:[%s5008 + $0x110] sm:$0xff]
        %v5033 = vld [vmem:[%s5008 + $0x120] sm:$0xff]
        %v5034 = vld [vmem:[%s5008 + $0x128] sm:$0xff]
        %v5035 = vld [vmem:[%s5008 + $0x138] sm:$0xff]
        %v5036 = vld [vmem:[%s5008 + $0x140] sm:$0xff]
        %v5037 = vld [vmem:[%s5008 + $0x150] sm:$0xff]
        %v5038 = vld [vmem:[%s5008 + $0x158] sm:$0xff]
        %v5039 = vld [vmem:[%s5008 + $0x168] sm:$0xff]
        %v5040 = vld [vmem:[%s5008 + $0x170] sm:$0xff]
        %s5041 = scalar_lea.vmem %s8, 48
        %v5042 = vld [vmem:[%s5041] sm:$0xff]
        %v5043 = vld [vmem:[%s5041 + $0x8] sm:$0xff]
        %v5045 = vsel %vm3906, %v5009, 0
        %v5048 = vsel %vm3906, %v5010, 0
        %v5051 = vsel %vm3906, %v5011, 0
        %v5054 = vsel %vm3906, %v5012, 0
        %v5057 = vsel %vm3906, %v5013, 0
        %v5060 = vsel %vm3906, %v5014, 0
        %v5063 = vsel %vm3906, %v5015, 0
        %v5066 = vsel %vm3906, %v5016, 0
        %v5069 = vsel %vm3906, %v5017, 0
        %v5072 = vsel %vm3906, %v5018, 0
        %v5075 = vsel %vm3906, %v5019, 0
        %v5078 = vsel %vm3906, %v5020, 0
        %v5081 = vsel %vm3906, %v5021, 0
        %v5084 = vsel %vm3906, %v5022, 0
        %v5087 = vsel %vm3906, %v5023, 0
        %v5090 = vsel %vm3906, %v5024, 0
        %v5093 = vsel %vm3906, %v5025, 0
        %v5096 = vsel %vm3906, %v5026, 0
        %v5099 = vsel %vm3906, %v5027, 0
        %v5102 = vsel %vm3906, %v5028, 0
        %v5105 = vsel %vm3906, %v5029, 0
        %v5108 = vsel %vm3906, %v5030, 0
        %v5111 = vsel %vm3906, %v5031, 0
        %v5114 = vsel %vm3906, %v5032, 0
        %v5117 = vsel %vm3906, %v5033, 0
        %v5120 = vsel %vm3906, %v5034, 0
        %v5123 = vsel %vm3906, %v5035, 0
        %v5126 = vsel %vm3906, %v5036, 0
        %v5129 = vsel %vm3906, %v5037, 0
        %v5132 = vsel %vm3906, %v5038, 0
        %v5135 = vsel %vm3906, %v5039, 0
        %v5138 = vsel %vm3906, %v5040, 0
        %5140 = vmatprep.subr.mxu0 0.0
        %5141 = vmatpush1.msra.mxu0 %v5042
        %5142 = vmatprep.subr.mxu0 0.0
        %5143 = vmatpush1.msra.mxu0 %v5043
        %5144 = vmatprep.subr.mxu0 0.0
        %5145 = vmatpush1.msra.mxu0 0.0
        %5146 = vmatprep.subr.mxu0 0.0
        %5147 = vmatpush1.msra.mxu0 0.0
        %5148 = vmatprep.subr.mxu0 0.0
        %5149 = vmatpush1.msra.mxu0 0.0
        %5150 = vmatprep.subr.mxu0 0.0
        %5151 = vmatpush1.msra.mxu0 0.0
        %5152 = vmatprep.subr.mxu0 0.0
        %5153 = vmatpush1.msra.mxu0 0.0
        %5154 = vmatprep.subr.mxu0 0.0
        %5155 = vmatpush1.msra.mxu0 0.0
        %5156 = vmatprep.subr.mxu0 0.0
        %5157 = vmatpush1.msra.mxu0 0.0
        %5158 = vmatprep.subr.mxu0 0.0
        %5159 = vmatpush1.msra.mxu0 0.0
        %5160 = vmatprep.subr.mxu0 0.0
        %5161 = vmatpush1.msra.mxu0 0.0
        %5162 = vmatprep.subr.mxu0 0.0
        %5163 = vmatpush1.msra.mxu0 0.0
        %5164 = vmatprep.subr.mxu0 0.0
        %5165 = vmatpush1.msra.mxu0 0.0
        %5166 = vmatprep.subr.mxu0 0.0
        %5167 = vmatpush1.msra.mxu0 0.0
        %5168 = vmatprep.subr.mxu0 0.0
        %5169 = vmatpush1.msra.mxu0 0.0
        %5170 = vmatprep.subr.mxu0 0.0
        %5171 = vmatpush1.msra.mxu0 0.0
        %5172 = vmatprep.subr.mxu0 0.0
        %5173 = vmatpush1.msra.mxu0 0.0
        %5174 = vmatprep.subr.mxu0 0.0
        %5175 = vmatpush1.msra.mxu0 0.0
        %5176 = vmatprep.subr.mxu0 0.0
        %5177 = vmatpush1.msra.mxu0 0.0
        %5178 = vmatprep.subr.mxu0 0.0
        %5179 = vmatpush1.msra.mxu0 0.0
        %5180 = vmatprep.subr.mxu0 0.0
        %5181 = vmatpush1.msra.mxu0 0.0
        %5182 = vmatprep.subr.mxu0 0.0
        %5183 = vmatpush1.msra.mxu0 0.0
        %5184 = vmatprep.subr.mxu0 0.0
        %5185 = vmatpush1.msra.mxu0 0.0
        %5186 = vmatprep.subr.mxu0 0.0
        %5187 = vmatpush1.msra.mxu0 0.0
        %5188 = vmatprep.subr.mxu0 0.0
        %5189 = vmatpush1.msra.mxu0 0.0
        %5190 = vmatprep.subr.mxu0 0.0
        %5191 = vmatpush1.msra.mxu0 0.0
        %5192 = vmatprep.subr.mxu0 0.0
        %5193 = vmatpush1.msra.mxu0 0.0
        %5194 = vmatprep.subr.mxu0 0.0
        %5195 = vmatpush1.msra.mxu0 0.0
        %5196 = vmatprep.subr.mxu0 0.0
        %5197 = vmatpush1.msra.mxu0 0.0
        %5198 = vmatprep.subr.mxu0 0.0
        %5199 = vmatpush1.msra.mxu0 0.0
        %5200 = vmatprep.subr.mxu0 0.0
        %5201 = vmatpush1.msra.mxu0 0.0
        %5202 = vmatprep.subr.mxu0 0.0
        %5203 = vmatpush1.msra.mxu0 0.0
        %5204 = vmatprep.mubr.f32.mxu0 0.0
        %5205 = vmatmul.mubr.f32.gmra.mrb[0].mxu0 %v5045
        %v5206 = vpop.f32.mrb[0].mxu0
        %v5207 = vadd.f32 0.0, %v5206
        %v5208 = vpop.f32.mrb[0].mxu0
        %5209 = vmatprep.mubr.f32.mxu0 0.0
        %5210 = vmatmul.mubr.f32.gmra.mrb[0].mxu0 %v5048
        %v5211 = vpop.f32.mrb[0].mxu0
        %v5212 = vadd.f32 0.0, %v5211
        %v5213 = vpop.f32.mrb[0].mxu0
        %5214 = vmatprep.mubr.f32.mxu0 0.0
        %5215 = vmatmul.mubr.f32.gmra.mrb[0].mxu0 %v5051
        %v5216 = vpop.f32.mrb[0].mxu0
        %v5217 = vadd.f32 0.0, %v5216
        %v5218 = vpop.f32.mrb[0].mxu0
        %5219 = vmatprep.mubr.f32.mxu0 0.0
        %5220 = vmatmul.mubr.f32.gmra.mrb[0].mxu0 %v5054
        %v5221 = vpop.f32.mrb[0].mxu0
        %v5222 = vadd.f32 0.0, %v5221
        %v5223 = vpop.f32.mrb[0].mxu0
        %5224 = vmatprep.mubr.f32.mxu0 0.0
        %5225 = vmatmul.mubr.f32.gmra.mrb[0].mxu0 %v5057
        %v5226 = vpop.f32.mrb[0].mxu0
        %v5227 = vadd.f32 0.0, %v5226
        %v5228 = vpop.f32.mrb[0].mxu0
        %5229 = vmatprep.mubr.f32.mxu0 0.0
        %5230 = vmatmul.mubr.f32.gmra.mrb[0].mxu0 %v5060
        %v5231 = vpop.f32.mrb[0].mxu0
        %v5232 = vadd.f32 0.0, %v5231
        %v5233 = vpop.f32.mrb[0].mxu0
        %5234 = vmatprep.mubr.f32.mxu0 0.0
        %5235 = vmatmul.mubr.f32.gmra.mrb[0].mxu0 %v5063
        %v5236 = vpop.f32.mrb[0].mxu0
        %v5237 = vadd.f32 0.0, %v5236
        %v5238 = vpop.f32.mrb[0].mxu0
        %5239 = vmatprep.mubr.f32.mxu0 0.0
        %5240 = vmatmul.mubr.f32.gmra.mrb[0].mxu0 %v5066
        %v5241 = vpop.f32.mrb[0].mxu0
        %v5242 = vadd.f32 0.0, %v5241
        %v5243 = vpop.f32.mrb[0].mxu0
        %5244 = vmatprep.mubr.f32.mxu0 0.0
        %5245 = vmatmul.mubr.f32.gmra.mrb[0].mxu0 %v5069
        %v5246 = vpop.f32.mrb[0].mxu0
        %v5247 = vadd.f32 0.0, %v5246
        %v5248 = vpop.f32.mrb[0].mxu0
        %5249 = vmatprep.mubr.f32.mxu0 0.0
        %5250 = vmatmul.mubr.f32.gmra.mrb[0].mxu0 %v5072
        %v5251 = vpop.f32.mrb[0].mxu0
        %v5252 = vadd.f32 0.0, %v5251
        %v5253 = vpop.f32.mrb[0].mxu0
        %5254 = vmatprep.mubr.f32.mxu0 0.0
        %5255 = vmatmul.mubr.f32.gmra.mrb[0].mxu0 %v5075
        %v5256 = vpop.f32.mrb[0].mxu0
        %v5257 = vadd.f32 0.0, %v5256
        %v5258 = vpop.f32.mrb[0].mxu0
        %5259 = vmatprep.mubr.f32.mxu0 0.0
        %5260 = vmatmul.mubr.f32.gmra.mrb[0].mxu0 %v5078
        %v5261 = vpop.f32.mrb[0].mxu0
        %v5262 = vadd.f32 0.0, %v5261
        %v5263 = vpop.f32.mrb[0].mxu0
        %5264 = vmatprep.mubr.f32.mxu0 0.0
        %5265 = vmatmul.mubr.f32.gmra.mrb[0].mxu0 %v5081
        %v5266 = vpop.f32.mrb[0].mxu0
        %v5267 = vadd.f32 0.0, %v5266
        %v5268 = vpop.f32.mrb[0].mxu0
        %5269 = vmatprep.mubr.f32.mxu0 0.0
        %5270 = vmatmul.mubr.f32.gmra.mrb[0].mxu0 %v5084
        %v5271 = vpop.f32.mrb[0].mxu0
        %v5272 = vadd.f32 0.0, %v5271
        %v5273 = vpop.f32.mrb[0].mxu0
        %5274 = vmatprep.mubr.f32.mxu0 0.0
        %5275 = vmatmul.mubr.f32.gmra.mrb[0].mxu0 %v5087
        %v5276 = vpop.f32.mrb[0].mxu0
        %v5277 = vadd.f32 0.0, %v5276
        %v5278 = vpop.f32.mrb[0].mxu0
        %5279 = vmatprep.mubr.f32.mxu0 0.0
        %5280 = vmatmul.mubr.f32.gmra.mrb[0].mxu0 %v5090
        %v5281 = vpop.f32.mrb[0].mxu0
        %v5282 = vadd.f32 0.0, %v5281
        %v5283 = vpop.f32.mrb[0].mxu0
        %5284 = vmatprep.mubr.f32.mxu0 0.0
        %5285 = vmatmul.mubr.f32.gmra.mrb[0].mxu0 %v5093
        %v5286 = vpop.f32.mrb[0].mxu0
        %v5287 = vadd.f32 0.0, %v5286
        %v5288 = vpop.f32.mrb[0].mxu0
        %5289 = vmatprep.mubr.f32.mxu0 0.0
        %5290 = vmatmul.mubr.f32.gmra.mrb[0].mxu0 %v5096
        %v5291 = vpop.f32.mrb[0].mxu0
        %v5292 = vadd.f32 0.0, %v5291
        %v5293 = vpop.f32.mrb[0].mxu0
        %5294 = vmatprep.mubr.f32.mxu0 0.0
        %5295 = vmatmul.mubr.f32.gmra.mrb[0].mxu0 %v5099
        %v5296 = vpop.f32.mrb[0].mxu0
        %v5297 = vadd.f32 0.0, %v5296
        %v5298 = vpop.f32.mrb[0].mxu0
        %5299 = vmatprep.mubr.f32.mxu0 0.0
        %5300 = vmatmul.mubr.f32.gmra.mrb[0].mxu0 %v5102
        %v5301 = vpop.f32.mrb[0].mxu0
        %v5302 = vadd.f32 0.0, %v5301
        %v5303 = vpop.f32.mrb[0].mxu0
        %5304 = vmatprep.mubr.f32.mxu0 0.0
        %5305 = vmatmul.mubr.f32.gmra.mrb[0].mxu0 %v5105
        %v5306 = vpop.f32.mrb[0].mxu0
        %v5307 = vadd.f32 0.0, %v5306
        %v5308 = vpop.f32.mrb[0].mxu0
        %5309 = vmatprep.mubr.f32.mxu0 0.0
        %5310 = vmatmul.mubr.f32.gmra.mrb[0].mxu0 %v5108
        %v5311 = vpop.f32.mrb[0].mxu0
        %v5312 = vadd.f32 0.0, %v5311
        %v5313 = vpop.f32.mrb[0].mxu0
        %5314 = vmatprep.mubr.f32.mxu0 0.0
        %5315 = vmatmul.mubr.f32.gmra.mrb[0].mxu0 %v5111
        %v5316 = vpop.f32.mrb[0].mxu0
        %v5317 = vadd.f32 0.0, %v5316
        %v5318 = vpop.f32.mrb[0].mxu0
        %5319 = vmatprep.mubr.f32.mxu0 0.0
        %5320 = vmatmul.mubr.f32.gmra.mrb[0].mxu0 %v5114
        %v5321 = vpop.f32.mrb[0].mxu0
        %v5322 = vadd.f32 0.0, %v5321
        %v5323 = vpop.f32.mrb[0].mxu0
        %5324 = vmatprep.mubr.f32.mxu0 0.0
        %5325 = vmatmul.mubr.f32.gmra.mrb[0].mxu0 %v5117
        %v5326 = vpop.f32.mrb[0].mxu0
        %v5327 = vadd.f32 0.0, %v5326
        %v5328 = vpop.f32.mrb[0].mxu0
        %5329 = vmatprep.mubr.f32.mxu0 0.0
        %5330 = vmatmul.mubr.f32.gmra.mrb[0].mxu0 %v5120
        %v5331 = vpop.f32.mrb[0].mxu0
        %v5332 = vadd.f32 0.0, %v5331
        %v5333 = vpop.f32.mrb[0].mxu0
        %5334 = vmatprep.mubr.f32.mxu0 0.0
        %5335 = vmatmul.mubr.f32.gmra.mrb[0].mxu0 %v5123
        %v5336 = vpop.f32.mrb[0].mxu0
        %v5337 = vadd.f32 0.0, %v5336
        %v5338 = vpop.f32.mrb[0].mxu0
        %5339 = vmatprep.mubr.f32.mxu0 0.0
        %5340 = vmatmul.mubr.f32.gmra.mrb[0].mxu0 %v5126
        %v5341 = vpop.f32.mrb[0].mxu0
        %v5342 = vadd.f32 0.0, %v5341
        %v5343 = vpop.f32.mrb[0].mxu0
        %5344 = vmatprep.mubr.f32.mxu0 0.0
        %5345 = vmatmul.mubr.f32.gmra.mrb[0].mxu0 %v5129
        %v5346 = vpop.f32.mrb[0].mxu0
        %v5347 = vadd.f32 0.0, %v5346
        %v5348 = vpop.f32.mrb[0].mxu0
        %5349 = vmatprep.mubr.f32.mxu0 0.0
        %5350 = vmatmul.mubr.f32.gmra.mrb[0].mxu0 %v5132
        %v5351 = vpop.f32.mrb[0].mxu0
        %v5352 = vadd.f32 0.0, %v5351
        %v5353 = vpop.f32.mrb[0].mxu0
        %5354 = vmatprep.mubr.f32.mxu0 0.0
        %5355 = vmatmul.mubr.f32.gmra.mrb[0].mxu0 %v5135
        %v5356 = vpop.f32.mrb[0].mxu0
        %v5357 = vadd.f32 0.0, %v5356
        %v5358 = vpop.f32.mrb[0].mxu0
        %5359 = vmatprep.mubr.f32.mxu0 0.0
        %5360 = vmatmul.mubr.f32.gmra.mrb[0].mxu0 %v5138
        %v5361 = vpop.f32.mrb[0].mxu0
        %v5362 = vadd.f32 0.0, %v5361
        %v5363 = vpop.f32.mrb[0].mxu0
        %5364 = vdwg.mxu0
        %v5365 = vadd.f32 %v4976, %v5207
        %v5366 = vadd.f32 %v4977, %v5212
        %v5367 = vadd.f32 %v4978, %v5217
        %v5368 = vadd.f32 %v4979, %v5222
        %v5369 = vadd.f32 %v4980, %v5227
        %v5370 = vadd.f32 %v4981, %v5232
        %v5371 = vadd.f32 %v4982, %v5237
        %v5372 = vadd.f32 %v4983, %v5242
        %v5373 = vadd.f32 %v4984, %v5247
        %v5374 = vadd.f32 %v4985, %v5252
        %v5375 = vadd.f32 %v4986, %v5257
        %v5376 = vadd.f32 %v4987, %v5262
        %v5377 = vadd.f32 %v4988, %v5267
        %v5378 = vadd.f32 %v4989, %v5272
        %v5379 = vadd.f32 %v4990, %v5277
        %v5380 = vadd.f32 %v4991, %v5282
        %v5381 = vadd.f32 %v4992, %v5287
        %v5382 = vadd.f32 %v4993, %v5292
        %v5383 = vadd.f32 %v4994, %v5297
        %v5384 = vadd.f32 %v4995, %v5302
        %v5385 = vadd.f32 %v4996, %v5307
        %v5386 = vadd.f32 %v4997, %v5312
        %v5387 = vadd.f32 %v4998, %v5317
        %v5388 = vadd.f32 %v4999, %v5322
        %v5389 = vadd.f32 %v5000, %v5327
        %v5390 = vadd.f32 %v5001, %v5332
        %v5391 = vadd.f32 %v5002, %v5337
        %v5392 = vadd.f32 %v5003, %v5342
        %v5393 = vadd.f32 %v5004, %v5347
        %v5394 = vadd.f32 %v5005, %v5352
        %v5395 = vadd.f32 %v5006, %v5357
        %v5396 = vadd.f32 %v5007, %v5362
        %v5397 = vld [vmem:[%s5008 + $0x1] sm:$0xff]
        %v5398 = vld [vmem:[%s5008 + $0x9] sm:$0xff]
        %v5399 = vld [vmem:[%s5008 + $0x19] sm:$0xff]
        %v5400 = vld [vmem:[%s5008 + $0x21] sm:$0xff]
        %v5401 = vld [vmem:[%s5008 + $0x31] sm:$0xff]
        %v5402 = vld [vmem:[%s5008 + $0x39] sm:$0xff]
        %v5403 = vld [vmem:[%s5008 + $0x49] sm:$0xff]
        %v5404 = vld [vmem:[%s5008 + $0x51] sm:$0xff]
        %v5405 = vld [vmem:[%s5008 + $0x61] sm:$0xff]
        %v5406 = vld [vmem:[%s5008 + $0x69] sm:$0xff]
        %v5407 = vld [vmem:[%s5008 + $0x79] sm:$0xff]
        %v5408 = vld [vmem:[%s5008 + $0x81] sm:$0xff]
        %v5409 = vld [vmem:[%s5008 + $0x91] sm:$0xff]
        %v5410 = vld [vmem:[%s5008 + $0x99] sm:$0xff]
        %v5411 = vld [vmem:[%s5008 + $0xa9] sm:$0xff]
        %v5412 = vld [vmem:[%s5008 + $0xb1] sm:$0xff]
        %v5413 = vld [vmem:[%s5008 + $0xc1] sm:$0xff]
        %v5414 = vld [vmem:[%s5008 + $0xc9] sm:$0xff]
        %v5415 = vld [vmem:[%s5008 + $0xd9] sm:$0xff]
        %v5416 = vld [vmem:[%s5008 + $0xe1] sm:$0xff]
        %v5417 = vld [vmem:[%s5008 + $0xf1] sm:$0xff]
        %v5418 = vld [vmem:[%s5008 + $0xf9] sm:$0xff]
        %v5419 = vld [vmem:[%s5008 + $0x109] sm:$0xff]
        %v5420 = vld [vmem:[%s5008 + $0x111] sm:$0xff]
        %v5421 = vld [vmem:[%s5008 + $0x121] sm:$0xff]
        %v5422 = vld [vmem:[%s5008 + $0x129] sm:$0xff]
        %v5423 = vld [vmem:[%s5008 + $0x139] sm:$0xff]
        %v5424 = vld [vmem:[%s5008 + $0x141] sm:$0xff]
        %v5425 = vld [vmem:[%s5008 + $0x151] sm:$0xff]
        %v5426 = vld [vmem:[%s5008 + $0x159] sm:$0xff]
        %v5427 = vld [vmem:[%s5008 + $0x169] sm:$0xff]
        %v5428 = vld [vmem:[%s5008 + $0x171] sm:$0xff]
        %s5429 = scalar_lea.vmem %s8, 64
        %v5430 = vld [vmem:[%s5429] sm:$0xff]
        %v5431 = vld [vmem:[%s5429 + $0x8] sm:$0xff]
        %v5433 = vsel %vm3906, %v5397, 0
        %v5436 = vsel %vm3906, %v5398, 0
        %v5439 = vsel %vm3906, %v5399, 0
        %v5442 = vsel %vm3906, %v5400, 0
        %v5445 = vsel %vm3906, %v5401, 0
        %v5448 = vsel %vm3906, %v5402, 0
        %v5451 = vsel %vm3906, %v5403, 0
        %v5454 = vsel %vm3906, %v5404, 0
        %v5457 = vsel %vm3906, %v5405, 0
        %v5460 = vsel %vm3906, %v5406, 0
        %v5463 = vsel %vm3906, %v5407, 0
        %v5466 = vsel %vm3906, %v5408, 0
        %v5469 = vsel %vm3906, %v5409, 0
        %v5472 = vsel %vm3906, %v5410, 0
        %v5475 = vsel %vm3906, %v5411, 0
        %v5478 = vsel %vm3906, %v5412, 0
        %v5481 = vsel %vm3906, %v5413, 0
        %v5484 = vsel %vm3906, %v5414, 0
        %v5487 = vsel %vm3906, %v5415, 0
        %v5490 = vsel %vm3906, %v5416, 0
        %v5493 = vsel %vm3906, %v5417, 0
        %v5496 = vsel %vm3906, %v5418, 0
        %v5499 = vsel %vm3906, %v5419, 0
        %v5502 = vsel %vm3906, %v5420, 0
        %v5505 = vsel %vm3906, %v5421, 0
        %v5508 = vsel %vm3906, %v5422, 0
        %v5511 = vsel %vm3906, %v5423, 0
        %v5514 = vsel %vm3906, %v5424, 0
        %v5517 = vsel %vm3906, %v5425, 0
        %v5520 = vsel %vm3906, %v5426, 0
        %v5523 = vsel %vm3906, %v5427, 0
        %v5526 = vsel %vm3906, %v5428, 0
        %5528 = vmatprep.subr.mxu0 0.0
        %5529 = vmatpush1.msra.mxu0 %v5430
        %5530 = vmatprep.subr.mxu0 0.0
        %5531 = vmatpush1.msra.mxu0 %v5431
        %5532 = vmatprep.subr.mxu0 0.0
        %5533 = vmatpush1.msra.mxu0 0.0
        %5534 = vmatprep.subr.mxu0 0.0
        %5535 = vmatpush1.msra.mxu0 0.0
        %5536 = vmatprep.subr.mxu0 0.0
        %5537 = vmatpush1.msra.mxu0 0.0
        %5538 = vmatprep.subr.mxu0 0.0
        %5539 = vmatpush1.msra.mxu0 0.0
        %5540 = vmatprep.subr.mxu0 0.0
        %5541 = vmatpush1.msra.mxu0 0.0
        %5542 = vmatprep.subr.mxu0 0.0
        %5543 = vmatpush1.msra.mxu0 0.0
        %5544 = vmatprep.subr.mxu0 0.0
        %5545 = vmatpush1.msra.mxu0 0.0
        %5546 = vmatprep.subr.mxu0 0.0
        %5547 = vmatpush1.msra.mxu0 0.0
        %5548 = vmatprep.subr.mxu0 0.0
        %5549 = vmatpush1.msra.mxu0 0.0
        %5550 = vmatprep.subr.mxu0 0.0
        %5551 = vmatpush1.msra.mxu0 0.0
        %5552 = vmatprep.subr.mxu0 0.0
        %5553 = vmatpush1.msra.mxu0 0.0
        %5554 = vmatprep.subr.mxu0 0.0
        %5555 = vmatpush1.msra.mxu0 0.0
        %5556 = vmatprep.subr.mxu0 0.0
        %5557 = vmatpush1.msra.mxu0 0.0
        %5558 = vmatprep.subr.mxu0 0.0
        %5559 = vmatpush1.msra.mxu0 0.0
        %5560 = vmatprep.subr.mxu0 0.0
        %5561 = vmatpush1.msra.mxu0 0.0
        %5562 = vmatprep.subr.mxu0 0.0
        %5563 = vmatpush1.msra.mxu0 0.0
        %5564 = vmatprep.subr.mxu0 0.0
        %5565 = vmatpush1.msra.mxu0 0.0
        %5566 = vmatprep.subr.mxu0 0.0
        %5567 = vmatpush1.msra.mxu0 0.0
        %5568 = vmatprep.subr.mxu0 0.0
        %5569 = vmatpush1.msra.mxu0 0.0
        %5570 = vmatprep.subr.mxu0 0.0
        %5571 = vmatpush1.msra.mxu0 0.0
        %5572 = vmatprep.subr.mxu0 0.0
        %5573 = vmatpush1.msra.mxu0 0.0
        %5574 = vmatprep.subr.mxu0 0.0
        %5575 = vmatpush1.msra.mxu0 0.0
        %5576 = vmatprep.subr.mxu0 0.0
        %5577 = vmatpush1.msra.mxu0 0.0
        %5578 = vmatprep.subr.mxu0 0.0
        %5579 = vmatpush1.msra.mxu0 0.0
        %5580 = vmatprep.subr.mxu0 0.0
        %5581 = vmatpush1.msra.mxu0 0.0
        %5582 = vmatprep.subr.mxu0 0.0
        %5583 = vmatpush1.msra.mxu0 0.0
        %5584 = vmatprep.subr.mxu0 0.0
        %5585 = vmatpush1.msra.mxu0 0.0
        %5586 = vmatprep.subr.mxu0 0.0
        %5587 = vmatpush1.msra.mxu0 0.0
        %5588 = vmatprep.subr.mxu0 0.0
        %5589 = vmatpush1.msra.mxu0 0.0
        %5590 = vmatprep.subr.mxu0 0.0
        %5591 = vmatpush1.msra.mxu0 0.0
        %5592 = vmatprep.mubr.f32.mxu0 0.0
        %5593 = vmatmul.mubr.f32.gmra.mrb[0].mxu0 %v5433
        %v5594 = vpop.f32.mrb[0].mxu0
        %v5595 = vadd.f32 0.0, %v5594
        %v5596 = vpop.f32.mrb[0].mxu0
        %5597 = vmatprep.mubr.f32.mxu0 0.0
        %5598 = vmatmul.mubr.f32.gmra.mrb[0].mxu0 %v5436
        %v5599 = vpop.f32.mrb[0].mxu0
        %v5600 = vadd.f32 0.0, %v5599
        %v5601 = vpop.f32.mrb[0].mxu0
        %5602 = vmatprep.mubr.f32.mxu0 0.0
        %5603 = vmatmul.mubr.f32.gmra.mrb[0].mxu0 %v5439
        %v5604 = vpop.f32.mrb[0].mxu0
        %v5605 = vadd.f32 0.0, %v5604
        %v5606 = vpop.f32.mrb[0].mxu0
        %5607 = vmatprep.mubr.f32.mxu0 0.0
        %5608 = vmatmul.mubr.f32.gmra.mrb[0].mxu0 %v5442
        %v5609 = vpop.f32.mrb[0].mxu0
        %v5610 = vadd.f32 0.0, %v5609
        %v5611 = vpop.f32.mrb[0].mxu0
        %5612 = vmatprep.mubr.f32.mxu0 0.0
        %5613 = vmatmul.mubr.f32.gmra.mrb[0].mxu0 %v5445
        %v5614 = vpop.f32.mrb[0].mxu0
        %v5615 = vadd.f32 0.0, %v5614
        %v5616 = vpop.f32.mrb[0].mxu0
        %5617 = vmatprep.mubr.f32.mxu0 0.0
        %5618 = vmatmul.mubr.f32.gmra.mrb[0].mxu0 %v5448
        %v5619 = vpop.f32.mrb[0].mxu0
        %v5620 = vadd.f32 0.0, %v5619
        %v5621 = vpop.f32.mrb[0].mxu0
        %5622 = vmatprep.mubr.f32.mxu0 0.0
        %5623 = vmatmul.mubr.f32.gmra.mrb[0].mxu0 %v5451
        %v5624 = vpop.f32.mrb[0].mxu0
        %v5625 = vadd.f32 0.0, %v5624
        %v5626 = vpop.f32.mrb[0].mxu0
        %5627 = vmatprep.mubr.f32.mxu0 0.0
        %5628 = vmatmul.mubr.f32.gmra.mrb[0].mxu0 %v5454
        %v5629 = vpop.f32.mrb[0].mxu0
        %v5630 = vadd.f32 0.0, %v5629
        %v5631 = vpop.f32.mrb[0].mxu0
        %5632 = vmatprep.mubr.f32.mxu0 0.0
        %5633 = vmatmul.mubr.f32.gmra.mrb[0].mxu0 %v5457
        %v5634 = vpop.f32.mrb[0].mxu0
        %v5635 = vadd.f32 0.0, %v5634
        %v5636 = vpop.f32.mrb[0].mxu0
        %5637 = vmatprep.mubr.f32.mxu0 0.0
        %5638 = vmatmul.mubr.f32.gmra.mrb[0].mxu0 %v5460
        %v5639 = vpop.f32.mrb[0].mxu0
        %v5640 = vadd.f32 0.0, %v5639
        %v5641 = vpop.f32.mrb[0].mxu0
        %5642 = vmatprep.mubr.f32.mxu0 0.0
        %5643 = vmatmul.mubr.f32.gmra.mrb[0].mxu0 %v5463
        %v5644 = vpop.f32.mrb[0].mxu0
        %v5645 = vadd.f32 0.0, %v5644
        %v5646 = vpop.f32.mrb[0].mxu0
        %5647 = vmatprep.mubr.f32.mxu0 0.0
        %5648 = vmatmul.mubr.f32.gmra.mrb[0].mxu0 %v5466
        %v5649 = vpop.f32.mrb[0].mxu0
        %v5650 = vadd.f32 0.0, %v5649
        %v5651 = vpop.f32.mrb[0].mxu0
        %5652 = vmatprep.mubr.f32.mxu0 0.0
        %5653 = vmatmul.mubr.f32.gmra.mrb[0].mxu0 %v5469
        %v5654 = vpop.f32.mrb[0].mxu0
        %v5655 = vadd.f32 0.0, %v5654
        %v5656 = vpop.f32.mrb[0].mxu0
        %5657 = vmatprep.mubr.f32.mxu0 0.0
        %5658 = vmatmul.mubr.f32.gmra.mrb[0].mxu0 %v5472
        %v5659 = vpop.f32.mrb[0].mxu0
        %v5660 = vadd.f32 0.0, %v5659
        %v5661 = vpop.f32.mrb[0].mxu0
        %5662 = vmatprep.mubr.f32.mxu0 0.0
        %5663 = vmatmul.mubr.f32.gmra.mrb[0].mxu0 %v5475
        %v5664 = vpop.f32.mrb[0].mxu0
        %v5665 = vadd.f32 0.0, %v5664
        %v5666 = vpop.f32.mrb[0].mxu0
        %5667 = vmatprep.mubr.f32.mxu0 0.0
        %5668 = vmatmul.mubr.f32.gmra.mrb[0].mxu0 %v5478
        %v5669 = vpop.f32.mrb[0].mxu0
        %v5670 = vadd.f32 0.0, %v5669
        %v5671 = vpop.f32.mrb[0].mxu0
        %5672 = vmatprep.mubr.f32.mxu0 0.0
        %5673 = vmatmul.mubr.f32.gmra.mrb[0].mxu0 %v5481
        %v5674 = vpop.f32.mrb[0].mxu0
        %v5675 = vadd.f32 0.0, %v5674
        %v5676 = vpop.f32.mrb[0].mxu0
        %5677 = vmatprep.mubr.f32.mxu0 0.0
        %5678 = vmatmul.mubr.f32.gmra.mrb[0].mxu0 %v5484
        %v5679 = vpop.f32.mrb[0].mxu0
        %v5680 = vadd.f32 0.0, %v5679
        %v5681 = vpop.f32.mrb[0].mxu0
        %5682 = vmatprep.mubr.f32.mxu0 0.0
        %5683 = vmatmul.mubr.f32.gmra.mrb[0].mxu0 %v5487
        %v5684 = vpop.f32.mrb[0].mxu0
        %v5685 = vadd.f32 0.0, %v5684
        %v5686 = vpop.f32.mrb[0].mxu0
        %5687 = vmatprep.mubr.f32.mxu0 0.0
        %5688 = vmatmul.mubr.f32.gmra.mrb[0].mxu0 %v5490
        %v5689 = vpop.f32.mrb[0].mxu0
        %v5690 = vadd.f32 0.0, %v5689
        %v5691 = vpop.f32.mrb[0].mxu0
        %5692 = vmatprep.mubr.f32.mxu0 0.0
        %5693 = vmatmul.mubr.f32.gmra.mrb[0].mxu0 %v5493
        %v5694 = vpop.f32.mrb[0].mxu0
        %v5695 = vadd.f32 0.0, %v5694
        %v5696 = vpop.f32.mrb[0].mxu0
        %5697 = vmatprep.mubr.f32.mxu0 0.0
        %5698 = vmatmul.mubr.f32.gmra.mrb[0].mxu0 %v5496
        %v5699 = vpop.f32.mrb[0].mxu0
        %v5700 = vadd.f32 0.0, %v5699
        %v5701 = vpop.f32.mrb[0].mxu0
        %5702 = vmatprep.mubr.f32.mxu0 0.0
        %5703 = vmatmul.mubr.f32.gmra.mrb[0].mxu0 %v5499
        %v5704 = vpop.f32.mrb[0].mxu0
        %v5705 = vadd.f32 0.0, %v5704
        %v5706 = vpop.f32.mrb[0].mxu0
        %5707 = vmatprep.mubr.f32.mxu0 0.0
        %5708 = vmatmul.mubr.f32.gmra.mrb[0].mxu0 %v5502
        %v5709 = vpop.f32.mrb[0].mxu0
        %v5710 = vadd.f32 0.0, %v5709
        %v5711 = vpop.f32.mrb[0].mxu0
        %5712 = vmatprep.mubr.f32.mxu0 0.0
        %5713 = vmatmul.mubr.f32.gmra.mrb[0].mxu0 %v5505
        %v5714 = vpop.f32.mrb[0].mxu0
        %v5715 = vadd.f32 0.0, %v5714
        %v5716 = vpop.f32.mrb[0].mxu0
        %5717 = vmatprep.mubr.f32.mxu0 0.0
        %5718 = vmatmul.mubr.f32.gmra.mrb[0].mxu0 %v5508
        %v5719 = vpop.f32.mrb[0].mxu0
        %v5720 = vadd.f32 0.0, %v5719
        %v5721 = vpop.f32.mrb[0].mxu0
        %5722 = vmatprep.mubr.f32.mxu0 0.0
        %5723 = vmatmul.mubr.f32.gmra.mrb[0].mxu0 %v5511
        %v5724 = vpop.f32.mrb[0].mxu0
        %v5725 = vadd.f32 0.0, %v5724
        %v5726 = vpop.f32.mrb[0].mxu0
        %5727 = vmatprep.mubr.f32.mxu0 0.0
        %5728 = vmatmul.mubr.f32.gmra.mrb[0].mxu0 %v5514
        %v5729 = vpop.f32.mrb[0].mxu0
        %v5730 = vadd.f32 0.0, %v5729
        %v5731 = vpop.f32.mrb[0].mxu0
        %5732 = vmatprep.mubr.f32.mxu0 0.0
        %5733 = vmatmul.mubr.f32.gmra.mrb[0].mxu0 %v5517
        %v5734 = vpop.f32.mrb[0].mxu0
        %v5735 = vadd.f32 0.0, %v5734
        %v5736 = vpop.f32.mrb[0].mxu0
        %5737 = vmatprep.mubr.f32.mxu0 0.0
        %5738 = vmatmul.mubr.f32.gmra.mrb[0].mxu0 %v5520
        %v5739 = vpop.f32.mrb[0].mxu0
        %v5740 = vadd.f32 0.0, %v5739
        %v5741 = vpop.f32.mrb[0].mxu0
        %5742 = vmatprep.mubr.f32.mxu0 0.0
        %5743 = vmatmul.mubr.f32.gmra.mrb[0].mxu0 %v5523
        %v5744 = vpop.f32.mrb[0].mxu0
        %v5745 = vadd.f32 0.0, %v5744
        %v5746 = vpop.f32.mrb[0].mxu0
        %5747 = vmatprep.mubr.f32.mxu0 0.0
        %5748 = vmatmul.mubr.f32.gmra.mrb[0].mxu0 %v5526
        %v5749 = vpop.f32.mrb[0].mxu0
        %v5750 = vadd.f32 0.0, %v5749
        %v5751 = vpop.f32.mrb[0].mxu0
        %5752 = vdwg.mxu0
        %v5753 = vadd.f32 %v5365, %v5595
        %v5754 = vadd.f32 %v5366, %v5600
        %v5755 = vadd.f32 %v5367, %v5605
        %v5756 = vadd.f32 %v5368, %v5610
        %v5757 = vadd.f32 %v5369, %v5615
        %v5758 = vadd.f32 %v5370, %v5620
        %v5759 = vadd.f32 %v5371, %v5625
        %v5760 = vadd.f32 %v5372, %v5630
        %v5761 = vadd.f32 %v5373, %v5635
        %v5762 = vadd.f32 %v5374, %v5640
        %v5763 = vadd.f32 %v5375, %v5645
        %v5764 = vadd.f32 %v5376, %v5650
        %v5765 = vadd.f32 %v5377, %v5655
        %v5766 = vadd.f32 %v5378, %v5660
        %v5767 = vadd.f32 %v5379, %v5665
        %v5768 = vadd.f32 %v5380, %v5670
        %v5769 = vadd.f32 %v5381, %v5675
        %v5770 = vadd.f32 %v5382, %v5680
        %v5771 = vadd.f32 %v5383, %v5685
        %v5772 = vadd.f32 %v5384, %v5690
        %v5773 = vadd.f32 %v5385, %v5695
        %v5774 = vadd.f32 %v5386, %v5700
        %v5775 = vadd.f32 %v5387, %v5705
        %v5776 = vadd.f32 %v5388, %v5710
        %v5777 = vadd.f32 %v5389, %v5715
        %v5778 = vadd.f32 %v5390, %v5720
        %v5779 = vadd.f32 %v5391, %v5725
        %v5780 = vadd.f32 %v5392, %v5730
        %v5781 = vadd.f32 %v5393, %v5735
        %v5782 = vadd.f32 %v5394, %v5740
        %v5783 = vadd.f32 %v5395, %v5745
        %v5784 = vadd.f32 %v5396, %v5750
        %v5785 = vld [vmem:[%s5008 + $0x2] sm:$0xff]
        %v5786 = vld [vmem:[%s5008 + $0xa] sm:$0xff]
        %v5787 = vld [vmem:[%s5008 + $0x1a] sm:$0xff]
        %v5788 = vld [vmem:[%s5008 + $0x22] sm:$0xff]
        %v5789 = vld [vmem:[%s5008 + $0x32] sm:$0xff]
        %v5790 = vld [vmem:[%s5008 + $0x3a] sm:$0xff]
        %v5791 = vld [vmem:[%s5008 + $0x4a] sm:$0xff]
        %v5792 = vld [vmem:[%s5008 + $0x52] sm:$0xff]
        %v5793 = vld [vmem:[%s5008 + $0x62] sm:$0xff]
        %v5794 = vld [vmem:[%s5008 + $0x6a] sm:$0xff]
        %v5795 = vld [vmem:[%s5008 + $0x7a] sm:$0xff]
        %v5796 = vld [vmem:[%s5008 + $0x82] sm:$0xff]
        %v5797 = vld [vmem:[%s5008 + $0x92] sm:$0xff]
        %v5798 = vld [vmem:[%s5008 + $0x9a] sm:$0xff]
        %v5799 = vld [vmem:[%s5008 + $0xaa] sm:$0xff]
        %v5800 = vld [vmem:[%s5008 + $0xb2] sm:$0xff]
        %v5801 = vld [vmem:[%s5008 + $0xc2] sm:$0xff]
        %v5802 = vld [vmem:[%s5008 + $0xca] sm:$0xff]
        %v5803 = vld [vmem:[%s5008 + $0xda] sm:$0xff]
        %v5804 = vld [vmem:[%s5008 + $0xe2] sm:$0xff]
        %v5805 = vld [vmem:[%s5008 + $0xf2] sm:$0xff]
        %v5806 = vld [vmem:[%s5008 + $0xfa] sm:$0xff]
        %v5807 = vld [vmem:[%s5008 + $0x10a] sm:$0xff]
        %v5808 = vld [vmem:[%s5008 + $0x112] sm:$0xff]
        %v5809 = vld [vmem:[%s5008 + $0x122] sm:$0xff]
        %v5810 = vld [vmem:[%s5008 + $0x12a] sm:$0xff]
        %v5811 = vld [vmem:[%s5008 + $0x13a] sm:$0xff]
        %v5812 = vld [vmem:[%s5008 + $0x142] sm:$0xff]
        %v5813 = vld [vmem:[%s5008 + $0x152] sm:$0xff]
        %v5814 = vld [vmem:[%s5008 + $0x15a] sm:$0xff]
        %v5815 = vld [vmem:[%s5008 + $0x16a] sm:$0xff]
        %v5816 = vld [vmem:[%s5008 + $0x172] sm:$0xff]
        %s5817 = scalar_lea.vmem %s8, 80
        %v5818 = vld [vmem:[%s5817] sm:$0xff]
        %v5819 = vld [vmem:[%s5817 + $0x8] sm:$0xff]
        %v5821 = vsel %vm3906, %v5785, 0
        %v5824 = vsel %vm3906, %v5786, 0
        %v5827 = vsel %vm3906, %v5787, 0
        %v5830 = vsel %vm3906, %v5788, 0
        %v5833 = vsel %vm3906, %v5789, 0
        %v5836 = vsel %vm3906, %v5790, 0
        %v5839 = vsel %vm3906, %v5791, 0
        %v5842 = vsel %vm3906, %v5792, 0
        %v5845 = vsel %vm3906, %v5793, 0
        %v5848 = vsel %vm3906, %v5794, 0
        %v5851 = vsel %vm3906, %v5795, 0
        %v5854 = vsel %vm3906, %v5796, 0
        %v5857 = vsel %vm3906, %v5797, 0
        %v5860 = vsel %vm3906, %v5798, 0
        %v5863 = vsel %vm3906, %v5799, 0
        %v5866 = vsel %vm3906, %v5800, 0
        %v5869 = vsel %vm3906, %v5801, 0
        %v5872 = vsel %vm3906, %v5802, 0
        %v5875 = vsel %vm3906, %v5803, 0
        %v5878 = vsel %vm3906, %v5804, 0
        %v5881 = vsel %vm3906, %v5805, 0
        %v5884 = vsel %vm3906, %v5806, 0
        %v5887 = vsel %vm3906, %v5807, 0
        %v5890 = vsel %vm3906, %v5808, 0
        %v5893 = vsel %vm3906, %v5809, 0
        %v5896 = vsel %vm3906, %v5810, 0
        %v5899 = vsel %vm3906, %v5811, 0
        %v5902 = vsel %vm3906, %v5812, 0
        %v5905 = vsel %vm3906, %v5813, 0
        %v5908 = vsel %vm3906, %v5814, 0
        %v5911 = vsel %vm3906, %v5815, 0
        %v5914 = vsel %vm3906, %v5816, 0
        %5916 = vmatprep.subr.mxu0 0.0
        %5917 = vmatpush1.msra.mxu0 %v5818
        %5918 = vmatprep.subr.mxu0 0.0
        %5919 = vmatpush1.msra.mxu0 %v5819
        %5920 = vmatprep.subr.mxu0 0.0
        %5921 = vmatpush1.msra.mxu0 0.0
        %5922 = vmatprep.subr.mxu0 0.0
        %5923 = vmatpush1.msra.mxu0 0.0
        %5924 = vmatprep.subr.mxu0 0.0
        %5925 = vmatpush1.msra.mxu0 0.0
        %5926 = vmatprep.subr.mxu0 0.0
        %5927 = vmatpush1.msra.mxu0 0.0
        %5928 = vmatprep.subr.mxu0 0.0
        %5929 = vmatpush1.msra.mxu0 0.0
        %5930 = vmatprep.subr.mxu0 0.0
        %5931 = vmatpush1.msra.mxu0 0.0
        %5932 = vmatprep.subr.mxu0 0.0
        %5933 = vmatpush1.msra.mxu0 0.0
        %5934 = vmatprep.subr.mxu0 0.0
        %5935 = vmatpush1.msra.mxu0 0.0
        %5936 = vmatprep.subr.mxu0 0.0
        %5937 = vmatpush1.msra.mxu0 0.0
        %5938 = vmatprep.subr.mxu0 0.0
        %5939 = vmatpush1.msra.mxu0 0.0
        %5940 = vmatprep.subr.mxu0 0.0
        %5941 = vmatpush1.msra.mxu0 0.0
        %5942 = vmatprep.subr.mxu0 0.0
        %5943 = vmatpush1.msra.mxu0 0.0
        %5944 = vmatprep.subr.mxu0 0.0
        %5945 = vmatpush1.msra.mxu0 0.0
        %5946 = vmatprep.subr.mxu0 0.0
        %5947 = vmatpush1.msra.mxu0 0.0
        %5948 = vmatprep.subr.mxu0 0.0
        %5949 = vmatpush1.msra.mxu0 0.0
        %5950 = vmatprep.subr.mxu0 0.0
        %5951 = vmatpush1.msra.mxu0 0.0
        %5952 = vmatprep.subr.mxu0 0.0
        %5953 = vmatpush1.msra.mxu0 0.0
        %5954 = vmatprep.subr.mxu0 0.0
        %5955 = vmatpush1.msra.mxu0 0.0
        %5956 = vmatprep.subr.mxu0 0.0
        %5957 = vmatpush1.msra.mxu0 0.0
        %5958 = vmatprep.subr.mxu0 0.0
        %5959 = vmatpush1.msra.mxu0 0.0
        %5960 = vmatprep.subr.mxu0 0.0
        %5961 = vmatpush1.msra.mxu0 0.0
        %5962 = vmatprep.subr.mxu0 0.0
        %5963 = vmatpush1.msra.mxu0 0.0
        %5964 = vmatprep.subr.mxu0 0.0
        %5965 = vmatpush1.msra.mxu0 0.0
        %5966 = vmatprep.subr.mxu0 0.0
        %5967 = vmatpush1.msra.mxu0 0.0
        %5968 = vmatprep.subr.mxu0 0.0
        %5969 = vmatpush1.msra.mxu0 0.0
        %5970 = vmatprep.subr.mxu0 0.0
        %5971 = vmatpush1.msra.mxu0 0.0
        %5972 = vmatprep.subr.mxu0 0.0
        %5973 = vmatpush1.msra.mxu0 0.0
        %5974 = vmatprep.subr.mxu0 0.0
        %5975 = vmatpush1.msra.mxu0 0.0
        %5976 = vmatprep.subr.mxu0 0.0
        %5977 = vmatpush1.msra.mxu0 0.0
        %5978 = vmatprep.subr.mxu0 0.0
        %5979 = vmatpush1.msra.mxu0 0.0
        %5980 = vmatprep.mubr.f32.mxu0 0.0
        %5981 = vmatmul.mubr.f32.gmra.mrb[0].mxu0 %v5821
        %v5982 = vpop.f32.mrb[0].mxu0
        %v5983 = vadd.f32 0.0, %v5982
        %v5984 = vpop.f32.mrb[0].mxu0
        %5985 = vmatprep.mubr.f32.mxu0 0.0
        %5986 = vmatmul.mubr.f32.gmra.mrb[0].mxu0 %v5824
        %v5987 = vpop.f32.mrb[0].mxu0
        %v5988 = vadd.f32 0.0, %v5987
        %v5989 = vpop.f32.mrb[0].mxu0
        %5990 = vmatprep.mubr.f32.mxu0 0.0
        %5991 = vmatmul.mubr.f32.gmra.mrb[0].mxu0 %v5827
        %v5992 = vpop.f32.mrb[0].mxu0
        %v5993 = vadd.f32 0.0, %v5992
        %v5994 = vpop.f32.mrb[0].mxu0
        %5995 = vmatprep.mubr.f32.mxu0 0.0
        %5996 = vmatmul.mubr.f32.gmra.mrb[0].mxu0 %v5830
        %v5997 = vpop.f32.mrb[0].mxu0
        %v5998 = vadd.f32 0.0, %v5997
        %v5999 = vpop.f32.mrb[0].mxu0
        %6000 = vmatprep.mubr.f32.mxu0 0.0
        %6001 = vmatmul.mubr.f32.gmra.mrb[0].mxu0 %v5833
        %v6002 = vpop.f32.mrb[0].mxu0
        %v6003 = vadd.f32 0.0, %v6002
        %v6004 = vpop.f32.mrb[0].mxu0
        %6005 = vmatprep.mubr.f32.mxu0 0.0
        %6006 = vmatmul.mubr.f32.gmra.mrb[0].mxu0 %v5836
        %v6007 = vpop.f32.mrb[0].mxu0
        %v6008 = vadd.f32 0.0, %v6007
        %v6009 = vpop.f32.mrb[0].mxu0
        %6010 = vmatprep.mubr.f32.mxu0 0.0
        %6011 = vmatmul.mubr.f32.gmra.mrb[0].mxu0 %v5839
        %v6012 = vpop.f32.mrb[0].mxu0
        %v6013 = vadd.f32 0.0, %v6012
        %v6014 = vpop.f32.mrb[0].mxu0
        %6015 = vmatprep.mubr.f32.mxu0 0.0
        %6016 = vmatmul.mubr.f32.gmra.mrb[0].mxu0 %v5842
        %v6017 = vpop.f32.mrb[0].mxu0
        %v6018 = vadd.f32 0.0, %v6017
        %v6019 = vpop.f32.mrb[0].mxu0
        %6020 = vmatprep.mubr.f32.mxu0 0.0
        %6021 = vmatmul.mubr.f32.gmra.mrb[0].mxu0 %v5845
        %v6022 = vpop.f32.mrb[0].mxu0
        %v6023 = vadd.f32 0.0, %v6022
        %v6024 = vpop.f32.mrb[0].mxu0
        %6025 = vmatprep.mubr.f32.mxu0 0.0
        %6026 = vmatmul.mubr.f32.gmra.mrb[0].mxu0 %v5848
        %v6027 = vpop.f32.mrb[0].mxu0
        %v6028 = vadd.f32 0.0, %v6027
        %v6029 = vpop.f32.mrb[0].mxu0
        %6030 = vmatprep.mubr.f32.mxu0 0.0
        %6031 = vmatmul.mubr.f32.gmra.mrb[0].mxu0 %v5851
        %v6032 = vpop.f32.mrb[0].mxu0
        %v6033 = vadd.f32 0.0, %v6032
        %v6034 = vpop.f32.mrb[0].mxu0
        %6035 = vmatprep.mubr.f32.mxu0 0.0
        %6036 = vmatmul.mubr.f32.gmra.mrb[0].mxu0 %v5854
        %v6037 = vpop.f32.mrb[0].mxu0
        %v6038 = vadd.f32 0.0, %v6037
        %v6039 = vpop.f32.mrb[0].mxu0
        %6040 = vmatprep.mubr.f32.mxu0 0.0
        %6041 = vmatmul.mubr.f32.gmra.mrb[0].mxu0 %v5857
        %v6042 = vpop.f32.mrb[0].mxu0
        %v6043 = vadd.f32 0.0, %v6042
        %v6044 = vpop.f32.mrb[0].mxu0
        %6045 = vmatprep.mubr.f32.mxu0 0.0
        %6046 = vmatmul.mubr.f32.gmra.mrb[0].mxu0 %v5860
        %v6047 = vpop.f32.mrb[0].mxu0
        %v6048 = vadd.f32 0.0, %v6047
        %v6049 = vpop.f32.mrb[0].mxu0
        %6050 = vmatprep.mubr.f32.mxu0 0.0
        %6051 = vmatmul.mubr.f32.gmra.mrb[0].mxu0 %v5863
        %v6052 = vpop.f32.mrb[0].mxu0
        %v6053 = vadd.f32 0.0, %v6052
        %v6054 = vpop.f32.mrb[0].mxu0
        %6055 = vmatprep.mubr.f32.mxu0 0.0
        %6056 = vmatmul.mubr.f32.gmra.mrb[0].mxu0 %v5866
        %v6057 = vpop.f32.mrb[0].mxu0
        %v6058 = vadd.f32 0.0, %v6057
        %v6059 = vpop.f32.mrb[0].mxu0
        %6060 = vmatprep.mubr.f32.mxu0 0.0
        %6061 = vmatmul.mubr.f32.gmra.mrb[0].mxu0 %v5869
        %v6062 = vpop.f32.mrb[0].mxu0
        %v6063 = vadd.f32 0.0, %v6062
        %v6064 = vpop.f32.mrb[0].mxu0
        %6065 = vmatprep.mubr.f32.mxu0 0.0
        %6066 = vmatmul.mubr.f32.gmra.mrb[0].mxu0 %v5872
        %v6067 = vpop.f32.mrb[0].mxu0
        %v6068 = vadd.f32 0.0, %v6067
        %v6069 = vpop.f32.mrb[0].mxu0
        %6070 = vmatprep.mubr.f32.mxu0 0.0
        %6071 = vmatmul.mubr.f32.gmra.mrb[0].mxu0 %v5875
        %v6072 = vpop.f32.mrb[0].mxu0
        %v6073 = vadd.f32 0.0, %v6072
        %v6074 = vpop.f32.mrb[0].mxu0
        %6075 = vmatprep.mubr.f32.mxu0 0.0
        %6076 = vmatmul.mubr.f32.gmra.mrb[0].mxu0 %v5878
        %v6077 = vpop.f32.mrb[0].mxu0
        %v6078 = vadd.f32 0.0, %v6077
        %v6079 = vpop.f32.mrb[0].mxu0
        %6080 = vmatprep.mubr.f32.mxu0 0.0
        %6081 = vmatmul.mubr.f32.gmra.mrb[0].mxu0 %v5881
        %v6082 = vpop.f32.mrb[0].mxu0
        %v6083 = vadd.f32 0.0, %v6082
        %v6084 = vpop.f32.mrb[0].mxu0
        %6085 = vmatprep.mubr.f32.mxu0 0.0
        %6086 = vmatmul.mubr.f32.gmra.mrb[0].mxu0 %v5884
        %v6087 = vpop.f32.mrb[0].mxu0
        %v6088 = vadd.f32 0.0, %v6087
        %v6089 = vpop.f32.mrb[0].mxu0
        %6090 = vmatprep.mubr.f32.mxu0 0.0
        %6091 = vmatmul.mubr.f32.gmra.mrb[0].mxu0 %v5887
        %v6092 = vpop.f32.mrb[0].mxu0
        %v6093 = vadd.f32 0.0, %v6092
        %v6094 = vpop.f32.mrb[0].mxu0
        %6095 = vmatprep.mubr.f32.mxu0 0.0
        %6096 = vmatmul.mubr.f32.gmra.mrb[0].mxu0 %v5890
        %v6097 = vpop.f32.mrb[0].mxu0
        %v6098 = vadd.f32 0.0, %v6097
        %v6099 = vpop.f32.mrb[0].mxu0
        %6100 = vmatprep.mubr.f32.mxu0 0.0
        %6101 = vmatmul.mubr.f32.gmra.mrb[0].mxu0 %v5893
        %v6102 = vpop.f32.mrb[0].mxu0
        %v6103 = vadd.f32 0.0, %v6102
        %v6104 = vpop.f32.mrb[0].mxu0
        %6105 = vmatprep.mubr.f32.mxu0 0.0
        %6106 = vmatmul.mubr.f32.gmra.mrb[0].mxu0 %v5896
        %v6107 = vpop.f32.mrb[0].mxu0
        %v6108 = vadd.f32 0.0, %v6107
        %v6109 = vpop.f32.mrb[0].mxu0
        %6110 = vmatprep.mubr.f32.mxu0 0.0
        %6111 = vmatmul.mubr.f32.gmra.mrb[0].mxu0 %v5899
        %v6112 = vpop.f32.mrb[0].mxu0
        %v6113 = vadd.f32 0.0, %v6112
        %v6114 = vpop.f32.mrb[0].mxu0
        %6115 = vmatprep.mubr.f32.mxu0 0.0
        %6116 = vmatmul.mubr.f32.gmra.mrb[0].mxu0 %v5902
        %v6117 = vpop.f32.mrb[0].mxu0
        %v6118 = vadd.f32 0.0, %v6117
        %v6119 = vpop.f32.mrb[0].mxu0
        %6120 = vmatprep.mubr.f32.mxu0 0.0
        %6121 = vmatmul.mubr.f32.gmra.mrb[0].mxu0 %v5905
        %v6122 = vpop.f32.mrb[0].mxu0
        %v6123 = vadd.f32 0.0, %v6122
        %v6124 = vpop.f32.mrb[0].mxu0
        %6125 = vmatprep.mubr.f32.mxu0 0.0
        %6126 = vmatmul.mubr.f32.gmra.mrb[0].mxu0 %v5908
        %v6127 = vpop.f32.mrb[0].mxu0
        %v6128 = vadd.f32 0.0, %v6127
        %v6129 = vpop.f32.mrb[0].mxu0
        %6130 = vmatprep.mubr.f32.mxu0 0.0
        %6131 = vmatmul.mubr.f32.gmra.mrb[0].mxu0 %v5911
        %v6132 = vpop.f32.mrb[0].mxu0
        %v6133 = vadd.f32 0.0, %v6132
        %v6134 = vpop.f32.mrb[0].mxu0
        %6135 = vmatprep.mubr.f32.mxu0 0.0
        %6136 = vmatmul.mubr.f32.gmra.mrb[0].mxu0 %v5914
        %v6137 = vpop.f32.mrb[0].mxu0
        %v6138 = vadd.f32 0.0, %v6137
        %v6139 = vpop.f32.mrb[0].mxu0
        %6140 = vdwg.mxu0
        %v6141 = vadd.f32 %v5753, %v5983
        %v6142 = vadd.f32 %v5754, %v5988
        %v6143 = vadd.f32 %v5755, %v5993
        %v6144 = vadd.f32 %v5756, %v5998
        %v6145 = vadd.f32 %v5757, %v6003
        %v6146 = vadd.f32 %v5758, %v6008
        %v6147 = vadd.f32 %v5759, %v6013
        %v6148 = vadd.f32 %v5760, %v6018
        %v6149 = vadd.f32 %v5761, %v6023
        %v6150 = vadd.f32 %v5762, %v6028
        %v6151 = vadd.f32 %v5763, %v6033
        %v6152 = vadd.f32 %v5764, %v6038
        %v6153 = vadd.f32 %v5765, %v6043
        %v6154 = vadd.f32 %v5766, %v6048
        %v6155 = vadd.f32 %v5767, %v6053
        %v6156 = vadd.f32 %v5768, %v6058
        %v6157 = vadd.f32 %v5769, %v6063
        %v6158 = vadd.f32 %v5770, %v6068
        %v6159 = vadd.f32 %v5771, %v6073
        %v6160 = vadd.f32 %v5772, %v6078
        %v6161 = vadd.f32 %v5773, %v6083
        %v6162 = vadd.f32 %v5774, %v6088
        %v6163 = vadd.f32 %v5775, %v6093
        %v6164 = vadd.f32 %v5776, %v6098
        %v6165 = vadd.f32 %v5777, %v6103
        %v6166 = vadd.f32 %v5778, %v6108
        %v6167 = vadd.f32 %v5779, %v6113
        %v6168 = vadd.f32 %v5780, %v6118
        %v6169 = vadd.f32 %v5781, %v6123
        %v6170 = vadd.f32 %v5782, %v6128
        %v6171 = vadd.f32 %v5783, %v6133
        %v6172 = vadd.f32 %v5784, %v6138
        %s6173 = scalar_lea.vmem [#allocation2], 48
        %v6174 = vld [vmem:[%s6173] sm:$0xff]
        %v6175 = vld [vmem:[%s6173 + $0x8] sm:$0xff]
        %v6176 = vld [vmem:[%s6173 + $0x18] sm:$0xff]
        %v6177 = vld [vmem:[%s6173 + $0x20] sm:$0xff]
        %v6178 = vld [vmem:[%s6173 + $0x30] sm:$0xff]
        %v6179 = vld [vmem:[%s6173 + $0x38] sm:$0xff]
        %v6180 = vld [vmem:[%s6173 + $0x48] sm:$0xff]
        %v6181 = vld [vmem:[%s6173 + $0x50] sm:$0xff]
        %v6182 = vld [vmem:[%s6173 + $0x60] sm:$0xff]
        %v6183 = vld [vmem:[%s6173 + $0x68] sm:$0xff]
        %v6184 = vld [vmem:[%s6173 + $0x78] sm:$0xff]
        %v6185 = vld [vmem:[%s6173 + $0x80] sm:$0xff]
        %v6186 = vld [vmem:[%s6173 + $0x90] sm:$0xff]
        %v6187 = vld [vmem:[%s6173 + $0x98] sm:$0xff]
        %v6188 = vld [vmem:[%s6173 + $0xa8] sm:$0xff]
        %v6189 = vld [vmem:[%s6173 + $0xb0] sm:$0xff]
        %v6190 = vld [vmem:[%s6173 + $0xc0] sm:$0xff]
        %v6191 = vld [vmem:[%s6173 + $0xc8] sm:$0xff]
        %v6192 = vld [vmem:[%s6173 + $0xd8] sm:$0xff]
        %v6193 = vld [vmem:[%s6173 + $0xe0] sm:$0xff]
        %v6194 = vld [vmem:[%s6173 + $0xf0] sm:$0xff]
        %v6195 = vld [vmem:[%s6173 + $0xf8] sm:$0xff]
        %v6196 = vld [vmem:[%s6173 + $0x108] sm:$0xff]
        %v6197 = vld [vmem:[%s6173 + $0x110] sm:$0xff]
        %v6198 = vld [vmem:[%s6173 + $0x120] sm:$0xff]
        %v6199 = vld [vmem:[%s6173 + $0x128] sm:$0xff]
        %v6200 = vld [vmem:[%s6173 + $0x138] sm:$0xff]
        %v6201 = vld [vmem:[%s6173 + $0x140] sm:$0xff]
        %v6202 = vld [vmem:[%s6173 + $0x150] sm:$0xff]
        %v6203 = vld [vmem:[%s6173 + $0x158] sm:$0xff]
        %v6204 = vld [vmem:[%s6173 + $0x168] sm:$0xff]
        %v6205 = vld [vmem:[%s6173 + $0x170] sm:$0xff]
        %s6206 = scalar_lea.vmem %s8, 96
        %v6207 = vld [vmem:[%s6206] sm:$0xff]
        %v6208 = vld [vmem:[%s6206 + $0x8] sm:$0xff]
        %v6210 = vsel %vm3906, %v6174, 0
        %v6213 = vsel %vm3906, %v6175, 0
        %v6216 = vsel %vm3906, %v6176, 0
        %v6219 = vsel %vm3906, %v6177, 0
        %v6222 = vsel %vm3906, %v6178, 0
        %v6225 = vsel %vm3906, %v6179, 0
        %v6228 = vsel %vm3906, %v6180, 0
        %v6231 = vsel %vm3906, %v6181, 0
        %v6234 = vsel %vm3906, %v6182, 0
        %v6237 = vsel %vm3906, %v6183, 0
        %v6240 = vsel %vm3906, %v6184, 0
        %v6243 = vsel %vm3906, %v6185, 0
        %v6246 = vsel %vm3906, %v6186, 0
        %v6249 = vsel %vm3906, %v6187, 0
        %v6252 = vsel %vm3906, %v6188, 0
        %v6255 = vsel %vm3906, %v6189, 0
        %v6258 = vsel %vm3906, %v6190, 0
        %v6261 = vsel %vm3906, %v6191, 0
        %v6264 = vsel %vm3906, %v6192, 0
        %v6267 = vsel %vm3906, %v6193, 0
        %v6270 = vsel %vm3906, %v6194, 0
        %v6273 = vsel %vm3906, %v6195, 0
        %v6276 = vsel %vm3906, %v6196, 0
        %v6279 = vsel %vm3906, %v6197, 0
        %v6282 = vsel %vm3906, %v6198, 0
        %v6285 = vsel %vm3906, %v6199, 0
        %v6288 = vsel %vm3906, %v6200, 0
        %v6291 = vsel %vm3906, %v6201, 0
        %v6294 = vsel %vm3906, %v6202, 0
        %v6297 = vsel %vm3906, %v6203, 0
        %v6300 = vsel %vm3906, %v6204, 0
        %v6303 = vsel %vm3906, %v6205, 0
        %6305 = vmatprep.subr.mxu0 0.0
        %6306 = vmatpush1.msra.mxu0 %v6207
        %6307 = vmatprep.subr.mxu0 0.0
        %6308 = vmatpush1.msra.mxu0 %v6208
        %6309 = vmatprep.subr.mxu0 0.0
        %6310 = vmatpush1.msra.mxu0 0.0
        %6311 = vmatprep.subr.mxu0 0.0
        %6312 = vmatpush1.msra.mxu0 0.0
        %6313 = vmatprep.subr.mxu0 0.0
        %6314 = vmatpush1.msra.mxu0 0.0
        %6315 = vmatprep.subr.mxu0 0.0
        %6316 = vmatpush1.msra.mxu0 0.0
        %6317 = vmatprep.subr.mxu0 0.0
        %6318 = vmatpush1.msra.mxu0 0.0
        %6319 = vmatprep.subr.mxu0 0.0
        %6320 = vmatpush1.msra.mxu0 0.0
        %6321 = vmatprep.subr.mxu0 0.0
        %6322 = vmatpush1.msra.mxu0 0.0
        %6323 = vmatprep.subr.mxu0 0.0
        %6324 = vmatpush1.msra.mxu0 0.0
        %6325 = vmatprep.subr.mxu0 0.0
        %6326 = vmatpush1.msra.mxu0 0.0
        %6327 = vmatprep.subr.mxu0 0.0
        %6328 = vmatpush1.msra.mxu0 0.0
        %6329 = vmatprep.subr.mxu0 0.0
        %6330 = vmatpush1.msra.mxu0 0.0
        %6331 = vmatprep.subr.mxu0 0.0
        %6332 = vmatpush1.msra.mxu0 0.0
        %6333 = vmatprep.subr.mxu0 0.0
        %6334 = vmatpush1.msra.mxu0 0.0
        %6335 = vmatprep.subr.mxu0 0.0
        %6336 = vmatpush1.msra.mxu0 0.0
        %6337 = vmatprep.subr.mxu0 0.0
        %6338 = vmatpush1.msra.mxu0 0.0
        %6339 = vmatprep.subr.mxu0 0.0
        %6340 = vmatpush1.msra.mxu0 0.0
        %6341 = vmatprep.subr.mxu0 0.0
        %6342 = vmatpush1.msra.mxu0 0.0
        %6343 = vmatprep.subr.mxu0 0.0
        %6344 = vmatpush1.msra.mxu0 0.0
        %6345 = vmatprep.subr.mxu0 0.0
        %6346 = vmatpush1.msra.mxu0 0.0
        %6347 = vmatprep.subr.mxu0 0.0
        %6348 = vmatpush1.msra.mxu0 0.0
        %6349 = vmatprep.subr.mxu0 0.0
        %6350 = vmatpush1.msra.mxu0 0.0
        %6351 = vmatprep.subr.mxu0 0.0
        %6352 = vmatpush1.msra.mxu0 0.0
        %6353 = vmatprep.subr.mxu0 0.0
        %6354 = vmatpush1.msra.mxu0 0.0
        %6355 = vmatprep.subr.mxu0 0.0
        %6356 = vmatpush1.msra.mxu0 0.0
        %6357 = vmatprep.subr.mxu0 0.0
        %6358 = vmatpush1.msra.mxu0 0.0
        %6359 = vmatprep.subr.mxu0 0.0
        %6360 = vmatpush1.msra.mxu0 0.0
        %6361 = vmatprep.subr.mxu0 0.0
        %6362 = vmatpush1.msra.mxu0 0.0
        %6363 = vmatprep.subr.mxu0 0.0
        %6364 = vmatpush1.msra.mxu0 0.0
        %6365 = vmatprep.subr.mxu0 0.0
        %6366 = vmatpush1.msra.mxu0 0.0
        %6367 = vmatprep.subr.mxu0 0.0
        %6368 = vmatpush1.msra.mxu0 0.0
        %6369 = vmatprep.mubr.f32.mxu0 0.0
        %6370 = vmatmul.mubr.f32.gmra.mrb[0].mxu0 %v6210
        %v6371 = vpop.f32.mrb[0].mxu0
        %v6372 = vadd.f32 0.0, %v6371
        %v6373 = vpop.f32.mrb[0].mxu0
        %6374 = vmatprep.mubr.f32.mxu0 0.0
        %6375 = vmatmul.mubr.f32.gmra.mrb[0].mxu0 %v6213
        %v6376 = vpop.f32.mrb[0].mxu0
        %v6377 = vadd.f32 0.0, %v6376
        %v6378 = vpop.f32.mrb[0].mxu0
        %6379 = vmatprep.mubr.f32.mxu0 0.0
        %6380 = vmatmul.mubr.f32.gmra.mrb[0].mxu0 %v6216
        %v6381 = vpop.f32.mrb[0].mxu0
        %v6382 = vadd.f32 0.0, %v6381
        %v6383 = vpop.f32.mrb[0].mxu0
        %6384 = vmatprep.mubr.f32.mxu0 0.0
        %6385 = vmatmul.mubr.f32.gmra.mrb[0].mxu0 %v6219
        %v6386 = vpop.f32.mrb[0].mxu0
        %v6387 = vadd.f32 0.0, %v6386
        %v6388 = vpop.f32.mrb[0].mxu0
        %6389 = vmatprep.mubr.f32.mxu0 0.0
        %6390 = vmatmul.mubr.f32.gmra.mrb[0].mxu0 %v6222
        %v6391 = vpop.f32.mrb[0].mxu0
        %v6392 = vadd.f32 0.0, %v6391
        %v6393 = vpop.f32.mrb[0].mxu0
        %6394 = vmatprep.mubr.f32.mxu0 0.0
        %6395 = vmatmul.mubr.f32.gmra.mrb[0].mxu0 %v6225
        %v6396 = vpop.f32.mrb[0].mxu0
        %v6397 = vadd.f32 0.0, %v6396
        %v6398 = vpop.f32.mrb[0].mxu0
        %6399 = vmatprep.mubr.f32.mxu0 0.0
        %6400 = vmatmul.mubr.f32.gmra.mrb[0].mxu0 %v6228
        %v6401 = vpop.f32.mrb[0].mxu0
        %v6402 = vadd.f32 0.0, %v6401
        %v6403 = vpop.f32.mrb[0].mxu0
        %6404 = vmatprep.mubr.f32.mxu0 0.0
        %6405 = vmatmul.mubr.f32.gmra.mrb[0].mxu0 %v6231
        %v6406 = vpop.f32.mrb[0].mxu0
        %v6407 = vadd.f32 0.0, %v6406
        %v6408 = vpop.f32.mrb[0].mxu0
        %6409 = vmatprep.mubr.f32.mxu0 0.0
        %6410 = vmatmul.mubr.f32.gmra.mrb[0].mxu0 %v6234
        %v6411 = vpop.f32.mrb[0].mxu0
        %v6412 = vadd.f32 0.0, %v6411
        %v6413 = vpop.f32.mrb[0].mxu0
        %6414 = vmatprep.mubr.f32.mxu0 0.0
        %6415 = vmatmul.mubr.f32.gmra.mrb[0].mxu0 %v6237
        %v6416 = vpop.f32.mrb[0].mxu0
        %v6417 = vadd.f32 0.0, %v6416
        %v6418 = vpop.f32.mrb[0].mxu0
        %6419 = vmatprep.mubr.f32.mxu0 0.0
        %6420 = vmatmul.mubr.f32.gmra.mrb[0].mxu0 %v6240
        %v6421 = vpop.f32.mrb[0].mxu0
        %v6422 = vadd.f32 0.0, %v6421
        %v6423 = vpop.f32.mrb[0].mxu0
        %6424 = vmatprep.mubr.f32.mxu0 0.0
        %6425 = vmatmul.mubr.f32.gmra.mrb[0].mxu0 %v6243
        %v6426 = vpop.f32.mrb[0].mxu0
        %v6427 = vadd.f32 0.0, %v6426
        %v6428 = vpop.f32.mrb[0].mxu0
        %6429 = vmatprep.mubr.f32.mxu0 0.0
        %6430 = vmatmul.mubr.f32.gmra.mrb[0].mxu0 %v6246
        %v6431 = vpop.f32.mrb[0].mxu0
        %v6432 = vadd.f32 0.0, %v6431
        %v6433 = vpop.f32.mrb[0].mxu0
        %6434 = vmatprep.mubr.f32.mxu0 0.0
        %6435 = vmatmul.mubr.f32.gmra.mrb[0].mxu0 %v6249
        %v6436 = vpop.f32.mrb[0].mxu0
        %v6437 = vadd.f32 0.0, %v6436
        %v6438 = vpop.f32.mrb[0].mxu0
        %6439 = vmatprep.mubr.f32.mxu0 0.0
        %6440 = vmatmul.mubr.f32.gmra.mrb[0].mxu0 %v6252
        %v6441 = vpop.f32.mrb[0].mxu0
        %v6442 = vadd.f32 0.0, %v6441
        %v6443 = vpop.f32.mrb[0].mxu0
        %6444 = vmatprep.mubr.f32.mxu0 0.0
        %6445 = vmatmul.mubr.f32.gmra.mrb[0].mxu0 %v6255
        %v6446 = vpop.f32.mrb[0].mxu0
        %v6447 = vadd.f32 0.0, %v6446
        %v6448 = vpop.f32.mrb[0].mxu0
        %6449 = vmatprep.mubr.f32.mxu0 0.0
        %6450 = vmatmul.mubr.f32.gmra.mrb[0].mxu0 %v6258
        %v6451 = vpop.f32.mrb[0].mxu0
        %v6452 = vadd.f32 0.0, %v6451
        %v6453 = vpop.f32.mrb[0].mxu0
        %6454 = vmatprep.mubr.f32.mxu0 0.0
        %6455 = vmatmul.mubr.f32.gmra.mrb[0].mxu0 %v6261
        %v6456 = vpop.f32.mrb[0].mxu0
        %v6457 = vadd.f32 0.0, %v6456
        %v6458 = vpop.f32.mrb[0].mxu0
        %6459 = vmatprep.mubr.f32.mxu0 0.0
        %6460 = vmatmul.mubr.f32.gmra.mrb[0].mxu0 %v6264
        %v6461 = vpop.f32.mrb[0].mxu0
        %v6462 = vadd.f32 0.0, %v6461
        %v6463 = vpop.f32.mrb[0].mxu0
        %6464 = vmatprep.mubr.f32.mxu0 0.0
        %6465 = vmatmul.mubr.f32.gmra.mrb[0].mxu0 %v6267
        %v6466 = vpop.f32.mrb[0].mxu0
        %v6467 = vadd.f32 0.0, %v6466
        %v6468 = vpop.f32.mrb[0].mxu0
        %6469 = vmatprep.mubr.f32.mxu0 0.0
        %6470 = vmatmul.mubr.f32.gmra.mrb[0].mxu0 %v6270
        %v6471 = vpop.f32.mrb[0].mxu0
        %v6472 = vadd.f32 0.0, %v6471
        %v6473 = vpop.f32.mrb[0].mxu0
        %6474 = vmatprep.mubr.f32.mxu0 0.0
        %6475 = vmatmul.mubr.f32.gmra.mrb[0].mxu0 %v6273
        %v6476 = vpop.f32.mrb[0].mxu0
        %v6477 = vadd.f32 0.0, %v6476
        %v6478 = vpop.f32.mrb[0].mxu0
        %6479 = vmatprep.mubr.f32.mxu0 0.0
        %6480 = vmatmul.mubr.f32.gmra.mrb[0].mxu0 %v6276
        %v6481 = vpop.f32.mrb[0].mxu0
        %v6482 = vadd.f32 0.0, %v6481
        %v6483 = vpop.f32.mrb[0].mxu0
        %6484 = vmatprep.mubr.f32.mxu0 0.0
        %6485 = vmatmul.mubr.f32.gmra.mrb[0].mxu0 %v6279
        %v6486 = vpop.f32.mrb[0].mxu0
        %v6487 = vadd.f32 0.0, %v6486
        %v6488 = vpop.f32.mrb[0].mxu0
        %6489 = vmatprep.mubr.f32.mxu0 0.0
        %6490 = vmatmul.mubr.f32.gmra.mrb[0].mxu0 %v6282
        %v6491 = vpop.f32.mrb[0].mxu0
        %v6492 = vadd.f32 0.0, %v6491
        %v6493 = vpop.f32.mrb[0].mxu0
        %6494 = vmatprep.mubr.f32.mxu0 0.0
        %6495 = vmatmul.mubr.f32.gmra.mrb[0].mxu0 %v6285
        %v6496 = vpop.f32.mrb[0].mxu0
        %v6497 = vadd.f32 0.0, %v6496
        %v6498 = vpop.f32.mrb[0].mxu0
        %6499 = vmatprep.mubr.f32.mxu0 0.0
        %6500 = vmatmul.mubr.f32.gmra.mrb[0].mxu0 %v6288
        %v6501 = vpop.f32.mrb[0].mxu0
        %v6502 = vadd.f32 0.0, %v6501
        %v6503 = vpop.f32.mrb[0].mxu0
        %6504 = vmatprep.mubr.f32.mxu0 0.0
        %6505 = vmatmul.mubr.f32.gmra.mrb[0].mxu0 %v6291
        %v6506 = vpop.f32.mrb[0].mxu0
        %v6507 = vadd.f32 0.0, %v6506
        %v6508 = vpop.f32.mrb[0].mxu0
        %6509 = vmatprep.mubr.f32.mxu0 0.0
        %6510 = vmatmul.mubr.f32.gmra.mrb[0].mxu0 %v6294
        %v6511 = vpop.f32.mrb[0].mxu0
        %v6512 = vadd.f32 0.0, %v6511
        %v6513 = vpop.f32.mrb[0].mxu0
        %6514 = vmatprep.mubr.f32.mxu0 0.0
        %6515 = vmatmul.mubr.f32.gmra.mrb[0].mxu0 %v6297
        %v6516 = vpop.f32.mrb[0].mxu0
        %v6517 = vadd.f32 0.0, %v6516
        %v6518 = vpop.f32.mrb[0].mxu0
        %6519 = vmatprep.mubr.f32.mxu0 0.0
        %6520 = vmatmul.mubr.f32.gmra.mrb[0].mxu0 %v6300
        %v6521 = vpop.f32.mrb[0].mxu0
        %v6522 = vadd.f32 0.0, %v6521
        %v6523 = vpop.f32.mrb[0].mxu0
        %6524 = vmatprep.mubr.f32.mxu0 0.0
        %6525 = vmatmul.mubr.f32.gmra.mrb[0].mxu0 %v6303
        %v6526 = vpop.f32.mrb[0].mxu0
        %v6527 = vadd.f32 0.0, %v6526
        %v6528 = vpop.f32.mrb[0].mxu0
        %6529 = vdwg.mxu0
        %v6530 = vadd.f32 %v6141, %v6372
        %v6531 = vadd.f32 %v6142, %v6377
        %v6532 = vadd.f32 %v6143, %v6382
        %v6533 = vadd.f32 %v6144, %v6387
        %v6534 = vadd.f32 %v6145, %v6392
        %v6535 = vadd.f32 %v6146, %v6397
        %v6536 = vadd.f32 %v6147, %v6402
        %v6537 = vadd.f32 %v6148, %v6407
        %v6538 = vadd.f32 %v6149, %v6412
        %v6539 = vadd.f32 %v6150, %v6417
        %v6540 = vadd.f32 %v6151, %v6422
        %v6541 = vadd.f32 %v6152, %v6427
        %v6542 = vadd.f32 %v6153, %v6432
        %v6543 = vadd.f32 %v6154, %v6437
        %v6544 = vadd.f32 %v6155, %v6442
        %v6545 = vadd.f32 %v6156, %v6447
        %v6546 = vadd.f32 %v6157, %v6452
        %v6547 = vadd.f32 %v6158, %v6457
        %v6548 = vadd.f32 %v6159, %v6462
        %v6549 = vadd.f32 %v6160, %v6467
        %v6550 = vadd.f32 %v6161, %v6472
        %v6551 = vadd.f32 %v6162, %v6477
        %v6552 = vadd.f32 %v6163, %v6482
        %v6553 = vadd.f32 %v6164, %v6487
        %v6554 = vadd.f32 %v6165, %v6492
        %v6555 = vadd.f32 %v6166, %v6497
        %v6556 = vadd.f32 %v6167, %v6502
        %v6557 = vadd.f32 %v6168, %v6507
        %v6558 = vadd.f32 %v6169, %v6512
        %v6559 = vadd.f32 %v6170, %v6517
        %v6560 = vadd.f32 %v6171, %v6522
        %v6561 = vadd.f32 %v6172, %v6527
        %v6562 = vld [vmem:[%s6173 + $0x1] sm:$0xff]
        %v6563 = vld [vmem:[%s6173 + $0x9] sm:$0xff]
        %v6564 = vld [vmem:[%s6173 + $0x19] sm:$0xff]
        %v6565 = vld [vmem:[%s6173 + $0x21] sm:$0xff]
        %v6566 = vld [vmem:[%s6173 + $0x31] sm:$0xff]
        %v6567 = vld [vmem:[%s6173 + $0x39] sm:$0xff]
        %v6568 = vld [vmem:[%s6173 + $0x49] sm:$0xff]
        %v6569 = vld [vmem:[%s6173 + $0x51] sm:$0xff]
        %v6570 = vld [vmem:[%s6173 + $0x61] sm:$0xff]
        %v6571 = vld [vmem:[%s6173 + $0x69] sm:$0xff]
        %v6572 = vld [vmem:[%s6173 + $0x79] sm:$0xff]
        %v6573 = vld [vmem:[%s6173 + $0x81] sm:$0xff]
        %v6574 = vld [vmem:[%s6173 + $0x91] sm:$0xff]
        %v6575 = vld [vmem:[%s6173 + $0x99] sm:$0xff]
        %v6576 = vld [vmem:[%s6173 + $0xa9] sm:$0xff]
        %v6577 = vld [vmem:[%s6173 + $0xb1] sm:$0xff]
        %v6578 = vld [vmem:[%s6173 + $0xc1] sm:$0xff]
        %v6579 = vld [vmem:[%s6173 + $0xc9] sm:$0xff]
        %v6580 = vld [vmem:[%s6173 + $0xd9] sm:$0xff]
        %v6581 = vld [vmem:[%s6173 + $0xe1] sm:$0xff]
        %v6582 = vld [vmem:[%s6173 + $0xf1] sm:$0xff]
        %v6583 = vld [vmem:[%s6173 + $0xf9] sm:$0xff]
        %v6584 = vld [vmem:[%s6173 + $0x109] sm:$0xff]
        %v6585 = vld [vmem:[%s6173 + $0x111] sm:$0xff]
        %v6586 = vld [vmem:[%s6173 + $0x121] sm:$0xff]
        %v6587 = vld [vmem:[%s6173 + $0x129] sm:$0xff]
        %v6588 = vld [vmem:[%s6173 + $0x139] sm:$0xff]
        %v6589 = vld [vmem:[%s6173 + $0x141] sm:$0xff]
        %v6590 = vld [vmem:[%s6173 + $0x151] sm:$0xff]
        %v6591 = vld [vmem:[%s6173 + $0x159] sm:$0xff]
        %v6592 = vld [vmem:[%s6173 + $0x169] sm:$0xff]
        %v6593 = vld [vmem:[%s6173 + $0x171] sm:$0xff]
        %s6594 = scalar_lea.vmem %s8, 112
        %v6595 = vld [vmem:[%s6594] sm:$0xff]
        %v6596 = vld [vmem:[%s6594 + $0x8] sm:$0xff]
        %v6598 = vsel %vm3906, %v6562, 0
        %v6601 = vsel %vm3906, %v6563, 0
        %v6604 = vsel %vm3906, %v6564, 0
        %v6607 = vsel %vm3906, %v6565, 0
        %v6610 = vsel %vm3906, %v6566, 0
        %v6613 = vsel %vm3906, %v6567, 0
        %v6616 = vsel %vm3906, %v6568, 0
        %v6619 = vsel %vm3906, %v6569, 0
        %v6622 = vsel %vm3906, %v6570, 0
        %v6625 = vsel %vm3906, %v6571, 0
        %v6628 = vsel %vm3906, %v6572, 0
        %v6631 = vsel %vm3906, %v6573, 0
        %v6634 = vsel %vm3906, %v6574, 0
        %v6637 = vsel %vm3906, %v6575, 0
        %v6640 = vsel %vm3906, %v6576, 0
        %v6643 = vsel %vm3906, %v6577, 0
        %v6646 = vsel %vm3906, %v6578, 0
        %v6649 = vsel %vm3906, %v6579, 0
        %v6652 = vsel %vm3906, %v6580, 0
        %v6655 = vsel %vm3906, %v6581, 0
        %v6658 = vsel %vm3906, %v6582, 0
        %v6661 = vsel %vm3906, %v6583, 0
        %v6664 = vsel %vm3906, %v6584, 0
        %v6667 = vsel %vm3906, %v6585, 0
        %v6670 = vsel %vm3906, %v6586, 0
        %v6673 = vsel %vm3906, %v6587, 0
        %v6676 = vsel %vm3906, %v6588, 0
        %v6679 = vsel %vm3906, %v6589, 0
        %v6682 = vsel %vm3906, %v6590, 0
        %v6685 = vsel %vm3906, %v6591, 0
        %v6688 = vsel %vm3906, %v6592, 0
        %v6691 = vsel %vm3906, %v6593, 0
        %6693 = vmatprep.subr.mxu0 0.0
        %6694 = vmatpush1.msra.mxu0 %v6595
        %6695 = vmatprep.subr.mxu0 0.0
        %6696 = vmatpush1.msra.mxu0 %v6596
        %6697 = vmatprep.subr.mxu0 0.0
        %6698 = vmatpush1.msra.mxu0 0.0
        %6699 = vmatprep.subr.mxu0 0.0
        %6700 = vmatpush1.msra.mxu0 0.0
        %6701 = vmatprep.subr.mxu0 0.0
        %6702 = vmatpush1.msra.mxu0 0.0
        %6703 = vmatprep.subr.mxu0 0.0
        %6704 = vmatpush1.msra.mxu0 0.0
        %6705 = vmatprep.subr.mxu0 0.0
        %6706 = vmatpush1.msra.mxu0 0.0
        %6707 = vmatprep.subr.mxu0 0.0
        %6708 = vmatpush1.msra.mxu0 0.0
        %6709 = vmatprep.subr.mxu0 0.0
        %6710 = vmatpush1.msra.mxu0 0.0
        %6711 = vmatprep.subr.mxu0 0.0
        %6712 = vmatpush1.msra.mxu0 0.0
        %6713 = vmatprep.subr.mxu0 0.0
        %6714 = vmatpush1.msra.mxu0 0.0
        %6715 = vmatprep.subr.mxu0 0.0
        %6716 = vmatpush1.msra.mxu0 0.0
        %6717 = vmatprep.subr.mxu0 0.0
        %6718 = vmatpush1.msra.mxu0 0.0
        %6719 = vmatprep.subr.mxu0 0.0
        %6720 = vmatpush1.msra.mxu0 0.0
        %6721 = vmatprep.subr.mxu0 0.0
        %6722 = vmatpush1.msra.mxu0 0.0
        %6723 = vmatprep.subr.mxu0 0.0
        %6724 = vmatpush1.msra.mxu0 0.0
        %6725 = vmatprep.subr.mxu0 0.0
        %6726 = vmatpush1.msra.mxu0 0.0
        %6727 = vmatprep.subr.mxu0 0.0
        %6728 = vmatpush1.msra.mxu0 0.0
        %6729 = vmatprep.subr.mxu0 0.0
        %6730 = vmatpush1.msra.mxu0 0.0
        %6731 = vmatprep.subr.mxu0 0.0
        %6732 = vmatpush1.msra.mxu0 0.0
        %6733 = vmatprep.subr.mxu0 0.0
        %6734 = vmatpush1.msra.mxu0 0.0
        %6735 = vmatprep.subr.mxu0 0.0
        %6736 = vmatpush1.msra.mxu0 0.0
        %6737 = vmatprep.subr.mxu0 0.0
        %6738 = vmatpush1.msra.mxu0 0.0
        %6739 = vmatprep.subr.mxu0 0.0
        %6740 = vmatpush1.msra.mxu0 0.0
        %6741 = vmatprep.subr.mxu0 0.0
        %6742 = vmatpush1.msra.mxu0 0.0
        %6743 = vmatprep.subr.mxu0 0.0
        %6744 = vmatpush1.msra.mxu0 0.0
        %6745 = vmatprep.subr.mxu0 0.0
        %6746 = vmatpush1.msra.mxu0 0.0
        %6747 = vmatprep.subr.mxu0 0.0
        %6748 = vmatpush1.msra.mxu0 0.0
        %6749 = vmatprep.subr.mxu0 0.0
        %6750 = vmatpush1.msra.mxu0 0.0
        %6751 = vmatprep.subr.mxu0 0.0
        %6752 = vmatpush1.msra.mxu0 0.0
        %6753 = vmatprep.subr.mxu0 0.0
        %6754 = vmatpush1.msra.mxu0 0.0
        %6755 = vmatprep.subr.mxu0 0.0
        %6756 = vmatpush1.msra.mxu0 0.0
        %6757 = vmatprep.mubr.f32.mxu0 0.0
        %6758 = vmatmul.mubr.f32.gmra.mrb[0].mxu0 %v6598
        %v6759 = vpop.f32.mrb[0].mxu0
        %v6760 = vadd.f32 0.0, %v6759
        %v6761 = vpop.f32.mrb[0].mxu0
        %6762 = vmatprep.mubr.f32.mxu0 0.0
        %6763 = vmatmul.mubr.f32.gmra.mrb[0].mxu0 %v6601
        %v6764 = vpop.f32.mrb[0].mxu0
        %v6765 = vadd.f32 0.0, %v6764
        %v6766 = vpop.f32.mrb[0].mxu0
        %6767 = vmatprep.mubr.f32.mxu0 0.0
        %6768 = vmatmul.mubr.f32.gmra.mrb[0].mxu0 %v6604
        %v6769 = vpop.f32.mrb[0].mxu0
        %v6770 = vadd.f32 0.0, %v6769
        %v6771 = vpop.f32.mrb[0].mxu0
        %6772 = vmatprep.mubr.f32.mxu0 0.0
        %6773 = vmatmul.mubr.f32.gmra.mrb[0].mxu0 %v6607
        %v6774 = vpop.f32.mrb[0].mxu0
        %v6775 = vadd.f32 0.0, %v6774
        %v6776 = vpop.f32.mrb[0].mxu0
        %6777 = vmatprep.mubr.f32.mxu0 0.0
        %6778 = vmatmul.mubr.f32.gmra.mrb[0].mxu0 %v6610
        %v6779 = vpop.f32.mrb[0].mxu0
        %v6780 = vadd.f32 0.0, %v6779
        %v6781 = vpop.f32.mrb[0].mxu0
        %6782 = vmatprep.mubr.f32.mxu0 0.0
        %6783 = vmatmul.mubr.f32.gmra.mrb[0].mxu0 %v6613
        %v6784 = vpop.f32.mrb[0].mxu0
        %v6785 = vadd.f32 0.0, %v6784
        %v6786 = vpop.f32.mrb[0].mxu0
        %6787 = vmatprep.mubr.f32.mxu0 0.0
        %6788 = vmatmul.mubr.f32.gmra.mrb[0].mxu0 %v6616
        %v6789 = vpop.f32.mrb[0].mxu0
        %v6790 = vadd.f32 0.0, %v6789
        %v6791 = vpop.f32.mrb[0].mxu0
        %6792 = vmatprep.mubr.f32.mxu0 0.0
        %6793 = vmatmul.mubr.f32.gmra.mrb[0].mxu0 %v6619
        %v6794 = vpop.f32.mrb[0].mxu0
        %v6795 = vadd.f32 0.0, %v6794
        %v6796 = vpop.f32.mrb[0].mxu0
        %6797 = vmatprep.mubr.f32.mxu0 0.0
        %6798 = vmatmul.mubr.f32.gmra.mrb[0].mxu0 %v6622
        %v6799 = vpop.f32.mrb[0].mxu0
        %v6800 = vadd.f32 0.0, %v6799
        %v6801 = vpop.f32.mrb[0].mxu0
        %6802 = vmatprep.mubr.f32.mxu0 0.0
        %6803 = vmatmul.mubr.f32.gmra.mrb[0].mxu0 %v6625
        %v6804 = vpop.f32.mrb[0].mxu0
        %v6805 = vadd.f32 0.0, %v6804
        %v6806 = vpop.f32.mrb[0].mxu0
        %6807 = vmatprep.mubr.f32.mxu0 0.0
        %6808 = vmatmul.mubr.f32.gmra.mrb[0].mxu0 %v6628
        %v6809 = vpop.f32.mrb[0].mxu0
        %v6810 = vadd.f32 0.0, %v6809
        %v6811 = vpop.f32.mrb[0].mxu0
        %6812 = vmatprep.mubr.f32.mxu0 0.0
        %6813 = vmatmul.mubr.f32.gmra.mrb[0].mxu0 %v6631
        %v6814 = vpop.f32.mrb[0].mxu0
        %v6815 = vadd.f32 0.0, %v6814
        %v6816 = vpop.f32.mrb[0].mxu0
        %6817 = vmatprep.mubr.f32.mxu0 0.0
        %6818 = vmatmul.mubr.f32.gmra.mrb[0].mxu0 %v6634
        %v6819 = vpop.f32.mrb[0].mxu0
        %v6820 = vadd.f32 0.0, %v6819
        %v6821 = vpop.f32.mrb[0].mxu0
        %6822 = vmatprep.mubr.f32.mxu0 0.0
        %6823 = vmatmul.mubr.f32.gmra.mrb[0].mxu0 %v6637
        %v6824 = vpop.f32.mrb[0].mxu0
        %v6825 = vadd.f32 0.0, %v6824
        %v6826 = vpop.f32.mrb[0].mxu0
        %6827 = vmatprep.mubr.f32.mxu0 0.0
        %6828 = vmatmul.mubr.f32.gmra.mrb[0].mxu0 %v6640
        %v6829 = vpop.f32.mrb[0].mxu0
        %v6830 = vadd.f32 0.0, %v6829
        %v6831 = vpop.f32.mrb[0].mxu0
        %6832 = vmatprep.mubr.f32.mxu0 0.0
        %6833 = vmatmul.mubr.f32.gmra.mrb[0].mxu0 %v6643
        %v6834 = vpop.f32.mrb[0].mxu0
        %v6835 = vadd.f32 0.0, %v6834
        %v6836 = vpop.f32.mrb[0].mxu0
        %6837 = vmatprep.mubr.f32.mxu0 0.0
        %6838 = vmatmul.mubr.f32.gmra.mrb[0].mxu0 %v6646
        %v6839 = vpop.f32.mrb[0].mxu0
        %v6840 = vadd.f32 0.0, %v6839
        %v6841 = vpop.f32.mrb[0].mxu0
        %6842 = vmatprep.mubr.f32.mxu0 0.0
        %6843 = vmatmul.mubr.f32.gmra.mrb[0].mxu0 %v6649
        %v6844 = vpop.f32.mrb[0].mxu0
        %v6845 = vadd.f32 0.0, %v6844
        %v6846 = vpop.f32.mrb[0].mxu0
        %6847 = vmatprep.mubr.f32.mxu0 0.0
        %6848 = vmatmul.mubr.f32.gmra.mrb[0].mxu0 %v6652
        %v6849 = vpop.f32.mrb[0].mxu0
        %v6850 = vadd.f32 0.0, %v6849
        %v6851 = vpop.f32.mrb[0].mxu0
        %6852 = vmatprep.mubr.f32.mxu0 0.0
        %6853 = vmatmul.mubr.f32.gmra.mrb[0].mxu0 %v6655
        %v6854 = vpop.f32.mrb[0].mxu0
        %v6855 = vadd.f32 0.0, %v6854
        %v6856 = vpop.f32.mrb[0].mxu0
        %6857 = vmatprep.mubr.f32.mxu0 0.0
        %6858 = vmatmul.mubr.f32.gmra.mrb[0].mxu0 %v6658
        %v6859 = vpop.f32.mrb[0].mxu0
        %v6860 = vadd.f32 0.0, %v6859
        %v6861 = vpop.f32.mrb[0].mxu0
        %6862 = vmatprep.mubr.f32.mxu0 0.0
        %6863 = vmatmul.mubr.f32.gmra.mrb[0].mxu0 %v6661
        %v6864 = vpop.f32.mrb[0].mxu0
        %v6865 = vadd.f32 0.0, %v6864
        %v6866 = vpop.f32.mrb[0].mxu0
        %6867 = vmatprep.mubr.f32.mxu0 0.0
        %6868 = vmatmul.mubr.f32.gmra.mrb[0].mxu0 %v6664
        %v6869 = vpop.f32.mrb[0].mxu0
        %v6870 = vadd.f32 0.0, %v6869
        %v6871 = vpop.f32.mrb[0].mxu0
        %6872 = vmatprep.mubr.f32.mxu0 0.0
        %6873 = vmatmul.mubr.f32.gmra.mrb[0].mxu0 %v6667
        %v6874 = vpop.f32.mrb[0].mxu0
        %v6875 = vadd.f32 0.0, %v6874
        %v6876 = vpop.f32.mrb[0].mxu0
        %6877 = vmatprep.mubr.f32.mxu0 0.0
        %6878 = vmatmul.mubr.f32.gmra.mrb[0].mxu0 %v6670
        %v6879 = vpop.f32.mrb[0].mxu0
        %v6880 = vadd.f32 0.0, %v6879
        %v6881 = vpop.f32.mrb[0].mxu0
        %6882 = vmatprep.mubr.f32.mxu0 0.0
        %6883 = vmatmul.mubr.f32.gmra.mrb[0].mxu0 %v6673
        %v6884 = vpop.f32.mrb[0].mxu0
        %v6885 = vadd.f32 0.0, %v6884
        %v6886 = vpop.f32.mrb[0].mxu0
        %6887 = vmatprep.mubr.f32.mxu0 0.0
        %6888 = vmatmul.mubr.f32.gmra.mrb[0].mxu0 %v6676
        %v6889 = vpop.f32.mrb[0].mxu0
        %v6890 = vadd.f32 0.0, %v6889
        %v6891 = vpop.f32.mrb[0].mxu0
        %6892 = vmatprep.mubr.f32.mxu0 0.0
        %6893 = vmatmul.mubr.f32.gmra.mrb[0].mxu0 %v6679
        %v6894 = vpop.f32.mrb[0].mxu0
        %v6895 = vadd.f32 0.0, %v6894
        %v6896 = vpop.f32.mrb[0].mxu0
        %6897 = vmatprep.mubr.f32.mxu0 0.0
        %6898 = vmatmul.mubr.f32.gmra.mrb[0].mxu0 %v6682
        %v6899 = vpop.f32.mrb[0].mxu0
        %v6900 = vadd.f32 0.0, %v6899
        %v6901 = vpop.f32.mrb[0].mxu0
        %6902 = vmatprep.mubr.f32.mxu0 0.0
        %6903 = vmatmul.mubr.f32.gmra.mrb[0].mxu0 %v6685
        %v6904 = vpop.f32.mrb[0].mxu0
        %v6905 = vadd.f32 0.0, %v6904
        %v6906 = vpop.f32.mrb[0].mxu0
        %6907 = vmatprep.mubr.f32.mxu0 0.0
        %6908 = vmatmul.mubr.f32.gmra.mrb[0].mxu0 %v6688
        %v6909 = vpop.f32.mrb[0].mxu0
        %v6910 = vadd.f32 0.0, %v6909
        %v6911 = vpop.f32.mrb[0].mxu0
        %6912 = vmatprep.mubr.f32.mxu0 0.0
        %6913 = vmatmul.mubr.f32.gmra.mrb[0].mxu0 %v6691
        %v6914 = vpop.f32.mrb[0].mxu0
        %v6915 = vadd.f32 0.0, %v6914
        %v6916 = vpop.f32.mrb[0].mxu0
        %6917 = vdwg.mxu0
        %v6918 = vadd.f32 %v6530, %v6760
        %v6919 = vadd.f32 %v6531, %v6765
        %v6920 = vadd.f32 %v6532, %v6770
        %v6921 = vadd.f32 %v6533, %v6775
        %v6922 = vadd.f32 %v6534, %v6780
        %v6923 = vadd.f32 %v6535, %v6785
        %v6924 = vadd.f32 %v6536, %v6790
        %v6925 = vadd.f32 %v6537, %v6795
        %v6926 = vadd.f32 %v6538, %v6800
        %v6927 = vadd.f32 %v6539, %v6805
        %v6928 = vadd.f32 %v6540, %v6810
        %v6929 = vadd.f32 %v6541, %v6815
        %v6930 = vadd.f32 %v6542, %v6820
        %v6931 = vadd.f32 %v6543, %v6825
        %v6932 = vadd.f32 %v6544, %v6830
        %v6933 = vadd.f32 %v6545, %v6835
        %v6934 = vadd.f32 %v6546, %v6840
        %v6935 = vadd.f32 %v6547, %v6845
        %v6936 = vadd.f32 %v6548, %v6850
        %v6937 = vadd.f32 %v6549, %v6855
        %v6938 = vadd.f32 %v6550, %v6860
        %v6939 = vadd.f32 %v6551, %v6865
        %v6940 = vadd.f32 %v6552, %v6870
        %v6941 = vadd.f32 %v6553, %v6875
        %v6942 = vadd.f32 %v6554, %v6880
        %v6943 = vadd.f32 %v6555, %v6885
        %v6944 = vadd.f32 %v6556, %v6890
        %v6945 = vadd.f32 %v6557, %v6895
        %v6946 = vadd.f32 %v6558, %v6900
        %v6947 = vadd.f32 %v6559, %v6905
        %v6948 = vadd.f32 %v6560, %v6910
        %v6949 = vadd.f32 %v6561, %v6915
        %v6950 = vld [vmem:[%s6173 + $0x2] sm:$0xff]
        %v6951 = vld [vmem:[%s6173 + $0xa] sm:$0xff]
        %v6952 = vld [vmem:[%s6173 + $0x1a] sm:$0xff]
        %v6953 = vld [vmem:[%s6173 + $0x22] sm:$0xff]
        %v6954 = vld [vmem:[%s6173 + $0x32] sm:$0xff]
        %v6955 = vld [vmem:[%s6173 + $0x3a] sm:$0xff]
        %v6956 = vld [vmem:[%s6173 + $0x4a] sm:$0xff]
        %v6957 = vld [vmem:[%s6173 + $0x52] sm:$0xff]
        %v6958 = vld [vmem:[%s6173 + $0x62] sm:$0xff]
        %v6959 = vld [vmem:[%s6173 + $0x6a] sm:$0xff]
        %v6960 = vld [vmem:[%s6173 + $0x7a] sm:$0xff]
        %v6961 = vld [vmem:[%s6173 + $0x82] sm:$0xff]
        %v6962 = vld [vmem:[%s6173 + $0x92] sm:$0xff]
        %v6963 = vld [vmem:[%s6173 + $0x9a] sm:$0xff]
        %v6964 = vld [vmem:[%s6173 + $0xaa] sm:$0xff]
        %v6965 = vld [vmem:[%s6173 + $0xb2] sm:$0xff]
        %v6966 = vld [vmem:[%s6173 + $0xc2] sm:$0xff]
        %v6967 = vld [vmem:[%s6173 + $0xca] sm:$0xff]
        %v6968 = vld [vmem:[%s6173 + $0xda] sm:$0xff]
        %v6969 = vld [vmem:[%s6173 + $0xe2] sm:$0xff]
        %v6970 = vld [vmem:[%s6173 + $0xf2] sm:$0xff]
        %v6971 = vld [vmem:[%s6173 + $0xfa] sm:$0xff]
        %v6972 = vld [vmem:[%s6173 + $0x10a] sm:$0xff]
        %v6973 = vld [vmem:[%s6173 + $0x112] sm:$0xff]
        %v6974 = vld [vmem:[%s6173 + $0x122] sm:$0xff]
        %v6975 = vld [vmem:[%s6173 + $0x12a] sm:$0xff]
        %v6976 = vld [vmem:[%s6173 + $0x13a] sm:$0xff]
        %v6977 = vld [vmem:[%s6173 + $0x142] sm:$0xff]
        %v6978 = vld [vmem:[%s6173 + $0x152] sm:$0xff]
        %v6979 = vld [vmem:[%s6173 + $0x15a] sm:$0xff]
        %v6980 = vld [vmem:[%s6173 + $0x16a] sm:$0xff]
        %v6981 = vld [vmem:[%s6173 + $0x172] sm:$0xff]
        %s6982 = scalar_lea.vmem %s8, 128
        %v6983 = vld [vmem:[%s6982] sm:$0xff]
        %v6984 = vld [vmem:[%s6982 + $0x8] sm:$0xff]
        %v6986 = vsel %vm3906, %v6950, 0
        %v6989 = vsel %vm3906, %v6951, 0
        %v6992 = vsel %vm3906, %v6952, 0
        %v6995 = vsel %vm3906, %v6953, 0
        %v6998 = vsel %vm3906, %v6954, 0
        %v7001 = vsel %vm3906, %v6955, 0
        %v7004 = vsel %vm3906, %v6956, 0
        %v7007 = vsel %vm3906, %v6957, 0
        %v7010 = vsel %vm3906, %v6958, 0
        %v7013 = vsel %vm3906, %v6959, 0
        %v7016 = vsel %vm3906, %v6960, 0
        %v7019 = vsel %vm3906, %v6961, 0
        %v7022 = vsel %vm3906, %v6962, 0
        %v7025 = vsel %vm3906, %v6963, 0
        %v7028 = vsel %vm3906, %v6964, 0
        %v7031 = vsel %vm3906, %v6965, 0
        %v7034 = vsel %vm3906, %v6966, 0
        %v7037 = vsel %vm3906, %v6967, 0
        %v7040 = vsel %vm3906, %v6968, 0
        %v7043 = vsel %vm3906, %v6969, 0
        %v7046 = vsel %vm3906, %v6970, 0
        %v7049 = vsel %vm3906, %v6971, 0
        %v7052 = vsel %vm3906, %v6972, 0
        %v7055 = vsel %vm3906, %v6973, 0
        %v7058 = vsel %vm3906, %v6974, 0
        %v7061 = vsel %vm3906, %v6975, 0
        %v7064 = vsel %vm3906, %v6976, 0
        %v7067 = vsel %vm3906, %v6977, 0
        %v7070 = vsel %vm3906, %v6978, 0
        %v7073 = vsel %vm3906, %v6979, 0
        %v7076 = vsel %vm3906, %v6980, 0
        %v7079 = vsel %vm3906, %v6981, 0
        %7081 = vmatprep.subr.mxu0 0.0
        %7082 = vmatpush1.msra.mxu0 %v6983
        %7083 = vmatprep.subr.mxu0 0.0
        %7084 = vmatpush1.msra.mxu0 %v6984
        %7085 = vmatprep.subr.mxu0 0.0
        %7086 = vmatpush1.msra.mxu0 0.0
        %7087 = vmatprep.subr.mxu0 0.0
        %7088 = vmatpush1.msra.mxu0 0.0
        %7089 = vmatprep.subr.mxu0 0.0
        %7090 = vmatpush1.msra.mxu0 0.0
        %7091 = vmatprep.subr.mxu0 0.0
        %7092 = vmatpush1.msra.mxu0 0.0
        %7093 = vmatprep.subr.mxu0 0.0
        %7094 = vmatpush1.msra.mxu0 0.0
        %7095 = vmatprep.subr.mxu0 0.0
        %7096 = vmatpush1.msra.mxu0 0.0
        %7097 = vmatprep.subr.mxu0 0.0
        %7098 = vmatpush1.msra.mxu0 0.0
        %7099 = vmatprep.subr.mxu0 0.0
        %7100 = vmatpush1.msra.mxu0 0.0
        %7101 = vmatprep.subr.mxu0 0.0
        %7102 = vmatpush1.msra.mxu0 0.0
        %7103 = vmatprep.subr.mxu0 0.0
        %7104 = vmatpush1.msra.mxu0 0.0
        %7105 = vmatprep.subr.mxu0 0.0
        %7106 = vmatpush1.msra.mxu0 0.0
        %7107 = vmatprep.subr.mxu0 0.0
        %7108 = vmatpush1.msra.mxu0 0.0
        %7109 = vmatprep.subr.mxu0 0.0
        %7110 = vmatpush1.msra.mxu0 0.0
        %7111 = vmatprep.subr.mxu0 0.0
        %7112 = vmatpush1.msra.mxu0 0.0
        %7113 = vmatprep.subr.mxu0 0.0
        %7114 = vmatpush1.msra.mxu0 0.0
        %7115 = vmatprep.subr.mxu0 0.0
        %7116 = vmatpush1.msra.mxu0 0.0
        %7117 = vmatprep.subr.mxu0 0.0
        %7118 = vmatpush1.msra.mxu0 0.0
        %7119 = vmatprep.subr.mxu0 0.0
        %7120 = vmatpush1.msra.mxu0 0.0
        %7121 = vmatprep.subr.mxu0 0.0
        %7122 = vmatpush1.msra.mxu0 0.0
        %7123 = vmatprep.subr.mxu0 0.0
        %7124 = vmatpush1.msra.mxu0 0.0
        %7125 = vmatprep.subr.mxu0 0.0
        %7126 = vmatpush1.msra.mxu0 0.0
        %7127 = vmatprep.subr.mxu0 0.0
        %7128 = vmatpush1.msra.mxu0 0.0
        %7129 = vmatprep.subr.mxu0 0.0
        %7130 = vmatpush1.msra.mxu0 0.0
        %7131 = vmatprep.subr.mxu0 0.0
        %7132 = vmatpush1.msra.mxu0 0.0
        %7133 = vmatprep.subr.mxu0 0.0
        %7134 = vmatpush1.msra.mxu0 0.0
        %7135 = vmatprep.subr.mxu0 0.0
        %7136 = vmatpush1.msra.mxu0 0.0
        %7137 = vmatprep.subr.mxu0 0.0
        %7138 = vmatpush1.msra.mxu0 0.0
        %7139 = vmatprep.subr.mxu0 0.0
        %7140 = vmatpush1.msra.mxu0 0.0
        %7141 = vmatprep.subr.mxu0 0.0
        %7142 = vmatpush1.msra.mxu0 0.0
        %7143 = vmatprep.subr.mxu0 0.0
        %7144 = vmatpush1.msra.mxu0 0.0
        %7145 = vmatprep.mubr.f32.mxu0 0.0
        %7146 = vmatmul.mubr.f32.gmra.mrb[0].mxu0 %v6986
        %v7147 = vpop.f32.mrb[0].mxu0
        %v7148 = vadd.f32 0.0, %v7147
        %v7149 = vpop.f32.mrb[0].mxu0
        %7150 = vmatprep.mubr.f32.mxu0 0.0
        %7151 = vmatmul.mubr.f32.gmra.mrb[0].mxu0 %v6989
        %v7152 = vpop.f32.mrb[0].mxu0
        %v7153 = vadd.f32 0.0, %v7152
        %v7154 = vpop.f32.mrb[0].mxu0
        %7155 = vmatprep.mubr.f32.mxu0 0.0
        %7156 = vmatmul.mubr.f32.gmra.mrb[0].mxu0 %v6992
        %v7157 = vpop.f32.mrb[0].mxu0
        %v7158 = vadd.f32 0.0, %v7157
        %v7159 = vpop.f32.mrb[0].mxu0
        %7160 = vmatprep.mubr.f32.mxu0 0.0
        %7161 = vmatmul.mubr.f32.gmra.mrb[0].mxu0 %v6995
        %v7162 = vpop.f32.mrb[0].mxu0
        %v7163 = vadd.f32 0.0, %v7162
        %v7164 = vpop.f32.mrb[0].mxu0
        %7165 = vmatprep.mubr.f32.mxu0 0.0
        %7166 = vmatmul.mubr.f32.gmra.mrb[0].mxu0 %v6998
        %v7167 = vpop.f32.mrb[0].mxu0
        %v7168 = vadd.f32 0.0, %v7167
        %v7169 = vpop.f32.mrb[0].mxu0
        %7170 = vmatprep.mubr.f32.mxu0 0.0
        %7171 = vmatmul.mubr.f32.gmra.mrb[0].mxu0 %v7001
        %v7172 = vpop.f32.mrb[0].mxu0
        %v7173 = vadd.f32 0.0, %v7172
        %v7174 = vpop.f32.mrb[0].mxu0
        %7175 = vmatprep.mubr.f32.mxu0 0.0
        %7176 = vmatmul.mubr.f32.gmra.mrb[0].mxu0 %v7004
        %v7177 = vpop.f32.mrb[0].mxu0
        %v7178 = vadd.f32 0.0, %v7177
        %v7179 = vpop.f32.mrb[0].mxu0
        %7180 = vmatprep.mubr.f32.mxu0 0.0
        %7181 = vmatmul.mubr.f32.gmra.mrb[0].mxu0 %v7007
        %v7182 = vpop.f32.mrb[0].mxu0
        %v7183 = vadd.f32 0.0, %v7182
        %v7184 = vpop.f32.mrb[0].mxu0
        %7185 = vmatprep.mubr.f32.mxu0 0.0
        %7186 = vmatmul.mubr.f32.gmra.mrb[0].mxu0 %v7010
        %v7187 = vpop.f32.mrb[0].mxu0
        %v7188 = vadd.f32 0.0, %v7187
        %v7189 = vpop.f32.mrb[0].mxu0
        %7190 = vmatprep.mubr.f32.mxu0 0.0
        %7191 = vmatmul.mubr.f32.gmra.mrb[0].mxu0 %v7013
        %v7192 = vpop.f32.mrb[0].mxu0
        %v7193 = vadd.f32 0.0, %v7192
        %v7194 = vpop.f32.mrb[0].mxu0
        %7195 = vmatprep.mubr.f32.mxu0 0.0
        %7196 = vmatmul.mubr.f32.gmra.mrb[0].mxu0 %v7016
        %v7197 = vpop.f32.mrb[0].mxu0
        %v7198 = vadd.f32 0.0, %v7197
        %v7199 = vpop.f32.mrb[0].mxu0
        %7200 = vmatprep.mubr.f32.mxu0 0.0
        %7201 = vmatmul.mubr.f32.gmra.mrb[0].mxu0 %v7019
        %v7202 = vpop.f32.mrb[0].mxu0
        %v7203 = vadd.f32 0.0, %v7202
        %v7204 = vpop.f32.mrb[0].mxu0
        %7205 = vmatprep.mubr.f32.mxu0 0.0
        %7206 = vmatmul.mubr.f32.gmra.mrb[0].mxu0 %v7022
        %v7207 = vpop.f32.mrb[0].mxu0
        %v7208 = vadd.f32 0.0, %v7207
        %v7209 = vpop.f32.mrb[0].mxu0
        %7210 = vmatprep.mubr.f32.mxu0 0.0
        %7211 = vmatmul.mubr.f32.gmra.mrb[0].mxu0 %v7025
        %v7212 = vpop.f32.mrb[0].mxu0
        %v7213 = vadd.f32 0.0, %v7212
        %v7214 = vpop.f32.mrb[0].mxu0
        %7215 = vmatprep.mubr.f32.mxu0 0.0
        %7216 = vmatmul.mubr.f32.gmra.mrb[0].mxu0 %v7028
        %v7217 = vpop.f32.mrb[0].mxu0
        %v7218 = vadd.f32 0.0, %v7217
        %v7219 = vpop.f32.mrb[0].mxu0
        %7220 = vmatprep.mubr.f32.mxu0 0.0
        %7221 = vmatmul.mubr.f32.gmra.mrb[0].mxu0 %v7031
        %v7222 = vpop.f32.mrb[0].mxu0
        %v7223 = vadd.f32 0.0, %v7222
        %v7224 = vpop.f32.mrb[0].mxu0
        %7225 = vmatprep.mubr.f32.mxu0 0.0
        %7226 = vmatmul.mubr.f32.gmra.mrb[0].mxu0 %v7034
        %v7227 = vpop.f32.mrb[0].mxu0
        %v7228 = vadd.f32 0.0, %v7227
        %v7229 = vpop.f32.mrb[0].mxu0
        %7230 = vmatprep.mubr.f32.mxu0 0.0
        %7231 = vmatmul.mubr.f32.gmra.mrb[0].mxu0 %v7037
        %v7232 = vpop.f32.mrb[0].mxu0
        %v7233 = vadd.f32 0.0, %v7232
        %v7234 = vpop.f32.mrb[0].mxu0
        %7235 = vmatprep.mubr.f32.mxu0 0.0
        %7236 = vmatmul.mubr.f32.gmra.mrb[0].mxu0 %v7040
        %v7237 = vpop.f32.mrb[0].mxu0
        %v7238 = vadd.f32 0.0, %v7237
        %v7239 = vpop.f32.mrb[0].mxu0
        %7240 = vmatprep.mubr.f32.mxu0 0.0
        %7241 = vmatmul.mubr.f32.gmra.mrb[0].mxu0 %v7043
        %v7242 = vpop.f32.mrb[0].mxu0
        %v7243 = vadd.f32 0.0, %v7242
        %v7244 = vpop.f32.mrb[0].mxu0
        %7245 = vmatprep.mubr.f32.mxu0 0.0
        %7246 = vmatmul.mubr.f32.gmra.mrb[0].mxu0 %v7046
        %v7247 = vpop.f32.mrb[0].mxu0
        %v7248 = vadd.f32 0.0, %v7247
        %v7249 = vpop.f32.mrb[0].mxu0
        %7250 = vmatprep.mubr.f32.mxu0 0.0
        %7251 = vmatmul.mubr.f32.gmra.mrb[0].mxu0 %v7049
        %v7252 = vpop.f32.mrb[0].mxu0
        %v7253 = vadd.f32 0.0, %v7252
        %v7254 = vpop.f32.mrb[0].mxu0
        %7255 = vmatprep.mubr.f32.mxu0 0.0
        %7256 = vmatmul.mubr.f32.gmra.mrb[0].mxu0 %v7052
        %v7257 = vpop.f32.mrb[0].mxu0
        %v7258 = vadd.f32 0.0, %v7257
        %v7259 = vpop.f32.mrb[0].mxu0
        %7260 = vmatprep.mubr.f32.mxu0 0.0
        %7261 = vmatmul.mubr.f32.gmra.mrb[0].mxu0 %v7055
        %v7262 = vpop.f32.mrb[0].mxu0
        %v7263 = vadd.f32 0.0, %v7262
        %v7264 = vpop.f32.mrb[0].mxu0
        %7265 = vmatprep.mubr.f32.mxu0 0.0
        %7266 = vmatmul.mubr.f32.gmra.mrb[0].mxu0 %v7058
        %v7267 = vpop.f32.mrb[0].mxu0
        %v7268 = vadd.f32 0.0, %v7267
        %v7269 = vpop.f32.mrb[0].mxu0
        %7270 = vmatprep.mubr.f32.mxu0 0.0
        %7271 = vmatmul.mubr.f32.gmra.mrb[0].mxu0 %v7061
        %v7272 = vpop.f32.mrb[0].mxu0
        %v7273 = vadd.f32 0.0, %v7272
        %v7274 = vpop.f32.mrb[0].mxu0
        %7275 = vmatprep.mubr.f32.mxu0 0.0
        %7276 = vmatmul.mubr.f32.gmra.mrb[0].mxu0 %v7064
        %v7277 = vpop.f32.mrb[0].mxu0
        %v7278 = vadd.f32 0.0, %v7277
        %v7279 = vpop.f32.mrb[0].mxu0
        %7280 = vmatprep.mubr.f32.mxu0 0.0
        %7281 = vmatmul.mubr.f32.gmra.mrb[0].mxu0 %v7067
        %v7282 = vpop.f32.mrb[0].mxu0
        %v7283 = vadd.f32 0.0, %v7282
        %v7284 = vpop.f32.mrb[0].mxu0
        %7285 = vmatprep.mubr.f32.mxu0 0.0
        %7286 = vmatmul.mubr.f32.gmra.mrb[0].mxu0 %v7070
        %v7287 = vpop.f32.mrb[0].mxu0
        %v7288 = vadd.f32 0.0, %v7287
        %v7289 = vpop.f32.mrb[0].mxu0
        %7290 = vmatprep.mubr.f32.mxu0 0.0
        %7291 = vmatmul.mubr.f32.gmra.mrb[0].mxu0 %v7073
        %v7292 = vpop.f32.mrb[0].mxu0
        %v7293 = vadd.f32 0.0, %v7292
        %v7294 = vpop.f32.mrb[0].mxu0
        %7295 = vmatprep.mubr.f32.mxu0 0.0
        %7296 = vmatmul.mubr.f32.gmra.mrb[0].mxu0 %v7076
        %v7297 = vpop.f32.mrb[0].mxu0
        %v7298 = vadd.f32 0.0, %v7297
        %v7299 = vpop.f32.mrb[0].mxu0
        %7300 = vmatprep.mubr.f32.mxu0 0.0
        %7301 = vmatmul.mubr.f32.gmra.mrb[0].mxu0 %v7079
        %v7302 = vpop.f32.mrb[0].mxu0
        %v7303 = vadd.f32 0.0, %v7302
        %v7304 = vpop.f32.mrb[0].mxu0
        %7305 = vdwg.mxu0
        %v7306 = vadd.f32 %v6918, %v7148
        %v7307 = vadd.f32 %v6919, %v7153
        %v7308 = vadd.f32 %v6920, %v7158
        %v7309 = vadd.f32 %v6921, %v7163
        %v7310 = vadd.f32 %v6922, %v7168
        %v7311 = vadd.f32 %v6923, %v7173
        %v7312 = vadd.f32 %v6924, %v7178
        %v7313 = vadd.f32 %v6925, %v7183
        %v7314 = vadd.f32 %v6926, %v7188
        %v7315 = vadd.f32 %v6927, %v7193
        %v7316 = vadd.f32 %v6928, %v7198
        %v7317 = vadd.f32 %v6929, %v7203
        %v7318 = vadd.f32 %v6930, %v7208
        %v7319 = vadd.f32 %v6931, %v7213
        %v7320 = vadd.f32 %v6932, %v7218
        %v7321 = vadd.f32 %v6933, %v7223
        %v7322 = vadd.f32 %v6934, %v7228
        %v7323 = vadd.f32 %v6935, %v7233
        %v7324 = vadd.f32 %v6936, %v7238
        %v7325 = vadd.f32 %v6937, %v7243
        %v7326 = vadd.f32 %v6938, %v7248
        %v7327 = vadd.f32 %v6939, %v7253
        %v7328 = vadd.f32 %v6940, %v7258
        %v7329 = vadd.f32 %v6941, %v7263
        %v7330 = vadd.f32 %v6942, %v7268
        %v7331 = vadd.f32 %v6943, %v7273
        %v7332 = vadd.f32 %v6944, %v7278
        %v7333 = vadd.f32 %v6945, %v7283
        %v7334 = vadd.f32 %v6946, %v7288
        %v7335 = vadd.f32 %v6947, %v7293
        %v7336 = vadd.f32 %v6948, %v7298
        %v7337 = vadd.f32 %v6949, %v7303
        %v7338 = vld [vmem:[%s9] sm:$0x1]
        %v7340 = vlaneseq
        %v7341 = vshrl.u32 %v7340, 7
        %v7342 = vsub.s32 0, %v7341
        %v7343 = vrot.slane %v7338, %v7342
        %v7345 = vadd.f32 %v7306, %v7343
        %v7346 = vadd.f32 %v7307, %v7343
        %v7347 = vadd.f32 %v7308, %v7343
        %v7348 = vadd.f32 %v7309, %v7343
        %v7349 = vadd.f32 %v7310, %v7343
        %v7350 = vadd.f32 %v7311, %v7343
        %v7351 = vadd.f32 %v7312, %v7343
        %v7352 = vadd.f32 %v7313, %v7343
        %v7353 = vadd.f32 %v7314, %v7343
        %v7354 = vadd.f32 %v7315, %v7343
        %v7355 = vadd.f32 %v7316, %v7343
        %v7356 = vadd.f32 %v7317, %v7343
        %v7357 = vadd.f32 %v7318, %v7343
        %v7358 = vadd.f32 %v7319, %v7343
        %v7359 = vadd.f32 %v7320, %v7343
        %v7360 = vadd.f32 %v7321, %v7343
        %v7361 = vadd.f32 %v7322, %v7343
        %v7362 = vadd.f32 %v7323, %v7343
        %v7363 = vadd.f32 %v7324, %v7343
        %v7364 = vadd.f32 %v7325, %v7343
        %v7365 = vadd.f32 %v7326, %v7343
        %v7366 = vadd.f32 %v7327, %v7343
        %v7367 = vadd.f32 %v7328, %v7343
        %v7368 = vadd.f32 %v7329, %v7343
        %v7369 = vadd.f32 %v7330, %v7343
        %v7370 = vadd.f32 %v7331, %v7343
        %v7371 = vadd.f32 %v7332, %v7343
        %v7372 = vadd.f32 %v7333, %v7343
        %v7373 = vadd.f32 %v7334, %v7343
        %v7374 = vadd.f32 %v7335, %v7343
        %v7375 = vadd.f32 %v7336, %v7343
        %v7376 = vadd.f32 %v7337, %v7343
        %v7377 = vmax.f32 %v7345, 0.0
        %v7378 = vmax.f32 %v7346, 0.0
        %v7379 = vmax.f32 %v7347, 0.0
        %v7380 = vmax.f32 %v7348, 0.0
        %v7381 = vmax.f32 %v7349, 0.0
        %v7382 = vmax.f32 %v7350, 0.0
        %v7383 = vmax.f32 %v7351, 0.0
        %v7384 = vmax.f32 %v7352, 0.0
        %v7385 = vmax.f32 %v7353, 0.0
        %v7386 = vmax.f32 %v7354, 0.0
        %v7387 = vmax.f32 %v7355, 0.0
        %v7388 = vmax.f32 %v7356, 0.0
        %v7389 = vmax.f32 %v7357, 0.0
        %v7390 = vmax.f32 %v7358, 0.0
        %v7391 = vmax.f32 %v7359, 0.0
        %v7392 = vmax.f32 %v7360, 0.0
        %v7393 = vmax.f32 %v7361, 0.0
        %v7394 = vmax.f32 %v7362, 0.0
        %v7395 = vmax.f32 %v7363, 0.0
        %v7396 = vmax.f32 %v7364, 0.0
        %v7397 = vmax.f32 %v7365, 0.0
        %v7398 = vmax.f32 %v7366, 0.0
        %v7399 = vmax.f32 %v7367, 0.0
        %v7400 = vmax.f32 %v7368, 0.0
        %v7401 = vmax.f32 %v7369, 0.0
        %v7402 = vmax.f32 %v7370, 0.0
        %v7403 = vmax.f32 %v7371, 0.0
        %v7404 = vmax.f32 %v7372, 0.0
        %v7405 = vmax.f32 %v7373, 0.0
        %v7406 = vmax.f32 %v7374, 0.0
        %v7407 = vmax.f32 %v7375, 0.0
        %v7408 = vmax.f32 %v7376, 0.0
        %7409 = vst.msk [vmem:[%s551] sm:$0xff] %vm3906, %v7377
        %7410 = vst.msk [vmem:[%s551 + $0x8] sm:$0xff] %vm3906, %v7378
        %7411 = vst.msk [vmem:[%s551 + $0x10] sm:$0xff] %vm3906, %v7379
        %7412 = vst.msk [vmem:[%s551 + $0x18] sm:$0xff] %vm3906, %v7380
        %7413 = vst.msk [vmem:[%s551 + $0x20] sm:$0xff] %vm3906, %v7381
        %7414 = vst.msk [vmem:[%s551 + $0x28] sm:$0xff] %vm3906, %v7382
        %7415 = vst.msk [vmem:[%s551 + $0x30] sm:$0xff] %vm3906, %v7383
        %7416 = vst.msk [vmem:[%s551 + $0x38] sm:$0xff] %vm3906, %v7384
        %7417 = vst.msk [vmem:[%s551 + $0x40] sm:$0xff] %vm3906, %v7385
        %7418 = vst.msk [vmem:[%s551 + $0x48] sm:$0xff] %vm3906, %v7386
        %7419 = vst.msk [vmem:[%s551 + $0x50] sm:$0xff] %vm3906, %v7387
        %7420 = vst.msk [vmem:[%s551 + $0x58] sm:$0xff] %vm3906, %v7388
        %7421 = vst.msk [vmem:[%s551 + $0x60] sm:$0xff] %vm3906, %v7389
        %7422 = vst.msk [vmem:[%s551 + $0x68] sm:$0xff] %vm3906, %v7390
        %7423 = vst.msk [vmem:[%s551 + $0x70] sm:$0xff] %vm3906, %v7391
        %7424 = vst.msk [vmem:[%s551 + $0x78] sm:$0xff] %vm3906, %v7392
        %7425 = vst.msk [vmem:[%s551 + $0x80] sm:$0xff] %vm3906, %v7393
        %7426 = vst.msk [vmem:[%s551 + $0x88] sm:$0xff] %vm3906, %v7394
        %7427 = vst.msk [vmem:[%s551 + $0x90] sm:$0xff] %vm3906, %v7395
        %7428 = vst.msk [vmem:[%s551 + $0x98] sm:$0xff] %vm3906, %v7396
        %7429 = vst.msk [vmem:[%s551 + $0xa0] sm:$0xff] %vm3906, %v7397
        %7430 = vst.msk [vmem:[%s551 + $0xa8] sm:$0xff] %vm3906, %v7398
        %7431 = vst.msk [vmem:[%s551 + $0xb0] sm:$0xff] %vm3906, %v7399
        %7432 = vst.msk [vmem:[%s551 + $0xb8] sm:$0xff] %vm3906, %v7400
        %7433 = vst.msk [vmem:[%s551 + $0xc0] sm:$0xff] %vm3906, %v7401
        %7434 = vst.msk [vmem:[%s551 + $0xc8] sm:$0xff] %vm3906, %v7402
        %7435 = vst.msk [vmem:[%s551 + $0xd0] sm:$0xff] %vm3906, %v7403
        %7436 = vst.msk [vmem:[%s551 + $0xd8] sm:$0xff] %vm3906, %v7404
        %7437 = vst.msk [vmem:[%s551 + $0xe0] sm:$0xff] %vm3906, %v7405
        %7438 = vst.msk [vmem:[%s551 + $0xe8] sm:$0xff] %vm3906, %v7406
        %7439 = vst.msk [vmem:[%s551 + $0xf0] sm:$0xff] %vm3906, %v7407
        %7440 = vst.msk [vmem:[%s551 + $0xf8] sm:$0xff] %vm3906, %v7408
      $region72: #{acfm_forward.1} parent=59 // pred_fallthru
        _
      // Predicated region
      $region73: #{acfm_forward.1} parent=59 // pred_check
        %p7441 = pneg %p616
      $region74: #{acfm_forward.1} parent=59 // pred_check_branch
        %7443 = sbr.rel (%p7441) target = $region76
      $region75: #{acfm_forward.1} parent=59 // pred_region
        %s7444 = scalar_lea.vmem [#allocation2], 384
        %v7445 = vld [vmem:[%s7444] sm:$0xff]
        %v7446 = vld [vmem:[%s7444 + $0x8] sm:$0xff]
        %v7447 = vld [vmem:[%s7444 + $0x10] sm:$0x3]
        %vm7448 = vcmask 130048
        %7449 = vst.msk [vmem:[#allocation2] sm:$0xff] %vm7448, %v7445
        %7450 = vst.msk [vmem:[#allocation2 + $0x8] sm:$0xff] %vm7448, %v7446
        %vm7451 = vcmask 123904
        %7452 = vst.msk [vmem:[#allocation2 + $0x10] sm:$0x3] %vm7451, %v7447
        %v7453 = vld [vmem:[#allocation3] sm:$0xff]
        %v7454 = vld [vmem:[#allocation3 + $0x8] sm:$0xff]
        %v7455 = vld [vmem:[#allocation3 + $0x10] sm:$0xff]
        %v7456 = vld [vmem:[#allocation3 + $0x18] sm:$0xff]
        %v7457 = vld [vmem:[#allocation3 + $0x20] sm:$0xff]
        %v7458 = vld [vmem:[#allocation3 + $0x28] sm:$0xff]
        %v7459 = vld [vmem:[#allocation3 + $0x30] sm:$0xff]
        %v7460 = vld [vmem:[#allocation3 + $0x38] sm:$0xff]
        %v7461 = vld [vmem:[#allocation3 + $0x40] sm:$0xff]
        %v7462 = vld [vmem:[#allocation3 + $0x48] sm:$0xff]
        %v7463 = vld [vmem:[#allocation3 + $0x50] sm:$0xff]
        %v7464 = vld [vmem:[#allocation3 + $0x58] sm:$0xff]
        %v7465 = vld [vmem:[#allocation3 + $0x60] sm:$0xff]
        %v7466 = vld [vmem:[#allocation3 + $0x68] sm:$0xff]
        %v7467 = vld [vmem:[#allocation3 + $0x70] sm:$0xff]
        %v7468 = vld [vmem:[#allocation3 + $0x78] sm:$0xff]
        %v7469 = vld [vmem:[#allocation3 + $0x80] sm:$0xff]
        %v7470 = vld [vmem:[#allocation3 + $0x88] sm:$0xff]
        %v7471 = vld [vmem:[#allocation3 + $0x90] sm:$0xff]
        %v7472 = vld [vmem:[#allocation3 + $0x98] sm:$0xff]
        %v7473 = vld [vmem:[#allocation3 + $0xa0] sm:$0xff]
        %v7474 = vld [vmem:[#allocation3 + $0xa8] sm:$0xff]
        %v7475 = vld [vmem:[#allocation3 + $0xb0] sm:$0xff]
        %v7476 = vld [vmem:[#allocation3 + $0xb8] sm:$0xff]
        %v7477 = vld [vmem:[#allocation3 + $0xc0] sm:$0xff]
        %v7478 = vld [vmem:[#allocation3 + $0xc8] sm:$0xff]
        %v7479 = vld [vmem:[#allocation3 + $0xd0] sm:$0xff]
        %v7480 = vld [vmem:[#allocation3 + $0xd8] sm:$0xff]
        %v7481 = vld [vmem:[#allocation3 + $0xe0] sm:$0xff]
        %v7482 = vld [vmem:[#allocation3 + $0xe8] sm:$0xff]
        %v7483 = vld [vmem:[#allocation3 + $0xf0] sm:$0xff]
        %v7484 = vld [vmem:[#allocation3 + $0xf8] sm:$0xff]
        %s7485 = scalar_lea.vmem [#allocation2], 24
        %7486 = vst.msk [vmem:[%s7485 + $0x1] sm:$0xff] %vm7448, %v7453
        %7487 = vst.msk [vmem:[%s7485 + $0x9] sm:$0xff] %vm7448, %v7454
        %7488 = vst.msk [vmem:[%s7485 + $0x19] sm:$0xff] %vm7448, %v7455
        %7489 = vst.msk [vmem:[%s7485 + $0x21] sm:$0xff] %vm7448, %v7456
        %7490 = vst.msk [vmem:[%s7485 + $0x31] sm:$0xff] %vm7448, %v7457
        %7491 = vst.msk [vmem:[%s7485 + $0x39] sm:$0xff] %vm7448, %v7458
        %7492 = vst.msk [vmem:[%s7485 + $0x49] sm:$0xff] %vm7448, %v7459
        %7493 = vst.msk [vmem:[%s7485 + $0x51] sm:$0xff] %vm7448, %v7460
        %7494 = vst.msk [vmem:[%s7485 + $0x61] sm:$0xff] %vm7448, %v7461
        %7495 = vst.msk [vmem:[%s7485 + $0x69] sm:$0xff] %vm7448, %v7462
        %7496 = vst.msk [vmem:[%s7485 + $0x79] sm:$0xff] %vm7448, %v7463
        %7497 = vst.msk [vmem:[%s7485 + $0x81] sm:$0xff] %vm7448, %v7464
        %7498 = vst.msk [vmem:[%s7485 + $0x91] sm:$0xff] %vm7448, %v7465
        %7499 = vst.msk [vmem:[%s7485 + $0x99] sm:$0xff] %vm7448, %v7466
        %7500 = vst.msk [vmem:[%s7485 + $0xa9] sm:$0xff] %vm7448, %v7467
        %7501 = vst.msk [vmem:[%s7485 + $0xb1] sm:$0xff] %vm7448, %v7468
        %7502 = vst.msk [vmem:[%s7485 + $0xc1] sm:$0xff] %vm7448, %v7469
        %7503 = vst.msk [vmem:[%s7485 + $0xc9] sm:$0xff] %vm7448, %v7470
        %7504 = vst.msk [vmem:[%s7485 + $0xd9] sm:$0xff] %vm7448, %v7471
        %7505 = vst.msk [vmem:[%s7485 + $0xe1] sm:$0xff] %vm7448, %v7472
        %7506 = vst.msk [vmem:[%s7485 + $0xf1] sm:$0xff] %vm7448, %v7473
        %7507 = vst.msk [vmem:[%s7485 + $0xf9] sm:$0xff] %vm7448, %v7474
        %7508 = vst.msk [vmem:[%s7485 + $0x109] sm:$0xff] %vm7448, %v7475
        %7509 = vst.msk [vmem:[%s7485 + $0x111] sm:$0xff] %vm7448, %v7476
        %7510 = vst.msk [vmem:[%s7485 + $0x121] sm:$0xff] %vm7448, %v7477
        %7511 = vst.msk [vmem:[%s7485 + $0x129] sm:$0xff] %vm7448, %v7478
        %7512 = vst.msk [vmem:[%s7485 + $0x139] sm:$0xff] %vm7448, %v7479
        %7513 = vst.msk [vmem:[%s7485 + $0x141] sm:$0xff] %vm7448, %v7480
        %7514 = vst.msk [vmem:[%s7485 + $0x151] sm:$0xff] %vm7448, %v7481
        %7515 = vst.msk [vmem:[%s7485 + $0x159] sm:$0xff] %vm7448, %v7482
        %7516 = vst.msk [vmem:[%s7485 + $0x169] sm:$0xff] %vm7448, %v7483
        %7517 = vst.msk [vmem:[%s7485 + $0x171] sm:$0xff] %vm7448, %v7484
      $region76: #{acfm_forward.1} parent=59 // pred_fallthru
        _
      %s7518 = ssub.s32 %s26, 1
      %p7519 = scmp.gt.s32.totalorder %s7518, 0
      %s7520 = scalar_select %p7519, %s7518, 0
      %s7521 = smul.u32 16, %s7520
      %p7522 = scmp.lt.s32.totalorder %s25, 1
      %s7523 = scalar_select %p7522, %s25, 1
      %p7524 = scmp.lt.s32.totalorder %s7521, 15
      %s7525 = scalar_select %p7524, %s7521, 15
      %s7526 = smul.addr %s7525, 2
      %s7527 = smul.addr %s7523, 32
      %s7528 = sadd.s32 %s7526, %s7527
      %s7529 = smul.addr %s7528, 8
      %s7530 = scalar_lea.vmem %s10, %s7529
      // Predicated region
      $region77: #{acfm_forward.1} parent=59 // pred_check
        %p7531 = pneg %p307
      $region78: #{acfm_forward.1} parent=59 // pred_check_branch
        %7533 = sbr.rel (%p7531) target = $region80
      $region79: #{acfm_forward.1} parent=59 // pred_region
        %s7534 = ssub.s32 %s26, 1
        %p7535 = scmp.gt.s32.totalorder %s7534, 0
        %s7536 = scalar_select %p7535, %s7534, 0
        %s7537 = smul.u32 16, %s7536
      $region80: #{acfm_forward.1} parent=59 // pred_fallthru
        _
    $region60: #{acfm_forward.1} parent=5 // pred_fallthru
      _
    %p7538 = scmp.le.s32.totalorder 2, %s16
    // Predicated region
    $region81: #{acfm_forward.1} parent=5 // pred_check
      %p7539 = pneg %p7538
    $region82: #{acfm_forward.1} parent=5 // pred_check_branch
      %7541 = sbr.rel (%p7539) target = $region84
    $region83: #{acfm_forward.1} parent=5 // pred_region
      %s7542 = ssub.s32 %s16, 2
      // Predicated region
      $region85: #{acfm_forward.1} parent=83 // pred_check
        %p7543 = pneg %p313
      $region86: #{acfm_forward.1} parent=83 // pred_check_branch
        %7545 = sbr.rel (%p7543) target = $region88
      $region87: #{acfm_forward.1} parent=83 // pred_region
        %s7546 = ssub.s32 %s28, 1
        %p7547 = scmp.gt.s32.totalorder %s7546, 0
        %s7548 = scalar_select %p7547, %s7546, 0
        %s7549 = smul.u32 16, %s7548
        %p7550 = scmp.lt.s32.totalorder %s27, 1
        %s7551 = scalar_select %p7550, %s27, 1
        %p7552 = scmp.lt.s32.totalorder %s7549, 15
        %s7553 = scalar_select %p7552, %s7549, 15
        %s7554 = smul.addr %s7553, 2
        %s7555 = smul.addr %s7551, 32
        %s7556 = sadd.s32 %s7554, %s7555
        %s7557 = smul.addr %s7556, 8
        %s7558 = scalar_lea.vmem %s10, %s7557
      $region88: #{acfm_forward.1} parent=83 // pred_fallthru
        _
    $region84: #{acfm_forward.1} parent=5 // pred_fallthru
      _
  $region6: #{acfm_forward.1} parent=0 // loop_footer
    %s20 = sadd.s32 1, %s16
  $region7: #{acfm_forward.1} parent=0 // loop_footer_branch
    %15 = sbr.rel target = $region3
  $region8: #{acfm_forward.1} parent=0 // loop_exit
    _

</llo_original>
